<compile_context>
chip_gen: v5e
topology: v5e:2x2
jax: 0.10.0
libtpu: 0.0.40
codegen_flags: <defaults>
</compile_context>

<pallas_src>
import functools
import math

import jax
import jax.numpy as jnp
import numpy as np
from jax.experimental import pallas as pl
from jax.experimental.pallas import tpu as pltpu

_GROUP = 16        # lane-group width for head channels (>= num_anchors)
_OUT_LANES = 128   # lane-dense head-output width


# ------------------------------ Pallas kernel --------------------------------

def _fused_rpn_kernel(x_ref, mask_ref, w1_ref, b1_ref, w2_ref, b2_ref,
                      wh_ref, bh_ref, anc_ref, o_ref,
                      lhs1_ref, feat_ref, lhs2_ref, *,
                      m_rows, wp, cin_pad, feat_ch, img_h, img_w):
    """Backbone conv -> RPN conv -> heads -> box decode, one image per grid step.

    x_ref    : ((H+3)*(W+2), cin_pad) f32   zero-padded image, rows flattened
    mask_ref : (m_rows, 1) f32              1 on real columns, 0 on the 2 garbage
                                            pseudo-columns per row
    w1_ref   : (9*cin_pad, F) bf16          backbone 3x3 taps, K-concatenated
    w2_ref   : (9*F, F) bf16                RPN 3x3 taps, K-concatenated
    wh_ref   : (F, 128) bf16                1x1 heads, 16-lane groups
                                            [logit | dx | dy | dw | dh | 0...]
    anc_ref  : (m_rows, 64) f32             anchors, 16-lane groups [x1|y1|x2|y2]
    o_ref    : (m_rows, 128) f32            [logit | x1 | y1 | x2 | y2 | 0...]
    """
    g = _GROUP

    # ---- stage 1: backbone 3x3 conv + ReLU (single wide-K MXU dot) ----------
    for t in range(9):
        ky, kx = divmod(t, 3)
        lhs1_ref[:, t * cin_pad:(t + 1) * cin_pad] = (
            x_ref[pl.ds(ky * wp + kx, m_rows), :].astype(jnp.bfloat16))
    feat1 = jnp.dot(lhs1_ref[...], w1_ref[...],
                    preferred_element_type=jnp.float32)
    feat1 = jnp.maximum(feat1 + b1_ref[...], 0.0) * mask_ref[...]

    # Re-insert the SAME-pad border of the feature map (VMEM only, no HBM):
    # valid data lives at flattened rows [wp+1, wp+1+m_rows); the top pad row,
    # bottom pad + slack rows and (via the column mask above) the left/right
    # pad columns are exactly zero.
    feat_ref[pl.ds(0, wp + 1), :] = jnp.zeros((wp + 1, feat_ch), jnp.float32)
    feat_ref[pl.ds(wp + 1 + m_rows, 2 * wp - 1), :] = jnp.zeros(
        (2 * wp - 1, feat_ch), jnp.float32)
    feat_ref[pl.ds(wp + 1, m_rows), :] = feat1

    # ---- stage 2: RPN 3x3 conv + ReLU (single wide-K MXU dot) ---------------
    for t in range(9):
        ky, kx = divmod(t, 3)
        lhs2_ref[:, t * feat_ch:(t + 1) * feat_ch] = (
            feat_ref[pl.ds(ky * wp + kx, m_rows), :].astype(jnp.bfloat16))
    rpn = jnp.dot(lhs2_ref[...], w2_ref[...],
                  preferred_element_type=jnp.float32)
    rpn = jnp.maximum(rpn + b2_ref[...], 0.0)

    # ---- stage 3: 1x1 heads (objectness + deltas), 128 output lanes ---------
    head = jnp.dot(rpn.astype(jnp.bfloat16), wh_ref[...],
                   preferred_element_type=jnp.float32) + bh_ref[...]

    # ---- stage 4: Box2BoxTransform.apply_deltas (weights (1,1,1,1)) + clip --
    logits = head[:, 0 * g:1 * g]
    d_x = head[:, 1 * g:2 * g]
    d_y = head[:, 2 * g:3 * g]
    d_w = head[:, 3 * g:4 * g]
    d_h = head[:, 4 * g:5 * g]
    ax1 = anc_ref[:, 0 * g:1 * g]
    ay1 = anc_ref[:, 1 * g:2 * g]
    ax2 = anc_ref[:, 2 * g:3 * g]
    ay2 = anc_ref[:, 3 * g:4 * g]

    widths = ax2 - ax1
    heights = ay2 - ay1
    ctr_x = ax1 + 0.5 * widths
    ctr_y = ay1 + 0.5 * heights

    scale_clamp = math.log(1000.0 / 16)
    d_w = jnp.minimum(d_w, scale_clamp)
    d_h = jnp.minimum(d_h, scale_clamp)

    pred_ctr_x = d_x * widths + ctr_x
    pred_ctr_y = d_y * heights + ctr_y
    half_w = 0.5 * jnp.exp(d_w) * widths
    half_h = 0.5 * jnp.exp(d_h) * heights

    bx1 = jnp.clip(pred_ctr_x - half_w, 0.0, img_w)
    by1 = jnp.clip(pred_ctr_y - half_h, 0.0, img_h)
    bx2 = jnp.clip(pred_ctr_x + half_w, 0.0, img_w)
    by2 = jnp.clip(pred_ctr_y + half_h, 0.0, img_h)

    # one grouped, lane-dense 128-wide store (head[:, 5g:] is exactly zero).
    o_ref[...] = jnp.concatenate(
        [logits, bx1, by1, bx2, by2, head[:, 5 * g:]], axis=1)


# ------------------------------ wrapper helpers -------------------------------

def _pad_flatten(x_nhwc):
    # pad 1 top / 1 left / 1 right and 2 bottom (1 real pad row + 1 slack row so
    # every 3x3 tap slice of length H*(W+2) stays in bounds), then flatten rows.
    n, h, w, c = x_nhwc.shape
    wp = w + 2
    xp = jnp.pad(x_nhwc, ((0, 0), (1, 2), (1, 1), (0, 0)))
    return xp.reshape(n, (h + 3) * wp, c), wp


def _widen_conv_weights(w_oihw, cin_pad):
    # OIHW 3x3 weights -> (9*cin_pad, Cout) bf16 slab matching the tap-concat LHS.
    cout, cin, kh, kw = w_oihw.shape
    w = jnp.transpose(w_oihw, (2, 3, 1, 0))               # (kh, kw, cin, cout)
    if cin_pad != cin:
        w = jnp.pad(w, ((0, 0), (0, 0), (0, cin_pad - cin), (0, 0)))
    return w.reshape(kh * kw * cin_pad, cout).astype(jnp.bfloat16)


def _build_head_weights(params, feat_ch, num_anchors):
    # 1x1 objectness + delta heads -> (F, 128) bf16 / (1, 128) f32 bias laid out
    # in 16-lane groups [logit | dx | dy | dw | dh | zeros]; coordinate-major so
    # the in-kernel decode is pure elementwise math on lane groups.
    a = num_anchors
    wh = jnp.zeros((feat_ch, _OUT_LANES), jnp.float32)
    bh = jnp.zeros((_OUT_LANES,), jnp.float32)
    wh = wh.at[:, 0:a].set(params["rpn_obj_w"].reshape(a, feat_ch).T)
    bh = bh.at[0:a].set(params["rpn_obj_b"])
    dw = params["rpn_delta_w"].reshape(a, 4, feat_ch)   # detectron2 order a*4+coord
    db = params["rpn_delta_b"].reshape(a, 4)
    for coord in range(4):
        c0 = (coord + 1) * _GROUP
        wh = wh.at[:, c0:c0 + a].set(dw[:, coord, :].T)
        bh = bh.at[c0:c0 + a].set(db[:, coord])
    return wh.astype(jnp.bfloat16), bh.reshape(1, _OUT_LANES)


def _anchor_planes(h, wp, stride, sizes):
    # DefaultAnchorGenerator (aspect_ratio 1, offset 0) in the kernel's
    # (m_rows, 64) 16-lane-group layout [x1|y1|x2|y2]; garbage pseudo-columns
    # get harmless out-of-image anchors (sliced away downstream).
    a = len(sizes)
    cx = np.tile(np.arange(wp, dtype=np.float32) * stride, h)
    cy = np.repeat(np.arange(h, dtype=np.float32) * stride, wp)
    half = np.asarray(sizes, np.float32) / 2.0
    planes = np.zeros((h * wp, 4 * _GROUP), np.float32)
    planes[:, 0 * _GROUP:0 * _GROUP + a] = cx[:, None] - half[None, :]
    planes[:, 1 * _GROUP:1 * _GROUP + a] = cy[:, None] - half[None, :]
    planes[:, 2 * _GROUP:2 * _GROUP + a] = cx[:, None] + half[None, :]
    planes[:, 3 * _GROUP:3 * _GROUP + a] = cy[:, None] + half[None, :]
    return jnp.asarray(planes)


def _column_mask(h, w, wp):
    col = np.arange(h * wp, dtype=np.int64) % wp
    return jnp.asarray((col < w).astype(np.float32).reshape(h * wp, 1))


# TODO(synk): for images that do not fit VMEM, add a row-tile grid axis with a
#             2-row halo per conv stage (marked "parallel" so both v7x TCs get
#             work at batch 1-2) and size the tile per generation (~48 MiB
#             usable on v7x, ~100 MiB on v5e/v6e); at these sizes one image per
#             grid step fits comfortably.
def fused_backbone_rpn_heads(x_nhwc, params, pixel_std, img_h, img_w,
                             num_anchors, anchor_sizes):
    n, h, w, cin = x_nhwc.shape
    feat_ch = params["rpn_conv_w"].shape[0]
    assert num_anchors <= _GROUP and 5 * _GROUP <= _OUT_LANES

    # pixel-std normalization folded into the backbone conv weights:
    # conv(W, (x - mean)/std) == conv(W * 1/std, x - mean), incl. the zero pad.
    w_bb = params["backbone_w"] * (1.0 / pixel_std)[None, :, None, None]

    x_flat, wp = _pad_flatten(x_nhwc)                     # (n, (h+3)*wp, cin)
    l_rows = x_flat.shape[1]
    m_rows = h * wp
    cin_pad = -(-cin // 16) * 16                          # bf16 sublane packing
    if cin_pad != cin:
        x_flat = jnp.pad(x_flat, ((0, 0), (0, 0), (0, cin_pad - cin)))

    w1 = _widen_conv_weights(w_bb, cin_pad)                      # (9*cin_pad, F)
    w2 = _widen_conv_weights(params["rpn_conv_w"], feat_ch)      # (9*F, F)
    wh, bh = _build_head_weights(params, feat_ch, num_anchors)   # (F,128),(1,128)
    b1 = params["backbone_b"].reshape(1, feat_ch)
    b2 = params["rpn_conv_b"].reshape(1, feat_ch)
    mask = _column_mask(h, w, wp)                                # (m_rows, 1)
    anchors = _anchor_planes(h, wp, 1, anchor_sizes)             # (m_rows, 64)

    out = pl.pallas_call(
        functools.partial(_fused_rpn_kernel, m_rows=m_rows, wp=wp,
                          cin_pad=cin_pad, feat_ch=feat_ch,
                          img_h=float(img_h), img_w=float(img_w)),
        grid=(n,),
        in_specs=[
            pl.BlockSpec((None, l_rows, cin_pad), lambda i: (i, 0, 0)),
            pl.BlockSpec((m_rows, 1), lambda i: (0, 0)),
            pl.BlockSpec((9 * cin_pad, feat_ch), lambda i: (0, 0)),
            pl.BlockSpec((1, feat_ch), lambda i: (0, 0)),
            pl.BlockSpec((9 * feat_ch, feat_ch), lambda i: (0, 0)),
            pl.BlockSpec((1, feat_ch), lambda i: (0, 0)),
            pl.BlockSpec((feat_ch, _OUT_LANES), lambda i: (0, 0)),
            pl.BlockSpec((1, _OUT_LANES), lambda i: (0, 0)),
            pl.BlockSpec((m_rows, 4 * _GROUP), lambda i: (0, 0)),
        ],
        out_specs=pl.BlockSpec((None, m_rows, _OUT_LANES), lambda i: (i, 0, 0)),
        out_shape=jax.ShapeDtypeStruct((n, m_rows, _OUT_LANES), jnp.float32),
        scratch_shapes=[
            pltpu.VMEM((m_rows, 9 * cin_pad), jnp.bfloat16),   # stage-1 wide-K LHS
            pltpu.VMEM((l_rows, feat_ch), jnp.float32),        # padded feature map
            pltpu.VMEM((m_rows, 9 * feat_ch), jnp.bfloat16),   # stage-2 wide-K LHS
        ],
        compiler_params=pltpu.CompilerParams(
            dimension_semantics=("parallel",),
            vmem_limit_bytes=48 * 1024 * 1024),
    )(x_flat.astype(jnp.float32), mask, w1, b1, w2, b2, wh, bh, anchors)

    # drop the 2 garbage pseudo-columns per row.
    # TODO(synk): the garbage-column writeback (2/(W+2) of output bytes) could be
    #             avoided with a strided / row-tiled store; low priority.
    return out.reshape(n, h, wp, _OUT_LANES)[:, :, :w, :]


# ------------------------------- forward (glue) -------------------------------

def init_params(key, in_ch=3, feat_ch=32, num_anchors=3):
    # deterministic synthetic init (std=0.01 normal, zero bias) - matches RPN init.
    keys = jax.random.split(key, 4)
    nrm = lambda k, shape: 0.01 * jax.random.normal(k, shape, jnp.float32)
    return {
        "backbone_w": nrm(keys[0], (feat_ch, in_ch, 3, 3)),
        "backbone_b": jnp.zeros((feat_ch,), jnp.float32),
        "rpn_conv_w": nrm(keys[1], (feat_ch, feat_ch, 3, 3)),
        "rpn_conv_b": jnp.zeros((feat_ch,), jnp.float32),
        "rpn_obj_w": nrm(keys[2], (num_anchors, feat_ch, 1, 1)),
        "rpn_obj_b": jnp.zeros((num_anchors,), jnp.float32),
        "rpn_delta_w": nrm(keys[3], (num_anchors * 4, feat_ch, 1, 1)),
        "rpn_delta_b": jnp.zeros((num_anchors * 4,), jnp.float32),
    }


def proposal_network_forward(params, images_nchw, pixel_mean, pixel_std,
                             pre_nms_topk=50, anchor_sizes=(8.0, 16.0, 32.0)):
    n, _, img_h, img_w = images_nchw.shape
    num_anchors = params["rpn_obj_w"].shape[0]

    # 1. per-channel normalization: mean subtraction fuses into the XLA pad /
    #    layout glue, the 1/std scale is folded into the backbone conv weights.
    # TODO(synk): ImageList.from_tensors padding to size_divisibility skipped
    #             (all images share the same shape in this synthetic setup).
    x_nhwc = (jnp.transpose(images_nchw, (0, 2, 3, 1))
              - pixel_mean[None, None, None, :])

    # 2-4. backbone conv + RPN conv + 1x1 heads + box decode: ONE fused kernel.
    out = fused_backbone_rpn_heads(x_nhwc, params, pixel_std, img_h, img_w,
                                   num_anchors, anchor_sizes)
    # out: (N, H, W, 128), lanes = 16-wide groups [logits | x1 | y1 | x2 | y2].
    a = num_anchors
    logits = out[..., 0:a].reshape(n, img_h * img_w * a)
    boxes = jnp.stack(
        [out[..., 1 * _GROUP:1 * _GROUP + a],
         out[..., 2 * _GROUP:2 * _GROUP + a],
         out[..., 3 * _GROUP:3 * _GROUP + a],
         out[..., 4 * _GROUP:4 * _GROUP + a]], axis=-1)   # (N, H, W, A, 4)
    boxes = boxes.reshape(n, img_h * img_w * a, 4)

    # 5. batched proposal selection (score-sorted, truncated)
    # TODO(synk): the NMS inside find_top_rpn_proposals has no clean Pallas
    #             equivalent; proposals are only score-sorted / truncated here.
    # TODO(synk): detector_postprocess rescaling is identity because output
    #             height/width equal the (unpadded) input image size.
    scores, idx = jax.lax.top_k(logits, pre_nms_topk)          # (N, K)
    boxes_sel = jnp.take_along_axis(boxes, idx[..., None], axis=1)  # (N, K, 4)

    return [{"proposals": {"proposal_boxes": boxes_sel[i],
                           "objectness_logits": scores[i]}} for i in range(n)]


if __name__ == "__main__":
    key = jax.random.PRNGKey(0)
    k_img, k_par = jax.random.split(key)

    # batch=2, channels=3 (RGB), spatial 16x16
    images = jax.random.uniform(k_img, (2, 3, 16, 16), jnp.float32) * 255.0
    params = init_params(k_par, in_ch=3, feat_ch=32, num_anchors=3)

    pixel_mean = jnp.array([103.53, 116.28, 123.675], jnp.float32)
    pixel_std = jnp.array([57.375, 57.12, 58.395], jnp.float32)

    forward = jax.jit(functools.partial(proposal_network_forward,
                                        pre_nms_topk=50))
    results = forward(params, images, pixel_mean, pixel_std)
    for r in results:
        jax.block_until_ready(r["proposals"]["proposal_boxes"])
        jax.block_until_ready(r["proposals"]["objectness_logits"])
    print("KERNEL_OK")
</pallas_src>

<mosaic_0001>
module attributes {stable_mosaic.version = 11 : i64} {
  func.func @_fused_rpn_kernel(%arg0: i32, %arg1: memref<1x342x16xf32, #tpu.memory_space<vmem>>, %arg2: memref<288x1xf32, #tpu.memory_space<vmem>>, %arg3: memref<144x32xbf16, #tpu.memory_space<vmem>>, %arg4: memref<1x32xf32, #tpu.memory_space<vmem>>, %arg5: memref<288x32xbf16, #tpu.memory_space<vmem>>, %arg6: memref<1x32xf32, #tpu.memory_space<vmem>>, %arg7: memref<32x128xbf16, #tpu.memory_space<vmem>>, %arg8: memref<1x128xf32, #tpu.memory_space<vmem>>, %arg9: memref<288x64xf32, #tpu.memory_space<vmem>>, %arg10: memref<1x288x128xf32, #tpu.memory_space<vmem>>, %arg11: memref<288x144xbf16, #tpu.memory_space<vmem>>, %arg12: memref<342x32xf32, #tpu.memory_space<vmem>>, %arg13: memref<288x288xbf16, #tpu.memory_space<vmem>>) attributes {dimension_semantics = [#tpu.dimension_semantics<parallel>], iteration_bounds = array<i64: 2>, scalar_prefetch = 0 : i64, scratch_operands = 3 : i64, tpu.core_type = #tpu.core_type<tc>, window_params = [{transform_indices = @transform_0, window_bounds = array<i64: 1, 342, 16>}, {pipeline_mode = #tpu.pipeline_mode<synchronous>, transform_indices = @transform_1, window_bounds = array<i64: 288, 1>}, {pipeline_mode = #tpu.pipeline_mode<synchronous>, transform_indices = @transform_2, window_bounds = array<i64: 144, 32>}, {pipeline_mode = #tpu.pipeline_mode<synchronous>, transform_indices = @transform_3, window_bounds = array<i64: 1, 32>}, {pipeline_mode = #tpu.pipeline_mode<synchronous>, transform_indices = @transform_4, window_bounds = array<i64: 288, 32>}, {pipeline_mode = #tpu.pipeline_mode<synchronous>, transform_indices = @transform_5, window_bounds = array<i64: 1, 32>}, {pipeline_mode = #tpu.pipeline_mode<synchronous>, transform_indices = @transform_6, window_bounds = array<i64: 32, 128>}, {pipeline_mode = #tpu.pipeline_mode<synchronous>, transform_indices = @transform_7, window_bounds = array<i64: 1, 128>}, {pipeline_mode = #tpu.pipeline_mode<synchronous>, transform_indices = @transform_8, window_bounds = array<i64: 288, 64>}, {transform_indices = @transform_9, window_bounds = array<i64: 1, 288, 128>}]} {
    %c0 = arith.constant 0 : index
    %c0_0 = arith.constant 0 : index
    %c0_1 = arith.constant 0 : index
    %0 = vector.load %arg1[%c0, %c0_0, %c0_1] : memref<1x342x16xf32, #tpu.memory_space<vmem>>, vector<1x288x16xf32>
    %1 = vector.shape_cast %0 : vector<1x288x16xf32> to vector<288x16xf32>
    %2 = arith.truncf %1 : vector<288x16xf32> to vector<288x16xbf16>
    %c0_2 = arith.constant 0 : index
    %c0_3 = arith.constant 0 : index
    %3 = vector.load %arg11[%c0_2, %c0_3] : memref<288x144xbf16, #tpu.memory_space<vmem>>, vector<288x16xbf16>
    tpu.vector_store %arg11[%c0_2, %c0_3], %2 {strides = array<i32>} : memref<288x144xbf16, #tpu.memory_space<vmem>>, vector<288x16xbf16>,
    %c0_4 = arith.constant 0 : index
    %c1 = arith.constant 1 : index
    %c0_5 = arith.constant 0 : index
    %4 = vector.load %arg1[%c0_4, %c1, %c0_5] : memref<1x342x16xf32, #tpu.memory_space<vmem>>, vector<1x288x16xf32>
    %5 = vector.shape_cast %4 : vector<1x288x16xf32> to vector<288x16xf32>
    %6 = arith.truncf %5 : vector<288x16xf32> to vector<288x16xbf16>
    %c0_6 = arith.constant 0 : index
    %c16 = arith.constant 16 : index
    %7 = vector.load %arg11[%c0_6, %c16] : memref<288x144xbf16, #tpu.memory_space<vmem>>, vector<288x16xbf16>
    tpu.vector_store %arg11[%c0_6, %c16], %6 {strides = array<i32>} : memref<288x144xbf16, #tpu.memory_space<vmem>>, vector<288x16xbf16>,
    %c0_7 = arith.constant 0 : index
    %c2 = arith.constant 2 : index
    %c0_8 = arith.constant 0 : index
    %8 = vector.load %arg1[%c0_7, %c2, %c0_8] : memref<1x342x16xf32, #tpu.memory_space<vmem>>, vector<1x288x16xf32>
    %9 = vector.shape_cast %8 : vector<1x288x16xf32> to vector<288x16xf32>
    %10 = arith.truncf %9 : vector<288x16xf32> to vector<288x16xbf16>
    %c0_9 = arith.constant 0 : index
    %c32 = arith.constant 32 : index
    %11 = vector.load %arg11[%c0_9, %c32] : memref<288x144xbf16, #tpu.memory_space<vmem>>, vector<288x16xbf16>
    tpu.vector_store %arg11[%c0_9, %c32], %10 {strides = array<i32>} : memref<288x144xbf16, #tpu.memory_space<vmem>>, vector<288x16xbf16>,
    %c0_10 = arith.constant 0 : index
    %c18 = arith.constant 18 : index
    %c0_11 = arith.constant 0 : index
    %12 = vector.load %arg1[%c0_10, %c18, %c0_11] : memref<1x342x16xf32, #tpu.memory_space<vmem>>, vector<1x288x16xf32>
    %13 = vector.shape_cast %12 : vector<1x288x16xf32> to vector<288x16xf32>
    %14 = arith.truncf %13 : vector<288x16xf32> to vector<288x16xbf16>
    %c0_12 = arith.constant 0 : index
    %c48 = arith.constant 48 : index
    %15 = vector.load %arg11[%c0_12, %c48] : memref<288x144xbf16, #tpu.memory_space<vmem>>, vector<288x16xbf16>
    tpu.vector_store %arg11[%c0_12, %c48], %14 {strides = array<i32>} : memref<288x144xbf16, #tpu.memory_space<vmem>>, vector<288x16xbf16>,
    %c0_13 = arith.constant 0 : index
    %c19 = arith.constant 19 : index
    %c0_14 = arith.constant 0 : index
    %16 = vector.load %arg1[%c0_13, %c19, %c0_14] : memref<1x342x16xf32, #tpu.memory_space<vmem>>, vector<1x288x16xf32>
    %17 = vector.shape_cast %16 : vector<1x288x16xf32> to vector<288x16xf32>
    %18 = arith.truncf %17 : vector<288x16xf32> to vector<288x16xbf16>
    %c0_15 = arith.constant 0 : index
    %c64 = arith.constant 64 : index
    %19 = vector.load %arg11[%c0_15, %c64] : memref<288x144xbf16, #tpu.memory_space<vmem>>, vector<288x16xbf16>
    tpu.vector_store %arg11[%c0_15, %c64], %18 {strides = array<i32>} : memref<288x144xbf16, #tpu.memory_space<vmem>>, vector<288x16xbf16>,
    %c0_16 = arith.constant 0 : index
    %c20 = arith.constant 20 : index
    %c0_17 = arith.constant 0 : index
    %20 = vector.load %arg1[%c0_16, %c20, %c0_17] : memref<1x342x16xf32, #tpu.memory_space<vmem>>, vector<1x288x16xf32>
    %21 = vector.shape_cast %20 : vector<1x288x16xf32> to vector<288x16xf32>
    %22 = arith.truncf %21 : vector<288x16xf32> to vector<288x16xbf16>
    %c0_18 = arith.constant 0 : index
    %c80 = arith.constant 80 : index
    %23 = vector.load %arg11[%c0_18, %c80] : memref<288x144xbf16, #tpu.memory_space<vmem>>, vector<288x16xbf16>
    tpu.vector_store %arg11[%c0_18, %c80], %22 {strides = array<i32>} : memref<288x144xbf16, #tpu.memory_space<vmem>>, vector<288x16xbf16>,
    %c0_19 = arith.constant 0 : index
    %c36 = arith.constant 36 : index
    %c0_20 = arith.constant 0 : index
    %24 = vector.load %arg1[%c0_19, %c36, %c0_20] : memref<1x342x16xf32, #tpu.memory_space<vmem>>, vector<1x288x16xf32>
    %25 = vector.shape_cast %24 : vector<1x288x16xf32> to vector<288x16xf32>
    %26 = arith.truncf %25 : vector<288x16xf32> to vector<288x16xbf16>
    %c0_21 = arith.constant 0 : index
    %c96 = arith.constant 96 : index
    %27 = vector.load %arg11[%c0_21, %c96] : memref<288x144xbf16, #tpu.memory_space<vmem>>, vector<288x16xbf16>
    tpu.vector_store %arg11[%c0_21, %c96], %26 {strides = array<i32>} : memref<288x144xbf16, #tpu.memory_space<vmem>>, vector<288x16xbf16>,
    %c0_22 = arith.constant 0 : index
    %c37 = arith.constant 37 : index
    %c0_23 = arith.constant 0 : index
    %28 = vector.load %arg1[%c0_22, %c37, %c0_23] : memref<1x342x16xf32, #tpu.memory_space<vmem>>, vector<1x288x16xf32>
    %29 = vector.shape_cast %28 : vector<1x288x16xf32> to vector<288x16xf32>
    %30 = arith.truncf %29 : vector<288x16xf32> to vector<288x16xbf16>
    %c0_24 = arith.constant 0 : index
    %c112 = arith.constant 112 : index
    %31 = vector.load %arg11[%c0_24, %c112] : memref<288x144xbf16, #tpu.memory_space<vmem>>, vector<288x16xbf16>
    tpu.vector_store %arg11[%c0_24, %c112], %30 {strides = array<i32>} : memref<288x144xbf16, #tpu.memory_space<vmem>>, vector<288x16xbf16>,
    %c0_25 = arith.constant 0 : index
    %c38 = arith.constant 38 : index
    %c0_26 = arith.constant 0 : index
    %32 = vector.load %arg1[%c0_25, %c38, %c0_26] : memref<1x342x16xf32, #tpu.memory_space<vmem>>, vector<1x288x16xf32>
    %33 = vector.shape_cast %32 : vector<1x288x16xf32> to vector<288x16xf32>
    %34 = arith.truncf %33 : vector<288x16xf32> to vector<288x16xbf16>
    %c0_27 = arith.constant 0 : index
    %c128 = arith.constant 128 : index
    %35 = vector.load %arg11[%c0_27, %c128] : memref<288x144xbf16, #tpu.memory_space<vmem>>, vector<288x16xbf16>
    tpu.vector_store %arg11[%c0_27, %c128], %34 {strides = array<i32>} : memref<288x144xbf16, #tpu.memory_space<vmem>>, vector<288x16xbf16>,
    %c0_28 = arith.constant 0 : index
    %c0_29 = arith.constant 0 : index
    %36 = vector.load %arg11[%c0_28, %c0_29] : memref<288x144xbf16, #tpu.memory_space<vmem>>, vector<288x144xbf16>
    %c0_30 = arith.constant 0 : index
    %c0_31 = arith.constant 0 : index
    %37 = vector.load %arg3[%c0_30, %c0_31] : memref<144x32xbf16, #tpu.memory_space<vmem>>, vector<144x32xbf16>
    %cst = arith.constant dense<0.000000e+00> : vector<288x32xf32>
    %38 = tpu.matmul %36, %37, %cst {dimension_numbers = #tpu.dot_dimension_numbers<[1], [0], [0], [1], [0, 0, 1, 1], [], []>} : vector<288x144xbf16>, vector<144x32xbf16>, vector<288x32xf32> -> vector<288x32xf32>
    %c0_32 = arith.constant 0 : index
    %c0_33 = arith.constant 0 : index
    %39 = vector.load %arg4[%c0_32, %c0_33] : memref<1x32xf32, #tpu.memory_space<vmem>>, vector<1x32xf32>
    %40 = vector.broadcast %39 : vector<1x32xf32> to vector<288x32xf32>
    %41 = arith.addf %38, %40 : vector<288x32xf32>
    %cst_34 = arith.constant 0.000000e+00 : f32
    %42 = vector.broadcast %cst_34 : f32 to vector<288x32xf32>
    %43 = arith.maximumf %41, %42 : vector<288x32xf32>
    %c0_35 = arith.constant 0 : index
    %c0_36 = arith.constant 0 : index
    %44 = vector.load %arg2[%c0_35, %c0_36] : memref<288x1xf32, #tpu.memory_space<vmem>>, vector<288x1xf32>
    %45 = vector.broadcast %44 : vector<288x1xf32> to vector<288x32xf32>
    %46 = arith.mulf %43, %45 : vector<288x32xf32>
    %cst_37 = arith.constant 0.000000e+00 : f32
    %47 = vector.broadcast %cst_37 : f32 to vector<19x32xf32>
    %c0_38 = arith.constant 0 : index
    %c0_39 = arith.constant 0 : index
    %48 = vector.load %arg12[%c0_38, %c0_39] : memref<342x32xf32, #tpu.memory_space<vmem>>, vector<19x32xf32>
    tpu.vector_store %arg12[%c0_38, %c0_39], %47 {strides = array<i32>} : memref<342x32xf32, #tpu.memory_space<vmem>>, vector<19x32xf32>,
    %cst_40 = arith.constant 0.000000e+00 : f32
    %49 = vector.broadcast %cst_40 : f32 to vector<35x32xf32>
    %c307 = arith.constant 307 : index
    %c0_41 = arith.constant 0 : index
    %50 = vector.load %arg12[%c307, %c0_41] : memref<342x32xf32, #tpu.memory_space<vmem>>, vector<35x32xf32>
    tpu.vector_store %arg12[%c307, %c0_41], %49 {strides = array<i32>} : memref<342x32xf32, #tpu.memory_space<vmem>>, vector<35x32xf32>,
    %c19_42 = arith.constant 19 : index
    %c0_43 = arith.constant 0 : index
    %51 = vector.load %arg12[%c19_42, %c0_43] : memref<342x32xf32, #tpu.memory_space<vmem>>, vector<288x32xf32>
    tpu.vector_store %arg12[%c19_42, %c0_43], %46 {strides = array<i32>} : memref<342x32xf32, #tpu.memory_space<vmem>>, vector<288x32xf32>,
    %c0_44 = arith.constant 0 : index
    %c0_45 = arith.constant 0 : index
    %52 = vector.load %arg12[%c0_44, %c0_45] : memref<342x32xf32, #tpu.memory_space<vmem>>, vector<288x32xf32>
    %53 = arith.truncf %52 : vector<288x32xf32> to vector<288x32xbf16>
    %c0_46 = arith.constant 0 : index
    %c0_47 = arith.constant 0 : index
    %54 = vector.load %arg13[%c0_46, %c0_47] : memref<288x288xbf16, #tpu.memory_space<vmem>>, vector<288x32xbf16>
    tpu.vector_store %arg13[%c0_46, %c0_47], %53 {strides = array<i32>} : memref<288x288xbf16, #tpu.memory_space<vmem>>, vector<288x32xbf16>,
    %c1_48 = arith.constant 1 : index
    %c0_49 = arith.constant 0 : index
    %55 = vector.load %arg12[%c1_48, %c0_49] : memref<342x32xf32, #tpu.memory_space<vmem>>, vector<288x32xf32>
    %56 = arith.truncf %55 : vector<288x32xf32> to vector<288x32xbf16>
    %c0_50 = arith.constant 0 : index
    %c32_51 = arith.constant 32 : index
    %57 = vector.load %arg13[%c0_50, %c32_51] : memref<288x288xbf16, #tpu.memory_space<vmem>>, vector<288x32xbf16>
    tpu.vector_store %arg13[%c0_50, %c32_51], %56 {strides = array<i32>} : memref<288x288xbf16, #tpu.memory_space<vmem>>, vector<288x32xbf16>,
    %c2_52 = arith.constant 2 : index
    %c0_53 = arith.constant 0 : index
    %58 = vector.load %arg12[%c2_52, %c0_53] : memref<342x32xf32, #tpu.memory_space<vmem>>, vector<288x32xf32>
    %59 = arith.truncf %58 : vector<288x32xf32> to vector<288x32xbf16>
    %c0_54 = arith.constant 0 : index
    %c64_55 = arith.constant 64 : index
    %60 = vector.load %arg13[%c0_54, %c64_55] : memref<288x288xbf16, #tpu.memory_space<vmem>>, vector<288x32xbf16>
    tpu.vector_store %arg13[%c0_54, %c64_55], %59 {strides = array<i32>} : memref<288x288xbf16, #tpu.memory_space<vmem>>, vector<288x32xbf16>,
    %c18_56 = arith.constant 18 : index
    %c0_57 = arith.constant 0 : index
    %61 = vector.load %arg12[%c18_56, %c0_57] : memref<342x32xf32, #tpu.memory_space<vmem>>, vector<288x32xf32>
    %62 = arith.truncf %61 : vector<288x32xf32> to vector<288x32xbf16>
    %c0_58 = arith.constant 0 : index
    %c96_59 = arith.constant 96 : index
    %63 = vector.load %arg13[%c0_58, %c96_59] : memref<288x288xbf16, #tpu.memory_space<vmem>>, vector<288x32xbf16>
    tpu.vector_store %arg13[%c0_58, %c96_59], %62 {strides = array<i32>} : memref<288x288xbf16, #tpu.memory_space<vmem>>, vector<288x32xbf16>,
    %c19_60 = arith.constant 19 : index
    %c0_61 = arith.constant 0 : index
    %64 = vector.load %arg12[%c19_60, %c0_61] : memref<342x32xf32, #tpu.memory_space<vmem>>, vector<288x32xf32>
    %65 = arith.truncf %64 : vector<288x32xf32> to vector<288x32xbf16>
    %c0_62 = arith.constant 0 : index
    %c128_63 = arith.constant 128 : index
    %66 = vector.load %arg13[%c0_62, %c128_63] : memref<288x288xbf16, #tpu.memory_space<vmem>>, vector<288x32xbf16>
    tpu.vector_store %arg13[%c0_62, %c128_63], %65 {strides = array<i32>} : memref<288x288xbf16, #tpu.memory_space<vmem>>, vector<288x32xbf16>,
    %c20_64 = arith.constant 20 : index
    %c0_65 = arith.constant 0 : index
    %67 = vector.load %arg12[%c20_64, %c0_65] : memref<342x32xf32, #tpu.memory_space<vmem>>, vector<288x32xf32>
    %68 = arith.truncf %67 : vector<288x32xf32> to vector<288x32xbf16>
    %c0_66 = arith.constant 0 : index
    %c160 = arith.constant 160 : index
    %69 = vector.load %arg13[%c0_66, %c160] : memref<288x288xbf16, #tpu.memory_space<vmem>>, vector<288x32xbf16>
    tpu.vector_store %arg13[%c0_66, %c160], %68 {strides = array<i32>} : memref<288x288xbf16, #tpu.memory_space<vmem>>, vector<288x32xbf16>,
    %c36_67 = arith.constant 36 : index
    %c0_68 = arith.constant 0 : index
    %70 = vector.load %arg12[%c36_67, %c0_68] : memref<342x32xf32, #tpu.memory_space<vmem>>, vector<288x32xf32>
    %71 = arith.truncf %70 : vector<288x32xf32> to vector<288x32xbf16>
    %c0_69 = arith.constant 0 : index
    %c192 = arith.constant 192 : index
    %72 = vector.load %arg13[%c0_69, %c192] : memref<288x288xbf16, #tpu.memory_space<vmem>>, vector<288x32xbf16>
    tpu.vector_store %arg13[%c0_69, %c192], %71 {strides = array<i32>} : memref<288x288xbf16, #tpu.memory_space<vmem>>, vector<288x32xbf16>,
    %c37_70 = arith.constant 37 : index
    %c0_71 = arith.constant 0 : index
    %73 = vector.load %arg12[%c37_70, %c0_71] : memref<342x32xf32, #tpu.memory_space<vmem>>, vector<288x32xf32>
    %74 = arith.truncf %73 : vector<288x32xf32> to vector<288x32xbf16>
    %c0_72 = arith.constant 0 : index
    %c224 = arith.constant 224 : index
    %75 = vector.load %arg13[%c0_72, %c224] : memref<288x288xbf16, #tpu.memory_space<vmem>>, vector<288x32xbf16>
    tpu.vector_store %arg13[%c0_72, %c224], %74 {strides = array<i32>} : memref<288x288xbf16, #tpu.memory_space<vmem>>, vector<288x32xbf16>,
    %c38_73 = arith.constant 38 : index
    %c0_74 = arith.constant 0 : index
    %76 = vector.load %arg12[%c38_73, %c0_74] : memref<342x32xf32, #tpu.memory_space<vmem>>, vector<288x32xf32>
    %77 = arith.truncf %76 : vector<288x32xf32> to vector<288x32xbf16>
    %c0_75 = arith.constant 0 : index
    %c256 = arith.constant 256 : index
    %78 = vector.load %arg13[%c0_75, %c256] : memref<288x288xbf16, #tpu.memory_space<vmem>>, vector<288x32xbf16>
    tpu.vector_store %arg13[%c0_75, %c256], %77 {strides = array<i32>} : memref<288x288xbf16, #tpu.memory_space<vmem>>, vector<288x32xbf16>,
    %c0_76 = arith.constant 0 : index
    %c0_77 = arith.constant 0 : index
    %79 = vector.load %arg13[%c0_76, %c0_77] : memref<288x288xbf16, #tpu.memory_space<vmem>>, vector<288x288xbf16>
    %c0_78 = arith.constant 0 : index
    %c0_79 = arith.constant 0 : index
    %80 = vector.load %arg5[%c0_78, %c0_79] : memref<288x32xbf16, #tpu.memory_space<vmem>>, vector<288x32xbf16>
    %cst_80 = arith.constant dense<0.000000e+00> : vector<288x32xf32>
    %81 = tpu.matmul %79, %80, %cst_80 {dimension_numbers = #tpu.dot_dimension_numbers<[1], [0], [0], [1], [0, 0, 1, 1], [], []>} : vector<288x288xbf16>, vector<288x32xbf16>, vector<288x32xf32> -> vector<288x32xf32>
    %c0_81 = arith.constant 0 : index
    %c0_82 = arith.constant 0 : index
    %82 = vector.load %arg6[%c0_81, %c0_82] : memref<1x32xf32, #tpu.memory_space<vmem>>, vector<1x32xf32>
    %83 = vector.broadcast %82 : vector<1x32xf32> to vector<288x32xf32>
    %84 = arith.addf %81, %83 : vector<288x32xf32>
    %cst_83 = arith.constant 0.000000e+00 : f32
    %85 = vector.broadcast %cst_83 : f32 to vector<288x32xf32>
    %86 = arith.maximumf %84, %85 : vector<288x32xf32>
    %87 = arith.truncf %86 : vector<288x32xf32> to vector<288x32xbf16>
    %c0_84 = arith.constant 0 : index
    %c0_85 = arith.constant 0 : index
    %88 = vector.load %arg7[%c0_84, %c0_85] : memref<32x128xbf16, #tpu.memory_space<vmem>>, vector<32x128xbf16>
    %cst_86 = arith.constant dense<0.000000e+00> : vector<288x128xf32>
    %89 = tpu.matmul %87, %88, %cst_86 {dimension_numbers = #tpu.dot_dimension_numbers<[1], [0], [0], [1], [0, 0, 1, 1], [], []>} : vector<288x32xbf16>, vector<32x128xbf16>, vector<288x128xf32> -> vector<288x128xf32>
    %c0_87 = arith.constant 0 : index
    %c0_88 = arith.constant 0 : index
    %90 = vector.load %arg8[%c0_87, %c0_88] : memref<1x128xf32, #tpu.memory_space<vmem>>, vector<1x128xf32>
    %91 = vector.broadcast %90 : vector<1x128xf32> to vector<288x128xf32>
    %92 = arith.addf %89, %91 : vector<288x128xf32>
    %93 = vector.extract_strided_slice %92 {offsets = [0, 0], sizes = [288, 16], strides = [1, 1]} : vector<288x128xf32> to vector<288x16xf32>
    %94 = vector.extract_strided_slice %92 {offsets = [0, 16], sizes = [288, 16], strides = [1, 1]} : vector<288x128xf32> to vector<288x16xf32>
    %95 = vector.extract_strided_slice %92 {offsets = [0, 32], sizes = [288, 16], strides = [1, 1]} : vector<288x128xf32> to vector<288x16xf32>
    %96 = vector.extract_strided_slice %92 {offsets = [0, 48], sizes = [288, 16], strides = [1, 1]} : vector<288x128xf32> to vector<288x16xf32>
    %97 = vector.extract_strided_slice %92 {offsets = [0, 64], sizes = [288, 16], strides = [1, 1]} : vector<288x128xf32> to vector<288x16xf32>
    %c0_89 = arith.constant 0 : index
    %c0_90 = arith.constant 0 : index
    %98 = vector.load %arg9[%c0_89, %c0_90] : memref<288x64xf32, #tpu.memory_space<vmem>>, vector<288x16xf32>
    %c0_91 = arith.constant 0 : index
    %c16_92 = arith.constant 16 : index
    %99 = vector.load %arg9[%c0_91, %c16_92] : memref<288x64xf32, #tpu.memory_space<vmem>>, vector<288x16xf32>
    %c0_93 = arith.constant 0 : index
    %c32_94 = arith.constant 32 : index
    %100 = vector.load %arg9[%c0_93, %c32_94] : memref<288x64xf32, #tpu.memory_space<vmem>>, vector<288x16xf32>
    %c0_95 = arith.constant 0 : index
    %c48_96 = arith.constant 48 : index
    %101 = vector.load %arg9[%c0_95, %c48_96] : memref<288x64xf32, #tpu.memory_space<vmem>>, vector<288x16xf32>
    %102 = arith.subf %100, %98 : vector<288x16xf32>
    %103 = arith.subf %101, %99 : vector<288x16xf32>
    %cst_97 = arith.constant 5.000000e-01 : f32
    %104 = vector.broadcast %cst_97 : f32 to vector<288x16xf32>
    %105 = arith.mulf %104, %102 : vector<288x16xf32>
    %106 = arith.addf %98, %105 : vector<288x16xf32>
    %cst_98 = arith.constant 5.000000e-01 : f32
    %107 = vector.broadcast %cst_98 : f32 to vector<288x16xf32>
    %108 = arith.mulf %107, %103 : vector<288x16xf32>
    %109 = arith.addf %99, %108 : vector<288x16xf32>
    %cst_99 = arith.constant 4.13516665 : f32
    %110 = vector.broadcast %cst_99 : f32 to vector<288x16xf32>
    %111 = arith.minimumf %96, %110 : vector<288x16xf32>
    %cst_100 = arith.constant 4.13516665 : f32
    %112 = vector.broadcast %cst_100 : f32 to vector<288x16xf32>
    %113 = arith.minimumf %97, %112 : vector<288x16xf32>
    %114 = arith.mulf %94, %102 : vector<288x16xf32>
    %115 = arith.addf %114, %106 : vector<288x16xf32>
    %116 = arith.mulf %95, %103 : vector<288x16xf32>
    %117 = arith.addf %116, %109 : vector<288x16xf32>
    %118 = math.exp %111 : vector<288x16xf32>
    %cst_101 = arith.constant 5.000000e-01 : f32
    %119 = vector.broadcast %cst_101 : f32 to vector<288x16xf32>
    %120 = arith.mulf %119, %118 : vector<288x16xf32>
    %121 = arith.mulf %120, %102 : vector<288x16xf32>
    %122 = math.exp %113 : vector<288x16xf32>
    %cst_102 = arith.constant 5.000000e-01 : f32
    %123 = vector.broadcast %cst_102 : f32 to vector<288x16xf32>
    %124 = arith.mulf %123, %122 : vector<288x16xf32>
    %125 = arith.mulf %124, %103 : vector<288x16xf32>
    %126 = arith.subf %115, %121 : vector<288x16xf32>
    %cst_103 = arith.constant 0.000000e+00 : f32
    %cst_104 = arith.constant 1.600000e+01 : f32
    %127 = vector.broadcast %cst_103 : f32 to vector<288x16xf32>
    %128 = arith.maximumf %127, %126 : vector<288x16xf32>
    %129 = vector.broadcast %cst_104 : f32 to vector<288x16xf32>
    %130 = arith.minimumf %129, %128 : vector<288x16xf32>
    %131 = arith.subf %117, %125 : vector<288x16xf32>
    %cst_105 = arith.constant 0.000000e+00 : f32
    %cst_106 = arith.constant 1.600000e+01 : f32
    %132 = vector.broadcast %cst_105 : f32 to vector<288x16xf32>
    %133 = arith.maximumf %132, %131 : vector<288x16xf32>
    %134 = vector.broadcast %cst_106 : f32 to vector<288x16xf32>
    %135 = arith.minimumf %134, %133 : vector<288x16xf32>
    %136 = arith.addf %115, %121 : vector<288x16xf32>
    %cst_107 = arith.constant 0.000000e+00 : f32
    %cst_108 = arith.constant 1.600000e+01 : f32
    %137 = vector.broadcast %cst_107 : f32 to vector<288x16xf32>
    %138 = arith.maximumf %137, %136 : vector<288x16xf32>
    %139 = vector.broadcast %cst_108 : f32 to vector<288x16xf32>
    %140 = arith.minimumf %139, %138 : vector<288x16xf32>
    %141 = arith.addf %117, %125 : vector<288x16xf32>
    %cst_109 = arith.constant 0.000000e+00 : f32
    %cst_110 = arith.constant 1.600000e+01 : f32
    %142 = vector.broadcast %cst_109 : f32 to vector<288x16xf32>
    %143 = arith.maximumf %142, %141 : vector<288x16xf32>
    %144 = vector.broadcast %cst_110 : f32 to vector<288x16xf32>
    %145 = arith.minimumf %144, %143 : vector<288x16xf32>
    %146 = vector.extract_strided_slice %92 {offsets = [0, 80], sizes = [288, 48], strides = [1, 1]} : vector<288x128xf32> to vector<288x48xf32>
    %147 = tpu.concatenate %93, %130, %135, %140, %145, %146 in 1 : vector<288x16xf32>, vector<288x16xf32>, vector<288x16xf32>, vector<288x16xf32>, vector<288x16xf32>, vector<288x48xf32> -> vector<288x128xf32>
    %c0_111 = arith.constant 0 : index
    %c0_112 = arith.constant 0 : index
    %c0_113 = arith.constant 0 : index
    %148 = vector.load %arg10[%c0_111, %c0_112, %c0_113] : memref<1x288x128xf32, #tpu.memory_space<vmem>>, vector<1x288x128xf32>
    %149 = vector.shape_cast %148 : vector<1x288x128xf32> to vector<288x128xf32>
    %150 = vector.shape_cast %147 : vector<288x128xf32> to vector<1x288x128xf32>
    tpu.vector_store %arg10[%c0_111, %c0_112, %c0_113], %150 {strides = array<i32>} : memref<1x288x128xf32, #tpu.memory_space<vmem>>, vector<1x288x128xf32>,
    return
  }
  func.func @transform_0(%arg0: i32) -> (i32, i32, i32) {
    %c0_i32 = arith.constant 0 : i32
    %c0_i32_0 = arith.constant 0 : i32
    %c0_i32_1 = arith.constant 0 : i32
    return %arg0, %c0_i32, %c0_i32_0 : i32, i32, i32
  }
  func.func @transform_1(%arg0: i32) -> (i32, i32) {
    %c0_i32 = arith.constant 0 : i32
    %c0_i32_0 = arith.constant 0 : i32
    %c0_i32_1 = arith.constant 0 : i32
    return %c0_i32, %c0_i32_0 : i32, i32
  }
  func.func @transform_2(%arg0: i32) -> (i32, i32) {
    %c0_i32 = arith.constant 0 : i32
    %c0_i32_0 = arith.constant 0 : i32
    %c0_i32_1 = arith.constant 0 : i32
    return %c0_i32, %c0_i32_0 : i32, i32
  }
  func.func @transform_3(%arg0: i32) -> (i32, i32) {
    %c0_i32 = arith.constant 0 : i32
    %c0_i32_0 = arith.constant 0 : i32
    %c0_i32_1 = arith.constant 0 : i32
    return %c0_i32, %c0_i32_0 : i32, i32
  }
  func.func @transform_4(%arg0: i32) -> (i32, i32) {
    %c0_i32 = arith.constant 0 : i32
    %c0_i32_0 = arith.constant 0 : i32
    %c0_i32_1 = arith.constant 0 : i32
    return %c0_i32, %c0_i32_0 : i32, i32
  }
  func.func @transform_5(%arg0: i32) -> (i32, i32) {
    %c0_i32 = arith.constant 0 : i32
    %c0_i32_0 = arith.constant 0 : i32
    %c0_i32_1 = arith.constant 0 : i32
    return %c0_i32, %c0_i32_0 : i32, i32
  }
  func.func @transform_6(%arg0: i32) -> (i32, i32) {
    %c0_i32 = arith.constant 0 : i32
    %c0_i32_0 = arith.constant 0 : i32
    %c0_i32_1 = arith.constant 0 : i32
    return %c0_i32, %c0_i32_0 : i32, i32
  }
  func.func @transform_7(%arg0: i32) -> (i32, i32) {
    %c0_i32 = arith.constant 0 : i32
    %c0_i32_0 = arith.constant 0 : i32
    %c0_i32_1 = arith.constant 0 : i32
    return %c0_i32, %c0_i32_0 : i32, i32
  }
  func.func @transform_8(%arg0: i32) -> (i32, i32) {
    %c0_i32 = arith.constant 0 : i32
    %c0_i32_0 = arith.constant 0 : i32
    %c0_i32_1 = arith.constant 0 : i32
    return %c0_i32, %c0_i32_0 : i32, i32
  }
  func.func @transform_9(%arg0: i32) -> (i32, i32, i32) {
    %c0_i32 = arith.constant 0 : i32
    %c0_i32_0 = arith.constant 0 : i32
    %c0_i32_1 = arith.constant 0 : i32
    return %arg0, %c0_i32, %c0_i32_0 : i32, i32, i32
  }
}

</mosaic_0001>

<llo_original>
// kernel: proposal_network_forward.1
$region0: #{proposal_network_forward.1}
  #allocation0 [shape = 'u32[]', space=smem, size = 0x4, offset = 0x4, fixed_abs, tag = 'smem constant byte address 0x4 - core index']
  #allocation1 [shape = 'u32[72,128]{1,0:T(1,128)}', space=vmem, size = 0x9000, scoped, tag = 'internal scratch']
  #allocation2 [shape = 'bf16[288,144]{1,0:T(8,128)(2,1)}', space=vmem, size = 0x24000, scoped, tag = 'scratch operand']
  #allocation3 [shape = 'f32[342,32]{1,0:T(8,128)}', space=vmem, size = 0x2b000, scoped, tag = 'scratch operand']
  #allocation4 [shape = 'bf16[288,288]{1,0:T(8,128)(2,1)}', space=vmem, size = 0x36000, scoped, tag = 'scratch operand']
  %s0 = inlined_call_operand.vmem [shape: f32[2,342,16], index: 0, kind: input, shape index: {}]
  %s1 = inlined_call_operand.vmem [shape: f32[288,1], index: 1, kind: input, shape index: {}]
  %s2 = inlined_call_operand.vmem [shape: bf16[144,32], index: 2, kind: input, shape index: {}]
  %s3 = inlined_call_operand.vmem [shape: f32[1,32], index: 3, kind: input, shape index: {}]
  %s4 = inlined_call_operand.vmem [shape: bf16[288,32], index: 4, kind: input, shape index: {}]
  %s5 = inlined_call_operand.vmem [shape: f32[1,32], index: 5, kind: input, shape index: {}]
  %s6 = inlined_call_operand.vmem [shape: bf16[32,128], index: 6, kind: input, shape index: {}]
  %s7 = inlined_call_operand.vmem [shape: f32[1,128], index: 7, kind: input, shape index: {}]
  %s8 = inlined_call_operand.vmem [shape: f32[288,64], index: 8, kind: input, shape index: {}]
  %s9 = inlined_call_operand.vmem [shape: f32[2,288,128], index: 9, kind: output, shape index: {}]
  %s10 = sld [smem:[#allocation0]]
  $region69: #{proposal_network_forward.1} parent=0
    _
  %s12 = ssub.s32 1, %s10
  %s13 = scalar_select 0, %s12, %s10
  loop: start=0, step=1, limit=4
  $region2: #{proposal_network_forward.1} parent=0 // loop_pre_header
    _
  $region3: #{proposal_network_forward.1} parent=0 // loop_header
    %s15 = sphi 0, %s19
    %p16 = scmp.ge.s32.totalorder %s15, 4
    %s25 = sphi 0, %s27
    %s28 = sphi 0, %s25
    %s29 = sphi 0, %s28
    %s45 = sphi 0, %s29
    %s49 = sphi 0, %s49
    %s51 = sphi 0, %s49
    %s52 = sphi 0, %s51
    %s66 = sphi 0, %s52
    %s70 = sphi 0, %s70
    %s72 = sphi 0, %s70
    %s73 = sphi 0, %s72
    %s87 = sphi 0, %s73
    %s91 = sphi 0, %s91
    %s93 = sphi 0, %s91
    %s94 = sphi 0, %s93
    %s108 = sphi 0, %s94
    %s112 = sphi 0, %s112
    %s114 = sphi 0, %s112
    %s115 = sphi 0, %s114
    %s129 = sphi 0, %s115
    %s133 = sphi 0, %s133
    %s135 = sphi 0, %s133
    %s136 = sphi 0, %s135
    %s150 = sphi 0, %s136
    %s154 = sphi 0, %s154
    %s156 = sphi 0, %s154
    %s157 = sphi 0, %s156
    %s171 = sphi 0, %s157
    %s175 = sphi 0, %s175
    %s177 = sphi 0, %s175
    %s178 = sphi 0, %s177
    %s192 = sphi 0, %s178
    %s196 = sphi 0, %s196
    %s198 = sphi 0, %s196
    %s199 = sphi 0, %s198
    %s213 = sphi 0, %s199
    %s219 = sphi 0, %s221
    %s222 = sphi 0, %s219
    %s223 = sphi 0, %s222
    %s239 = sphi 0, %s223
  $region4: #{proposal_network_forward.1} parent=0 // loop_header_branch
    %18 = sbr.rel (%p16) target = $region8
  $region5: #{proposal_network_forward.1} parent=0 // loop_body
    %s20 = ssub.s32 %s15, 1
    %s21 = ssub.s32 %s15, 2
    %s22 = sadd.s32 %s15, 1
    %s23 = ssub.s32 %s15, %s22
    %p24 = scmp.eq.s32.totalorder %s23, 0
    %s26 = sadd.s32 %s25, 1
    %s27 = scalar_select %p24, %s25, %s26
    %p30 = pneg %p24
    %p31 = scmp.eq.s32.totalorder %s15, 1
    %p32 = por %p30, %p31
    %p33 = scmp.ne.s32.totalorder %s25, %s28
    %p34 = scmp.eq.s32.totalorder %s15, 0
    %p35 = por %p33, %p34
    %p36 = scmp.ne.s32.totalorder %s25, %s28
    %p37 = scmp.eq.s32.totalorder %s20, 1
    %p38 = por %p36, %p37
    %p39 = scmp.ne.s32.totalorder %s28, %s29
    %p40 = scmp.eq.s32.totalorder %s20, 0
    %p41 = por %p39, %p40
    %p42 = scmp.ne.s32.totalorder %s28, %s29
    %p43 = scmp.eq.s32.totalorder %s21, 1
    %p44 = por %p42, %p43
    %p46 = scmp.ne.s32.totalorder %s29, %s45
    %p47 = scmp.eq.s32.totalorder %s21, 0
    %p48 = por %p46, %p47
    %s50 = sadd.s32 %s49, 1
    %p53 = scmp.eq.s32.totalorder %s15, 1
    %p54 = scmp.ne.s32.totalorder %s49, %s51
    %p55 = scmp.eq.s32.totalorder %s15, 0
    %p56 = por %p54, %p55
    %p57 = scmp.ne.s32.totalorder %s49, %s51
    %p58 = scmp.eq.s32.totalorder %s20, 1
    %p59 = por %p57, %p58
    %p60 = scmp.ne.s32.totalorder %s51, %s52
    %p61 = scmp.eq.s32.totalorder %s20, 0
    %p62 = por %p60, %p61
    %p63 = scmp.ne.s32.totalorder %s51, %s52
    %p64 = scmp.eq.s32.totalorder %s21, 1
    %p65 = por %p63, %p64
    %p67 = scmp.ne.s32.totalorder %s52, %s66
    %p68 = scmp.eq.s32.totalorder %s21, 0
    %p69 = por %p67, %p68
    %s71 = sadd.s32 %s70, 1
    %p74 = scmp.eq.s32.totalorder %s15, 1
    %p75 = scmp.ne.s32.totalorder %s70, %s72
    %p76 = scmp.eq.s32.totalorder %s15, 0
    %p77 = por %p75, %p76
    %p78 = scmp.ne.s32.totalorder %s70, %s72
    %p79 = scmp.eq.s32.totalorder %s20, 1
    %p80 = por %p78, %p79
    %p81 = scmp.ne.s32.totalorder %s72, %s73
    %p82 = scmp.eq.s32.totalorder %s20, 0
    %p83 = por %p81, %p82
    %p84 = scmp.ne.s32.totalorder %s72, %s73
    %p85 = scmp.eq.s32.totalorder %s21, 1
    %p86 = por %p84, %p85
    %p88 = scmp.ne.s32.totalorder %s73, %s87
    %p89 = scmp.eq.s32.totalorder %s21, 0
    %p90 = por %p88, %p89
    %s92 = sadd.s32 %s91, 1
    %p95 = scmp.eq.s32.totalorder %s15, 1
    %p96 = scmp.ne.s32.totalorder %s91, %s93
    %p97 = scmp.eq.s32.totalorder %s15, 0
    %p98 = por %p96, %p97
    %p99 = scmp.ne.s32.totalorder %s91, %s93
    %p100 = scmp.eq.s32.totalorder %s20, 1
    %p101 = por %p99, %p100
    %p102 = scmp.ne.s32.totalorder %s93, %s94
    %p103 = scmp.eq.s32.totalorder %s20, 0
    %p104 = por %p102, %p103
    %p105 = scmp.ne.s32.totalorder %s93, %s94
    %p106 = scmp.eq.s32.totalorder %s21, 1
    %p107 = por %p105, %p106
    %p109 = scmp.ne.s32.totalorder %s94, %s108
    %p110 = scmp.eq.s32.totalorder %s21, 0
    %p111 = por %p109, %p110
    %s113 = sadd.s32 %s112, 1
    %p116 = scmp.eq.s32.totalorder %s15, 1
    %p117 = scmp.ne.s32.totalorder %s112, %s114
    %p118 = scmp.eq.s32.totalorder %s15, 0
    %p119 = por %p117, %p118
    %p120 = scmp.ne.s32.totalorder %s112, %s114
    %p121 = scmp.eq.s32.totalorder %s20, 1
    %p122 = por %p120, %p121
    %p123 = scmp.ne.s32.totalorder %s114, %s115
    %p124 = scmp.eq.s32.totalorder %s20, 0
    %p125 = por %p123, %p124
    %p126 = scmp.ne.s32.totalorder %s114, %s115
    %p127 = scmp.eq.s32.totalorder %s21, 1
    %p128 = por %p126, %p127
    %p130 = scmp.ne.s32.totalorder %s115, %s129
    %p131 = scmp.eq.s32.totalorder %s21, 0
    %p132 = por %p130, %p131
    %s134 = sadd.s32 %s133, 1
    %p137 = scmp.eq.s32.totalorder %s15, 1
    %p138 = scmp.ne.s32.totalorder %s133, %s135
    %p139 = scmp.eq.s32.totalorder %s15, 0
    %p140 = por %p138, %p139
    %p141 = scmp.ne.s32.totalorder %s133, %s135
    %p142 = scmp.eq.s32.totalorder %s20, 1
    %p143 = por %p141, %p142
    %p144 = scmp.ne.s32.totalorder %s135, %s136
    %p145 = scmp.eq.s32.totalorder %s20, 0
    %p146 = por %p144, %p145
    %p147 = scmp.ne.s32.totalorder %s135, %s136
    %p148 = scmp.eq.s32.totalorder %s21, 1
    %p149 = por %p147, %p148
    %p151 = scmp.ne.s32.totalorder %s136, %s150
    %p152 = scmp.eq.s32.totalorder %s21, 0
    %p153 = por %p151, %p152
    %s155 = sadd.s32 %s154, 1
    %p158 = scmp.eq.s32.totalorder %s15, 1
    %p159 = scmp.ne.s32.totalorder %s154, %s156
    %p160 = scmp.eq.s32.totalorder %s15, 0
    %p161 = por %p159, %p160
    %p162 = scmp.ne.s32.totalorder %s154, %s156
    %p163 = scmp.eq.s32.totalorder %s20, 1
    %p164 = por %p162, %p163
    %p165 = scmp.ne.s32.totalorder %s156, %s157
    %p166 = scmp.eq.s32.totalorder %s20, 0
    %p167 = por %p165, %p166
    %p168 = scmp.ne.s32.totalorder %s156, %s157
    %p169 = scmp.eq.s32.totalorder %s21, 1
    %p170 = por %p168, %p169
    %p172 = scmp.ne.s32.totalorder %s157, %s171
    %p173 = scmp.eq.s32.totalorder %s21, 0
    %p174 = por %p172, %p173
    %s176 = sadd.s32 %s175, 1
    %p179 = scmp.eq.s32.totalorder %s15, 1
    %p180 = scmp.ne.s32.totalorder %s175, %s177
    %p181 = scmp.eq.s32.totalorder %s15, 0
    %p182 = por %p180, %p181
    %p183 = scmp.ne.s32.totalorder %s175, %s177
    %p184 = scmp.eq.s32.totalorder %s20, 1
    %p185 = por %p183, %p184
    %p186 = scmp.ne.s32.totalorder %s177, %s178
    %p187 = scmp.eq.s32.totalorder %s20, 0
    %p188 = por %p186, %p187
    %p189 = scmp.ne.s32.totalorder %s177, %s178
    %p190 = scmp.eq.s32.totalorder %s21, 1
    %p191 = por %p189, %p190
    %p193 = scmp.ne.s32.totalorder %s178, %s192
    %p194 = scmp.eq.s32.totalorder %s21, 0
    %p195 = por %p193, %p194
    %s197 = sadd.s32 %s196, 1
    %p200 = scmp.eq.s32.totalorder %s15, 1
    %p201 = scmp.ne.s32.totalorder %s196, %s198
    %p202 = scmp.eq.s32.totalorder %s15, 0
    %p203 = por %p201, %p202
    %p204 = scmp.ne.s32.totalorder %s196, %s198
    %p205 = scmp.eq.s32.totalorder %s20, 1
    %p206 = por %p204, %p205
    %p207 = scmp.ne.s32.totalorder %s198, %s199
    %p208 = scmp.eq.s32.totalorder %s20, 0
    %p209 = por %p207, %p208
    %p210 = scmp.ne.s32.totalorder %s198, %s199
    %p211 = scmp.eq.s32.totalorder %s21, 1
    %p212 = por %p210, %p211
    %p214 = scmp.ne.s32.totalorder %s199, %s213
    %p215 = scmp.eq.s32.totalorder %s21, 0
    %p216 = por %p214, %p215
    %s217 = ssub.s32 %s15, %s22
    %p218 = scmp.eq.s32.totalorder %s217, 0
    %s220 = sadd.s32 %s219, 1
    %s221 = scalar_select %p218, %s219, %s220
    %p224 = pneg %p218
    %p225 = scmp.eq.s32.totalorder %s15, 1
    %p226 = por %p224, %p225
    %p227 = scmp.ne.s32.totalorder %s219, %s222
    %p228 = scmp.eq.s32.totalorder %s15, 0
    %p229 = por %p227, %p228
    %p230 = scmp.ne.s32.totalorder %s219, %s222
    %p231 = scmp.eq.s32.totalorder %s20, 1
    %p232 = por %p230, %p231
    %p233 = scmp.ne.s32.totalorder %s222, %s223
    %p234 = scmp.eq.s32.totalorder %s20, 0
    %p235 = por %p233, %p234
    %p236 = scmp.ne.s32.totalorder %s222, %s223
    %p237 = scmp.eq.s32.totalorder %s21, 1
    %p238 = por %p236, %p237
    %p240 = scmp.ne.s32.totalorder %s223, %s239
    %p241 = scmp.eq.s32.totalorder %s21, 0
    %p242 = por %p240, %p241
    %p243 = scmp.le.s32.totalorder 1, %s15
    %p244 = scmp.lt.s32.totalorder %s15, 3
    %p245 = pnand %p243, %p244
    %p246 = pneg %p245
    // Predicated region
    $region9: #{proposal_network_forward.1} parent=5 // pred_check
      _
    $region10: #{proposal_network_forward.1} parent=5 // pred_check_branch
      %248 = sbr.rel (%p245) target = $region12
    $region11: #{proposal_network_forward.1} parent=5 // pred_region
      %s249 = ssub.s32 %s15, 1
      // Predicated region
      $region13: #{proposal_network_forward.1} parent=11 // pred_check
        %p250 = pneg %p62
      $region14: #{proposal_network_forward.1} parent=11 // pred_check_branch
        %252 = sbr.rel (%p250) target = $region16
      $region15: #{proposal_network_forward.1} parent=11 // pred_region
        _
      $region16: #{proposal_network_forward.1} parent=11 // pred_fallthru
        _
      // Predicated region
      $region17: #{proposal_network_forward.1} parent=11 // pred_check
        %p253 = pneg %p83
      $region18: #{proposal_network_forward.1} parent=11 // pred_check_branch
        %255 = sbr.rel (%p253) target = $region20
      $region19: #{proposal_network_forward.1} parent=11 // pred_region
        _
      $region20: #{proposal_network_forward.1} parent=11 // pred_fallthru
        _
      // Predicated region
      $region21: #{proposal_network_forward.1} parent=11 // pred_check
        %p256 = pneg %p104
      $region22: #{proposal_network_forward.1} parent=11 // pred_check_branch
        %258 = sbr.rel (%p256) target = $region24
      $region23: #{proposal_network_forward.1} parent=11 // pred_region
        _
      $region24: #{proposal_network_forward.1} parent=11 // pred_fallthru
        _
      // Predicated region
      $region25: #{proposal_network_forward.1} parent=11 // pred_check
        %p259 = pneg %p125
      $region26: #{proposal_network_forward.1} parent=11 // pred_check_branch
        %261 = sbr.rel (%p259) target = $region28
      $region27: #{proposal_network_forward.1} parent=11 // pred_region
        _
      $region28: #{proposal_network_forward.1} parent=11 // pred_fallthru
        _
      // Predicated region
      $region29: #{proposal_network_forward.1} parent=11 // pred_check
        %p262 = pneg %p146
      $region30: #{proposal_network_forward.1} parent=11 // pred_check_branch
        %264 = sbr.rel (%p262) target = $region32
      $region31: #{proposal_network_forward.1} parent=11 // pred_region
        _
      $region32: #{proposal_network_forward.1} parent=11 // pred_fallthru
        _
      // Predicated region
      $region33: #{proposal_network_forward.1} parent=11 // pred_check
        %p265 = pneg %p167
      $region34: #{proposal_network_forward.1} parent=11 // pred_check_branch
        %267 = sbr.rel (%p265) target = $region36
      $region35: #{proposal_network_forward.1} parent=11 // pred_region
        _
      $region36: #{proposal_network_forward.1} parent=11 // pred_fallthru
        _
      // Predicated region
      $region37: #{proposal_network_forward.1} parent=11 // pred_check
        %p268 = pneg %p188
      $region38: #{proposal_network_forward.1} parent=11 // pred_check_branch
        %270 = sbr.rel (%p268) target = $region40
      $region39: #{proposal_network_forward.1} parent=11 // pred_region
        _
      $region40: #{proposal_network_forward.1} parent=11 // pred_fallthru
        _
      // Predicated region
      $region41: #{proposal_network_forward.1} parent=11 // pred_check
        %p271 = pneg %p209
      $region42: #{proposal_network_forward.1} parent=11 // pred_check_branch
        %273 = sbr.rel (%p271) target = $region44
      $region43: #{proposal_network_forward.1} parent=11 // pred_region
        _
      $region44: #{proposal_network_forward.1} parent=11 // pred_fallthru
        _
    $region12: #{proposal_network_forward.1} parent=5 // pred_fallthru
      _
    %p274 = scmp.lt.s32.totalorder %s15, 2
    // Predicated region
    $region45: #{proposal_network_forward.1} parent=5 // pred_check
      %p275 = pneg %p274
    $region46: #{proposal_network_forward.1} parent=5 // pred_check_branch
      %277 = sbr.rel (%p275) target = $region48
    $region47: #{proposal_network_forward.1} parent=5 // pred_region
      // Predicated region
      $region49: #{proposal_network_forward.1} parent=47 // pred_check
        %p278 = pneg %p35
      $region50: #{proposal_network_forward.1} parent=47 // pred_check_branch
        %280 = sbr.rel (%p278) target = $region52
      $region51: #{proposal_network_forward.1} parent=47 // pred_region
        %p281 = scmp.lt.s32.totalorder %s15, 1
        %s282 = scalar_select %p281, %s15, 1
        %s283 = smul.addr %s282, 43
        %s284 = smul.addr %s283, 8
        %s285 = scalar_lea.vmem %s0, %s284
      $region52: #{proposal_network_forward.1} parent=47 // pred_fallthru
        _
    $region48: #{proposal_network_forward.1} parent=5 // pred_fallthru
      _
    %p286 = scmp.le.s32.totalorder 1, %s15
    %p287 = scmp.lt.s32.totalorder %s15, 3
    %p288 = pnand %p286, %p287
    %p289 = pneg %p288
    // Predicated region
    $region53: #{proposal_network_forward.1} parent=5 // pred_check
      _
    $region54: #{proposal_network_forward.1} parent=5 // pred_check_branch
      %291 = sbr.rel (%p288) target = $region56
    $region55: #{proposal_network_forward.1} parent=5 // pred_region
      %s292 = ssub.s32 %s15, 1
      %p293 = scmp.lt.s32.totalorder %s20, 1
      %s294 = scalar_select %p293, %s20, 1
      %s295 = smul.addr %s294, 43
      %s296 = smul.addr %s295, 8
      %s297 = scalar_lea.vmem %s0, %s296
      %p298 = pneg %p41
      %p299 = pneg %p38
      %p300 = pneg %p62
      %p301 = pneg %p59
      %p302 = pneg %p83
      %p303 = pneg %p80
      %p304 = pneg %p104
      %p305 = pneg %p101
      %p306 = pneg %p125
      %p307 = pneg %p122
      %p308 = pneg %p146
      %p309 = pneg %p143
      %p310 = pneg %p167
      %p311 = pneg %p164
      %p312 = pneg %p188
      %p313 = pneg %p185
      %p314 = pneg %p209
      %p315 = pneg %p206
      %p316 = pneg %p235
      %p317 = pneg %p232
      %p318 = scmp.lt.s32.totalorder %s20, 1
      %s319 = scalar_select %p318, %s20, 1
      %s320 = smul.addr %s319, 36
      %s321 = smul.addr %s320, 8
      %s322 = scalar_lea.vmem %s9, %s321
      %p323 = scmp.lt.s32.totalorder %s20, 1
      %s324 = scalar_select %p323, %s20, 1
      %s325 = smul.addr %s324, 43
      %s326 = smul.addr %s325, 8
      %s327 = scalar_lea.vmem %s0, %s326
      %p328 = scmp.lt.s32.totalorder %s20, 1
      %s329 = scalar_select %p328, %s20, 1
      %s330 = smul.addr %s329, 36
      %s331 = smul.addr %s330, 8
      %s332 = scalar_lea.vmem %s9, %s331
      %v334 = vld [vmem:[%s327] sm:$0xff]
      %v335 = vld [vmem:[%s327 + $0x8] sm:$0xff]
      %v336 = vld [vmem:[%s327 + $0x10] sm:$0xff]
      %v337 = vld [vmem:[%s327 + $0x18] sm:$0xff]
      %v338 = vld [vmem:[%s327 + $0x20] sm:$0xff]
      %v339 = vld [vmem:[%s327 + $0x28] sm:$0xff]
      %v340 = vld [vmem:[%s327 + $0x30] sm:$0xff]
      %v341 = vld [vmem:[%s327 + $0x38] sm:$0xff]
      %v342 = vld [vmem:[%s327 + $0x40] sm:$0xff]
      %v343 = vld [vmem:[%s327 + $0x48] sm:$0xff]
      %v344 = vld [vmem:[%s327 + $0x50] sm:$0xff]
      %v345 = vld [vmem:[%s327 + $0x58] sm:$0xff]
      %v346 = vld [vmem:[%s327 + $0x60] sm:$0xff]
      %v347 = vld [vmem:[%s327 + $0x68] sm:$0xff]
      %v348 = vld [vmem:[%s327 + $0x70] sm:$0xff]
      %v349 = vld [vmem:[%s327 + $0x78] sm:$0xff]
      %v350 = vld [vmem:[%s327 + $0x80] sm:$0xff]
      %v351 = vld [vmem:[%s327 + $0x88] sm:$0xff]
      %v352 = vld [vmem:[%s327 + $0x90] sm:$0xff]
      %v353 = vld [vmem:[%s327 + $0x98] sm:$0xff]
      %v354 = vld [vmem:[%s327 + $0xa0] sm:$0xff]
      %v355 = vld [vmem:[%s327 + $0xa8] sm:$0xff]
      %v356 = vld [vmem:[%s327 + $0xb0] sm:$0xff]
      %v357 = vld [vmem:[%s327 + $0xb8] sm:$0xff]
      %v358 = vld [vmem:[%s327 + $0xc0] sm:$0xff]
      %v359 = vld [vmem:[%s327 + $0xc8] sm:$0xff]
      %v360 = vld [vmem:[%s327 + $0xd0] sm:$0xff]
      %v361 = vld [vmem:[%s327 + $0xd8] sm:$0xff]
      %v362 = vld [vmem:[%s327 + $0xe0] sm:$0xff]
      %v363 = vld [vmem:[%s327 + $0xe8] sm:$0xff]
      %v364 = vld [vmem:[%s327 + $0xf0] sm:$0xff]
      %v365 = vld [vmem:[%s327 + $0xf8] sm:$0xff]
      %v366 = vld [vmem:[%s327 + $0x100] sm:$0xff]
      %v367 = vld [vmem:[%s327 + $0x108] sm:$0xff]
      %v368 = vld [vmem:[%s327 + $0x110] sm:$0xff]
      %v369 = vld [vmem:[%s327 + $0x118] sm:$0xff]
      %v370 = vpack.c.bf16 %v334, %v334
      %v371 = vpack.c.bf16 %v335, %v335
      %v372 = vpack.c.bf16 %v336, %v336
      %v373 = vpack.c.bf16 %v337, %v337
      %v374 = vpack.c.bf16 %v338, %v338
      %v375 = vpack.c.bf16 %v339, %v339
      %v376 = vpack.c.bf16 %v340, %v340
      %v377 = vpack.c.bf16 %v341, %v341
      %v378 = vpack.c.bf16 %v342, %v342
      %v379 = vpack.c.bf16 %v343, %v343
      %v380 = vpack.c.bf16 %v344, %v344
      %v381 = vpack.c.bf16 %v345, %v345
      %v382 = vpack.c.bf16 %v346, %v346
      %v383 = vpack.c.bf16 %v347, %v347
      %v384 = vpack.c.bf16 %v348, %v348
      %v385 = vpack.c.bf16 %v349, %v349
      %v386 = vpack.c.bf16 %v350, %v350
      %v387 = vpack.c.bf16 %v351, %v351
      %v388 = vpack.c.bf16 %v352, %v352
      %v389 = vpack.c.bf16 %v353, %v353
      %v390 = vpack.c.bf16 %v354, %v354
      %v391 = vpack.c.bf16 %v355, %v355
      %v392 = vpack.c.bf16 %v356, %v356
      %v393 = vpack.c.bf16 %v357, %v357
      %v394 = vpack.c.bf16 %v358, %v358
      %v395 = vpack.c.bf16 %v359, %v359
      %v396 = vpack.c.bf16 %v360, %v360
      %v397 = vpack.c.bf16 %v361, %v361
      %v398 = vpack.c.bf16 %v362, %v362
      %v399 = vpack.c.bf16 %v363, %v363
      %v400 = vpack.c.bf16 %v364, %v364
      %v401 = vpack.c.bf16 %v365, %v365
      %v402 = vpack.c.bf16 %v366, %v366
      %v403 = vpack.c.bf16 %v367, %v367
      %v404 = vpack.c.bf16 %v368, %v368
      %v405 = vpack.c.bf16 %v369, %v369
      %vm406 = vcmask 125952
      %407 = vst.msk [vmem:[#allocation2] sm:$0xf] %vm406, %v370
      %408 = vst.msk [vmem:[#allocation2 + $0x8] sm:$0xf] %vm406, %v371
      %409 = vst.msk [vmem:[#allocation2 + $0x10] sm:$0xf] %vm406, %v372
      %410 = vst.msk [vmem:[#allocation2 + $0x18] sm:$0xf] %vm406, %v373
      %411 = vst.msk [vmem:[#allocation2 + $0x20] sm:$0xf] %vm406, %v374
      %412 = vst.msk [vmem:[#allocation2 + $0x28] sm:$0xf] %vm406, %v375
      %413 = vst.msk [vmem:[#allocation2 + $0x30] sm:$0xf] %vm406, %v376
      %414 = vst.msk [vmem:[#allocation2 + $0x38] sm:$0xf] %vm406, %v377
      %415 = vst.msk [vmem:[#allocation2 + $0x40] sm:$0xf] %vm406, %v378
      %416 = vst.msk [vmem:[#allocation2 + $0x48] sm:$0xf] %vm406, %v379
      %417 = vst.msk [vmem:[#allocation2 + $0x50] sm:$0xf] %vm406, %v380
      %418 = vst.msk [vmem:[#allocation2 + $0x58] sm:$0xf] %vm406, %v381
      %419 = vst.msk [vmem:[#allocation2 + $0x60] sm:$0xf] %vm406, %v382
      %420 = vst.msk [vmem:[#allocation2 + $0x68] sm:$0xf] %vm406, %v383
      %421 = vst.msk [vmem:[#allocation2 + $0x70] sm:$0xf] %vm406, %v384
      %422 = vst.msk [vmem:[#allocation2 + $0x78] sm:$0xf] %vm406, %v385
      %423 = vst.msk [vmem:[#allocation2 + $0x80] sm:$0xf] %vm406, %v386
      %424 = vst.msk [vmem:[#allocation2 + $0x88] sm:$0xf] %vm406, %v387
      %425 = vst.msk [vmem:[#allocation2 + $0x90] sm:$0xf] %vm406, %v388
      %426 = vst.msk [vmem:[#allocation2 + $0x98] sm:$0xf] %vm406, %v389
      %427 = vst.msk [vmem:[#allocation2 + $0xa0] sm:$0xf] %vm406, %v390
      %428 = vst.msk [vmem:[#allocation2 + $0xa8] sm:$0xf] %vm406, %v391
      %429 = vst.msk [vmem:[#allocation2 + $0xb0] sm:$0xf] %vm406, %v392
      %430 = vst.msk [vmem:[#allocation2 + $0xb8] sm:$0xf] %vm406, %v393
      %431 = vst.msk [vmem:[#allocation2 + $0xc0] sm:$0xf] %vm406, %v394
      %432 = vst.msk [vmem:[#allocation2 + $0xc8] sm:$0xf] %vm406, %v395
      %433 = vst.msk [vmem:[#allocation2 + $0xd0] sm:$0xf] %vm406, %v396
      %434 = vst.msk [vmem:[#allocation2 + $0xd8] sm:$0xf] %vm406, %v397
      %435 = vst.msk [vmem:[#allocation2 + $0xe0] sm:$0xf] %vm406, %v398
      %436 = vst.msk [vmem:[#allocation2 + $0xe8] sm:$0xf] %vm406, %v399
      %437 = vst.msk [vmem:[#allocation2 + $0xf0] sm:$0xf] %vm406, %v400
      %438 = vst.msk [vmem:[#allocation2 + $0xf8] sm:$0xf] %vm406, %v401
      %439 = vst.msk [vmem:[#allocation2 + $0x100] sm:$0xf] %vm406, %v402
      %440 = vst.msk [vmem:[#allocation2 + $0x108] sm:$0xf] %vm406, %v403
      %441 = vst.msk [vmem:[#allocation2 + $0x110] sm:$0xf] %vm406, %v404
      %442 = vst.msk [vmem:[#allocation2 + $0x118] sm:$0xf] %vm406, %v405
      %v443 = vld [vmem:[%s327 + $0x1] sm:$0xff]
      %v444 = vld [vmem:[%s327 + $0x9] sm:$0xff]
      %v445 = vld [vmem:[%s327 + $0x11] sm:$0xff]
      %v446 = vld [vmem:[%s327 + $0x19] sm:$0xff]
      %v447 = vld [vmem:[%s327 + $0x21] sm:$0xff]
      %v448 = vld [vmem:[%s327 + $0x29] sm:$0xff]
      %v449 = vld [vmem:[%s327 + $0x31] sm:$0xff]
      %v450 = vld [vmem:[%s327 + $0x39] sm:$0xff]
      %v451 = vld [vmem:[%s327 + $0x41] sm:$0xff]
      %v452 = vld [vmem:[%s327 + $0x49] sm:$0xff]
      %v453 = vld [vmem:[%s327 + $0x51] sm:$0xff]
      %v454 = vld [vmem:[%s327 + $0x59] sm:$0xff]
      %v455 = vld [vmem:[%s327 + $0x61] sm:$0xff]
      %v456 = vld [vmem:[%s327 + $0x69] sm:$0xff]
      %v457 = vld [vmem:[%s327 + $0x71] sm:$0xff]
      %v458 = vld [vmem:[%s327 + $0x79] sm:$0xff]
      %v459 = vld [vmem:[%s327 + $0x81] sm:$0xff]
      %v460 = vld [vmem:[%s327 + $0x89] sm:$0xff]
      %v461 = vld [vmem:[%s327 + $0x91] sm:$0xff]
      %v462 = vld [vmem:[%s327 + $0x99] sm:$0xff]
      %v463 = vld [vmem:[%s327 + $0xa1] sm:$0xff]
      %v464 = vld [vmem:[%s327 + $0xa9] sm:$0xff]
      %v465 = vld [vmem:[%s327 + $0xb1] sm:$0xff]
      %v466 = vld [vmem:[%s327 + $0xb9] sm:$0xff]
      %v467 = vld [vmem:[%s327 + $0xc1] sm:$0xff]
      %v468 = vld [vmem:[%s327 + $0xc9] sm:$0xff]
      %v469 = vld [vmem:[%s327 + $0xd1] sm:$0xff]
      %v470 = vld [vmem:[%s327 + $0xd9] sm:$0xff]
      %v471 = vld [vmem:[%s327 + $0xe1] sm:$0xff]
      %v472 = vld [vmem:[%s327 + $0xe9] sm:$0xff]
      %v473 = vld [vmem:[%s327 + $0xf1] sm:$0xff]
      %v474 = vld [vmem:[%s327 + $0xf9] sm:$0xff]
      %v475 = vld [vmem:[%s327 + $0x101] sm:$0xff]
      %v476 = vld [vmem:[%s327 + $0x109] sm:$0xff]
      %v477 = vld [vmem:[%s327 + $0x111] sm:$0xff]
      %v478 = vld [vmem:[%s327 + $0x119] sm:$0xff]
      %v479 = vpack.c.bf16 %v443, %v443
      %v480 = vpack.c.bf16 %v444, %v444
      %v481 = vpack.c.bf16 %v445, %v445
      %v482 = vpack.c.bf16 %v446, %v446
      %v483 = vpack.c.bf16 %v447, %v447
      %v484 = vpack.c.bf16 %v448, %v448
      %v485 = vpack.c.bf16 %v449, %v449
      %v486 = vpack.c.bf16 %v450, %v450
      %v487 = vpack.c.bf16 %v451, %v451
      %v488 = vpack.c.bf16 %v452, %v452
      %v489 = vpack.c.bf16 %v453, %v453
      %v490 = vpack.c.bf16 %v454, %v454
      %v491 = vpack.c.bf16 %v455, %v455
      %v492 = vpack.c.bf16 %v456, %v456
      %v493 = vpack.c.bf16 %v457, %v457
      %v494 = vpack.c.bf16 %v458, %v458
      %v495 = vpack.c.bf16 %v459, %v459
      %v496 = vpack.c.bf16 %v460, %v460
      %v497 = vpack.c.bf16 %v461, %v461
      %v498 = vpack.c.bf16 %v462, %v462
      %v499 = vpack.c.bf16 %v463, %v463
      %v500 = vpack.c.bf16 %v464, %v464
      %v501 = vpack.c.bf16 %v465, %v465
      %v502 = vpack.c.bf16 %v466, %v466
      %v503 = vpack.c.bf16 %v467, %v467
      %v504 = vpack.c.bf16 %v468, %v468
      %v505 = vpack.c.bf16 %v469, %v469
      %v506 = vpack.c.bf16 %v470, %v470
      %v507 = vpack.c.bf16 %v471, %v471
      %v508 = vpack.c.bf16 %v472, %v472
      %v509 = vpack.c.bf16 %v473, %v473
      %v510 = vpack.c.bf16 %v474, %v474
      %v511 = vpack.c.bf16 %v475, %v475
      %v512 = vpack.c.bf16 %v476, %v476
      %v513 = vpack.c.bf16 %v477, %v477
      %v514 = vpack.c.bf16 %v478, %v478
      %551 = vrot.lane.b32.xlu0 %v479, 16
      %v552 = vpop.permute.xlu0 %551
      %553 = vrot.lane.b32.xlu0 %v480, 16
      %v554 = vpop.permute.xlu0 %553
      %555 = vrot.lane.b32.xlu0 %v481, 16
      %v556 = vpop.permute.xlu0 %555
      %557 = vrot.lane.b32.xlu0 %v482, 16
      %v558 = vpop.permute.xlu0 %557
      %559 = vrot.lane.b32.xlu0 %v483, 16
      %v560 = vpop.permute.xlu0 %559
      %561 = vrot.lane.b32.xlu0 %v484, 16
      %v562 = vpop.permute.xlu0 %561
      %563 = vrot.lane.b32.xlu0 %v485, 16
      %v564 = vpop.permute.xlu0 %563
      %565 = vrot.lane.b32.xlu0 %v486, 16
      %v566 = vpop.permute.xlu0 %565
      %567 = vrot.lane.b32.xlu0 %v487, 16
      %v568 = vpop.permute.xlu0 %567
      %569 = vrot.lane.b32.xlu0 %v488, 16
      %v570 = vpop.permute.xlu0 %569
      %571 = vrot.lane.b32.xlu0 %v489, 16
      %v572 = vpop.permute.xlu0 %571
      %573 = vrot.lane.b32.xlu0 %v490, 16
      %v574 = vpop.permute.xlu0 %573
      %575 = vrot.lane.b32.xlu0 %v491, 16
      %v576 = vpop.permute.xlu0 %575
      %577 = vrot.lane.b32.xlu0 %v492, 16
      %v578 = vpop.permute.xlu0 %577
      %579 = vrot.lane.b32.xlu0 %v493, 16
      %v580 = vpop.permute.xlu0 %579
      %581 = vrot.lane.b32.xlu0 %v494, 16
      %v582 = vpop.permute.xlu0 %581
      %583 = vrot.lane.b32.xlu0 %v495, 16
      %v584 = vpop.permute.xlu0 %583
      %585 = vrot.lane.b32.xlu0 %v496, 16
      %v586 = vpop.permute.xlu0 %585
      %587 = vrot.lane.b32.xlu0 %v497, 16
      %v588 = vpop.permute.xlu0 %587
      %589 = vrot.lane.b32.xlu0 %v498, 16
      %v590 = vpop.permute.xlu0 %589
      %591 = vrot.lane.b32.xlu0 %v499, 16
      %v592 = vpop.permute.xlu0 %591
      %593 = vrot.lane.b32.xlu0 %v500, 16
      %v594 = vpop.permute.xlu0 %593
      %595 = vrot.lane.b32.xlu0 %v501, 16
      %v596 = vpop.permute.xlu0 %595
      %597 = vrot.lane.b32.xlu0 %v502, 16
      %v598 = vpop.permute.xlu0 %597
      %599 = vrot.lane.b32.xlu0 %v503, 16
      %v600 = vpop.permute.xlu0 %599
      %601 = vrot.lane.b32.xlu0 %v504, 16
      %v602 = vpop.permute.xlu0 %601
      %603 = vrot.lane.b32.xlu0 %v505, 16
      %v604 = vpop.permute.xlu0 %603
      %605 = vrot.lane.b32.xlu0 %v506, 16
      %v606 = vpop.permute.xlu0 %605
      %607 = vrot.lane.b32.xlu0 %v507, 16
      %v608 = vpop.permute.xlu0 %607
      %609 = vrot.lane.b32.xlu0 %v508, 16
      %v610 = vpop.permute.xlu0 %609
      %611 = vrot.lane.b32.xlu0 %v509, 16
      %v612 = vpop.permute.xlu0 %611
      %613 = vrot.lane.b32.xlu0 %v510, 16
      %v614 = vpop.permute.xlu0 %613
      %615 = vrot.lane.b32.xlu0 %v511, 16
      %v616 = vpop.permute.xlu0 %615
      %617 = vrot.lane.b32.xlu0 %v512, 16
      %v618 = vpop.permute.xlu0 %617
      %619 = vrot.lane.b32.xlu0 %v513, 16
      %v620 = vpop.permute.xlu0 %619
      %621 = vrot.lane.b32.xlu0 %v514, 16
      %v622 = vpop.permute.xlu0 %621
      %vm659 = vcmask 257152
      %660 = vst.msk [vmem:[#allocation2] sm:$0xf] %vm659, %v552
      %661 = vst.msk [vmem:[#allocation2 + $0x8] sm:$0xf] %vm659, %v554
      %662 = vst.msk [vmem:[#allocation2 + $0x10] sm:$0xf] %vm659, %v556
      %663 = vst.msk [vmem:[#allocation2 + $0x18] sm:$0xf] %vm659, %v558
      %664 = vst.msk [vmem:[#allocation2 + $0x20] sm:$0xf] %vm659, %v560
      %665 = vst.msk [vmem:[#allocation2 + $0x28] sm:$0xf] %vm659, %v562
      %666 = vst.msk [vmem:[#allocation2 + $0x30] sm:$0xf] %vm659, %v564
      %667 = vst.msk [vmem:[#allocation2 + $0x38] sm:$0xf] %vm659, %v566
      %668 = vst.msk [vmem:[#allocation2 + $0x40] sm:$0xf] %vm659, %v568
      %669 = vst.msk [vmem:[#allocation2 + $0x48] sm:$0xf] %vm659, %v570
      %670 = vst.msk [vmem:[#allocation2 + $0x50] sm:$0xf] %vm659, %v572
      %671 = vst.msk [vmem:[#allocation2 + $0x58] sm:$0xf] %vm659, %v574
      %672 = vst.msk [vmem:[#allocation2 + $0x60] sm:$0xf] %vm659, %v576
      %673 = vst.msk [vmem:[#allocation2 + $0x68] sm:$0xf] %vm659, %v578
      %674 = vst.msk [vmem:[#allocation2 + $0x70] sm:$0xf] %vm659, %v580
      %675 = vst.msk [vmem:[#allocation2 + $0x78] sm:$0xf] %vm659, %v582
      %676 = vst.msk [vmem:[#allocation2 + $0x80] sm:$0xf] %vm659, %v584
      %677 = vst.msk [vmem:[#allocation2 + $0x88] sm:$0xf] %vm659, %v586
      %678 = vst.msk [vmem:[#allocation2 + $0x90] sm:$0xf] %vm659, %v588
      %679 = vst.msk [vmem:[#allocation2 + $0x98] sm:$0xf] %vm659, %v590
      %680 = vst.msk [vmem:[#allocation2 + $0xa0] sm:$0xf] %vm659, %v592
      %681 = vst.msk [vmem:[#allocation2 + $0xa8] sm:$0xf] %vm659, %v594
      %682 = vst.msk [vmem:[#allocation2 + $0xb0] sm:$0xf] %vm659, %v596
      %683 = vst.msk [vmem:[#allocation2 + $0xb8] sm:$0xf] %vm659, %v598
      %684 = vst.msk [vmem:[#allocation2 + $0xc0] sm:$0xf] %vm659, %v600
      %685 = vst.msk [vmem:[#allocation2 + $0xc8] sm:$0xf] %vm659, %v602
      %686 = vst.msk [vmem:[#allocation2 + $0xd0] sm:$0xf] %vm659, %v604
      %687 = vst.msk [vmem:[#allocation2 + $0xd8] sm:$0xf] %vm659, %v606
      %688 = vst.msk [vmem:[#allocation2 + $0xe0] sm:$0xf] %vm659, %v608
      %689 = vst.msk [vmem:[#allocation2 + $0xe8] sm:$0xf] %vm659, %v610
      %690 = vst.msk [vmem:[#allocation2 + $0xf0] sm:$0xf] %vm659, %v612
      %691 = vst.msk [vmem:[#allocation2 + $0xf8] sm:$0xf] %vm659, %v614
      %692 = vst.msk [vmem:[#allocation2 + $0x100] sm:$0xf] %vm659, %v616
      %693 = vst.msk [vmem:[#allocation2 + $0x108] sm:$0xf] %vm659, %v618
      %694 = vst.msk [vmem:[#allocation2 + $0x110] sm:$0xf] %vm659, %v620
      %695 = vst.msk [vmem:[#allocation2 + $0x118] sm:$0xf] %vm659, %v622
      %v696 = vld [vmem:[%s327 + $0x2] sm:$0xff]
      %v697 = vld [vmem:[%s327 + $0xa] sm:$0xff]
      %v698 = vld [vmem:[%s327 + $0x12] sm:$0xff]
      %v699 = vld [vmem:[%s327 + $0x1a] sm:$0xff]
      %v700 = vld [vmem:[%s327 + $0x22] sm:$0xff]
      %v701 = vld [vmem:[%s327 + $0x2a] sm:$0xff]
      %v702 = vld [vmem:[%s327 + $0x32] sm:$0xff]
      %v703 = vld [vmem:[%s327 + $0x3a] sm:$0xff]
      %v704 = vld [vmem:[%s327 + $0x42] sm:$0xff]
      %v705 = vld [vmem:[%s327 + $0x4a] sm:$0xff]
      %v706 = vld [vmem:[%s327 + $0x52] sm:$0xff]
      %v707 = vld [vmem:[%s327 + $0x5a] sm:$0xff]
      %v708 = vld [vmem:[%s327 + $0x62] sm:$0xff]
      %v709 = vld [vmem:[%s327 + $0x6a] sm:$0xff]
      %v710 = vld [vmem:[%s327 + $0x72] sm:$0xff]
      %v711 = vld [vmem:[%s327 + $0x7a] sm:$0xff]
      %v712 = vld [vmem:[%s327 + $0x82] sm:$0xff]
      %v713 = vld [vmem:[%s327 + $0x8a] sm:$0xff]
      %v714 = vld [vmem:[%s327 + $0x92] sm:$0xff]
      %v715 = vld [vmem:[%s327 + $0x9a] sm:$0xff]
      %v716 = vld [vmem:[%s327 + $0xa2] sm:$0xff]
      %v717 = vld [vmem:[%s327 + $0xaa] sm:$0xff]
      %v718 = vld [vmem:[%s327 + $0xb2] sm:$0xff]
      %v719 = vld [vmem:[%s327 + $0xba] sm:$0xff]
      %v720 = vld [vmem:[%s327 + $0xc2] sm:$0xff]
      %v721 = vld [vmem:[%s327 + $0xca] sm:$0xff]
      %v722 = vld [vmem:[%s327 + $0xd2] sm:$0xff]
      %v723 = vld [vmem:[%s327 + $0xda] sm:$0xff]
      %v724 = vld [vmem:[%s327 + $0xe2] sm:$0xff]
      %v725 = vld [vmem:[%s327 + $0xea] sm:$0xff]
      %v726 = vld [vmem:[%s327 + $0xf2] sm:$0xff]
      %v727 = vld [vmem:[%s327 + $0xfa] sm:$0xff]
      %v728 = vld [vmem:[%s327 + $0x102] sm:$0xff]
      %v729 = vld [vmem:[%s327 + $0x10a] sm:$0xff]
      %v730 = vld [vmem:[%s327 + $0x112] sm:$0xff]
      %v731 = vld [vmem:[%s327 + $0x11a] sm:$0xff]
      %v732 = vpack.c.bf16 %v696, %v696
      %v733 = vpack.c.bf16 %v697, %v697
      %v734 = vpack.c.bf16 %v698, %v698
      %v735 = vpack.c.bf16 %v699, %v699
      %v736 = vpack.c.bf16 %v700, %v700
      %v737 = vpack.c.bf16 %v701, %v701
      %v738 = vpack.c.bf16 %v702, %v702
      %v739 = vpack.c.bf16 %v703, %v703
      %v740 = vpack.c.bf16 %v704, %v704
      %v741 = vpack.c.bf16 %v705, %v705
      %v742 = vpack.c.bf16 %v706, %v706
      %v743 = vpack.c.bf16 %v707, %v707
      %v744 = vpack.c.bf16 %v708, %v708
      %v745 = vpack.c.bf16 %v709, %v709
      %v746 = vpack.c.bf16 %v710, %v710
      %v747 = vpack.c.bf16 %v711, %v711
      %v748 = vpack.c.bf16 %v712, %v712
      %v749 = vpack.c.bf16 %v713, %v713
      %v750 = vpack.c.bf16 %v714, %v714
      %v751 = vpack.c.bf16 %v715, %v715
      %v752 = vpack.c.bf16 %v716, %v716
      %v753 = vpack.c.bf16 %v717, %v717
      %v754 = vpack.c.bf16 %v718, %v718
      %v755 = vpack.c.bf16 %v719, %v719
      %v756 = vpack.c.bf16 %v720, %v720
      %v757 = vpack.c.bf16 %v721, %v721
      %v758 = vpack.c.bf16 %v722, %v722
      %v759 = vpack.c.bf16 %v723, %v723
      %v760 = vpack.c.bf16 %v724, %v724
      %v761 = vpack.c.bf16 %v725, %v725
      %v762 = vpack.c.bf16 %v726, %v726
      %v763 = vpack.c.bf16 %v727, %v727
      %v764 = vpack.c.bf16 %v728, %v728
      %v765 = vpack.c.bf16 %v729, %v729
      %v766 = vpack.c.bf16 %v730, %v730
      %v767 = vpack.c.bf16 %v731, %v731
      %804 = vrot.lane.b32.xlu0 %v732, 32
      %v805 = vpop.permute.xlu0 %804
      %806 = vrot.lane.b32.xlu0 %v733, 32
      %v807 = vpop.permute.xlu0 %806
      %808 = vrot.lane.b32.xlu0 %v734, 32
      %v809 = vpop.permute.xlu0 %808
      %810 = vrot.lane.b32.xlu0 %v735, 32
      %v811 = vpop.permute.xlu0 %810
      %812 = vrot.lane.b32.xlu0 %v736, 32
      %v813 = vpop.permute.xlu0 %812
      %814 = vrot.lane.b32.xlu0 %v737, 32
      %v815 = vpop.permute.xlu0 %814
      %816 = vrot.lane.b32.xlu0 %v738, 32
      %v817 = vpop.permute.xlu0 %816
      %818 = vrot.lane.b32.xlu0 %v739, 32
      %v819 = vpop.permute.xlu0 %818
      %820 = vrot.lane.b32.xlu0 %v740, 32
      %v821 = vpop.permute.xlu0 %820
      %822 = vrot.lane.b32.xlu0 %v741, 32
      %v823 = vpop.permute.xlu0 %822
      %824 = vrot.lane.b32.xlu0 %v742, 32
      %v825 = vpop.permute.xlu0 %824
      %826 = vrot.lane.b32.xlu0 %v743, 32
      %v827 = vpop.permute.xlu0 %826
      %828 = vrot.lane.b32.xlu0 %v744, 32
      %v829 = vpop.permute.xlu0 %828
      %830 = vrot.lane.b32.xlu0 %v745, 32
      %v831 = vpop.permute.xlu0 %830
      %832 = vrot.lane.b32.xlu0 %v746, 32
      %v833 = vpop.permute.xlu0 %832
      %834 = vrot.lane.b32.xlu0 %v747, 32
      %v835 = vpop.permute.xlu0 %834
      %836 = vrot.lane.b32.xlu0 %v748, 32
      %v837 = vpop.permute.xlu0 %836
      %838 = vrot.lane.b32.xlu0 %v749, 32
      %v839 = vpop.permute.xlu0 %838
      %840 = vrot.lane.b32.xlu0 %v750, 32
      %v841 = vpop.permute.xlu0 %840
      %842 = vrot.lane.b32.xlu0 %v751, 32
      %v843 = vpop.permute.xlu0 %842
      %844 = vrot.lane.b32.xlu0 %v752, 32
      %v845 = vpop.permute.xlu0 %844
      %846 = vrot.lane.b32.xlu0 %v753, 32
      %v847 = vpop.permute.xlu0 %846
      %848 = vrot.lane.b32.xlu0 %v754, 32
      %v849 = vpop.permute.xlu0 %848
      %850 = vrot.lane.b32.xlu0 %v755, 32
      %v851 = vpop.permute.xlu0 %850
      %852 = vrot.lane.b32.xlu0 %v756, 32
      %v853 = vpop.permute.xlu0 %852
      %854 = vrot.lane.b32.xlu0 %v757, 32
      %v855 = vpop.permute.xlu0 %854
      %856 = vrot.lane.b32.xlu0 %v758, 32
      %v857 = vpop.permute.xlu0 %856
      %858 = vrot.lane.b32.xlu0 %v759, 32
      %v859 = vpop.permute.xlu0 %858
      %860 = vrot.lane.b32.xlu0 %v760, 32
      %v861 = vpop.permute.xlu0 %860
      %862 = vrot.lane.b32.xlu0 %v761, 32
      %v863 = vpop.permute.xlu0 %862
      %864 = vrot.lane.b32.xlu0 %v762, 32
      %v865 = vpop.permute.xlu0 %864
      %866 = vrot.lane.b32.xlu0 %v763, 32
      %v867 = vpop.permute.xlu0 %866
      %868 = vrot.lane.b32.xlu0 %v764, 32
      %v869 = vpop.permute.xlu0 %868
      %870 = vrot.lane.b32.xlu0 %v765, 32
      %v871 = vpop.permute.xlu0 %870
      %872 = vrot.lane.b32.xlu0 %v766, 32
      %v873 = vpop.permute.xlu0 %872
      %874 = vrot.lane.b32.xlu0 %v767, 32
      %v875 = vpop.permute.xlu0 %874
      %vm912 = vcmask 388352
      %913 = vst.msk [vmem:[#allocation2] sm:$0xf] %vm912, %v805
      %914 = vst.msk [vmem:[#allocation2 + $0x8] sm:$0xf] %vm912, %v807
      %915 = vst.msk [vmem:[#allocation2 + $0x10] sm:$0xf] %vm912, %v809
      %916 = vst.msk [vmem:[#allocation2 + $0x18] sm:$0xf] %vm912, %v811
      %917 = vst.msk [vmem:[#allocation2 + $0x20] sm:$0xf] %vm912, %v813
      %918 = vst.msk [vmem:[#allocation2 + $0x28] sm:$0xf] %vm912, %v815
      %919 = vst.msk [vmem:[#allocation2 + $0x30] sm:$0xf] %vm912, %v817
      %920 = vst.msk [vmem:[#allocation2 + $0x38] sm:$0xf] %vm912, %v819
      %921 = vst.msk [vmem:[#allocation2 + $0x40] sm:$0xf] %vm912, %v821
      %922 = vst.msk [vmem:[#allocation2 + $0x48] sm:$0xf] %vm912, %v823
      %923 = vst.msk [vmem:[#allocation2 + $0x50] sm:$0xf] %vm912, %v825
      %924 = vst.msk [vmem:[#allocation2 + $0x58] sm:$0xf] %vm912, %v827
      %925 = vst.msk [vmem:[#allocation2 + $0x60] sm:$0xf] %vm912, %v829
      %926 = vst.msk [vmem:[#allocation2 + $0x68] sm:$0xf] %vm912, %v831
      %927 = vst.msk [vmem:[#allocation2 + $0x70] sm:$0xf] %vm912, %v833
      %928 = vst.msk [vmem:[#allocation2 + $0x78] sm:$0xf] %vm912, %v835
      %929 = vst.msk [vmem:[#allocation2 + $0x80] sm:$0xf] %vm912, %v837
      %930 = vst.msk [vmem:[#allocation2 + $0x88] sm:$0xf] %vm912, %v839
      %931 = vst.msk [vmem:[#allocation2 + $0x90] sm:$0xf] %vm912, %v841
      %932 = vst.msk [vmem:[#allocation2 + $0x98] sm:$0xf] %vm912, %v843
      %933 = vst.msk [vmem:[#allocation2 + $0xa0] sm:$0xf] %vm912, %v845
      %934 = vst.msk [vmem:[#allocation2 + $0xa8] sm:$0xf] %vm912, %v847
      %935 = vst.msk [vmem:[#allocation2 + $0xb0] sm:$0xf] %vm912, %v849
      %936 = vst.msk [vmem:[#allocation2 + $0xb8] sm:$0xf] %vm912, %v851
      %937 = vst.msk [vmem:[#allocation2 + $0xc0] sm:$0xf] %vm912, %v853
      %938 = vst.msk [vmem:[#allocation2 + $0xc8] sm:$0xf] %vm912, %v855
      %939 = vst.msk [vmem:[#allocation2 + $0xd0] sm:$0xf] %vm912, %v857
      %940 = vst.msk [vmem:[#allocation2 + $0xd8] sm:$0xf] %vm912, %v859
      %941 = vst.msk [vmem:[#allocation2 + $0xe0] sm:$0xf] %vm912, %v861
      %942 = vst.msk [vmem:[#allocation2 + $0xe8] sm:$0xf] %vm912, %v863
      %943 = vst.msk [vmem:[#allocation2 + $0xf0] sm:$0xf] %vm912, %v865
      %944 = vst.msk [vmem:[#allocation2 + $0xf8] sm:$0xf] %vm912, %v867
      %945 = vst.msk [vmem:[#allocation2 + $0x100] sm:$0xf] %vm912, %v869
      %946 = vst.msk [vmem:[#allocation2 + $0x108] sm:$0xf] %vm912, %v871
      %947 = vst.msk [vmem:[#allocation2 + $0x110] sm:$0xf] %vm912, %v873
      %948 = vst.msk [vmem:[#allocation2 + $0x118] sm:$0xf] %vm912, %v875
      %v949 = vld [vmem:[%s327 + $0x12] sm:$0xff]
      %v950 = vld [vmem:[%s327 + $0x1a] sm:$0xff]
      %v951 = vld [vmem:[%s327 + $0x22] sm:$0xff]
      %v952 = vld [vmem:[%s327 + $0x2a] sm:$0xff]
      %v953 = vld [vmem:[%s327 + $0x32] sm:$0xff]
      %v954 = vld [vmem:[%s327 + $0x3a] sm:$0xff]
      %v955 = vld [vmem:[%s327 + $0x42] sm:$0xff]
      %v956 = vld [vmem:[%s327 + $0x4a] sm:$0xff]
      %v957 = vld [vmem:[%s327 + $0x52] sm:$0xff]
      %v958 = vld [vmem:[%s327 + $0x5a] sm:$0xff]
      %v959 = vld [vmem:[%s327 + $0x62] sm:$0xff]
      %v960 = vld [vmem:[%s327 + $0x6a] sm:$0xff]
      %v961 = vld [vmem:[%s327 + $0x72] sm:$0xff]
      %v962 = vld [vmem:[%s327 + $0x7a] sm:$0xff]
      %v963 = vld [vmem:[%s327 + $0x82] sm:$0xff]
      %v964 = vld [vmem:[%s327 + $0x8a] sm:$0xff]
      %v965 = vld [vmem:[%s327 + $0x92] sm:$0xff]
      %v966 = vld [vmem:[%s327 + $0x9a] sm:$0xff]
      %v967 = vld [vmem:[%s327 + $0xa2] sm:$0xff]
      %v968 = vld [vmem:[%s327 + $0xaa] sm:$0xff]
      %v969 = vld [vmem:[%s327 + $0xb2] sm:$0xff]
      %v970 = vld [vmem:[%s327 + $0xba] sm:$0xff]
      %v971 = vld [vmem:[%s327 + $0xc2] sm:$0xff]
      %v972 = vld [vmem:[%s327 + $0xca] sm:$0xff]
      %v973 = vld [vmem:[%s327 + $0xd2] sm:$0xff]
      %v974 = vld [vmem:[%s327 + $0xda] sm:$0xff]
      %v975 = vld [vmem:[%s327 + $0xe2] sm:$0xff]
      %v976 = vld [vmem:[%s327 + $0xea] sm:$0xff]
      %v977 = vld [vmem:[%s327 + $0xf2] sm:$0xff]
      %v978 = vld [vmem:[%s327 + $0xfa] sm:$0xff]
      %v979 = vld [vmem:[%s327 + $0x102] sm:$0xff]
      %v980 = vld [vmem:[%s327 + $0x10a] sm:$0xff]
      %v981 = vld [vmem:[%s327 + $0x112] sm:$0xff]
      %v982 = vld [vmem:[%s327 + $0x11a] sm:$0xff]
      %v983 = vld [vmem:[%s327 + $0x122] sm:$0xff]
      %v984 = vld [vmem:[%s327 + $0x12a] sm:$0xff]
      %v985 = vpack.c.bf16 %v949, %v949
      %v986 = vpack.c.bf16 %v950, %v950
      %v987 = vpack.c.bf16 %v951, %v951
      %v988 = vpack.c.bf16 %v952, %v952
      %v989 = vpack.c.bf16 %v953, %v953
      %v990 = vpack.c.bf16 %v954, %v954
      %v991 = vpack.c.bf16 %v955, %v955
      %v992 = vpack.c.bf16 %v956, %v956
      %v993 = vpack.c.bf16 %v957, %v957
      %v994 = vpack.c.bf16 %v958, %v958
      %v995 = vpack.c.bf16 %v959, %v959
      %v996 = vpack.c.bf16 %v960, %v960
      %v997 = vpack.c.bf16 %v961, %v961
      %v998 = vpack.c.bf16 %v962, %v962
      %v999 = vpack.c.bf16 %v963, %v963
      %v1000 = vpack.c.bf16 %v964, %v964
      %v1001 = vpack.c.bf16 %v965, %v965
      %v1002 = vpack.c.bf16 %v966, %v966
      %v1003 = vpack.c.bf16 %v967, %v967
      %v1004 = vpack.c.bf16 %v968, %v968
      %v1005 = vpack.c.bf16 %v969, %v969
      %v1006 = vpack.c.bf16 %v970, %v970
      %v1007 = vpack.c.bf16 %v971, %v971
      %v1008 = vpack.c.bf16 %v972, %v972
      %v1009 = vpack.c.bf16 %v973, %v973
      %v1010 = vpack.c.bf16 %v974, %v974
      %v1011 = vpack.c.bf16 %v975, %v975
      %v1012 = vpack.c.bf16 %v976, %v976
      %v1013 = vpack.c.bf16 %v977, %v977
      %v1014 = vpack.c.bf16 %v978, %v978
      %v1015 = vpack.c.bf16 %v979, %v979
      %v1016 = vpack.c.bf16 %v980, %v980
      %v1017 = vpack.c.bf16 %v981, %v981
      %v1018 = vpack.c.bf16 %v982, %v982
      %v1019 = vpack.c.bf16 %v983, %v983
      %v1020 = vpack.c.bf16 %v984, %v984
      %1057 = vrot.lane.b32.xlu0 %v985, 48
      %v1058 = vpop.permute.xlu0 %1057
      %1059 = vrot.lane.b32.xlu0 %v986, 48
      %v1060 = vpop.permute.xlu0 %1059
      %1061 = vrot.lane.b32.xlu0 %v987, 48
      %v1062 = vpop.permute.xlu0 %1061
      %1063 = vrot.lane.b32.xlu0 %v988, 48
      %v1064 = vpop.permute.xlu0 %1063
      %1065 = vrot.lane.b32.xlu0 %v989, 48
      %v1066 = vpop.permute.xlu0 %1065
      %1067 = vrot.lane.b32.xlu0 %v990, 48
      %v1068 = vpop.permute.xlu0 %1067
      %1069 = vrot.lane.b32.xlu0 %v991, 48
      %v1070 = vpop.permute.xlu0 %1069
      %1071 = vrot.lane.b32.xlu0 %v992, 48
      %v1072 = vpop.permute.xlu0 %1071
      %1073 = vrot.lane.b32.xlu0 %v993, 48
      %v1074 = vpop.permute.xlu0 %1073
      %1075 = vrot.lane.b32.xlu0 %v994, 48
      %v1076 = vpop.permute.xlu0 %1075
      %1077 = vrot.lane.b32.xlu0 %v995, 48
      %v1078 = vpop.permute.xlu0 %1077
      %1079 = vrot.lane.b32.xlu0 %v996, 48
      %v1080 = vpop.permute.xlu0 %1079
      %1081 = vrot.lane.b32.xlu0 %v997, 48
      %v1082 = vpop.permute.xlu0 %1081
      %1083 = vrot.lane.b32.xlu0 %v998, 48
      %v1084 = vpop.permute.xlu0 %1083
      %1085 = vrot.lane.b32.xlu0 %v999, 48
      %v1086 = vpop.permute.xlu0 %1085
      %1087 = vrot.lane.b32.xlu0 %v1000, 48
      %v1088 = vpop.permute.xlu0 %1087
      %1089 = vrot.lane.b32.xlu0 %v1001, 48
      %v1090 = vpop.permute.xlu0 %1089
      %1091 = vrot.lane.b32.xlu0 %v1002, 48
      %v1092 = vpop.permute.xlu0 %1091
      %1093 = vrot.lane.b32.xlu0 %v1003, 48
      %v1094 = vpop.permute.xlu0 %1093
      %1095 = vrot.lane.b32.xlu0 %v1004, 48
      %v1096 = vpop.permute.xlu0 %1095
      %1097 = vrot.lane.b32.xlu0 %v1005, 48
      %v1098 = vpop.permute.xlu0 %1097
      %1099 = vrot.lane.b32.xlu0 %v1006, 48
      %v1100 = vpop.permute.xlu0 %1099
      %1101 = vrot.lane.b32.xlu0 %v1007, 48
      %v1102 = vpop.permute.xlu0 %1101
      %1103 = vrot.lane.b32.xlu0 %v1008, 48
      %v1104 = vpop.permute.xlu0 %1103
      %1105 = vrot.lane.b32.xlu0 %v1009, 48
      %v1106 = vpop.permute.xlu0 %1105
      %1107 = vrot.lane.b32.xlu0 %v1010, 48
      %v1108 = vpop.permute.xlu0 %1107
      %1109 = vrot.lane.b32.xlu0 %v1011, 48
      %v1110 = vpop.permute.xlu0 %1109
      %1111 = vrot.lane.b32.xlu0 %v1012, 48
      %v1112 = vpop.permute.xlu0 %1111
      %1113 = vrot.lane.b32.xlu0 %v1013, 48
      %v1114 = vpop.permute.xlu0 %1113
      %1115 = vrot.lane.b32.xlu0 %v1014, 48
      %v1116 = vpop.permute.xlu0 %1115
      %1117 = vrot.lane.b32.xlu0 %v1015, 48
      %v1118 = vpop.permute.xlu0 %1117
      %1119 = vrot.lane.b32.xlu0 %v1016, 48
      %v1120 = vpop.permute.xlu0 %1119
      %1121 = vrot.lane.b32.xlu0 %v1017, 48
      %v1122 = vpop.permute.xlu0 %1121
      %1123 = vrot.lane.b32.xlu0 %v1018, 48
      %v1124 = vpop.permute.xlu0 %1123
      %1125 = vrot.lane.b32.xlu0 %v1019, 48
      %v1126 = vpop.permute.xlu0 %1125
      %1127 = vrot.lane.b32.xlu0 %v1020, 48
      %v1128 = vpop.permute.xlu0 %1127
      %vm1165 = vcmask 519552
      %1166 = vst.msk [vmem:[#allocation2] sm:$0xf] %vm1165, %v1058
      %1167 = vst.msk [vmem:[#allocation2 + $0x8] sm:$0xf] %vm1165, %v1060
      %1168 = vst.msk [vmem:[#allocation2 + $0x10] sm:$0xf] %vm1165, %v1062
      %1169 = vst.msk [vmem:[#allocation2 + $0x18] sm:$0xf] %vm1165, %v1064
      %1170 = vst.msk [vmem:[#allocation2 + $0x20] sm:$0xf] %vm1165, %v1066
      %1171 = vst.msk [vmem:[#allocation2 + $0x28] sm:$0xf] %vm1165, %v1068
      %1172 = vst.msk [vmem:[#allocation2 + $0x30] sm:$0xf] %vm1165, %v1070
      %1173 = vst.msk [vmem:[#allocation2 + $0x38] sm:$0xf] %vm1165, %v1072
      %1174 = vst.msk [vmem:[#allocation2 + $0x40] sm:$0xf] %vm1165, %v1074
      %1175 = vst.msk [vmem:[#allocation2 + $0x48] sm:$0xf] %vm1165, %v1076
      %1176 = vst.msk [vmem:[#allocation2 + $0x50] sm:$0xf] %vm1165, %v1078
      %1177 = vst.msk [vmem:[#allocation2 + $0x58] sm:$0xf] %vm1165, %v1080
      %1178 = vst.msk [vmem:[#allocation2 + $0x60] sm:$0xf] %vm1165, %v1082
      %1179 = vst.msk [vmem:[#allocation2 + $0x68] sm:$0xf] %vm1165, %v1084
      %1180 = vst.msk [vmem:[#allocation2 + $0x70] sm:$0xf] %vm1165, %v1086
      %1181 = vst.msk [vmem:[#allocation2 + $0x78] sm:$0xf] %vm1165, %v1088
      %1182 = vst.msk [vmem:[#allocation2 + $0x80] sm:$0xf] %vm1165, %v1090
      %1183 = vst.msk [vmem:[#allocation2 + $0x88] sm:$0xf] %vm1165, %v1092
      %1184 = vst.msk [vmem:[#allocation2 + $0x90] sm:$0xf] %vm1165, %v1094
      %1185 = vst.msk [vmem:[#allocation2 + $0x98] sm:$0xf] %vm1165, %v1096
      %1186 = vst.msk [vmem:[#allocation2 + $0xa0] sm:$0xf] %vm1165, %v1098
      %1187 = vst.msk [vmem:[#allocation2 + $0xa8] sm:$0xf] %vm1165, %v1100
      %1188 = vst.msk [vmem:[#allocation2 + $0xb0] sm:$0xf] %vm1165, %v1102
      %1189 = vst.msk [vmem:[#allocation2 + $0xb8] sm:$0xf] %vm1165, %v1104
      %1190 = vst.msk [vmem:[#allocation2 + $0xc0] sm:$0xf] %vm1165, %v1106
      %1191 = vst.msk [vmem:[#allocation2 + $0xc8] sm:$0xf] %vm1165, %v1108
      %1192 = vst.msk [vmem:[#allocation2 + $0xd0] sm:$0xf] %vm1165, %v1110
      %1193 = vst.msk [vmem:[#allocation2 + $0xd8] sm:$0xf] %vm1165, %v1112
      %1194 = vst.msk [vmem:[#allocation2 + $0xe0] sm:$0xf] %vm1165, %v1114
      %1195 = vst.msk [vmem:[#allocation2 + $0xe8] sm:$0xf] %vm1165, %v1116
      %1196 = vst.msk [vmem:[#allocation2 + $0xf0] sm:$0xf] %vm1165, %v1118
      %1197 = vst.msk [vmem:[#allocation2 + $0xf8] sm:$0xf] %vm1165, %v1120
      %1198 = vst.msk [vmem:[#allocation2 + $0x100] sm:$0xf] %vm1165, %v1122
      %1199 = vst.msk [vmem:[#allocation2 + $0x108] sm:$0xf] %vm1165, %v1124
      %1200 = vst.msk [vmem:[#allocation2 + $0x110] sm:$0xf] %vm1165, %v1126
      %1201 = vst.msk [vmem:[#allocation2 + $0x118] sm:$0xf] %vm1165, %v1128
      %v1202 = vld [vmem:[%s327 + $0x13] sm:$0xff]
      %v1203 = vld [vmem:[%s327 + $0x1b] sm:$0xff]
      %v1204 = vld [vmem:[%s327 + $0x23] sm:$0xff]
      %v1205 = vld [vmem:[%s327 + $0x2b] sm:$0xff]
      %v1206 = vld [vmem:[%s327 + $0x33] sm:$0xff]
      %v1207 = vld [vmem:[%s327 + $0x3b] sm:$0xff]
      %v1208 = vld [vmem:[%s327 + $0x43] sm:$0xff]
      %v1209 = vld [vmem:[%s327 + $0x4b] sm:$0xff]
      %v1210 = vld [vmem:[%s327 + $0x53] sm:$0xff]
      %v1211 = vld [vmem:[%s327 + $0x5b] sm:$0xff]
      %v1212 = vld [vmem:[%s327 + $0x63] sm:$0xff]
      %v1213 = vld [vmem:[%s327 + $0x6b] sm:$0xff]
      %v1214 = vld [vmem:[%s327 + $0x73] sm:$0xff]
      %v1215 = vld [vmem:[%s327 + $0x7b] sm:$0xff]
      %v1216 = vld [vmem:[%s327 + $0x83] sm:$0xff]
      %v1217 = vld [vmem:[%s327 + $0x8b] sm:$0xff]
      %v1218 = vld [vmem:[%s327 + $0x93] sm:$0xff]
      %v1219 = vld [vmem:[%s327 + $0x9b] sm:$0xff]
      %v1220 = vld [vmem:[%s327 + $0xa3] sm:$0xff]
      %v1221 = vld [vmem:[%s327 + $0xab] sm:$0xff]
      %v1222 = vld [vmem:[%s327 + $0xb3] sm:$0xff]
      %v1223 = vld [vmem:[%s327 + $0xbb] sm:$0xff]
      %v1224 = vld [vmem:[%s327 + $0xc3] sm:$0xff]
      %v1225 = vld [vmem:[%s327 + $0xcb] sm:$0xff]
      %v1226 = vld [vmem:[%s327 + $0xd3] sm:$0xff]
      %v1227 = vld [vmem:[%s327 + $0xdb] sm:$0xff]
      %v1228 = vld [vmem:[%s327 + $0xe3] sm:$0xff]
      %v1229 = vld [vmem:[%s327 + $0xeb] sm:$0xff]
      %v1230 = vld [vmem:[%s327 + $0xf3] sm:$0xff]
      %v1231 = vld [vmem:[%s327 + $0xfb] sm:$0xff]
      %v1232 = vld [vmem:[%s327 + $0x103] sm:$0xff]
      %v1233 = vld [vmem:[%s327 + $0x10b] sm:$0xff]
      %v1234 = vld [vmem:[%s327 + $0x113] sm:$0xff]
      %v1235 = vld [vmem:[%s327 + $0x11b] sm:$0xff]
      %v1236 = vld [vmem:[%s327 + $0x123] sm:$0xff]
      %v1237 = vld [vmem:[%s327 + $0x12b] sm:$0xff]
      %v1238 = vpack.c.bf16 %v1202, %v1202
      %v1239 = vpack.c.bf16 %v1203, %v1203
      %v1240 = vpack.c.bf16 %v1204, %v1204
      %v1241 = vpack.c.bf16 %v1205, %v1205
      %v1242 = vpack.c.bf16 %v1206, %v1206
      %v1243 = vpack.c.bf16 %v1207, %v1207
      %v1244 = vpack.c.bf16 %v1208, %v1208
      %v1245 = vpack.c.bf16 %v1209, %v1209
      %v1246 = vpack.c.bf16 %v1210, %v1210
      %v1247 = vpack.c.bf16 %v1211, %v1211
      %v1248 = vpack.c.bf16 %v1212, %v1212
      %v1249 = vpack.c.bf16 %v1213, %v1213
      %v1250 = vpack.c.bf16 %v1214, %v1214
      %v1251 = vpack.c.bf16 %v1215, %v1215
      %v1252 = vpack.c.bf16 %v1216, %v1216
      %v1253 = vpack.c.bf16 %v1217, %v1217
      %v1254 = vpack.c.bf16 %v1218, %v1218
      %v1255 = vpack.c.bf16 %v1219, %v1219
      %v1256 = vpack.c.bf16 %v1220, %v1220
      %v1257 = vpack.c.bf16 %v1221, %v1221
      %v1258 = vpack.c.bf16 %v1222, %v1222
      %v1259 = vpack.c.bf16 %v1223, %v1223
      %v1260 = vpack.c.bf16 %v1224, %v1224
      %v1261 = vpack.c.bf16 %v1225, %v1225
      %v1262 = vpack.c.bf16 %v1226, %v1226
      %v1263 = vpack.c.bf16 %v1227, %v1227
      %v1264 = vpack.c.bf16 %v1228, %v1228
      %v1265 = vpack.c.bf16 %v1229, %v1229
      %v1266 = vpack.c.bf16 %v1230, %v1230
      %v1267 = vpack.c.bf16 %v1231, %v1231
      %v1268 = vpack.c.bf16 %v1232, %v1232
      %v1269 = vpack.c.bf16 %v1233, %v1233
      %v1270 = vpack.c.bf16 %v1234, %v1234
      %v1271 = vpack.c.bf16 %v1235, %v1235
      %v1272 = vpack.c.bf16 %v1236, %v1236
      %v1273 = vpack.c.bf16 %v1237, %v1237
      %1310 = vrot.lane.b32.xlu0 %v1238, 64
      %v1311 = vpop.permute.xlu0 %1310
      %1312 = vrot.lane.b32.xlu0 %v1239, 64
      %v1313 = vpop.permute.xlu0 %1312
      %1314 = vrot.lane.b32.xlu0 %v1240, 64
      %v1315 = vpop.permute.xlu0 %1314
      %1316 = vrot.lane.b32.xlu0 %v1241, 64
      %v1317 = vpop.permute.xlu0 %1316
      %1318 = vrot.lane.b32.xlu0 %v1242, 64
      %v1319 = vpop.permute.xlu0 %1318
      %1320 = vrot.lane.b32.xlu0 %v1243, 64
      %v1321 = vpop.permute.xlu0 %1320
      %1322 = vrot.lane.b32.xlu0 %v1244, 64
      %v1323 = vpop.permute.xlu0 %1322
      %1324 = vrot.lane.b32.xlu0 %v1245, 64
      %v1325 = vpop.permute.xlu0 %1324
      %1326 = vrot.lane.b32.xlu0 %v1246, 64
      %v1327 = vpop.permute.xlu0 %1326
      %1328 = vrot.lane.b32.xlu0 %v1247, 64
      %v1329 = vpop.permute.xlu0 %1328
      %1330 = vrot.lane.b32.xlu0 %v1248, 64
      %v1331 = vpop.permute.xlu0 %1330
      %1332 = vrot.lane.b32.xlu0 %v1249, 64
      %v1333 = vpop.permute.xlu0 %1332
      %1334 = vrot.lane.b32.xlu0 %v1250, 64
      %v1335 = vpop.permute.xlu0 %1334
      %1336 = vrot.lane.b32.xlu0 %v1251, 64
      %v1337 = vpop.permute.xlu0 %1336
      %1338 = vrot.lane.b32.xlu0 %v1252, 64
      %v1339 = vpop.permute.xlu0 %1338
      %1340 = vrot.lane.b32.xlu0 %v1253, 64
      %v1341 = vpop.permute.xlu0 %1340
      %1342 = vrot.lane.b32.xlu0 %v1254, 64
      %v1343 = vpop.permute.xlu0 %1342
      %1344 = vrot.lane.b32.xlu0 %v1255, 64
      %v1345 = vpop.permute.xlu0 %1344
      %1346 = vrot.lane.b32.xlu0 %v1256, 64
      %v1347 = vpop.permute.xlu0 %1346
      %1348 = vrot.lane.b32.xlu0 %v1257, 64
      %v1349 = vpop.permute.xlu0 %1348
      %1350 = vrot.lane.b32.xlu0 %v1258, 64
      %v1351 = vpop.permute.xlu0 %1350
      %1352 = vrot.lane.b32.xlu0 %v1259, 64
      %v1353 = vpop.permute.xlu0 %1352
      %1354 = vrot.lane.b32.xlu0 %v1260, 64
      %v1355 = vpop.permute.xlu0 %1354
      %1356 = vrot.lane.b32.xlu0 %v1261, 64
      %v1357 = vpop.permute.xlu0 %1356
      %1358 = vrot.lane.b32.xlu0 %v1262, 64
      %v1359 = vpop.permute.xlu0 %1358
      %1360 = vrot.lane.b32.xlu0 %v1263, 64
      %v1361 = vpop.permute.xlu0 %1360
      %1362 = vrot.lane.b32.xlu0 %v1264, 64
      %v1363 = vpop.permute.xlu0 %1362
      %1364 = vrot.lane.b32.xlu0 %v1265, 64
      %v1365 = vpop.permute.xlu0 %1364
      %1366 = vrot.lane.b32.xlu0 %v1266, 64
      %v1367 = vpop.permute.xlu0 %1366
      %1368 = vrot.lane.b32.xlu0 %v1267, 64
      %v1369 = vpop.permute.xlu0 %1368
      %1370 = vrot.lane.b32.xlu0 %v1268, 64
      %v1371 = vpop.permute.xlu0 %1370
      %1372 = vrot.lane.b32.xlu0 %v1269, 64
      %v1373 = vpop.permute.xlu0 %1372
      %1374 = vrot.lane.b32.xlu0 %v1270, 64
      %v1375 = vpop.permute.xlu0 %1374
      %1376 = vrot.lane.b32.xlu0 %v1271, 64
      %v1377 = vpop.permute.xlu0 %1376
      %1378 = vrot.lane.b32.xlu0 %v1272, 64
      %v1379 = vpop.permute.xlu0 %1378
      %1380 = vrot.lane.b32.xlu0 %v1273, 64
      %v1381 = vpop.permute.xlu0 %1380
      %vm1418 = vcmask 650752
      %1419 = vst.msk [vmem:[#allocation2] sm:$0xf] %vm1418, %v1311
      %1420 = vst.msk [vmem:[#allocation2 + $0x8] sm:$0xf] %vm1418, %v1313
      %1421 = vst.msk [vmem:[#allocation2 + $0x10] sm:$0xf] %vm1418, %v1315
      %1422 = vst.msk [vmem:[#allocation2 + $0x18] sm:$0xf] %vm1418, %v1317
      %1423 = vst.msk [vmem:[#allocation2 + $0x20] sm:$0xf] %vm1418, %v1319
      %1424 = vst.msk [vmem:[#allocation2 + $0x28] sm:$0xf] %vm1418, %v1321
      %1425 = vst.msk [vmem:[#allocation2 + $0x30] sm:$0xf] %vm1418, %v1323
      %1426 = vst.msk [vmem:[#allocation2 + $0x38] sm:$0xf] %vm1418, %v1325
      %1427 = vst.msk [vmem:[#allocation2 + $0x40] sm:$0xf] %vm1418, %v1327
      %1428 = vst.msk [vmem:[#allocation2 + $0x48] sm:$0xf] %vm1418, %v1329
      %1429 = vst.msk [vmem:[#allocation2 + $0x50] sm:$0xf] %vm1418, %v1331
      %1430 = vst.msk [vmem:[#allocation2 + $0x58] sm:$0xf] %vm1418, %v1333
      %1431 = vst.msk [vmem:[#allocation2 + $0x60] sm:$0xf] %vm1418, %v1335
      %1432 = vst.msk [vmem:[#allocation2 + $0x68] sm:$0xf] %vm1418, %v1337
      %1433 = vst.msk [vmem:[#allocation2 + $0x70] sm:$0xf] %vm1418, %v1339
      %1434 = vst.msk [vmem:[#allocation2 + $0x78] sm:$0xf] %vm1418, %v1341
      %1435 = vst.msk [vmem:[#allocation2 + $0x80] sm:$0xf] %vm1418, %v1343
      %1436 = vst.msk [vmem:[#allocation2 + $0x88] sm:$0xf] %vm1418, %v1345
      %1437 = vst.msk [vmem:[#allocation2 + $0x90] sm:$0xf] %vm1418, %v1347
      %1438 = vst.msk [vmem:[#allocation2 + $0x98] sm:$0xf] %vm1418, %v1349
      %1439 = vst.msk [vmem:[#allocation2 + $0xa0] sm:$0xf] %vm1418, %v1351
      %1440 = vst.msk [vmem:[#allocation2 + $0xa8] sm:$0xf] %vm1418, %v1353
      %1441 = vst.msk [vmem:[#allocation2 + $0xb0] sm:$0xf] %vm1418, %v1355
      %1442 = vst.msk [vmem:[#allocation2 + $0xb8] sm:$0xf] %vm1418, %v1357
      %1443 = vst.msk [vmem:[#allocation2 + $0xc0] sm:$0xf] %vm1418, %v1359
      %1444 = vst.msk [vmem:[#allocation2 + $0xc8] sm:$0xf] %vm1418, %v1361
      %1445 = vst.msk [vmem:[#allocation2 + $0xd0] sm:$0xf] %vm1418, %v1363
      %1446 = vst.msk [vmem:[#allocation2 + $0xd8] sm:$0xf] %vm1418, %v1365
      %1447 = vst.msk [vmem:[#allocation2 + $0xe0] sm:$0xf] %vm1418, %v1367
      %1448 = vst.msk [vmem:[#allocation2 + $0xe8] sm:$0xf] %vm1418, %v1369
      %1449 = vst.msk [vmem:[#allocation2 + $0xf0] sm:$0xf] %vm1418, %v1371
      %1450 = vst.msk [vmem:[#allocation2 + $0xf8] sm:$0xf] %vm1418, %v1373
      %1451 = vst.msk [vmem:[#allocation2 + $0x100] sm:$0xf] %vm1418, %v1375
      %1452 = vst.msk [vmem:[#allocation2 + $0x108] sm:$0xf] %vm1418, %v1377
      %1453 = vst.msk [vmem:[#allocation2 + $0x110] sm:$0xf] %vm1418, %v1379
      %1454 = vst.msk [vmem:[#allocation2 + $0x118] sm:$0xf] %vm1418, %v1381
      %v1455 = vld [vmem:[%s327 + $0x14] sm:$0xff]
      %v1456 = vld [vmem:[%s327 + $0x1c] sm:$0xff]
      %v1457 = vld [vmem:[%s327 + $0x24] sm:$0xff]
      %v1458 = vld [vmem:[%s327 + $0x2c] sm:$0xff]
      %v1459 = vld [vmem:[%s327 + $0x34] sm:$0xff]
      %v1460 = vld [vmem:[%s327 + $0x3c] sm:$0xff]
      %v1461 = vld [vmem:[%s327 + $0x44] sm:$0xff]
      %v1462 = vld [vmem:[%s327 + $0x4c] sm:$0xff]
      %v1463 = vld [vmem:[%s327 + $0x54] sm:$0xff]
      %v1464 = vld [vmem:[%s327 + $0x5c] sm:$0xff]
      %v1465 = vld [vmem:[%s327 + $0x64] sm:$0xff]
      %v1466 = vld [vmem:[%s327 + $0x6c] sm:$0xff]
      %v1467 = vld [vmem:[%s327 + $0x74] sm:$0xff]
      %v1468 = vld [vmem:[%s327 + $0x7c] sm:$0xff]
      %v1469 = vld [vmem:[%s327 + $0x84] sm:$0xff]
      %v1470 = vld [vmem:[%s327 + $0x8c] sm:$0xff]
      %v1471 = vld [vmem:[%s327 + $0x94] sm:$0xff]
      %v1472 = vld [vmem:[%s327 + $0x9c] sm:$0xff]
      %v1473 = vld [vmem:[%s327 + $0xa4] sm:$0xff]
      %v1474 = vld [vmem:[%s327 + $0xac] sm:$0xff]
      %v1475 = vld [vmem:[%s327 + $0xb4] sm:$0xff]
      %v1476 = vld [vmem:[%s327 + $0xbc] sm:$0xff]
      %v1477 = vld [vmem:[%s327 + $0xc4] sm:$0xff]
      %v1478 = vld [vmem:[%s327 + $0xcc] sm:$0xff]
      %v1479 = vld [vmem:[%s327 + $0xd4] sm:$0xff]
      %v1480 = vld [vmem:[%s327 + $0xdc] sm:$0xff]
      %v1481 = vld [vmem:[%s327 + $0xe4] sm:$0xff]
      %v1482 = vld [vmem:[%s327 + $0xec] sm:$0xff]
      %v1483 = vld [vmem:[%s327 + $0xf4] sm:$0xff]
      %v1484 = vld [vmem:[%s327 + $0xfc] sm:$0xff]
      %v1485 = vld [vmem:[%s327 + $0x104] sm:$0xff]
      %v1486 = vld [vmem:[%s327 + $0x10c] sm:$0xff]
      %v1487 = vld [vmem:[%s327 + $0x114] sm:$0xff]
      %v1488 = vld [vmem:[%s327 + $0x11c] sm:$0xff]
      %v1489 = vld [vmem:[%s327 + $0x124] sm:$0xff]
      %v1490 = vld [vmem:[%s327 + $0x12c] sm:$0xff]
      %v1491 = vpack.c.bf16 %v1455, %v1455
      %v1492 = vpack.c.bf16 %v1456, %v1456
      %v1493 = vpack.c.bf16 %v1457, %v1457
      %v1494 = vpack.c.bf16 %v1458, %v1458
      %v1495 = vpack.c.bf16 %v1459, %v1459
      %v1496 = vpack.c.bf16 %v1460, %v1460
      %v1497 = vpack.c.bf16 %v1461, %v1461
      %v1498 = vpack.c.bf16 %v1462, %v1462
      %v1499 = vpack.c.bf16 %v1463, %v1463
      %v1500 = vpack.c.bf16 %v1464, %v1464
      %v1501 = vpack.c.bf16 %v1465, %v1465
      %v1502 = vpack.c.bf16 %v1466, %v1466
      %v1503 = vpack.c.bf16 %v1467, %v1467
      %v1504 = vpack.c.bf16 %v1468, %v1468
      %v1505 = vpack.c.bf16 %v1469, %v1469
      %v1506 = vpack.c.bf16 %v1470, %v1470
      %v1507 = vpack.c.bf16 %v1471, %v1471
      %v1508 = vpack.c.bf16 %v1472, %v1472
      %v1509 = vpack.c.bf16 %v1473, %v1473
      %v1510 = vpack.c.bf16 %v1474, %v1474
      %v1511 = vpack.c.bf16 %v1475, %v1475
      %v1512 = vpack.c.bf16 %v1476, %v1476
      %v1513 = vpack.c.bf16 %v1477, %v1477
      %v1514 = vpack.c.bf16 %v1478, %v1478
      %v1515 = vpack.c.bf16 %v1479, %v1479
      %v1516 = vpack.c.bf16 %v1480, %v1480
      %v1517 = vpack.c.bf16 %v1481, %v1481
      %v1518 = vpack.c.bf16 %v1482, %v1482
      %v1519 = vpack.c.bf16 %v1483, %v1483
      %v1520 = vpack.c.bf16 %v1484, %v1484
      %v1521 = vpack.c.bf16 %v1485, %v1485
      %v1522 = vpack.c.bf16 %v1486, %v1486
      %v1523 = vpack.c.bf16 %v1487, %v1487
      %v1524 = vpack.c.bf16 %v1488, %v1488
      %v1525 = vpack.c.bf16 %v1489, %v1489
      %v1526 = vpack.c.bf16 %v1490, %v1490
      %1563 = vrot.lane.b32.xlu0 %v1491, 80
      %v1564 = vpop.permute.xlu0 %1563
      %1565 = vrot.lane.b32.xlu0 %v1492, 80
      %v1566 = vpop.permute.xlu0 %1565
      %1567 = vrot.lane.b32.xlu0 %v1493, 80
      %v1568 = vpop.permute.xlu0 %1567
      %1569 = vrot.lane.b32.xlu0 %v1494, 80
      %v1570 = vpop.permute.xlu0 %1569
      %1571 = vrot.lane.b32.xlu0 %v1495, 80
      %v1572 = vpop.permute.xlu0 %1571
      %1573 = vrot.lane.b32.xlu0 %v1496, 80
      %v1574 = vpop.permute.xlu0 %1573
      %1575 = vrot.lane.b32.xlu0 %v1497, 80
      %v1576 = vpop.permute.xlu0 %1575
      %1577 = vrot.lane.b32.xlu0 %v1498, 80
      %v1578 = vpop.permute.xlu0 %1577
      %1579 = vrot.lane.b32.xlu0 %v1499, 80
      %v1580 = vpop.permute.xlu0 %1579
      %1581 = vrot.lane.b32.xlu0 %v1500, 80
      %v1582 = vpop.permute.xlu0 %1581
      %1583 = vrot.lane.b32.xlu0 %v1501, 80
      %v1584 = vpop.permute.xlu0 %1583
      %1585 = vrot.lane.b32.xlu0 %v1502, 80
      %v1586 = vpop.permute.xlu0 %1585
      %1587 = vrot.lane.b32.xlu0 %v1503, 80
      %v1588 = vpop.permute.xlu0 %1587
      %1589 = vrot.lane.b32.xlu0 %v1504, 80
      %v1590 = vpop.permute.xlu0 %1589
      %1591 = vrot.lane.b32.xlu0 %v1505, 80
      %v1592 = vpop.permute.xlu0 %1591
      %1593 = vrot.lane.b32.xlu0 %v1506, 80
      %v1594 = vpop.permute.xlu0 %1593
      %1595 = vrot.lane.b32.xlu0 %v1507, 80
      %v1596 = vpop.permute.xlu0 %1595
      %1597 = vrot.lane.b32.xlu0 %v1508, 80
      %v1598 = vpop.permute.xlu0 %1597
      %1599 = vrot.lane.b32.xlu0 %v1509, 80
      %v1600 = vpop.permute.xlu0 %1599
      %1601 = vrot.lane.b32.xlu0 %v1510, 80
      %v1602 = vpop.permute.xlu0 %1601
      %1603 = vrot.lane.b32.xlu0 %v1511, 80
      %v1604 = vpop.permute.xlu0 %1603
      %1605 = vrot.lane.b32.xlu0 %v1512, 80
      %v1606 = vpop.permute.xlu0 %1605
      %1607 = vrot.lane.b32.xlu0 %v1513, 80
      %v1608 = vpop.permute.xlu0 %1607
      %1609 = vrot.lane.b32.xlu0 %v1514, 80
      %v1610 = vpop.permute.xlu0 %1609
      %1611 = vrot.lane.b32.xlu0 %v1515, 80
      %v1612 = vpop.permute.xlu0 %1611
      %1613 = vrot.lane.b32.xlu0 %v1516, 80
      %v1614 = vpop.permute.xlu0 %1613
      %1615 = vrot.lane.b32.xlu0 %v1517, 80
      %v1616 = vpop.permute.xlu0 %1615
      %1617 = vrot.lane.b32.xlu0 %v1518, 80
      %v1618 = vpop.permute.xlu0 %1617
      %1619 = vrot.lane.b32.xlu0 %v1519, 80
      %v1620 = vpop.permute.xlu0 %1619
      %1621 = vrot.lane.b32.xlu0 %v1520, 80
      %v1622 = vpop.permute.xlu0 %1621
      %1623 = vrot.lane.b32.xlu0 %v1521, 80
      %v1624 = vpop.permute.xlu0 %1623
      %1625 = vrot.lane.b32.xlu0 %v1522, 80
      %v1626 = vpop.permute.xlu0 %1625
      %1627 = vrot.lane.b32.xlu0 %v1523, 80
      %v1628 = vpop.permute.xlu0 %1627
      %1629 = vrot.lane.b32.xlu0 %v1524, 80
      %v1630 = vpop.permute.xlu0 %1629
      %1631 = vrot.lane.b32.xlu0 %v1525, 80
      %v1632 = vpop.permute.xlu0 %1631
      %1633 = vrot.lane.b32.xlu0 %v1526, 80
      %v1634 = vpop.permute.xlu0 %1633
      %vm1671 = vcmask 781952
      %1672 = vst.msk [vmem:[#allocation2] sm:$0xf] %vm1671, %v1564
      %1673 = vst.msk [vmem:[#allocation2 + $0x8] sm:$0xf] %vm1671, %v1566
      %1674 = vst.msk [vmem:[#allocation2 + $0x10] sm:$0xf] %vm1671, %v1568
      %1675 = vst.msk [vmem:[#allocation2 + $0x18] sm:$0xf] %vm1671, %v1570
      %1676 = vst.msk [vmem:[#allocation2 + $0x20] sm:$0xf] %vm1671, %v1572
      %1677 = vst.msk [vmem:[#allocation2 + $0x28] sm:$0xf] %vm1671, %v1574
      %1678 = vst.msk [vmem:[#allocation2 + $0x30] sm:$0xf] %vm1671, %v1576
      %1679 = vst.msk [vmem:[#allocation2 + $0x38] sm:$0xf] %vm1671, %v1578
      %1680 = vst.msk [vmem:[#allocation2 + $0x40] sm:$0xf] %vm1671, %v1580
      %1681 = vst.msk [vmem:[#allocation2 + $0x48] sm:$0xf] %vm1671, %v1582
      %1682 = vst.msk [vmem:[#allocation2 + $0x50] sm:$0xf] %vm1671, %v1584
      %1683 = vst.msk [vmem:[#allocation2 + $0x58] sm:$0xf] %vm1671, %v1586
      %1684 = vst.msk [vmem:[#allocation2 + $0x60] sm:$0xf] %vm1671, %v1588
      %1685 = vst.msk [vmem:[#allocation2 + $0x68] sm:$0xf] %vm1671, %v1590
      %1686 = vst.msk [vmem:[#allocation2 + $0x70] sm:$0xf] %vm1671, %v1592
      %1687 = vst.msk [vmem:[#allocation2 + $0x78] sm:$0xf] %vm1671, %v1594
      %1688 = vst.msk [vmem:[#allocation2 + $0x80] sm:$0xf] %vm1671, %v1596
      %1689 = vst.msk [vmem:[#allocation2 + $0x88] sm:$0xf] %vm1671, %v1598
      %1690 = vst.msk [vmem:[#allocation2 + $0x90] sm:$0xf] %vm1671, %v1600
      %1691 = vst.msk [vmem:[#allocation2 + $0x98] sm:$0xf] %vm1671, %v1602
      %1692 = vst.msk [vmem:[#allocation2 + $0xa0] sm:$0xf] %vm1671, %v1604
      %1693 = vst.msk [vmem:[#allocation2 + $0xa8] sm:$0xf] %vm1671, %v1606
      %1694 = vst.msk [vmem:[#allocation2 + $0xb0] sm:$0xf] %vm1671, %v1608
      %1695 = vst.msk [vmem:[#allocation2 + $0xb8] sm:$0xf] %vm1671, %v1610
      %1696 = vst.msk [vmem:[#allocation2 + $0xc0] sm:$0xf] %vm1671, %v1612
      %1697 = vst.msk [vmem:[#allocation2 + $0xc8] sm:$0xf] %vm1671, %v1614
      %1698 = vst.msk [vmem:[#allocation2 + $0xd0] sm:$0xf] %vm1671, %v1616
      %1699 = vst.msk [vmem:[#allocation2 + $0xd8] sm:$0xf] %vm1671, %v1618
      %1700 = vst.msk [vmem:[#allocation2 + $0xe0] sm:$0xf] %vm1671, %v1620
      %1701 = vst.msk [vmem:[#allocation2 + $0xe8] sm:$0xf] %vm1671, %v1622
      %1702 = vst.msk [vmem:[#allocation2 + $0xf0] sm:$0xf] %vm1671, %v1624
      %1703 = vst.msk [vmem:[#allocation2 + $0xf8] sm:$0xf] %vm1671, %v1626
      %1704 = vst.msk [vmem:[#allocation2 + $0x100] sm:$0xf] %vm1671, %v1628
      %1705 = vst.msk [vmem:[#allocation2 + $0x108] sm:$0xf] %vm1671, %v1630
      %1706 = vst.msk [vmem:[#allocation2 + $0x110] sm:$0xf] %vm1671, %v1632
      %1707 = vst.msk [vmem:[#allocation2 + $0x118] sm:$0xf] %vm1671, %v1634
      %v1708 = vld [vmem:[%s327 + $0x24] sm:$0xff]
      %v1709 = vld [vmem:[%s327 + $0x2c] sm:$0xff]
      %v1710 = vld [vmem:[%s327 + $0x34] sm:$0xff]
      %v1711 = vld [vmem:[%s327 + $0x3c] sm:$0xff]
      %v1712 = vld [vmem:[%s327 + $0x44] sm:$0xff]
      %v1713 = vld [vmem:[%s327 + $0x4c] sm:$0xff]
      %v1714 = vld [vmem:[%s327 + $0x54] sm:$0xff]
      %v1715 = vld [vmem:[%s327 + $0x5c] sm:$0xff]
      %v1716 = vld [vmem:[%s327 + $0x64] sm:$0xff]
      %v1717 = vld [vmem:[%s327 + $0x6c] sm:$0xff]
      %v1718 = vld [vmem:[%s327 + $0x74] sm:$0xff]
      %v1719 = vld [vmem:[%s327 + $0x7c] sm:$0xff]
      %v1720 = vld [vmem:[%s327 + $0x84] sm:$0xff]
      %v1721 = vld [vmem:[%s327 + $0x8c] sm:$0xff]
      %v1722 = vld [vmem:[%s327 + $0x94] sm:$0xff]
      %v1723 = vld [vmem:[%s327 + $0x9c] sm:$0xff]
      %v1724 = vld [vmem:[%s327 + $0xa4] sm:$0xff]
      %v1725 = vld [vmem:[%s327 + $0xac] sm:$0xff]
      %v1726 = vld [vmem:[%s327 + $0xb4] sm:$0xff]
      %v1727 = vld [vmem:[%s327 + $0xbc] sm:$0xff]
      %v1728 = vld [vmem:[%s327 + $0xc4] sm:$0xff]
      %v1729 = vld [vmem:[%s327 + $0xcc] sm:$0xff]
      %v1730 = vld [vmem:[%s327 + $0xd4] sm:$0xff]
      %v1731 = vld [vmem:[%s327 + $0xdc] sm:$0xff]
      %v1732 = vld [vmem:[%s327 + $0xe4] sm:$0xff]
      %v1733 = vld [vmem:[%s327 + $0xec] sm:$0xff]
      %v1734 = vld [vmem:[%s327 + $0xf4] sm:$0xff]
      %v1735 = vld [vmem:[%s327 + $0xfc] sm:$0xff]
      %v1736 = vld [vmem:[%s327 + $0x104] sm:$0xff]
      %v1737 = vld [vmem:[%s327 + $0x10c] sm:$0xff]
      %v1738 = vld [vmem:[%s327 + $0x114] sm:$0xff]
      %v1739 = vld [vmem:[%s327 + $0x11c] sm:$0xff]
      %v1740 = vld [vmem:[%s327 + $0x124] sm:$0xff]
      %v1741 = vld [vmem:[%s327 + $0x12c] sm:$0xff]
      %v1742 = vld [vmem:[%s327 + $0x134] sm:$0xff]
      %v1743 = vld [vmem:[%s327 + $0x13c] sm:$0xff]
      %v1744 = vpack.c.bf16 %v1708, %v1708
      %v1745 = vpack.c.bf16 %v1709, %v1709
      %v1746 = vpack.c.bf16 %v1710, %v1710
      %v1747 = vpack.c.bf16 %v1711, %v1711
      %v1748 = vpack.c.bf16 %v1712, %v1712
      %v1749 = vpack.c.bf16 %v1713, %v1713
      %v1750 = vpack.c.bf16 %v1714, %v1714
      %v1751 = vpack.c.bf16 %v1715, %v1715
      %v1752 = vpack.c.bf16 %v1716, %v1716
      %v1753 = vpack.c.bf16 %v1717, %v1717
      %v1754 = vpack.c.bf16 %v1718, %v1718
      %v1755 = vpack.c.bf16 %v1719, %v1719
      %v1756 = vpack.c.bf16 %v1720, %v1720
      %v1757 = vpack.c.bf16 %v1721, %v1721
      %v1758 = vpack.c.bf16 %v1722, %v1722
      %v1759 = vpack.c.bf16 %v1723, %v1723
      %v1760 = vpack.c.bf16 %v1724, %v1724
      %v1761 = vpack.c.bf16 %v1725, %v1725
      %v1762 = vpack.c.bf16 %v1726, %v1726
      %v1763 = vpack.c.bf16 %v1727, %v1727
      %v1764 = vpack.c.bf16 %v1728, %v1728
      %v1765 = vpack.c.bf16 %v1729, %v1729
      %v1766 = vpack.c.bf16 %v1730, %v1730
      %v1767 = vpack.c.bf16 %v1731, %v1731
      %v1768 = vpack.c.bf16 %v1732, %v1732
      %v1769 = vpack.c.bf16 %v1733, %v1733
      %v1770 = vpack.c.bf16 %v1734, %v1734
      %v1771 = vpack.c.bf16 %v1735, %v1735
      %v1772 = vpack.c.bf16 %v1736, %v1736
      %v1773 = vpack.c.bf16 %v1737, %v1737
      %v1774 = vpack.c.bf16 %v1738, %v1738
      %v1775 = vpack.c.bf16 %v1739, %v1739
      %v1776 = vpack.c.bf16 %v1740, %v1740
      %v1777 = vpack.c.bf16 %v1741, %v1741
      %v1778 = vpack.c.bf16 %v1742, %v1742
      %v1779 = vpack.c.bf16 %v1743, %v1743
      %1816 = vrot.lane.b32.xlu0 %v1744, 96
      %v1817 = vpop.permute.xlu0 %1816
      %1818 = vrot.lane.b32.xlu0 %v1745, 96
      %v1819 = vpop.permute.xlu0 %1818
      %1820 = vrot.lane.b32.xlu0 %v1746, 96
      %v1821 = vpop.permute.xlu0 %1820
      %1822 = vrot.lane.b32.xlu0 %v1747, 96
      %v1823 = vpop.permute.xlu0 %1822
      %1824 = vrot.lane.b32.xlu0 %v1748, 96
      %v1825 = vpop.permute.xlu0 %1824
      %1826 = vrot.lane.b32.xlu0 %v1749, 96
      %v1827 = vpop.permute.xlu0 %1826
      %1828 = vrot.lane.b32.xlu0 %v1750, 96
      %v1829 = vpop.permute.xlu0 %1828
      %1830 = vrot.lane.b32.xlu0 %v1751, 96
      %v1831 = vpop.permute.xlu0 %1830
      %1832 = vrot.lane.b32.xlu0 %v1752, 96
      %v1833 = vpop.permute.xlu0 %1832
      %1834 = vrot.lane.b32.xlu0 %v1753, 96
      %v1835 = vpop.permute.xlu0 %1834
      %1836 = vrot.lane.b32.xlu0 %v1754, 96
      %v1837 = vpop.permute.xlu0 %1836
      %1838 = vrot.lane.b32.xlu0 %v1755, 96
      %v1839 = vpop.permute.xlu0 %1838
      %1840 = vrot.lane.b32.xlu0 %v1756, 96
      %v1841 = vpop.permute.xlu0 %1840
      %1842 = vrot.lane.b32.xlu0 %v1757, 96
      %v1843 = vpop.permute.xlu0 %1842
      %1844 = vrot.lane.b32.xlu0 %v1758, 96
      %v1845 = vpop.permute.xlu0 %1844
      %1846 = vrot.lane.b32.xlu0 %v1759, 96
      %v1847 = vpop.permute.xlu0 %1846
      %1848 = vrot.lane.b32.xlu0 %v1760, 96
      %v1849 = vpop.permute.xlu0 %1848
      %1850 = vrot.lane.b32.xlu0 %v1761, 96
      %v1851 = vpop.permute.xlu0 %1850
      %1852 = vrot.lane.b32.xlu0 %v1762, 96
      %v1853 = vpop.permute.xlu0 %1852
      %1854 = vrot.lane.b32.xlu0 %v1763, 96
      %v1855 = vpop.permute.xlu0 %1854
      %1856 = vrot.lane.b32.xlu0 %v1764, 96
      %v1857 = vpop.permute.xlu0 %1856
      %1858 = vrot.lane.b32.xlu0 %v1765, 96
      %v1859 = vpop.permute.xlu0 %1858
      %1860 = vrot.lane.b32.xlu0 %v1766, 96
      %v1861 = vpop.permute.xlu0 %1860
      %1862 = vrot.lane.b32.xlu0 %v1767, 96
      %v1863 = vpop.permute.xlu0 %1862
      %1864 = vrot.lane.b32.xlu0 %v1768, 96
      %v1865 = vpop.permute.xlu0 %1864
      %1866 = vrot.lane.b32.xlu0 %v1769, 96
      %v1867 = vpop.permute.xlu0 %1866
      %1868 = vrot.lane.b32.xlu0 %v1770, 96
      %v1869 = vpop.permute.xlu0 %1868
      %1870 = vrot.lane.b32.xlu0 %v1771, 96
      %v1871 = vpop.permute.xlu0 %1870
      %1872 = vrot.lane.b32.xlu0 %v1772, 96
      %v1873 = vpop.permute.xlu0 %1872
      %1874 = vrot.lane.b32.xlu0 %v1773, 96
      %v1875 = vpop.permute.xlu0 %1874
      %1876 = vrot.lane.b32.xlu0 %v1774, 96
      %v1877 = vpop.permute.xlu0 %1876
      %1878 = vrot.lane.b32.xlu0 %v1775, 96
      %v1879 = vpop.permute.xlu0 %1878
      %1880 = vrot.lane.b32.xlu0 %v1776, 96
      %v1881 = vpop.permute.xlu0 %1880
      %1882 = vrot.lane.b32.xlu0 %v1777, 96
      %v1883 = vpop.permute.xlu0 %1882
      %1884 = vrot.lane.b32.xlu0 %v1778, 96
      %v1885 = vpop.permute.xlu0 %1884
      %1886 = vrot.lane.b32.xlu0 %v1779, 96
      %v1887 = vpop.permute.xlu0 %1886
      %vm1924 = vcmask 913152
      %1925 = vst.msk [vmem:[#allocation2] sm:$0xf] %vm1924, %v1817
      %1926 = vst.msk [vmem:[#allocation2 + $0x8] sm:$0xf] %vm1924, %v1819
      %1927 = vst.msk [vmem:[#allocation2 + $0x10] sm:$0xf] %vm1924, %v1821
      %1928 = vst.msk [vmem:[#allocation2 + $0x18] sm:$0xf] %vm1924, %v1823
      %1929 = vst.msk [vmem:[#allocation2 + $0x20] sm:$0xf] %vm1924, %v1825
      %1930 = vst.msk [vmem:[#allocation2 + $0x28] sm:$0xf] %vm1924, %v1827
      %1931 = vst.msk [vmem:[#allocation2 + $0x30] sm:$0xf] %vm1924, %v1829
      %1932 = vst.msk [vmem:[#allocation2 + $0x38] sm:$0xf] %vm1924, %v1831
      %1933 = vst.msk [vmem:[#allocation2 + $0x40] sm:$0xf] %vm1924, %v1833
      %1934 = vst.msk [vmem:[#allocation2 + $0x48] sm:$0xf] %vm1924, %v1835
      %1935 = vst.msk [vmem:[#allocation2 + $0x50] sm:$0xf] %vm1924, %v1837
      %1936 = vst.msk [vmem:[#allocation2 + $0x58] sm:$0xf] %vm1924, %v1839
      %1937 = vst.msk [vmem:[#allocation2 + $0x60] sm:$0xf] %vm1924, %v1841
      %1938 = vst.msk [vmem:[#allocation2 + $0x68] sm:$0xf] %vm1924, %v1843
      %1939 = vst.msk [vmem:[#allocation2 + $0x70] sm:$0xf] %vm1924, %v1845
      %1940 = vst.msk [vmem:[#allocation2 + $0x78] sm:$0xf] %vm1924, %v1847
      %1941 = vst.msk [vmem:[#allocation2 + $0x80] sm:$0xf] %vm1924, %v1849
      %1942 = vst.msk [vmem:[#allocation2 + $0x88] sm:$0xf] %vm1924, %v1851
      %1943 = vst.msk [vmem:[#allocation2 + $0x90] sm:$0xf] %vm1924, %v1853
      %1944 = vst.msk [vmem:[#allocation2 + $0x98] sm:$0xf] %vm1924, %v1855
      %1945 = vst.msk [vmem:[#allocation2 + $0xa0] sm:$0xf] %vm1924, %v1857
      %1946 = vst.msk [vmem:[#allocation2 + $0xa8] sm:$0xf] %vm1924, %v1859
      %1947 = vst.msk [vmem:[#allocation2 + $0xb0] sm:$0xf] %vm1924, %v1861
      %1948 = vst.msk [vmem:[#allocation2 + $0xb8] sm:$0xf] %vm1924, %v1863
      %1949 = vst.msk [vmem:[#allocation2 + $0xc0] sm:$0xf] %vm1924, %v1865
      %1950 = vst.msk [vmem:[#allocation2 + $0xc8] sm:$0xf] %vm1924, %v1867
      %1951 = vst.msk [vmem:[#allocation2 + $0xd0] sm:$0xf] %vm1924, %v1869
      %1952 = vst.msk [vmem:[#allocation2 + $0xd8] sm:$0xf] %vm1924, %v1871
      %1953 = vst.msk [vmem:[#allocation2 + $0xe0] sm:$0xf] %vm1924, %v1873
      %1954 = vst.msk [vmem:[#allocation2 + $0xe8] sm:$0xf] %vm1924, %v1875
      %1955 = vst.msk [vmem:[#allocation2 + $0xf0] sm:$0xf] %vm1924, %v1877
      %1956 = vst.msk [vmem:[#allocation2 + $0xf8] sm:$0xf] %vm1924, %v1879
      %1957 = vst.msk [vmem:[#allocation2 + $0x100] sm:$0xf] %vm1924, %v1881
      %1958 = vst.msk [vmem:[#allocation2 + $0x108] sm:$0xf] %vm1924, %v1883
      %1959 = vst.msk [vmem:[#allocation2 + $0x110] sm:$0xf] %vm1924, %v1885
      %1960 = vst.msk [vmem:[#allocation2 + $0x118] sm:$0xf] %vm1924, %v1887
      %v1961 = vld [vmem:[%s327 + $0x25] sm:$0xff]
      %v1962 = vld [vmem:[%s327 + $0x2d] sm:$0xff]
      %v1963 = vld [vmem:[%s327 + $0x35] sm:$0xff]
      %v1964 = vld [vmem:[%s327 + $0x3d] sm:$0xff]
      %v1965 = vld [vmem:[%s327 + $0x45] sm:$0xff]
      %v1966 = vld [vmem:[%s327 + $0x4d] sm:$0xff]
      %v1967 = vld [vmem:[%s327 + $0x55] sm:$0xff]
      %v1968 = vld [vmem:[%s327 + $0x5d] sm:$0xff]
      %v1969 = vld [vmem:[%s327 + $0x65] sm:$0xff]
      %v1970 = vld [vmem:[%s327 + $0x6d] sm:$0xff]
      %v1971 = vld [vmem:[%s327 + $0x75] sm:$0xff]
      %v1972 = vld [vmem:[%s327 + $0x7d] sm:$0xff]
      %v1973 = vld [vmem:[%s327 + $0x85] sm:$0xff]
      %v1974 = vld [vmem:[%s327 + $0x8d] sm:$0xff]
      %v1975 = vld [vmem:[%s327 + $0x95] sm:$0xff]
      %v1976 = vld [vmem:[%s327 + $0x9d] sm:$0xff]
      %v1977 = vld [vmem:[%s327 + $0xa5] sm:$0xff]
      %v1978 = vld [vmem:[%s327 + $0xad] sm:$0xff]
      %v1979 = vld [vmem:[%s327 + $0xb5] sm:$0xff]
      %v1980 = vld [vmem:[%s327 + $0xbd] sm:$0xff]
      %v1981 = vld [vmem:[%s327 + $0xc5] sm:$0xff]
      %v1982 = vld [vmem:[%s327 + $0xcd] sm:$0xff]
      %v1983 = vld [vmem:[%s327 + $0xd5] sm:$0xff]
      %v1984 = vld [vmem:[%s327 + $0xdd] sm:$0xff]
      %v1985 = vld [vmem:[%s327 + $0xe5] sm:$0xff]
      %v1986 = vld [vmem:[%s327 + $0xed] sm:$0xff]
      %v1987 = vld [vmem:[%s327 + $0xf5] sm:$0xff]
      %v1988 = vld [vmem:[%s327 + $0xfd] sm:$0xff]
      %v1989 = vld [vmem:[%s327 + $0x105] sm:$0xff]
      %v1990 = vld [vmem:[%s327 + $0x10d] sm:$0xff]
      %v1991 = vld [vmem:[%s327 + $0x115] sm:$0xff]
      %v1992 = vld [vmem:[%s327 + $0x11d] sm:$0xff]
      %v1993 = vld [vmem:[%s327 + $0x125] sm:$0xff]
      %v1994 = vld [vmem:[%s327 + $0x12d] sm:$0xff]
      %v1995 = vld [vmem:[%s327 + $0x135] sm:$0xff]
      %v1996 = vld [vmem:[%s327 + $0x13d] sm:$0xff]
      %v1997 = vpack.c.bf16 %v1961, %v1961
      %v1998 = vpack.c.bf16 %v1962, %v1962
      %v1999 = vpack.c.bf16 %v1963, %v1963
      %v2000 = vpack.c.bf16 %v1964, %v1964
      %v2001 = vpack.c.bf16 %v1965, %v1965
      %v2002 = vpack.c.bf16 %v1966, %v1966
      %v2003 = vpack.c.bf16 %v1967, %v1967
      %v2004 = vpack.c.bf16 %v1968, %v1968
      %v2005 = vpack.c.bf16 %v1969, %v1969
      %v2006 = vpack.c.bf16 %v1970, %v1970
      %v2007 = vpack.c.bf16 %v1971, %v1971
      %v2008 = vpack.c.bf16 %v1972, %v1972
      %v2009 = vpack.c.bf16 %v1973, %v1973
      %v2010 = vpack.c.bf16 %v1974, %v1974
      %v2011 = vpack.c.bf16 %v1975, %v1975
      %v2012 = vpack.c.bf16 %v1976, %v1976
      %v2013 = vpack.c.bf16 %v1977, %v1977
      %v2014 = vpack.c.bf16 %v1978, %v1978
      %v2015 = vpack.c.bf16 %v1979, %v1979
      %v2016 = vpack.c.bf16 %v1980, %v1980
      %v2017 = vpack.c.bf16 %v1981, %v1981
      %v2018 = vpack.c.bf16 %v1982, %v1982
      %v2019 = vpack.c.bf16 %v1983, %v1983
      %v2020 = vpack.c.bf16 %v1984, %v1984
      %v2021 = vpack.c.bf16 %v1985, %v1985
      %v2022 = vpack.c.bf16 %v1986, %v1986
      %v2023 = vpack.c.bf16 %v1987, %v1987
      %v2024 = vpack.c.bf16 %v1988, %v1988
      %v2025 = vpack.c.bf16 %v1989, %v1989
      %v2026 = vpack.c.bf16 %v1990, %v1990
      %v2027 = vpack.c.bf16 %v1991, %v1991
      %v2028 = vpack.c.bf16 %v1992, %v1992
      %v2029 = vpack.c.bf16 %v1993, %v1993
      %v2030 = vpack.c.bf16 %v1994, %v1994
      %v2031 = vpack.c.bf16 %v1995, %v1995
      %v2032 = vpack.c.bf16 %v1996, %v1996
      %2069 = vrot.lane.b32.xlu0 %v1997, 112
      %v2070 = vpop.permute.xlu0 %2069
      %2071 = vrot.lane.b32.xlu0 %v1998, 112
      %v2072 = vpop.permute.xlu0 %2071
      %2073 = vrot.lane.b32.xlu0 %v1999, 112
      %v2074 = vpop.permute.xlu0 %2073
      %2075 = vrot.lane.b32.xlu0 %v2000, 112
      %v2076 = vpop.permute.xlu0 %2075
      %2077 = vrot.lane.b32.xlu0 %v2001, 112
      %v2078 = vpop.permute.xlu0 %2077
      %2079 = vrot.lane.b32.xlu0 %v2002, 112
      %v2080 = vpop.permute.xlu0 %2079
      %2081 = vrot.lane.b32.xlu0 %v2003, 112
      %v2082 = vpop.permute.xlu0 %2081
      %2083 = vrot.lane.b32.xlu0 %v2004, 112
      %v2084 = vpop.permute.xlu0 %2083
      %2085 = vrot.lane.b32.xlu0 %v2005, 112
      %v2086 = vpop.permute.xlu0 %2085
      %2087 = vrot.lane.b32.xlu0 %v2006, 112
      %v2088 = vpop.permute.xlu0 %2087
      %2089 = vrot.lane.b32.xlu0 %v2007, 112
      %v2090 = vpop.permute.xlu0 %2089
      %2091 = vrot.lane.b32.xlu0 %v2008, 112
      %v2092 = vpop.permute.xlu0 %2091
      %2093 = vrot.lane.b32.xlu0 %v2009, 112
      %v2094 = vpop.permute.xlu0 %2093
      %2095 = vrot.lane.b32.xlu0 %v2010, 112
      %v2096 = vpop.permute.xlu0 %2095
      %2097 = vrot.lane.b32.xlu0 %v2011, 112
      %v2098 = vpop.permute.xlu0 %2097
      %2099 = vrot.lane.b32.xlu0 %v2012, 112
      %v2100 = vpop.permute.xlu0 %2099
      %2101 = vrot.lane.b32.xlu0 %v2013, 112
      %v2102 = vpop.permute.xlu0 %2101
      %2103 = vrot.lane.b32.xlu0 %v2014, 112
      %v2104 = vpop.permute.xlu0 %2103
      %2105 = vrot.lane.b32.xlu0 %v2015, 112
      %v2106 = vpop.permute.xlu0 %2105
      %2107 = vrot.lane.b32.xlu0 %v2016, 112
      %v2108 = vpop.permute.xlu0 %2107
      %2109 = vrot.lane.b32.xlu0 %v2017, 112
      %v2110 = vpop.permute.xlu0 %2109
      %2111 = vrot.lane.b32.xlu0 %v2018, 112
      %v2112 = vpop.permute.xlu0 %2111
      %2113 = vrot.lane.b32.xlu0 %v2019, 112
      %v2114 = vpop.permute.xlu0 %2113
      %2115 = vrot.lane.b32.xlu0 %v2020, 112
      %v2116 = vpop.permute.xlu0 %2115
      %2117 = vrot.lane.b32.xlu0 %v2021, 112
      %v2118 = vpop.permute.xlu0 %2117
      %2119 = vrot.lane.b32.xlu0 %v2022, 112
      %v2120 = vpop.permute.xlu0 %2119
      %2121 = vrot.lane.b32.xlu0 %v2023, 112
      %v2122 = vpop.permute.xlu0 %2121
      %2123 = vrot.lane.b32.xlu0 %v2024, 112
      %v2124 = vpop.permute.xlu0 %2123
      %2125 = vrot.lane.b32.xlu0 %v2025, 112
      %v2126 = vpop.permute.xlu0 %2125
      %2127 = vrot.lane.b32.xlu0 %v2026, 112
      %v2128 = vpop.permute.xlu0 %2127
      %2129 = vrot.lane.b32.xlu0 %v2027, 112
      %v2130 = vpop.permute.xlu0 %2129
      %2131 = vrot.lane.b32.xlu0 %v2028, 112
      %v2132 = vpop.permute.xlu0 %2131
      %2133 = vrot.lane.b32.xlu0 %v2029, 112
      %v2134 = vpop.permute.xlu0 %2133
      %2135 = vrot.lane.b32.xlu0 %v2030, 112
      %v2136 = vpop.permute.xlu0 %2135
      %2137 = vrot.lane.b32.xlu0 %v2031, 112
      %v2138 = vpop.permute.xlu0 %2137
      %2139 = vrot.lane.b32.xlu0 %v2032, 112
      %v2140 = vpop.permute.xlu0 %2139
      %vm2177 = vcmask 1044352
      %2178 = vst.msk [vmem:[#allocation2] sm:$0xf] %vm2177, %v2070
      %2179 = vst.msk [vmem:[#allocation2 + $0x8] sm:$0xf] %vm2177, %v2072
      %2180 = vst.msk [vmem:[#allocation2 + $0x10] sm:$0xf] %vm2177, %v2074
      %2181 = vst.msk [vmem:[#allocation2 + $0x18] sm:$0xf] %vm2177, %v2076
      %2182 = vst.msk [vmem:[#allocation2 + $0x20] sm:$0xf] %vm2177, %v2078
      %2183 = vst.msk [vmem:[#allocation2 + $0x28] sm:$0xf] %vm2177, %v2080
      %2184 = vst.msk [vmem:[#allocation2 + $0x30] sm:$0xf] %vm2177, %v2082
      %2185 = vst.msk [vmem:[#allocation2 + $0x38] sm:$0xf] %vm2177, %v2084
      %2186 = vst.msk [vmem:[#allocation2 + $0x40] sm:$0xf] %vm2177, %v2086
      %2187 = vst.msk [vmem:[#allocation2 + $0x48] sm:$0xf] %vm2177, %v2088
      %2188 = vst.msk [vmem:[#allocation2 + $0x50] sm:$0xf] %vm2177, %v2090
      %2189 = vst.msk [vmem:[#allocation2 + $0x58] sm:$0xf] %vm2177, %v2092
      %2190 = vst.msk [vmem:[#allocation2 + $0x60] sm:$0xf] %vm2177, %v2094
      %2191 = vst.msk [vmem:[#allocation2 + $0x68] sm:$0xf] %vm2177, %v2096
      %2192 = vst.msk [vmem:[#allocation2 + $0x70] sm:$0xf] %vm2177, %v2098
      %2193 = vst.msk [vmem:[#allocation2 + $0x78] sm:$0xf] %vm2177, %v2100
      %2194 = vst.msk [vmem:[#allocation2 + $0x80] sm:$0xf] %vm2177, %v2102
      %2195 = vst.msk [vmem:[#allocation2 + $0x88] sm:$0xf] %vm2177, %v2104
      %2196 = vst.msk [vmem:[#allocation2 + $0x90] sm:$0xf] %vm2177, %v2106
      %2197 = vst.msk [vmem:[#allocation2 + $0x98] sm:$0xf] %vm2177, %v2108
      %2198 = vst.msk [vmem:[#allocation2 + $0xa0] sm:$0xf] %vm2177, %v2110
      %2199 = vst.msk [vmem:[#allocation2 + $0xa8] sm:$0xf] %vm2177, %v2112
      %2200 = vst.msk [vmem:[#allocation2 + $0xb0] sm:$0xf] %vm2177, %v2114
      %2201 = vst.msk [vmem:[#allocation2 + $0xb8] sm:$0xf] %vm2177, %v2116
      %2202 = vst.msk [vmem:[#allocation2 + $0xc0] sm:$0xf] %vm2177, %v2118
      %2203 = vst.msk [vmem:[#allocation2 + $0xc8] sm:$0xf] %vm2177, %v2120
      %2204 = vst.msk [vmem:[#allocation2 + $0xd0] sm:$0xf] %vm2177, %v2122
      %2205 = vst.msk [vmem:[#allocation2 + $0xd8] sm:$0xf] %vm2177, %v2124
      %2206 = vst.msk [vmem:[#allocation2 + $0xe0] sm:$0xf] %vm2177, %v2126
      %2207 = vst.msk [vmem:[#allocation2 + $0xe8] sm:$0xf] %vm2177, %v2128
      %2208 = vst.msk [vmem:[#allocation2 + $0xf0] sm:$0xf] %vm2177, %v2130
      %2209 = vst.msk [vmem:[#allocation2 + $0xf8] sm:$0xf] %vm2177, %v2132
      %2210 = vst.msk [vmem:[#allocation2 + $0x100] sm:$0xf] %vm2177, %v2134
      %2211 = vst.msk [vmem:[#allocation2 + $0x108] sm:$0xf] %vm2177, %v2136
      %2212 = vst.msk [vmem:[#allocation2 + $0x110] sm:$0xf] %vm2177, %v2138
      %2213 = vst.msk [vmem:[#allocation2 + $0x118] sm:$0xf] %vm2177, %v2140
      %v2214 = vld [vmem:[%s327 + $0x26] sm:$0xff]
      %v2215 = vld [vmem:[%s327 + $0x2e] sm:$0xff]
      %v2216 = vld [vmem:[%s327 + $0x36] sm:$0xff]
      %v2217 = vld [vmem:[%s327 + $0x3e] sm:$0xff]
      %v2218 = vld [vmem:[%s327 + $0x46] sm:$0xff]
      %v2219 = vld [vmem:[%s327 + $0x4e] sm:$0xff]
      %v2220 = vld [vmem:[%s327 + $0x56] sm:$0xff]
      %v2221 = vld [vmem:[%s327 + $0x5e] sm:$0xff]
      %v2222 = vld [vmem:[%s327 + $0x66] sm:$0xff]
      %v2223 = vld [vmem:[%s327 + $0x6e] sm:$0xff]
      %v2224 = vld [vmem:[%s327 + $0x76] sm:$0xff]
      %v2225 = vld [vmem:[%s327 + $0x7e] sm:$0xff]
      %v2226 = vld [vmem:[%s327 + $0x86] sm:$0xff]
      %v2227 = vld [vmem:[%s327 + $0x8e] sm:$0xff]
      %v2228 = vld [vmem:[%s327 + $0x96] sm:$0xff]
      %v2229 = vld [vmem:[%s327 + $0x9e] sm:$0xff]
      %v2230 = vld [vmem:[%s327 + $0xa6] sm:$0xff]
      %v2231 = vld [vmem:[%s327 + $0xae] sm:$0xff]
      %v2232 = vld [vmem:[%s327 + $0xb6] sm:$0xff]
      %v2233 = vld [vmem:[%s327 + $0xbe] sm:$0xff]
      %v2234 = vld [vmem:[%s327 + $0xc6] sm:$0xff]
      %v2235 = vld [vmem:[%s327 + $0xce] sm:$0xff]
      %v2236 = vld [vmem:[%s327 + $0xd6] sm:$0xff]
      %v2237 = vld [vmem:[%s327 + $0xde] sm:$0xff]
      %v2238 = vld [vmem:[%s327 + $0xe6] sm:$0xff]
      %v2239 = vld [vmem:[%s327 + $0xee] sm:$0xff]
      %v2240 = vld [vmem:[%s327 + $0xf6] sm:$0xff]
      %v2241 = vld [vmem:[%s327 + $0xfe] sm:$0xff]
      %v2242 = vld [vmem:[%s327 + $0x106] sm:$0xff]
      %v2243 = vld [vmem:[%s327 + $0x10e] sm:$0xff]
      %v2244 = vld [vmem:[%s327 + $0x116] sm:$0xff]
      %v2245 = vld [vmem:[%s327 + $0x11e] sm:$0xff]
      %v2246 = vld [vmem:[%s327 + $0x126] sm:$0xff]
      %v2247 = vld [vmem:[%s327 + $0x12e] sm:$0xff]
      %v2248 = vld [vmem:[%s327 + $0x136] sm:$0xff]
      %v2249 = vld [vmem:[%s327 + $0x13e] sm:$0xff]
      %v2250 = vpack.c.bf16 %v2214, %v2214
      %v2251 = vpack.c.bf16 %v2215, %v2215
      %v2252 = vpack.c.bf16 %v2216, %v2216
      %v2253 = vpack.c.bf16 %v2217, %v2217
      %v2254 = vpack.c.bf16 %v2218, %v2218
      %v2255 = vpack.c.bf16 %v2219, %v2219
      %v2256 = vpack.c.bf16 %v2220, %v2220
      %v2257 = vpack.c.bf16 %v2221, %v2221
      %v2258 = vpack.c.bf16 %v2222, %v2222
      %v2259 = vpack.c.bf16 %v2223, %v2223
      %v2260 = vpack.c.bf16 %v2224, %v2224
      %v2261 = vpack.c.bf16 %v2225, %v2225
      %v2262 = vpack.c.bf16 %v2226, %v2226
      %v2263 = vpack.c.bf16 %v2227, %v2227
      %v2264 = vpack.c.bf16 %v2228, %v2228
      %v2265 = vpack.c.bf16 %v2229, %v2229
      %v2266 = vpack.c.bf16 %v2230, %v2230
      %v2267 = vpack.c.bf16 %v2231, %v2231
      %v2268 = vpack.c.bf16 %v2232, %v2232
      %v2269 = vpack.c.bf16 %v2233, %v2233
      %v2270 = vpack.c.bf16 %v2234, %v2234
      %v2271 = vpack.c.bf16 %v2235, %v2235
      %v2272 = vpack.c.bf16 %v2236, %v2236
      %v2273 = vpack.c.bf16 %v2237, %v2237
      %v2274 = vpack.c.bf16 %v2238, %v2238
      %v2275 = vpack.c.bf16 %v2239, %v2239
      %v2276 = vpack.c.bf16 %v2240, %v2240
      %v2277 = vpack.c.bf16 %v2241, %v2241
      %v2278 = vpack.c.bf16 %v2242, %v2242
      %v2279 = vpack.c.bf16 %v2243, %v2243
      %v2280 = vpack.c.bf16 %v2244, %v2244
      %v2281 = vpack.c.bf16 %v2245, %v2245
      %v2282 = vpack.c.bf16 %v2246, %v2246
      %v2283 = vpack.c.bf16 %v2247, %v2247
      %v2284 = vpack.c.bf16 %v2248, %v2248
      %v2285 = vpack.c.bf16 %v2249, %v2249
      %2286 = vst.msk [vmem:[#allocation2 + $0x4] sm:$0xf] %vm406, %v2250
      %2287 = vst.msk [vmem:[#allocation2 + $0xc] sm:$0xf] %vm406, %v2251
      %2288 = vst.msk [vmem:[#allocation2 + $0x14] sm:$0xf] %vm406, %v2252
      %2289 = vst.msk [vmem:[#allocation2 + $0x1c] sm:$0xf] %vm406, %v2253
      %2290 = vst.msk [vmem:[#allocation2 + $0x24] sm:$0xf] %vm406, %v2254
      %2291 = vst.msk [vmem:[#allocation2 + $0x2c] sm:$0xf] %vm406, %v2255
      %2292 = vst.msk [vmem:[#allocation2 + $0x34] sm:$0xf] %vm406, %v2256
      %2293 = vst.msk [vmem:[#allocation2 + $0x3c] sm:$0xf] %vm406, %v2257
      %2294 = vst.msk [vmem:[#allocation2 + $0x44] sm:$0xf] %vm406, %v2258
      %2295 = vst.msk [vmem:[#allocation2 + $0x4c] sm:$0xf] %vm406, %v2259
      %2296 = vst.msk [vmem:[#allocation2 + $0x54] sm:$0xf] %vm406, %v2260
      %2297 = vst.msk [vmem:[#allocation2 + $0x5c] sm:$0xf] %vm406, %v2261
      %2298 = vst.msk [vmem:[#allocation2 + $0x64] sm:$0xf] %vm406, %v2262
      %2299 = vst.msk [vmem:[#allocation2 + $0x6c] sm:$0xf] %vm406, %v2263
      %2300 = vst.msk [vmem:[#allocation2 + $0x74] sm:$0xf] %vm406, %v2264
      %2301 = vst.msk [vmem:[#allocation2 + $0x7c] sm:$0xf] %vm406, %v2265
      %2302 = vst.msk [vmem:[#allocation2 + $0x84] sm:$0xf] %vm406, %v2266
      %2303 = vst.msk [vmem:[#allocation2 + $0x8c] sm:$0xf] %vm406, %v2267
      %2304 = vst.msk [vmem:[#allocation2 + $0x94] sm:$0xf] %vm406, %v2268
      %2305 = vst.msk [vmem:[#allocation2 + $0x9c] sm:$0xf] %vm406, %v2269
      %2306 = vst.msk [vmem:[#allocation2 + $0xa4] sm:$0xf] %vm406, %v2270
      %2307 = vst.msk [vmem:[#allocation2 + $0xac] sm:$0xf] %vm406, %v2271
      %2308 = vst.msk [vmem:[#allocation2 + $0xb4] sm:$0xf] %vm406, %v2272
      %2309 = vst.msk [vmem:[#allocation2 + $0xbc] sm:$0xf] %vm406, %v2273
      %2310 = vst.msk [vmem:[#allocation2 + $0xc4] sm:$0xf] %vm406, %v2274
      %2311 = vst.msk [vmem:[#allocation2 + $0xcc] sm:$0xf] %vm406, %v2275
      %2312 = vst.msk [vmem:[#allocation2 + $0xd4] sm:$0xf] %vm406, %v2276
      %2313 = vst.msk [vmem:[#allocation2 + $0xdc] sm:$0xf] %vm406, %v2277
      %2314 = vst.msk [vmem:[#allocation2 + $0xe4] sm:$0xf] %vm406, %v2278
      %2315 = vst.msk [vmem:[#allocation2 + $0xec] sm:$0xf] %vm406, %v2279
      %2316 = vst.msk [vmem:[#allocation2 + $0xf4] sm:$0xf] %vm406, %v2280
      %2317 = vst.msk [vmem:[#allocation2 + $0xfc] sm:$0xf] %vm406, %v2281
      %2318 = vst.msk [vmem:[#allocation2 + $0x104] sm:$0xf] %vm406, %v2282
      %2319 = vst.msk [vmem:[#allocation2 + $0x10c] sm:$0xf] %vm406, %v2283
      %2320 = vst.msk [vmem:[#allocation2 + $0x114] sm:$0xf] %vm406, %v2284
      %2321 = vst.msk [vmem:[#allocation2 + $0x11c] sm:$0xf] %vm406, %v2285
      %v2322 = vld [vmem:[#allocation2] sm:$0xff]
      %v2323 = vld [vmem:[#allocation2 + $0x8] sm:$0xff]
      %v2324 = vld [vmem:[#allocation2 + $0x10] sm:$0xff]
      %v2325 = vld [vmem:[#allocation2 + $0x18] sm:$0xff]
      %v2326 = vld [vmem:[#allocation2 + $0x20] sm:$0xff]
      %v2327 = vld [vmem:[#allocation2 + $0x28] sm:$0xff]
      %v2328 = vld [vmem:[#allocation2 + $0x30] sm:$0xff]
      %v2329 = vld [vmem:[#allocation2 + $0x38] sm:$0xff]
      %v2330 = vld [vmem:[#allocation2 + $0x40] sm:$0xff]
      %v2331 = vld [vmem:[#allocation2 + $0x48] sm:$0xff]
      %v2332 = vld [vmem:[#allocation2 + $0x50] sm:$0xff]
      %v2333 = vld [vmem:[#allocation2 + $0x58] sm:$0xff]
      %v2334 = vld [vmem:[#allocation2 + $0x60] sm:$0xff]
      %v2335 = vld [vmem:[#allocation2 + $0x68] sm:$0xff]
      %v2336 = vld [vmem:[#allocation2 + $0x70] sm:$0xff]
      %v2337 = vld [vmem:[#allocation2 + $0x78] sm:$0xff]
      %v2338 = vld [vmem:[#allocation2 + $0x80] sm:$0xff]
      %v2339 = vld [vmem:[#allocation2 + $0x88] sm:$0xff]
      %v2340 = vld [vmem:[#allocation2 + $0x90] sm:$0xff]
      %v2341 = vld [vmem:[#allocation2 + $0x98] sm:$0xff]
      %v2342 = vld [vmem:[#allocation2 + $0xa0] sm:$0xff]
      %v2343 = vld [vmem:[#allocation2 + $0xa8] sm:$0xff]
      %v2344 = vld [vmem:[#allocation2 + $0xb0] sm:$0xff]
      %v2345 = vld [vmem:[#allocation2 + $0xb8] sm:$0xff]
      %v2346 = vld [vmem:[#allocation2 + $0xc0] sm:$0xff]
      %v2347 = vld [vmem:[#allocation2 + $0xc8] sm:$0xff]
      %v2348 = vld [vmem:[#allocation2 + $0xd0] sm:$0xff]
      %v2349 = vld [vmem:[#allocation2 + $0xd8] sm:$0xff]
      %v2350 = vld [vmem:[#allocation2 + $0xe0] sm:$0xff]
      %v2351 = vld [vmem:[#allocation2 + $0xe8] sm:$0xff]
      %v2352 = vld [vmem:[#allocation2 + $0xf0] sm:$0xff]
      %v2353 = vld [vmem:[#allocation2 + $0xf8] sm:$0xff]
      %v2354 = vld [vmem:[#allocation2 + $0x100] sm:$0xff]
      %v2355 = vld [vmem:[#allocation2 + $0x108] sm:$0xff]
      %v2356 = vld [vmem:[#allocation2 + $0x110] sm:$0xff]
      %v2357 = vld [vmem:[#allocation2 + $0x118] sm:$0xff]
      %v2358 = vld [vmem:[%s2] sm:$0xf]
      %v2359 = vld [vmem:[%s2 + $0x4] sm:$0xf]
      %v2360 = vld [vmem:[%s2 + $0x8] sm:$0xf]
      %v2361 = vld [vmem:[%s2 + $0xc] sm:$0xf]
      %v2362 = vld [vmem:[%s2 + $0x10] sm:$0xf]
      %v2363 = vld [vmem:[%s2 + $0x14] sm:$0xf]
      %v2364 = vld [vmem:[%s2 + $0x18] sm:$0xf]
      %v2365 = vld [vmem:[%s2 + $0x1c] sm:$0xf]
      %v2366 = vld [vmem:[%s2 + $0x20] sm:$0xf]
      %v2367 = vld [vmem:[%s2 + $0x24] sm:$0xf]
      %v2368 = vld [vmem:[%s2 + $0x28] sm:$0xf]
      %v2369 = vld [vmem:[%s2 + $0x2c] sm:$0xf]
      %v2370 = vld [vmem:[%s2 + $0x30] sm:$0xf]
      %v2371 = vld [vmem:[%s2 + $0x34] sm:$0xf]
      %v2372 = vld [vmem:[%s2 + $0x38] sm:$0xf]
      %v2373 = vld [vmem:[%s2 + $0x3c] sm:$0xf]
      %v2374 = vld [vmem:[%s2 + $0x40] sm:$0xf]
      %v2375 = vld [vmem:[%s2 + $0x44] sm:$0xf]
      %v2376 = vld [vmem:[%s3] sm:$0x1]
      %v2378 = vperm.slane %v2376, 0
      %v2416 = vunpack.c.l.b16 %v2322
      %v2417 = vunpack.c.h.b16 %v2322
      %v2418 = vunpack.c.l.b16 %v2323
      %v2419 = vunpack.c.h.b16 %v2323
      %v2420 = vunpack.c.l.b16 %v2324
      %v2421 = vunpack.c.h.b16 %v2324
      %v2422 = vunpack.c.l.b16 %v2325
      %v2423 = vunpack.c.h.b16 %v2325
      %v2424 = vunpack.c.l.b16 %v2326
      %v2425 = vunpack.c.h.b16 %v2326
      %v2426 = vunpack.c.l.b16 %v2327
      %v2427 = vunpack.c.h.b16 %v2327
      %v2428 = vunpack.c.l.b16 %v2328
      %v2429 = vunpack.c.h.b16 %v2328
      %v2430 = vunpack.c.l.b16 %v2329
      %v2431 = vunpack.c.h.b16 %v2329
      %v2432 = vunpack.c.l.b16 %v2330
      %v2433 = vunpack.c.h.b16 %v2330
      %v2434 = vunpack.c.l.b16 %v2331
      %v2435 = vunpack.c.h.b16 %v2331
      %v2436 = vunpack.c.l.b16 %v2332
      %v2437 = vunpack.c.h.b16 %v2332
      %v2438 = vunpack.c.l.b16 %v2333
      %v2439 = vunpack.c.h.b16 %v2333
      %v2440 = vunpack.c.l.b16 %v2334
      %v2441 = vunpack.c.h.b16 %v2334
      %v2442 = vunpack.c.l.b16 %v2335
      %v2443 = vunpack.c.h.b16 %v2335
      %v2444 = vunpack.c.l.b16 %v2336
      %v2445 = vunpack.c.h.b16 %v2336
      %v2446 = vunpack.c.l.b16 %v2337
      %v2447 = vunpack.c.h.b16 %v2337
      %v2448 = vunpack.c.l.b16 %v2338
      %v2449 = vunpack.c.h.b16 %v2338
      %v2450 = vunpack.c.l.b16 %v2339
      %v2451 = vunpack.c.h.b16 %v2339
      %v2452 = vunpack.c.l.b16 %v2340
      %v2453 = vunpack.c.h.b16 %v2340
      %v2454 = vunpack.c.l.b16 %v2341
      %v2455 = vunpack.c.h.b16 %v2341
      %v2456 = vunpack.c.l.b16 %v2342
      %v2457 = vunpack.c.h.b16 %v2342
      %v2458 = vunpack.c.l.b16 %v2343
      %v2459 = vunpack.c.h.b16 %v2343
      %v2460 = vunpack.c.l.b16 %v2344
      %v2461 = vunpack.c.h.b16 %v2344
      %v2462 = vunpack.c.l.b16 %v2345
      %v2463 = vunpack.c.h.b16 %v2345
      %v2464 = vunpack.c.l.b16 %v2346
      %v2465 = vunpack.c.h.b16 %v2346
      %v2466 = vunpack.c.l.b16 %v2347
      %v2467 = vunpack.c.h.b16 %v2347
      %v2468 = vunpack.c.l.b16 %v2348
      %v2469 = vunpack.c.h.b16 %v2348
      %v2470 = vunpack.c.l.b16 %v2349
      %v2471 = vunpack.c.h.b16 %v2349
      %v2472 = vunpack.c.l.b16 %v2350
      %v2473 = vunpack.c.h.b16 %v2350
      %v2474 = vunpack.c.l.b16 %v2351
      %v2475 = vunpack.c.h.b16 %v2351
      %v2476 = vunpack.c.l.b16 %v2352
      %v2477 = vunpack.c.h.b16 %v2352
      %v2478 = vunpack.c.l.b16 %v2353
      %v2479 = vunpack.c.h.b16 %v2353
      %v2480 = vunpack.c.l.b16 %v2354
      %v2481 = vunpack.c.h.b16 %v2354
      %v2482 = vunpack.c.l.b16 %v2355
      %v2483 = vunpack.c.h.b16 %v2355
      %v2484 = vunpack.c.l.b16 %v2356
      %v2485 = vunpack.c.h.b16 %v2356
      %v2486 = vunpack.c.l.b16 %v2357
      %v2487 = vunpack.c.h.b16 %v2357
      %v2488 = vpack.c.b16 %v2418, %v2416
      %v2489 = vpack.c.b16 %v2419, %v2417
      %v2490 = vpack.c.b16 %v2422, %v2420
      %v2491 = vpack.c.b16 %v2423, %v2421
      %v2492 = vpack.c.b16 %v2426, %v2424
      %v2493 = vpack.c.b16 %v2427, %v2425
      %v2494 = vpack.c.b16 %v2430, %v2428
      %v2495 = vpack.c.b16 %v2431, %v2429
      %v2496 = vpack.c.b16 %v2434, %v2432
      %v2497 = vpack.c.b16 %v2435, %v2433
      %v2498 = vpack.c.b16 %v2438, %v2436
      %v2499 = vpack.c.b16 %v2439, %v2437
      %v2500 = vpack.c.b16 %v2442, %v2440
      %v2501 = vpack.c.b16 %v2443, %v2441
      %v2502 = vpack.c.b16 %v2446, %v2444
      %v2503 = vpack.c.b16 %v2447, %v2445
      %v2504 = vpack.c.b16 %v2450, %v2448
      %v2505 = vpack.c.b16 %v2451, %v2449
      %v2506 = vpack.c.b16 %v2454, %v2452
      %v2507 = vpack.c.b16 %v2455, %v2453
      %v2508 = vpack.c.b16 %v2458, %v2456
      %v2509 = vpack.c.b16 %v2459, %v2457
      %v2510 = vpack.c.b16 %v2462, %v2460
      %v2511 = vpack.c.b16 %v2463, %v2461
      %v2512 = vpack.c.b16 %v2466, %v2464
      %v2513 = vpack.c.b16 %v2467, %v2465
      %v2514 = vpack.c.b16 %v2470, %v2468
      %v2515 = vpack.c.b16 %v2471, %v2469
      %v2516 = vpack.c.b16 %v2474, %v2472
      %v2517 = vpack.c.b16 %v2475, %v2473
      %v2518 = vpack.c.b16 %v2478, %v2476
      %v2519 = vpack.c.b16 %v2479, %v2477
      %v2520 = vpack.c.b16 %v2482, %v2480
      %v2521 = vpack.c.b16 %v2483, %v2481
      %v2522 = vpack.c.b16 %v2486, %v2484
      %v2523 = vpack.c.b16 %v2487, %v2485
      %v2560 = vunpack.c.l.b16 %v2358
      %v2561 = vunpack.c.l.b16 %v2359
      %v2562 = vunpack.c.l.b16 %v2360
      %v2563 = vunpack.c.l.b16 %v2361
      %v2564 = vunpack.c.l.b16 %v2362
      %v2565 = vunpack.c.l.b16 %v2363
      %v2566 = vunpack.c.l.b16 %v2364
      %v2567 = vunpack.c.l.b16 %v2365
      %v2568 = vunpack.c.l.b16 %v2366
      %v2569 = vunpack.c.l.b16 %v2367
      %v2570 = vunpack.c.l.b16 %v2368
      %v2571 = vunpack.c.l.b16 %v2369
      %v2572 = vunpack.c.l.b16 %v2370
      %v2573 = vunpack.c.l.b16 %v2371
      %v2574 = vunpack.c.l.b16 %v2372
      %v2575 = vunpack.c.l.b16 %v2373
      %v2576 = vunpack.c.l.b16 %v2374
      %v2577 = vunpack.c.l.b16 %v2375
      %v2578 = vpack.c.b16 %v2561, %v2560
      %v2579 = vpack.c.b16 %v2563, %v2562
      %v2580 = vpack.c.b16 %v2565, %v2564
      %v2581 = vpack.c.b16 %v2567, %v2566
      %v2582 = vpack.c.b16 %v2569, %v2568
      %v2583 = vpack.c.b16 %v2571, %v2570
      %v2584 = vpack.c.b16 %v2573, %v2572
      %v2585 = vpack.c.b16 %v2575, %v2574
      %v2586 = vpack.c.b16 %v2577, %v2576
      %vm2596 = vcmask 130048
      %v2598 = vsel %vm2596, %v2489, 0
      %v2601 = vsel %vm2596, %v2491, 0
      %v2604 = vsel %vm2596, %v2493, 0
      %v2607 = vsel %vm2596, %v2495, 0
      %v2610 = vsel %vm2596, %v2497, 0
      %v2613 = vsel %vm2596, %v2499, 0
      %v2616 = vsel %vm2596, %v2501, 0
      %v2619 = vsel %vm2596, %v2503, 0
      %v2622 = vsel %vm2596, %v2505, 0
      %v2625 = vsel %vm2596, %v2507, 0
      %v2628 = vsel %vm2596, %v2509, 0
      %v2631 = vsel %vm2596, %v2511, 0
      %v2634 = vsel %vm2596, %v2513, 0
      %v2637 = vsel %vm2596, %v2515, 0
      %v2640 = vsel %vm2596, %v2517, 0
      %v2643 = vsel %vm2596, %v2519, 0
      %v2646 = vsel %vm2596, %v2521, 0
      %v2649 = vsel %vm2596, %v2523, 0
      %2651 = vmatpush.bf16.msra.mxu0 %v2585
      %2652 = vmatpush.bf16.msra.mxu0 %v2584
      %2653 = vmatpush.bf16.msra.mxu0 %v2583
      %2654 = vmatpush.bf16.msra.mxu0 %v2582
      %2655 = vmatpush.bf16.msra.mxu0 %v2581
      %2656 = vmatpush.bf16.msra.mxu0 %v2580
      %2657 = vmatpush.bf16.msra.mxu0 %v2579
      %2658 = vmatpush.bf16.msra.mxu0 %v2578
      %2659 = vmatmul.bf16.gmra.mxu0 %v2488
      %v2660 = vpop.f32.mrf.mxu0
      %v2661 = vadd.f32 %v2378, %v2660
      %v2662 = vpop.f32.mrf.mxu0
      %v2663 = vadd.f32 %v2378, %v2662
      %2664 = vmatmul.bf16.gmra.mxu0 %v2490
      %v2665 = vpop.f32.mrf.mxu0
      %v2666 = vadd.f32 %v2378, %v2665
      %v2667 = vpop.f32.mrf.mxu0
      %v2668 = vadd.f32 %v2378, %v2667
      %2669 = vmatmul.bf16.gmra.mxu0 %v2492
      %v2670 = vpop.f32.mrf.mxu0
      %v2671 = vadd.f32 %v2378, %v2670
      %v2672 = vpop.f32.mrf.mxu0
      %v2673 = vadd.f32 %v2378, %v2672
      %2674 = vmatmul.bf16.gmra.mxu0 %v2494
      %v2675 = vpop.f32.mrf.mxu0
      %v2676 = vadd.f32 %v2378, %v2675
      %v2677 = vpop.f32.mrf.mxu0
      %v2678 = vadd.f32 %v2378, %v2677
      %2679 = vmatmul.bf16.gmra.mxu0 %v2496
      %v2680 = vpop.f32.mrf.mxu0
      %v2681 = vadd.f32 %v2378, %v2680
      %v2682 = vpop.f32.mrf.mxu0
      %v2683 = vadd.f32 %v2378, %v2682
      %2684 = vmatmul.bf16.gmra.mxu0 %v2498
      %v2685 = vpop.f32.mrf.mxu0
      %v2686 = vadd.f32 %v2378, %v2685
      %v2687 = vpop.f32.mrf.mxu0
      %v2688 = vadd.f32 %v2378, %v2687
      %2689 = vmatmul.bf16.gmra.mxu0 %v2500
      %v2690 = vpop.f32.mrf.mxu0
      %v2691 = vadd.f32 %v2378, %v2690
      %v2692 = vpop.f32.mrf.mxu0
      %v2693 = vadd.f32 %v2378, %v2692
      %2694 = vmatmul.bf16.gmra.mxu0 %v2502
      %v2695 = vpop.f32.mrf.mxu0
      %v2696 = vadd.f32 %v2378, %v2695
      %v2697 = vpop.f32.mrf.mxu0
      %v2698 = vadd.f32 %v2378, %v2697
      %2699 = vmatmul.bf16.gmra.mxu0 %v2504
      %v2700 = vpop.f32.mrf.mxu0
      %v2701 = vadd.f32 %v2378, %v2700
      %v2702 = vpop.f32.mrf.mxu0
      %v2703 = vadd.f32 %v2378, %v2702
      %2704 = vmatmul.bf16.gmra.mxu0 %v2506
      %v2705 = vpop.f32.mrf.mxu0
      %v2706 = vadd.f32 %v2378, %v2705
      %v2707 = vpop.f32.mrf.mxu0
      %v2708 = vadd.f32 %v2378, %v2707
      %2709 = vmatmul.bf16.gmra.mxu0 %v2508
      %v2710 = vpop.f32.mrf.mxu0
      %v2711 = vadd.f32 %v2378, %v2710
      %v2712 = vpop.f32.mrf.mxu0
      %v2713 = vadd.f32 %v2378, %v2712
      %2714 = vmatmul.bf16.gmra.mxu0 %v2510
      %v2715 = vpop.f32.mrf.mxu0
      %v2716 = vadd.f32 %v2378, %v2715
      %v2717 = vpop.f32.mrf.mxu0
      %v2718 = vadd.f32 %v2378, %v2717
      %2719 = vmatmul.bf16.gmra.mxu0 %v2512
      %v2720 = vpop.f32.mrf.mxu0
      %v2721 = vadd.f32 %v2378, %v2720
      %v2722 = vpop.f32.mrf.mxu0
      %v2723 = vadd.f32 %v2378, %v2722
      %2724 = vmatmul.bf16.gmra.mxu0 %v2514
      %v2725 = vpop.f32.mrf.mxu0
      %v2726 = vadd.f32 %v2378, %v2725
      %v2727 = vpop.f32.mrf.mxu0
      %v2728 = vadd.f32 %v2378, %v2727
      %2729 = vmatmul.bf16.gmra.mxu0 %v2516
      %v2730 = vpop.f32.mrf.mxu0
      %v2731 = vadd.f32 %v2378, %v2730
      %v2732 = vpop.f32.mrf.mxu0
      %v2733 = vadd.f32 %v2378, %v2732
      %2734 = vmatmul.bf16.gmra.mxu0 %v2518
      %v2735 = vpop.f32.mrf.mxu0
      %v2736 = vadd.f32 %v2378, %v2735
      %v2737 = vpop.f32.mrf.mxu0
      %v2738 = vadd.f32 %v2378, %v2737
      %2739 = vmatmul.bf16.gmra.mxu0 %v2520
      %v2740 = vpop.f32.mrf.mxu0
      %v2741 = vadd.f32 %v2378, %v2740
      %v2742 = vpop.f32.mrf.mxu0
      %v2743 = vadd.f32 %v2378, %v2742
      %2744 = vmatmul.bf16.gmra.mxu0 %v2522
      %v2745 = vpop.f32.mrf.mxu0
      %v2746 = vadd.f32 %v2378, %v2745
      %v2747 = vpop.f32.mrf.mxu0
      %v2748 = vadd.f32 %v2378, %v2747
      %2749 = vdwg.mxu0
      %2750 = vmatpush.bf16.msra.mxu0 0
      %2751 = vmatpush.bf16.msra.mxu0 0
      %2752 = vmatpush.bf16.msra.mxu0 0
      %2753 = vmatpush.bf16.msra.mxu0 0
      %2754 = vmatpush.bf16.msra.mxu0 0
      %2755 = vmatpush.bf16.msra.mxu0 0
      %2756 = vmatpush.bf16.msra.mxu0 0
      %2757 = vmatpush.bf16.msra.mxu0 %v2586
      %2758 = vmatmul.bf16.gmra.mxu0 %v2598
      %v2759 = vpop.f32.mrf.mxu0
      %v2760 = vadd.f32 %v2661, %v2759
      %v2761 = vpop.f32.mrf.mxu0
      %v2762 = vadd.f32 %v2663, %v2761
      %2763 = vmatmul.bf16.gmra.mxu0 %v2601
      %v2764 = vpop.f32.mrf.mxu0
      %v2765 = vadd.f32 %v2666, %v2764
      %v2766 = vpop.f32.mrf.mxu0
      %v2767 = vadd.f32 %v2668, %v2766
      %2768 = vmatmul.bf16.gmra.mxu0 %v2604
      %v2769 = vpop.f32.mrf.mxu0
      %v2770 = vadd.f32 %v2671, %v2769
      %v2771 = vpop.f32.mrf.mxu0
      %v2772 = vadd.f32 %v2673, %v2771
      %2773 = vmatmul.bf16.gmra.mxu0 %v2607
      %v2774 = vpop.f32.mrf.mxu0
      %v2775 = vadd.f32 %v2676, %v2774
      %v2776 = vpop.f32.mrf.mxu0
      %v2777 = vadd.f32 %v2678, %v2776
      %2778 = vmatmul.bf16.gmra.mxu0 %v2610
      %v2779 = vpop.f32.mrf.mxu0
      %v2780 = vadd.f32 %v2681, %v2779
      %v2781 = vpop.f32.mrf.mxu0
      %v2782 = vadd.f32 %v2683, %v2781
      %2783 = vmatmul.bf16.gmra.mxu0 %v2613
      %v2784 = vpop.f32.mrf.mxu0
      %v2785 = vadd.f32 %v2686, %v2784
      %v2786 = vpop.f32.mrf.mxu0
      %v2787 = vadd.f32 %v2688, %v2786
      %2788 = vmatmul.bf16.gmra.mxu0 %v2616
      %v2789 = vpop.f32.mrf.mxu0
      %v2790 = vadd.f32 %v2691, %v2789
      %v2791 = vpop.f32.mrf.mxu0
      %v2792 = vadd.f32 %v2693, %v2791
      %2793 = vmatmul.bf16.gmra.mxu0 %v2619
      %v2794 = vpop.f32.mrf.mxu0
      %v2795 = vadd.f32 %v2696, %v2794
      %v2796 = vpop.f32.mrf.mxu0
      %v2797 = vadd.f32 %v2698, %v2796
      %2798 = vmatmul.bf16.gmra.mxu0 %v2622
      %v2799 = vpop.f32.mrf.mxu0
      %v2800 = vadd.f32 %v2701, %v2799
      %v2801 = vpop.f32.mrf.mxu0
      %v2802 = vadd.f32 %v2703, %v2801
      %2803 = vmatmul.bf16.gmra.mxu0 %v2625
      %v2804 = vpop.f32.mrf.mxu0
      %v2805 = vadd.f32 %v2706, %v2804
      %v2806 = vpop.f32.mrf.mxu0
      %v2807 = vadd.f32 %v2708, %v2806
      %2808 = vmatmul.bf16.gmra.mxu0 %v2628
      %v2809 = vpop.f32.mrf.mxu0
      %v2810 = vadd.f32 %v2711, %v2809
      %v2811 = vpop.f32.mrf.mxu0
      %v2812 = vadd.f32 %v2713, %v2811
      %2813 = vmatmul.bf16.gmra.mxu0 %v2631
      %v2814 = vpop.f32.mrf.mxu0
      %v2815 = vadd.f32 %v2716, %v2814
      %v2816 = vpop.f32.mrf.mxu0
      %v2817 = vadd.f32 %v2718, %v2816
      %2818 = vmatmul.bf16.gmra.mxu0 %v2634
      %v2819 = vpop.f32.mrf.mxu0
      %v2820 = vadd.f32 %v2721, %v2819
      %v2821 = vpop.f32.mrf.mxu0
      %v2822 = vadd.f32 %v2723, %v2821
      %2823 = vmatmul.bf16.gmra.mxu0 %v2637
      %v2824 = vpop.f32.mrf.mxu0
      %v2825 = vadd.f32 %v2726, %v2824
      %v2826 = vpop.f32.mrf.mxu0
      %v2827 = vadd.f32 %v2728, %v2826
      %2828 = vmatmul.bf16.gmra.mxu0 %v2640
      %v2829 = vpop.f32.mrf.mxu0
      %v2830 = vadd.f32 %v2731, %v2829
      %v2831 = vpop.f32.mrf.mxu0
      %v2832 = vadd.f32 %v2733, %v2831
      %2833 = vmatmul.bf16.gmra.mxu0 %v2643
      %v2834 = vpop.f32.mrf.mxu0
      %v2835 = vadd.f32 %v2736, %v2834
      %v2836 = vpop.f32.mrf.mxu0
      %v2837 = vadd.f32 %v2738, %v2836
      %2838 = vmatmul.bf16.gmra.mxu0 %v2646
      %v2839 = vpop.f32.mrf.mxu0
      %v2840 = vadd.f32 %v2741, %v2839
      %v2841 = vpop.f32.mrf.mxu0
      %v2842 = vadd.f32 %v2743, %v2841
      %2843 = vmatmul.bf16.gmra.mxu0 %v2649
      %v2844 = vpop.f32.mrf.mxu0
      %v2845 = vadd.f32 %v2746, %v2844
      %v2846 = vpop.f32.mrf.mxu0
      %v2847 = vadd.f32 %v2748, %v2846
      %2848 = vdwg.mxu0
      %v2849 = vmax.f32 %v2760, 0.0
      %v2850 = vmax.f32 %v2762, 0.0
      %v2851 = vmax.f32 %v2765, 0.0
      %v2852 = vmax.f32 %v2767, 0.0
      %v2853 = vmax.f32 %v2770, 0.0
      %v2854 = vmax.f32 %v2772, 0.0
      %v2855 = vmax.f32 %v2775, 0.0
      %v2856 = vmax.f32 %v2777, 0.0
      %v2857 = vmax.f32 %v2780, 0.0
      %v2858 = vmax.f32 %v2782, 0.0
      %v2859 = vmax.f32 %v2785, 0.0
      %v2860 = vmax.f32 %v2787, 0.0
      %v2861 = vmax.f32 %v2790, 0.0
      %v2862 = vmax.f32 %v2792, 0.0
      %v2863 = vmax.f32 %v2795, 0.0
      %v2864 = vmax.f32 %v2797, 0.0
      %v2865 = vmax.f32 %v2800, 0.0
      %v2866 = vmax.f32 %v2802, 0.0
      %v2867 = vmax.f32 %v2805, 0.0
      %v2868 = vmax.f32 %v2807, 0.0
      %v2869 = vmax.f32 %v2810, 0.0
      %v2870 = vmax.f32 %v2812, 0.0
      %v2871 = vmax.f32 %v2815, 0.0
      %v2872 = vmax.f32 %v2817, 0.0
      %v2873 = vmax.f32 %v2820, 0.0
      %v2874 = vmax.f32 %v2822, 0.0
      %v2875 = vmax.f32 %v2825, 0.0
      %v2876 = vmax.f32 %v2827, 0.0
      %v2877 = vmax.f32 %v2830, 0.0
      %v2878 = vmax.f32 %v2832, 0.0
      %v2879 = vmax.f32 %v2835, 0.0
      %v2880 = vmax.f32 %v2837, 0.0
      %v2881 = vmax.f32 %v2840, 0.0
      %v2882 = vmax.f32 %v2842, 0.0
      %v2883 = vmax.f32 %v2845, 0.0
      %v2884 = vmax.f32 %v2847, 0.0
      %v2885 = vld [vmem:[%s1] sm:$0xff]
      %v2886 = vld [vmem:[%s1 + $0x8] sm:$0xff]
      %v2887 = vld [vmem:[%s1 + $0x10] sm:$0xff]
      %v2888 = vld [vmem:[%s1 + $0x18] sm:$0xff]
      %v2889 = vld [vmem:[%s1 + $0x20] sm:$0xff]
      %v2890 = vld [vmem:[%s1 + $0x28] sm:$0xff]
      %v2891 = vld [vmem:[%s1 + $0x30] sm:$0xff]
      %v2892 = vld [vmem:[%s1 + $0x38] sm:$0xff]
      %v2893 = vld [vmem:[%s1 + $0x40] sm:$0xff]
      %v2894 = vld [vmem:[%s1 + $0x48] sm:$0xff]
      %v2895 = vld [vmem:[%s1 + $0x50] sm:$0xff]
      %v2896 = vld [vmem:[%s1 + $0x58] sm:$0xff]
      %v2897 = vld [vmem:[%s1 + $0x60] sm:$0xff]
      %v2898 = vld [vmem:[%s1 + $0x68] sm:$0xff]
      %v2899 = vld [vmem:[%s1 + $0x70] sm:$0xff]
      %v2900 = vld [vmem:[%s1 + $0x78] sm:$0xff]
      %v2901 = vld [vmem:[%s1 + $0x80] sm:$0xff]
      %v2902 = vld [vmem:[%s1 + $0x88] sm:$0xff]
      %v2903 = vld [vmem:[%s1 + $0x90] sm:$0xff]
      %v2904 = vld [vmem:[%s1 + $0x98] sm:$0xff]
      %v2905 = vld [vmem:[%s1 + $0xa0] sm:$0xff]
      %v2906 = vld [vmem:[%s1 + $0xa8] sm:$0xff]
      %v2907 = vld [vmem:[%s1 + $0xb0] sm:$0xff]
      %v2908 = vld [vmem:[%s1 + $0xb8] sm:$0xff]
      %v2909 = vld [vmem:[%s1 + $0xc0] sm:$0xff]
      %v2910 = vld [vmem:[%s1 + $0xc8] sm:$0xff]
      %v2911 = vld [vmem:[%s1 + $0xd0] sm:$0xff]
      %v2912 = vld [vmem:[%s1 + $0xd8] sm:$0xff]
      %v2913 = vld [vmem:[%s1 + $0xe0] sm:$0xff]
      %v2914 = vld [vmem:[%s1 + $0xe8] sm:$0xff]
      %v2915 = vld [vmem:[%s1 + $0xf0] sm:$0xff]
      %v2916 = vld [vmem:[%s1 + $0xf8] sm:$0xff]
      %v2917 = vld [vmem:[%s1 + $0x100] sm:$0xff]
      %v2918 = vld [vmem:[%s1 + $0x108] sm:$0xff]
      %v2919 = vld [vmem:[%s1 + $0x110] sm:$0xff]
      %v2920 = vld [vmem:[%s1 + $0x118] sm:$0xff]
      %2922 = vset.pattern.permute.xlu0 0
      %2923 = vperm.xlu0 %2922, %v2885
      %v2924 = vpop.permute.xlu0 %2923
      %2927 = vset.pattern.permute.xlu0 0
      %2928 = vperm.xlu0 %2927, %v2886
      %v2929 = vpop.permute.xlu0 %2928
      %2932 = vset.pattern.permute.xlu0 0
      %2933 = vperm.xlu0 %2932, %v2887
      %v2934 = vpop.permute.xlu0 %2933
      %2937 = vset.pattern.permute.xlu0 0
      %2938 = vperm.xlu0 %2937, %v2888
      %v2939 = vpop.permute.xlu0 %2938
      %2942 = vset.pattern.permute.xlu0 0
      %2943 = vperm.xlu0 %2942, %v2889
      %v2944 = vpop.permute.xlu0 %2943
      %2947 = vset.pattern.permute.xlu0 0
      %2948 = vperm.xlu0 %2947, %v2890
      %v2949 = vpop.permute.xlu0 %2948
      %2952 = vset.pattern.permute.xlu0 0
      %2953 = vperm.xlu0 %2952, %v2891
      %v2954 = vpop.permute.xlu0 %2953
      %2957 = vset.pattern.permute.xlu0 0
      %2958 = vperm.xlu0 %2957, %v2892
      %v2959 = vpop.permute.xlu0 %2958
      %2962 = vset.pattern.permute.xlu0 0
      %2963 = vperm.xlu0 %2962, %v2893
      %v2964 = vpop.permute.xlu0 %2963
      %2967 = vset.pattern.permute.xlu0 0
      %2968 = vperm.xlu0 %2967, %v2894
      %v2969 = vpop.permute.xlu0 %2968
      %2972 = vset.pattern.permute.xlu0 0
      %2973 = vperm.xlu0 %2972, %v2895
      %v2974 = vpop.permute.xlu0 %2973
      %2977 = vset.pattern.permute.xlu0 0
      %2978 = vperm.xlu0 %2977, %v2896
      %v2979 = vpop.permute.xlu0 %2978
      %2982 = vset.pattern.permute.xlu0 0
      %2983 = vperm.xlu0 %2982, %v2897
      %v2984 = vpop.permute.xlu0 %2983
      %2987 = vset.pattern.permute.xlu0 0
      %2988 = vperm.xlu0 %2987, %v2898
      %v2989 = vpop.permute.xlu0 %2988
      %2992 = vset.pattern.permute.xlu0 0
      %2993 = vperm.xlu0 %2992, %v2899
      %v2994 = vpop.permute.xlu0 %2993
      %2997 = vset.pattern.permute.xlu0 0
      %2998 = vperm.xlu0 %2997, %v2900
      %v2999 = vpop.permute.xlu0 %2998
      %3002 = vset.pattern.permute.xlu0 0
      %3003 = vperm.xlu0 %3002, %v2901
      %v3004 = vpop.permute.xlu0 %3003
      %3007 = vset.pattern.permute.xlu0 0
      %3008 = vperm.xlu0 %3007, %v2902
      %v3009 = vpop.permute.xlu0 %3008
      %3012 = vset.pattern.permute.xlu0 0
      %3013 = vperm.xlu0 %3012, %v2903
      %v3014 = vpop.permute.xlu0 %3013
      %3017 = vset.pattern.permute.xlu0 0
      %3018 = vperm.xlu0 %3017, %v2904
      %v3019 = vpop.permute.xlu0 %3018
      %3022 = vset.pattern.permute.xlu0 0
      %3023 = vperm.xlu0 %3022, %v2905
      %v3024 = vpop.permute.xlu0 %3023
      %3027 = vset.pattern.permute.xlu0 0
      %3028 = vperm.xlu0 %3027, %v2906
      %v3029 = vpop.permute.xlu0 %3028
      %3032 = vset.pattern.permute.xlu0 0
      %3033 = vperm.xlu0 %3032, %v2907
      %v3034 = vpop.permute.xlu0 %3033
      %3037 = vset.pattern.permute.xlu0 0
      %3038 = vperm.xlu0 %3037, %v2908
      %v3039 = vpop.permute.xlu0 %3038
      %3042 = vset.pattern.permute.xlu0 0
      %3043 = vperm.xlu0 %3042, %v2909
      %v3044 = vpop.permute.xlu0 %3043
      %3047 = vset.pattern.permute.xlu0 0
      %3048 = vperm.xlu0 %3047, %v2910
      %v3049 = vpop.permute.xlu0 %3048
      %3052 = vset.pattern.permute.xlu0 0
      %3053 = vperm.xlu0 %3052, %v2911
      %v3054 = vpop.permute.xlu0 %3053
      %3057 = vset.pattern.permute.xlu0 0
      %3058 = vperm.xlu0 %3057, %v2912
      %v3059 = vpop.permute.xlu0 %3058
      %3062 = vset.pattern.permute.xlu0 0
      %3063 = vperm.xlu0 %3062, %v2913
      %v3064 = vpop.permute.xlu0 %3063
      %3067 = vset.pattern.permute.xlu0 0
      %3068 = vperm.xlu0 %3067, %v2914
      %v3069 = vpop.permute.xlu0 %3068
      %3072 = vset.pattern.permute.xlu0 0
      %3073 = vperm.xlu0 %3072, %v2915
      %v3074 = vpop.permute.xlu0 %3073
      %3077 = vset.pattern.permute.xlu0 0
      %3078 = vperm.xlu0 %3077, %v2916
      %v3079 = vpop.permute.xlu0 %3078
      %3082 = vset.pattern.permute.xlu0 0
      %3083 = vperm.xlu0 %3082, %v2917
      %v3084 = vpop.permute.xlu0 %3083
      %3087 = vset.pattern.permute.xlu0 0
      %3088 = vperm.xlu0 %3087, %v2918
      %v3089 = vpop.permute.xlu0 %3088
      %3092 = vset.pattern.permute.xlu0 0
      %3093 = vperm.xlu0 %3092, %v2919
      %v3094 = vpop.permute.xlu0 %3093
      %3097 = vset.pattern.permute.xlu0 0
      %3098 = vperm.xlu0 %3097, %v2920
      %v3099 = vpop.permute.xlu0 %3098
      %v3101 = vmul.f32 %v2849, %v2924
      %v3102 = vmul.f32 %v2850, %v2929
      %v3103 = vmul.f32 %v2851, %v2934
      %v3104 = vmul.f32 %v2852, %v2939
      %v3105 = vmul.f32 %v2853, %v2944
      %v3106 = vmul.f32 %v2854, %v2949
      %v3107 = vmul.f32 %v2855, %v2954
      %v3108 = vmul.f32 %v2856, %v2959
      %v3109 = vmul.f32 %v2857, %v2964
      %v3110 = vmul.f32 %v2858, %v2969
      %v3111 = vmul.f32 %v2859, %v2974
      %v3112 = vmul.f32 %v2860, %v2979
      %v3113 = vmul.f32 %v2861, %v2984
      %v3114 = vmul.f32 %v2862, %v2989
      %v3115 = vmul.f32 %v2863, %v2994
      %v3116 = vmul.f32 %v2864, %v2999
      %v3117 = vmul.f32 %v2865, %v3004
      %v3118 = vmul.f32 %v2866, %v3009
      %v3119 = vmul.f32 %v2867, %v3014
      %v3120 = vmul.f32 %v2868, %v3019
      %v3121 = vmul.f32 %v2869, %v3024
      %v3122 = vmul.f32 %v2870, %v3029
      %v3123 = vmul.f32 %v2871, %v3034
      %v3124 = vmul.f32 %v2872, %v3039
      %v3125 = vmul.f32 %v2873, %v3044
      %v3126 = vmul.f32 %v2874, %v3049
      %v3127 = vmul.f32 %v2875, %v3054
      %v3128 = vmul.f32 %v2876, %v3059
      %v3129 = vmul.f32 %v2877, %v3064
      %v3130 = vmul.f32 %v2878, %v3069
      %v3131 = vmul.f32 %v2879, %v3074
      %v3132 = vmul.f32 %v2880, %v3079
      %v3133 = vmul.f32 %v2881, %v3084
      %v3134 = vmul.f32 %v2882, %v3089
      %v3135 = vmul.f32 %v2883, %v3094
      %v3136 = vmul.f32 %v2884, %v3099
      %vm3137 = vcmask 261120
      %3138 = vst.msk [vmem:[#allocation3] sm:$0xff] %vm3137, 0.0
      %3139 = vst.msk [vmem:[#allocation3 + $0x8] sm:$0xff] %vm3137, 0.0
      %vm3140 = vcmask 256000
      %3141 = vst.msk [vmem:[#allocation3 + $0x10] sm:$0x7] %vm3140, 0.0
      %3142 = vst.msk [vmem:[#allocation3 + $0x133] sm:$0xff] %vm3137, 0.0
      %3143 = vst.msk [vmem:[#allocation3 + $0x13b] sm:$0xff] %vm3137, 0.0
      %3144 = vst.msk [vmem:[#allocation3 + $0x143] sm:$0xff] %vm3137, 0.0
      %3145 = vst.msk [vmem:[#allocation3 + $0x14b] sm:$0xff] %vm3137, 0.0
      %3146 = vst.msk [vmem:[#allocation3 + $0x153] sm:$0x7] %vm3140, 0.0
      %3147 = vst.msk [vmem:[#allocation3 + $0x13] sm:$0xff] %vm3137, %v3101
      %3148 = vst.msk [vmem:[#allocation3 + $0x1b] sm:$0xff] %vm3137, %v3102
      %3149 = vst.msk [vmem:[#allocation3 + $0x23] sm:$0xff] %vm3137, %v3103
      %3150 = vst.msk [vmem:[#allocation3 + $0x2b] sm:$0xff] %vm3137, %v3104
      %3151 = vst.msk [vmem:[#allocation3 + $0x33] sm:$0xff] %vm3137, %v3105
      %3152 = vst.msk [vmem:[#allocation3 + $0x3b] sm:$0xff] %vm3137, %v3106
      %3153 = vst.msk [vmem:[#allocation3 + $0x43] sm:$0xff] %vm3137, %v3107
      %3154 = vst.msk [vmem:[#allocation3 + $0x4b] sm:$0xff] %vm3137, %v3108
      %3155 = vst.msk [vmem:[#allocation3 + $0x53] sm:$0xff] %vm3137, %v3109
      %3156 = vst.msk [vmem:[#allocation3 + $0x5b] sm:$0xff] %vm3137, %v3110
      %3157 = vst.msk [vmem:[#allocation3 + $0x63] sm:$0xff] %vm3137, %v3111
      %3158 = vst.msk [vmem:[#allocation3 + $0x6b] sm:$0xff] %vm3137, %v3112
      %3159 = vst.msk [vmem:[#allocation3 + $0x73] sm:$0xff] %vm3137, %v3113
      %3160 = vst.msk [vmem:[#allocation3 + $0x7b] sm:$0xff] %vm3137, %v3114
      %3161 = vst.msk [vmem:[#allocation3 + $0x83] sm:$0xff] %vm3137, %v3115
      %3162 = vst.msk [vmem:[#allocation3 + $0x8b] sm:$0xff] %vm3137, %v3116
      %3163 = vst.msk [vmem:[#allocation3 + $0x93] sm:$0xff] %vm3137, %v3117
      %3164 = vst.msk [vmem:[#allocation3 + $0x9b] sm:$0xff] %vm3137, %v3118
      %3165 = vst.msk [vmem:[#allocation3 + $0xa3] sm:$0xff] %vm3137, %v3119
      %3166 = vst.msk [vmem:[#allocation3 + $0xab] sm:$0xff] %vm3137, %v3120
      %3167 = vst.msk [vmem:[#allocation3 + $0xb3] sm:$0xff] %vm3137, %v3121
      %3168 = vst.msk [vmem:[#allocation3 + $0xbb] sm:$0xff] %vm3137, %v3122
      %3169 = vst.msk [vmem:[#allocation3 + $0xc3] sm:$0xff] %vm3137, %v3123
      %3170 = vst.msk [vmem:[#allocation3 + $0xcb] sm:$0xff] %vm3137, %v3124
      %3171 = vst.msk [vmem:[#allocation3 + $0xd3] sm:$0xff] %vm3137, %v3125
      %3172 = vst.msk [vmem:[#allocation3 + $0xdb] sm:$0xff] %vm3137, %v3126
      %3173 = vst.msk [vmem:[#allocation3 + $0xe3] sm:$0xff] %vm3137, %v3127
      %3174 = vst.msk [vmem:[#allocation3 + $0xeb] sm:$0xff] %vm3137, %v3128
      %3175 = vst.msk [vmem:[#allocation3 + $0xf3] sm:$0xff] %vm3137, %v3129
      %3176 = vst.msk [vmem:[#allocation3 + $0xfb] sm:$0xff] %vm3137, %v3130
      %3177 = vst.msk [vmem:[#allocation3 + $0x103] sm:$0xff] %vm3137, %v3131
      %3178 = vst.msk [vmem:[#allocation3 + $0x10b] sm:$0xff] %vm3137, %v3132
      %3179 = vst.msk [vmem:[#allocation3 + $0x113] sm:$0xff] %vm3137, %v3133
      %3180 = vst.msk [vmem:[#allocation3 + $0x11b] sm:$0xff] %vm3137, %v3134
      %3181 = vst.msk [vmem:[#allocation3 + $0x123] sm:$0xff] %vm3137, %v3135
      %3182 = vst.msk [vmem:[#allocation3 + $0x12b] sm:$0xff] %vm3137, %v3136
      %v3183 = vld [vmem:[#allocation3] sm:$0xff]
      %v3184 = vld [vmem:[#allocation3 + $0x8] sm:$0xff]
      %v3185 = vld [vmem:[#allocation3 + $0x10] sm:$0xff]
      %v3186 = vld [vmem:[#allocation3 + $0x18] sm:$0xff]
      %v3187 = vld [vmem:[#allocation3 + $0x20] sm:$0xff]
      %v3188 = vld [vmem:[#allocation3 + $0x28] sm:$0xff]
      %v3189 = vld [vmem:[#allocation3 + $0x30] sm:$0xff]
      %v3190 = vld [vmem:[#allocation3 + $0x38] sm:$0xff]
      %v3191 = vld [vmem:[#allocation3 + $0x40] sm:$0xff]
      %v3192 = vld [vmem:[#allocation3 + $0x48] sm:$0xff]
      %v3193 = vld [vmem:[#allocation3 + $0x50] sm:$0xff]
      %v3194 = vld [vmem:[#allocation3 + $0x58] sm:$0xff]
      %v3195 = vld [vmem:[#allocation3 + $0x60] sm:$0xff]
      %v3196 = vld [vmem:[#allocation3 + $0x68] sm:$0xff]
      %v3197 = vld [vmem:[#allocation3 + $0x70] sm:$0xff]
      %v3198 = vld [vmem:[#allocation3 + $0x78] sm:$0xff]
      %v3199 = vld [vmem:[#allocation3 + $0x80] sm:$0xff]
      %v3200 = vld [vmem:[#allocation3 + $0x88] sm:$0xff]
      %v3201 = vld [vmem:[#allocation3 + $0x90] sm:$0xff]
      %v3202 = vld [vmem:[#allocation3 + $0x98] sm:$0xff]
      %v3203 = vld [vmem:[#allocation3 + $0xa0] sm:$0xff]
      %v3204 = vld [vmem:[#allocation3 + $0xa8] sm:$0xff]
      %v3205 = vld [vmem:[#allocation3 + $0xb0] sm:$0xff]
      %v3206 = vld [vmem:[#allocation3 + $0xb8] sm:$0xff]
      %v3207 = vld [vmem:[#allocation3 + $0xc0] sm:$0xff]
      %v3208 = vld [vmem:[#allocation3 + $0xc8] sm:$0xff]
      %v3209 = vld [vmem:[#allocation3 + $0xd0] sm:$0xff]
      %v3210 = vld [vmem:[#allocation3 + $0xd8] sm:$0xff]
      %v3211 = vld [vmem:[#allocation3 + $0xe0] sm:$0xff]
      %v3212 = vld [vmem:[#allocation3 + $0xe8] sm:$0xff]
      %v3213 = vld [vmem:[#allocation3 + $0xf0] sm:$0xff]
      %v3214 = vld [vmem:[#allocation3 + $0xf8] sm:$0xff]
      %v3215 = vld [vmem:[#allocation3 + $0x100] sm:$0xff]
      %v3216 = vld [vmem:[#allocation3 + $0x108] sm:$0xff]
      %v3217 = vld [vmem:[#allocation3 + $0x110] sm:$0xff]
      %v3218 = vld [vmem:[#allocation3 + $0x118] sm:$0xff]
      %v3219 = vpack.c.bf16 %v3183, %v3183
      %v3220 = vpack.c.bf16 %v3184, %v3184
      %v3221 = vpack.c.bf16 %v3185, %v3185
      %v3222 = vpack.c.bf16 %v3186, %v3186
      %v3223 = vpack.c.bf16 %v3187, %v3187
      %v3224 = vpack.c.bf16 %v3188, %v3188
      %v3225 = vpack.c.bf16 %v3189, %v3189
      %v3226 = vpack.c.bf16 %v3190, %v3190
      %v3227 = vpack.c.bf16 %v3191, %v3191
      %v3228 = vpack.c.bf16 %v3192, %v3192
      %v3229 = vpack.c.bf16 %v3193, %v3193
      %v3230 = vpack.c.bf16 %v3194, %v3194
      %v3231 = vpack.c.bf16 %v3195, %v3195
      %v3232 = vpack.c.bf16 %v3196, %v3196
      %v3233 = vpack.c.bf16 %v3197, %v3197
      %v3234 = vpack.c.bf16 %v3198, %v3198
      %v3235 = vpack.c.bf16 %v3199, %v3199
      %v3236 = vpack.c.bf16 %v3200, %v3200
      %v3237 = vpack.c.bf16 %v3201, %v3201
      %v3238 = vpack.c.bf16 %v3202, %v3202
      %v3239 = vpack.c.bf16 %v3203, %v3203
      %v3240 = vpack.c.bf16 %v3204, %v3204
      %v3241 = vpack.c.bf16 %v3205, %v3205
      %v3242 = vpack.c.bf16 %v3206, %v3206
      %v3243 = vpack.c.bf16 %v3207, %v3207
      %v3244 = vpack.c.bf16 %v3208, %v3208
      %v3245 = vpack.c.bf16 %v3209, %v3209
      %v3246 = vpack.c.bf16 %v3210, %v3210
      %v3247 = vpack.c.bf16 %v3211, %v3211
      %v3248 = vpack.c.bf16 %v3212, %v3212
      %v3249 = vpack.c.bf16 %v3213, %v3213
      %v3250 = vpack.c.bf16 %v3214, %v3214
      %v3251 = vpack.c.bf16 %v3215, %v3215
      %v3252 = vpack.c.bf16 %v3216, %v3216
      %v3253 = vpack.c.bf16 %v3217, %v3217
      %v3254 = vpack.c.bf16 %v3218, %v3218
      %vm3255 = vcmask 257024
      %3256 = vst.msk [vmem:[#allocation4] sm:$0xf] %vm3255, %v3219
      %3257 = vst.msk [vmem:[#allocation4 + $0xc] sm:$0xf] %vm3255, %v3220
      %3258 = vst.msk [vmem:[#allocation4 + $0x18] sm:$0xf] %vm3255, %v3221
      %3259 = vst.msk [vmem:[#allocation4 + $0x24] sm:$0xf] %vm3255, %v3222
      %3260 = vst.msk [vmem:[#allocation4 + $0x30] sm:$0xf] %vm3255, %v3223
      %3261 = vst.msk [vmem:[#allocation4 + $0x3c] sm:$0xf] %vm3255, %v3224
      %3262 = vst.msk [vmem:[#allocation4 + $0x48] sm:$0xf] %vm3255, %v3225
      %3263 = vst.msk [vmem:[#allocation4 + $0x54] sm:$0xf] %vm3255, %v3226
      %3264 = vst.msk [vmem:[#allocation4 + $0x60] sm:$0xf] %vm3255, %v3227
      %3265 = vst.msk [vmem:[#allocation4 + $0x6c] sm:$0xf] %vm3255, %v3228
      %3266 = vst.msk [vmem:[#allocation4 + $0x78] sm:$0xf] %vm3255, %v3229
      %3267 = vst.msk [vmem:[#allocation4 + $0x84] sm:$0xf] %vm3255, %v3230
      %3268 = vst.msk [vmem:[#allocation4 + $0x90] sm:$0xf] %vm3255, %v3231
      %3269 = vst.msk [vmem:[#allocation4 + $0x9c] sm:$0xf] %vm3255, %v3232
      %3270 = vst.msk [vmem:[#allocation4 + $0xa8] sm:$0xf] %vm3255, %v3233
      %3271 = vst.msk [vmem:[#allocation4 + $0xb4] sm:$0xf] %vm3255, %v3234
      %3272 = vst.msk [vmem:[#allocation4 + $0xc0] sm:$0xf] %vm3255, %v3235
      %3273 = vst.msk [vmem:[#allocation4 + $0xcc] sm:$0xf] %vm3255, %v3236
      %3274 = vst.msk [vmem:[#allocation4 + $0xd8] sm:$0xf] %vm3255, %v3237
      %3275 = vst.msk [vmem:[#allocation4 + $0xe4] sm:$0xf] %vm3255, %v3238
      %3276 = vst.msk [vmem:[#allocation4 + $0xf0] sm:$0xf] %vm3255, %v3239
      %3277 = vst.msk [vmem:[#allocation4 + $0xfc] sm:$0xf] %vm3255, %v3240
      %3278 = vst.msk [vmem:[#allocation4 + $0x108] sm:$0xf] %vm3255, %v3241
      %3279 = vst.msk [vmem:[#allocation4 + $0x114] sm:$0xf] %vm3255, %v3242
      %3280 = vst.msk [vmem:[#allocation4 + $0x120] sm:$0xf] %vm3255, %v3243
      %3281 = vst.msk [vmem:[#allocation4 + $0x12c] sm:$0xf] %vm3255, %v3244
      %3282 = vst.msk [vmem:[#allocation4 + $0x138] sm:$0xf] %vm3255, %v3245
      %3283 = vst.msk [vmem:[#allocation4 + $0x144] sm:$0xf] %vm3255, %v3246
      %3284 = vst.msk [vmem:[#allocation4 + $0x150] sm:$0xf] %vm3255, %v3247
      %3285 = vst.msk [vmem:[#allocation4 + $0x15c] sm:$0xf] %vm3255, %v3248
      %3286 = vst.msk [vmem:[#allocation4 + $0x168] sm:$0xf] %vm3255, %v3249
      %3287 = vst.msk [vmem:[#allocation4 + $0x174] sm:$0xf] %vm3255, %v3250
      %3288 = vst.msk [vmem:[#allocation4 + $0x180] sm:$0xf] %vm3255, %v3251
      %3289 = vst.msk [vmem:[#allocation4 + $0x18c] sm:$0xf] %vm3255, %v3252
      %3290 = vst.msk [vmem:[#allocation4 + $0x198] sm:$0xf] %vm3255, %v3253
      %3291 = vst.msk [vmem:[#allocation4 + $0x1a4] sm:$0xf] %vm3255, %v3254
      %v3292 = vld [vmem:[#allocation3 + $0x1] sm:$0xff]
      %v3293 = vld [vmem:[#allocation3 + $0x9] sm:$0xff]
      %v3294 = vld [vmem:[#allocation3 + $0x11] sm:$0xff]
      %v3295 = vld [vmem:[#allocation3 + $0x19] sm:$0xff]
      %v3296 = vld [vmem:[#allocation3 + $0x21] sm:$0xff]
      %v3297 = vld [vmem:[#allocation3 + $0x29] sm:$0xff]
      %v3298 = vld [vmem:[#allocation3 + $0x31] sm:$0xff]
      %v3299 = vld [vmem:[#allocation3 + $0x39] sm:$0xff]
      %v3300 = vld [vmem:[#allocation3 + $0x41] sm:$0xff]
      %v3301 = vld [vmem:[#allocation3 + $0x49] sm:$0xff]
      %v3302 = vld [vmem:[#allocation3 + $0x51] sm:$0xff]
      %v3303 = vld [vmem:[#allocation3 + $0x59] sm:$0xff]
      %v3304 = vld [vmem:[#allocation3 + $0x61] sm:$0xff]
      %v3305 = vld [vmem:[#allocation3 + $0x69] sm:$0xff]
      %v3306 = vld [vmem:[#allocation3 + $0x71] sm:$0xff]
      %v3307 = vld [vmem:[#allocation3 + $0x79] sm:$0xff]
      %v3308 = vld [vmem:[#allocation3 + $0x81] sm:$0xff]
      %v3309 = vld [vmem:[#allocation3 + $0x89] sm:$0xff]
      %v3310 = vld [vmem:[#allocation3 + $0x91] sm:$0xff]
      %v3311 = vld [vmem:[#allocation3 + $0x99] sm:$0xff]
      %v3312 = vld [vmem:[#allocation3 + $0xa1] sm:$0xff]
      %v3313 = vld [vmem:[#allocation3 + $0xa9] sm:$0xff]
      %v3314 = vld [vmem:[#allocation3 + $0xb1] sm:$0xff]
      %v3315 = vld [vmem:[#allocation3 + $0xb9] sm:$0xff]
      %v3316 = vld [vmem:[#allocation3 + $0xc1] sm:$0xff]
      %v3317 = vld [vmem:[#allocation3 + $0xc9] sm:$0xff]
      %v3318 = vld [vmem:[#allocation3 + $0xd1] sm:$0xff]
      %v3319 = vld [vmem:[#allocation3 + $0xd9] sm:$0xff]
      %v3320 = vld [vmem:[#allocation3 + $0xe1] sm:$0xff]
      %v3321 = vld [vmem:[#allocation3 + $0xe9] sm:$0xff]
      %v3322 = vld [vmem:[#allocation3 + $0xf1] sm:$0xff]
      %v3323 = vld [vmem:[#allocation3 + $0xf9] sm:$0xff]
      %v3324 = vld [vmem:[#allocation3 + $0x101] sm:$0xff]
      %v3325 = vld [vmem:[#allocation3 + $0x109] sm:$0xff]
      %v3326 = vld [vmem:[#allocation3 + $0x111] sm:$0xff]
      %v3327 = vld [vmem:[#allocation3 + $0x119] sm:$0xff]
      %v3328 = vpack.c.bf16 %v3292, %v3292
      %v3329 = vpack.c.bf16 %v3293, %v3293
      %v3330 = vpack.c.bf16 %v3294, %v3294
      %v3331 = vpack.c.bf16 %v3295, %v3295
      %v3332 = vpack.c.bf16 %v3296, %v3296
      %v3333 = vpack.c.bf16 %v3297, %v3297
      %v3334 = vpack.c.bf16 %v3298, %v3298
      %v3335 = vpack.c.bf16 %v3299, %v3299
      %v3336 = vpack.c.bf16 %v3300, %v3300
      %v3337 = vpack.c.bf16 %v3301, %v3301
      %v3338 = vpack.c.bf16 %v3302, %v3302
      %v3339 = vpack.c.bf16 %v3303, %v3303
      %v3340 = vpack.c.bf16 %v3304, %v3304
      %v3341 = vpack.c.bf16 %v3305, %v3305
      %v3342 = vpack.c.bf16 %v3306, %v3306
      %v3343 = vpack.c.bf16 %v3307, %v3307
      %v3344 = vpack.c.bf16 %v3308, %v3308
      %v3345 = vpack.c.bf16 %v3309, %v3309
      %v3346 = vpack.c.bf16 %v3310, %v3310
      %v3347 = vpack.c.bf16 %v3311, %v3311
      %v3348 = vpack.c.bf16 %v3312, %v3312
      %v3349 = vpack.c.bf16 %v3313, %v3313
      %v3350 = vpack.c.bf16 %v3314, %v3314
      %v3351 = vpack.c.bf16 %v3315, %v3315
      %v3352 = vpack.c.bf16 %v3316, %v3316
      %v3353 = vpack.c.bf16 %v3317, %v3317
      %v3354 = vpack.c.bf16 %v3318, %v3318
      %v3355 = vpack.c.bf16 %v3319, %v3319
      %v3356 = vpack.c.bf16 %v3320, %v3320
      %v3357 = vpack.c.bf16 %v3321, %v3321
      %v3358 = vpack.c.bf16 %v3322, %v3322
      %v3359 = vpack.c.bf16 %v3323, %v3323
      %v3360 = vpack.c.bf16 %v3324, %v3324
      %v3361 = vpack.c.bf16 %v3325, %v3325
      %v3362 = vpack.c.bf16 %v3326, %v3326
      %v3363 = vpack.c.bf16 %v3327, %v3327
      %3400 = vrot.lane.b32.xlu0 %v3328, 32
      %v3401 = vpop.permute.xlu0 %3400
      %3402 = vrot.lane.b32.xlu0 %v3329, 32
      %v3403 = vpop.permute.xlu0 %3402
      %3404 = vrot.lane.b32.xlu0 %v3330, 32
      %v3405 = vpop.permute.xlu0 %3404
      %3406 = vrot.lane.b32.xlu0 %v3331, 32
      %v3407 = vpop.permute.xlu0 %3406
      %3408 = vrot.lane.b32.xlu0 %v3332, 32
      %v3409 = vpop.permute.xlu0 %3408
      %3410 = vrot.lane.b32.xlu0 %v3333, 32
      %v3411 = vpop.permute.xlu0 %3410
      %3412 = vrot.lane.b32.xlu0 %v3334, 32
      %v3413 = vpop.permute.xlu0 %3412
      %3414 = vrot.lane.b32.xlu0 %v3335, 32
      %v3415 = vpop.permute.xlu0 %3414
      %3416 = vrot.lane.b32.xlu0 %v3336, 32
      %v3417 = vpop.permute.xlu0 %3416
      %3418 = vrot.lane.b32.xlu0 %v3337, 32
      %v3419 = vpop.permute.xlu0 %3418
      %3420 = vrot.lane.b32.xlu0 %v3338, 32
      %v3421 = vpop.permute.xlu0 %3420
      %3422 = vrot.lane.b32.xlu0 %v3339, 32
      %v3423 = vpop.permute.xlu0 %3422
      %3424 = vrot.lane.b32.xlu0 %v3340, 32
      %v3425 = vpop.permute.xlu0 %3424
      %3426 = vrot.lane.b32.xlu0 %v3341, 32
      %v3427 = vpop.permute.xlu0 %3426
      %3428 = vrot.lane.b32.xlu0 %v3342, 32
      %v3429 = vpop.permute.xlu0 %3428
      %3430 = vrot.lane.b32.xlu0 %v3343, 32
      %v3431 = vpop.permute.xlu0 %3430
      %3432 = vrot.lane.b32.xlu0 %v3344, 32
      %v3433 = vpop.permute.xlu0 %3432
      %3434 = vrot.lane.b32.xlu0 %v3345, 32
      %v3435 = vpop.permute.xlu0 %3434
      %3436 = vrot.lane.b32.xlu0 %v3346, 32
      %v3437 = vpop.permute.xlu0 %3436
      %3438 = vrot.lane.b32.xlu0 %v3347, 32
      %v3439 = vpop.permute.xlu0 %3438
      %3440 = vrot.lane.b32.xlu0 %v3348, 32
      %v3441 = vpop.permute.xlu0 %3440
      %3442 = vrot.lane.b32.xlu0 %v3349, 32
      %v3443 = vpop.permute.xlu0 %3442
      %3444 = vrot.lane.b32.xlu0 %v3350, 32
      %v3445 = vpop.permute.xlu0 %3444
      %3446 = vrot.lane.b32.xlu0 %v3351, 32
      %v3447 = vpop.permute.xlu0 %3446
      %3448 = vrot.lane.b32.xlu0 %v3352, 32
      %v3449 = vpop.permute.xlu0 %3448
      %3450 = vrot.lane.b32.xlu0 %v3353, 32
      %v3451 = vpop.permute.xlu0 %3450
      %3452 = vrot.lane.b32.xlu0 %v3354, 32
      %v3453 = vpop.permute.xlu0 %3452
      %3454 = vrot.lane.b32.xlu0 %v3355, 32
      %v3455 = vpop.permute.xlu0 %3454
      %3456 = vrot.lane.b32.xlu0 %v3356, 32
      %v3457 = vpop.permute.xlu0 %3456
      %3458 = vrot.lane.b32.xlu0 %v3357, 32
      %v3459 = vpop.permute.xlu0 %3458
      %3460 = vrot.lane.b32.xlu0 %v3358, 32
      %v3461 = vpop.permute.xlu0 %3460
      %3462 = vrot.lane.b32.xlu0 %v3359, 32
      %v3463 = vpop.permute.xlu0 %3462
      %3464 = vrot.lane.b32.xlu0 %v3360, 32
      %v3465 = vpop.permute.xlu0 %3464
      %3466 = vrot.lane.b32.xlu0 %v3361, 32
      %v3467 = vpop.permute.xlu0 %3466
      %3468 = vrot.lane.b32.xlu0 %v3362, 32
      %v3469 = vpop.permute.xlu0 %3468
      %3470 = vrot.lane.b32.xlu0 %v3363, 32
      %v3471 = vpop.permute.xlu0 %3470
      %vm3508 = vcmask 519424
      %3509 = vst.msk [vmem:[#allocation4] sm:$0xf] %vm3508, %v3401
      %3510 = vst.msk [vmem:[#allocation4 + $0xc] sm:$0xf] %vm3508, %v3403
      %3511 = vst.msk [vmem:[#allocation4 + $0x18] sm:$0xf] %vm3508, %v3405
      %3512 = vst.msk [vmem:[#allocation4 + $0x24] sm:$0xf] %vm3508, %v3407
      %3513 = vst.msk [vmem:[#allocation4 + $0x30] sm:$0xf] %vm3508, %v3409
      %3514 = vst.msk [vmem:[#allocation4 + $0x3c] sm:$0xf] %vm3508, %v3411
      %3515 = vst.msk [vmem:[#allocation4 + $0x48] sm:$0xf] %vm3508, %v3413
      %3516 = vst.msk [vmem:[#allocation4 + $0x54] sm:$0xf] %vm3508, %v3415
      %3517 = vst.msk [vmem:[#allocation4 + $0x60] sm:$0xf] %vm3508, %v3417
      %3518 = vst.msk [vmem:[#allocation4 + $0x6c] sm:$0xf] %vm3508, %v3419
      %3519 = vst.msk [vmem:[#allocation4 + $0x78] sm:$0xf] %vm3508, %v3421
      %3520 = vst.msk [vmem:[#allocation4 + $0x84] sm:$0xf] %vm3508, %v3423
      %3521 = vst.msk [vmem:[#allocation4 + $0x90] sm:$0xf] %vm3508, %v3425
      %3522 = vst.msk [vmem:[#allocation4 + $0x9c] sm:$0xf] %vm3508, %v3427
      %3523 = vst.msk [vmem:[#allocation4 + $0xa8] sm:$0xf] %vm3508, %v3429
      %3524 = vst.msk [vmem:[#allocation4 + $0xb4] sm:$0xf] %vm3508, %v3431
      %3525 = vst.msk [vmem:[#allocation4 + $0xc0] sm:$0xf] %vm3508, %v3433
      %3526 = vst.msk [vmem:[#allocation4 + $0xcc] sm:$0xf] %vm3508, %v3435
      %3527 = vst.msk [vmem:[#allocation4 + $0xd8] sm:$0xf] %vm3508, %v3437
      %3528 = vst.msk [vmem:[#allocation4 + $0xe4] sm:$0xf] %vm3508, %v3439
      %3529 = vst.msk [vmem:[#allocation4 + $0xf0] sm:$0xf] %vm3508, %v3441
      %3530 = vst.msk [vmem:[#allocation4 + $0xfc] sm:$0xf] %vm3508, %v3443
      %3531 = vst.msk [vmem:[#allocation4 + $0x108] sm:$0xf] %vm3508, %v3445
      %3532 = vst.msk [vmem:[#allocation4 + $0x114] sm:$0xf] %vm3508, %v3447
      %3533 = vst.msk [vmem:[#allocation4 + $0x120] sm:$0xf] %vm3508, %v3449
      %3534 = vst.msk [vmem:[#allocation4 + $0x12c] sm:$0xf] %vm3508, %v3451
      %3535 = vst.msk [vmem:[#allocation4 + $0x138] sm:$0xf] %vm3508, %v3453
      %3536 = vst.msk [vmem:[#allocation4 + $0x144] sm:$0xf] %vm3508, %v3455
      %3537 = vst.msk [vmem:[#allocation4 + $0x150] sm:$0xf] %vm3508, %v3457
      %3538 = vst.msk [vmem:[#allocation4 + $0x15c] sm:$0xf] %vm3508, %v3459
      %3539 = vst.msk [vmem:[#allocation4 + $0x168] sm:$0xf] %vm3508, %v3461
      %3540 = vst.msk [vmem:[#allocation4 + $0x174] sm:$0xf] %vm3508, %v3463
      %3541 = vst.msk [vmem:[#allocation4 + $0x180] sm:$0xf] %vm3508, %v3465
      %3542 = vst.msk [vmem:[#allocation4 + $0x18c] sm:$0xf] %vm3508, %v3467
      %3543 = vst.msk [vmem:[#allocation4 + $0x198] sm:$0xf] %vm3508, %v3469
      %3544 = vst.msk [vmem:[#allocation4 + $0x1a4] sm:$0xf] %vm3508, %v3471
      %v3545 = vld [vmem:[#allocation3 + $0x2] sm:$0xff]
      %v3546 = vld [vmem:[#allocation3 + $0xa] sm:$0xff]
      %v3547 = vld [vmem:[#allocation3 + $0x12] sm:$0xff]
      %v3548 = vld [vmem:[#allocation3 + $0x1a] sm:$0xff]
      %v3549 = vld [vmem:[#allocation3 + $0x22] sm:$0xff]
      %v3550 = vld [vmem:[#allocation3 + $0x2a] sm:$0xff]
      %v3551 = vld [vmem:[#allocation3 + $0x32] sm:$0xff]
      %v3552 = vld [vmem:[#allocation3 + $0x3a] sm:$0xff]
      %v3553 = vld [vmem:[#allocation3 + $0x42] sm:$0xff]
      %v3554 = vld [vmem:[#allocation3 + $0x4a] sm:$0xff]
      %v3555 = vld [vmem:[#allocation3 + $0x52] sm:$0xff]
      %v3556 = vld [vmem:[#allocation3 + $0x5a] sm:$0xff]
      %v3557 = vld [vmem:[#allocation3 + $0x62] sm:$0xff]
      %v3558 = vld [vmem:[#allocation3 + $0x6a] sm:$0xff]
      %v3559 = vld [vmem:[#allocation3 + $0x72] sm:$0xff]
      %v3560 = vld [vmem:[#allocation3 + $0x7a] sm:$0xff]
      %v3561 = vld [vmem:[#allocation3 + $0x82] sm:$0xff]
      %v3562 = vld [vmem:[#allocation3 + $0x8a] sm:$0xff]
      %v3563 = vld [vmem:[#allocation3 + $0x92] sm:$0xff]
      %v3564 = vld [vmem:[#allocation3 + $0x9a] sm:$0xff]
      %v3565 = vld [vmem:[#allocation3 + $0xa2] sm:$0xff]
      %v3566 = vld [vmem:[#allocation3 + $0xaa] sm:$0xff]
      %v3567 = vld [vmem:[#allocation3 + $0xb2] sm:$0xff]
      %v3568 = vld [vmem:[#allocation3 + $0xba] sm:$0xff]
      %v3569 = vld [vmem:[#allocation3 + $0xc2] sm:$0xff]
      %v3570 = vld [vmem:[#allocation3 + $0xca] sm:$0xff]
      %v3571 = vld [vmem:[#allocation3 + $0xd2] sm:$0xff]
      %v3572 = vld [vmem:[#allocation3 + $0xda] sm:$0xff]
      %v3573 = vld [vmem:[#allocation3 + $0xe2] sm:$0xff]
      %v3574 = vld [vmem:[#allocation3 + $0xea] sm:$0xff]
      %v3575 = vld [vmem:[#allocation3 + $0xf2] sm:$0xff]
      %v3576 = vld [vmem:[#allocation3 + $0xfa] sm:$0xff]
      %v3577 = vld [vmem:[#allocation3 + $0x102] sm:$0xff]
      %v3578 = vld [vmem:[#allocation3 + $0x10a] sm:$0xff]
      %v3579 = vld [vmem:[#allocation3 + $0x112] sm:$0xff]
      %v3580 = vld [vmem:[#allocation3 + $0x11a] sm:$0xff]
      %v3581 = vpack.c.bf16 %v3545, %v3545
      %v3582 = vpack.c.bf16 %v3546, %v3546
      %v3583 = vpack.c.bf16 %v3547, %v3547
      %v3584 = vpack.c.bf16 %v3548, %v3548
      %v3585 = vpack.c.bf16 %v3549, %v3549
      %v3586 = vpack.c.bf16 %v3550, %v3550
      %v3587 = vpack.c.bf16 %v3551, %v3551
      %v3588 = vpack.c.bf16 %v3552, %v3552
      %v3589 = vpack.c.bf16 %v3553, %v3553
      %v3590 = vpack.c.bf16 %v3554, %v3554
      %v3591 = vpack.c.bf16 %v3555, %v3555
      %v3592 = vpack.c.bf16 %v3556, %v3556
      %v3593 = vpack.c.bf16 %v3557, %v3557
      %v3594 = vpack.c.bf16 %v3558, %v3558
      %v3595 = vpack.c.bf16 %v3559, %v3559
      %v3596 = vpack.c.bf16 %v3560, %v3560
      %v3597 = vpack.c.bf16 %v3561, %v3561
      %v3598 = vpack.c.bf16 %v3562, %v3562
      %v3599 = vpack.c.bf16 %v3563, %v3563
      %v3600 = vpack.c.bf16 %v3564, %v3564
      %v3601 = vpack.c.bf16 %v3565, %v3565
      %v3602 = vpack.c.bf16 %v3566, %v3566
      %v3603 = vpack.c.bf16 %v3567, %v3567
      %v3604 = vpack.c.bf16 %v3568, %v3568
      %v3605 = vpack.c.bf16 %v3569, %v3569
      %v3606 = vpack.c.bf16 %v3570, %v3570
      %v3607 = vpack.c.bf16 %v3571, %v3571
      %v3608 = vpack.c.bf16 %v3572, %v3572
      %v3609 = vpack.c.bf16 %v3573, %v3573
      %v3610 = vpack.c.bf16 %v3574, %v3574
      %v3611 = vpack.c.bf16 %v3575, %v3575
      %v3612 = vpack.c.bf16 %v3576, %v3576
      %v3613 = vpack.c.bf16 %v3577, %v3577
      %v3614 = vpack.c.bf16 %v3578, %v3578
      %v3615 = vpack.c.bf16 %v3579, %v3579
      %v3616 = vpack.c.bf16 %v3580, %v3580
      %3653 = vrot.lane.b32.xlu0 %v3581, 64
      %v3654 = vpop.permute.xlu0 %3653
      %3655 = vrot.lane.b32.xlu0 %v3582, 64
      %v3656 = vpop.permute.xlu0 %3655
      %3657 = vrot.lane.b32.xlu0 %v3583, 64
      %v3658 = vpop.permute.xlu0 %3657
      %3659 = vrot.lane.b32.xlu0 %v3584, 64
      %v3660 = vpop.permute.xlu0 %3659
      %3661 = vrot.lane.b32.xlu0 %v3585, 64
      %v3662 = vpop.permute.xlu0 %3661
      %3663 = vrot.lane.b32.xlu0 %v3586, 64
      %v3664 = vpop.permute.xlu0 %3663
      %3665 = vrot.lane.b32.xlu0 %v3587, 64
      %v3666 = vpop.permute.xlu0 %3665
      %3667 = vrot.lane.b32.xlu0 %v3588, 64
      %v3668 = vpop.permute.xlu0 %3667
      %3669 = vrot.lane.b32.xlu0 %v3589, 64
      %v3670 = vpop.permute.xlu0 %3669
      %3671 = vrot.lane.b32.xlu0 %v3590, 64
      %v3672 = vpop.permute.xlu0 %3671
      %3673 = vrot.lane.b32.xlu0 %v3591, 64
      %v3674 = vpop.permute.xlu0 %3673
      %3675 = vrot.lane.b32.xlu0 %v3592, 64
      %v3676 = vpop.permute.xlu0 %3675
      %3677 = vrot.lane.b32.xlu0 %v3593, 64
      %v3678 = vpop.permute.xlu0 %3677
      %3679 = vrot.lane.b32.xlu0 %v3594, 64
      %v3680 = vpop.permute.xlu0 %3679
      %3681 = vrot.lane.b32.xlu0 %v3595, 64
      %v3682 = vpop.permute.xlu0 %3681
      %3683 = vrot.lane.b32.xlu0 %v3596, 64
      %v3684 = vpop.permute.xlu0 %3683
      %3685 = vrot.lane.b32.xlu0 %v3597, 64
      %v3686 = vpop.permute.xlu0 %3685
      %3687 = vrot.lane.b32.xlu0 %v3598, 64
      %v3688 = vpop.permute.xlu0 %3687
      %3689 = vrot.lane.b32.xlu0 %v3599, 64
      %v3690 = vpop.permute.xlu0 %3689
      %3691 = vrot.lane.b32.xlu0 %v3600, 64
      %v3692 = vpop.permute.xlu0 %3691
      %3693 = vrot.lane.b32.xlu0 %v3601, 64
      %v3694 = vpop.permute.xlu0 %3693
      %3695 = vrot.lane.b32.xlu0 %v3602, 64
      %v3696 = vpop.permute.xlu0 %3695
      %3697 = vrot.lane.b32.xlu0 %v3603, 64
      %v3698 = vpop.permute.xlu0 %3697
      %3699 = vrot.lane.b32.xlu0 %v3604, 64
      %v3700 = vpop.permute.xlu0 %3699
      %3701 = vrot.lane.b32.xlu0 %v3605, 64
      %v3702 = vpop.permute.xlu0 %3701
      %3703 = vrot.lane.b32.xlu0 %v3606, 64
      %v3704 = vpop.permute.xlu0 %3703
      %3705 = vrot.lane.b32.xlu0 %v3607, 64
      %v3706 = vpop.permute.xlu0 %3705
      %3707 = vrot.lane.b32.xlu0 %v3608, 64
      %v3708 = vpop.permute.xlu0 %3707
      %3709 = vrot.lane.b32.xlu0 %v3609, 64
      %v3710 = vpop.permute.xlu0 %3709
      %3711 = vrot.lane.b32.xlu0 %v3610, 64
      %v3712 = vpop.permute.xlu0 %3711
      %3713 = vrot.lane.b32.xlu0 %v3611, 64
      %v3714 = vpop.permute.xlu0 %3713
      %3715 = vrot.lane.b32.xlu0 %v3612, 64
      %v3716 = vpop.permute.xlu0 %3715
      %3717 = vrot.lane.b32.xlu0 %v3613, 64
      %v3718 = vpop.permute.xlu0 %3717
      %3719 = vrot.lane.b32.xlu0 %v3614, 64
      %v3720 = vpop.permute.xlu0 %3719
      %3721 = vrot.lane.b32.xlu0 %v3615, 64
      %v3722 = vpop.permute.xlu0 %3721
      %3723 = vrot.lane.b32.xlu0 %v3616, 64
      %v3724 = vpop.permute.xlu0 %3723
      %vm3761 = vcmask 781824
      %3762 = vst.msk [vmem:[#allocation4] sm:$0xf] %vm3761, %v3654
      %3763 = vst.msk [vmem:[#allocation4 + $0xc] sm:$0xf] %vm3761, %v3656
      %3764 = vst.msk [vmem:[#allocation4 + $0x18] sm:$0xf] %vm3761, %v3658
      %3765 = vst.msk [vmem:[#allocation4 + $0x24] sm:$0xf] %vm3761, %v3660
      %3766 = vst.msk [vmem:[#allocation4 + $0x30] sm:$0xf] %vm3761, %v3662
      %3767 = vst.msk [vmem:[#allocation4 + $0x3c] sm:$0xf] %vm3761, %v3664
      %3768 = vst.msk [vmem:[#allocation4 + $0x48] sm:$0xf] %vm3761, %v3666
      %3769 = vst.msk [vmem:[#allocation4 + $0x54] sm:$0xf] %vm3761, %v3668
      %3770 = vst.msk [vmem:[#allocation4 + $0x60] sm:$0xf] %vm3761, %v3670
      %3771 = vst.msk [vmem:[#allocation4 + $0x6c] sm:$0xf] %vm3761, %v3672
      %3772 = vst.msk [vmem:[#allocation4 + $0x78] sm:$0xf] %vm3761, %v3674
      %3773 = vst.msk [vmem:[#allocation4 + $0x84] sm:$0xf] %vm3761, %v3676
      %3774 = vst.msk [vmem:[#allocation4 + $0x90] sm:$0xf] %vm3761, %v3678
      %3775 = vst.msk [vmem:[#allocation4 + $0x9c] sm:$0xf] %vm3761, %v3680
      %3776 = vst.msk [vmem:[#allocation4 + $0xa8] sm:$0xf] %vm3761, %v3682
      %3777 = vst.msk [vmem:[#allocation4 + $0xb4] sm:$0xf] %vm3761, %v3684
      %3778 = vst.msk [vmem:[#allocation4 + $0xc0] sm:$0xf] %vm3761, %v3686
      %3779 = vst.msk [vmem:[#allocation4 + $0xcc] sm:$0xf] %vm3761, %v3688
      %3780 = vst.msk [vmem:[#allocation4 + $0xd8] sm:$0xf] %vm3761, %v3690
      %3781 = vst.msk [vmem:[#allocation4 + $0xe4] sm:$0xf] %vm3761, %v3692
      %3782 = vst.msk [vmem:[#allocation4 + $0xf0] sm:$0xf] %vm3761, %v3694
      %3783 = vst.msk [vmem:[#allocation4 + $0xfc] sm:$0xf] %vm3761, %v3696
      %3784 = vst.msk [vmem:[#allocation4 + $0x108] sm:$0xf] %vm3761, %v3698
      %3785 = vst.msk [vmem:[#allocation4 + $0x114] sm:$0xf] %vm3761, %v3700
      %3786 = vst.msk [vmem:[#allocation4 + $0x120] sm:$0xf] %vm3761, %v3702
      %3787 = vst.msk [vmem:[#allocation4 + $0x12c] sm:$0xf] %vm3761, %v3704
      %3788 = vst.msk [vmem:[#allocation4 + $0x138] sm:$0xf] %vm3761, %v3706
      %3789 = vst.msk [vmem:[#allocation4 + $0x144] sm:$0xf] %vm3761, %v3708
      %3790 = vst.msk [vmem:[#allocation4 + $0x150] sm:$0xf] %vm3761, %v3710
      %3791 = vst.msk [vmem:[#allocation4 + $0x15c] sm:$0xf] %vm3761, %v3712
      %3792 = vst.msk [vmem:[#allocation4 + $0x168] sm:$0xf] %vm3761, %v3714
      %3793 = vst.msk [vmem:[#allocation4 + $0x174] sm:$0xf] %vm3761, %v3716
      %3794 = vst.msk [vmem:[#allocation4 + $0x180] sm:$0xf] %vm3761, %v3718
      %3795 = vst.msk [vmem:[#allocation4 + $0x18c] sm:$0xf] %vm3761, %v3720
      %3796 = vst.msk [vmem:[#allocation4 + $0x198] sm:$0xf] %vm3761, %v3722
      %3797 = vst.msk [vmem:[#allocation4 + $0x1a4] sm:$0xf] %vm3761, %v3724
      %v3798 = vld [vmem:[#allocation3 + $0x12] sm:$0xff]
      %v3799 = vld [vmem:[#allocation3 + $0x1a] sm:$0xff]
      %v3800 = vld [vmem:[#allocation3 + $0x22] sm:$0xff]
      %v3801 = vld [vmem:[#allocation3 + $0x2a] sm:$0xff]
      %v3802 = vld [vmem:[#allocation3 + $0x32] sm:$0xff]
      %v3803 = vld [vmem:[#allocation3 + $0x3a] sm:$0xff]
      %v3804 = vld [vmem:[#allocation3 + $0x42] sm:$0xff]
      %v3805 = vld [vmem:[#allocation3 + $0x4a] sm:$0xff]
      %v3806 = vld [vmem:[#allocation3 + $0x52] sm:$0xff]
      %v3807 = vld [vmem:[#allocation3 + $0x5a] sm:$0xff]
      %v3808 = vld [vmem:[#allocation3 + $0x62] sm:$0xff]
      %v3809 = vld [vmem:[#allocation3 + $0x6a] sm:$0xff]
      %v3810 = vld [vmem:[#allocation3 + $0x72] sm:$0xff]
      %v3811 = vld [vmem:[#allocation3 + $0x7a] sm:$0xff]
      %v3812 = vld [vmem:[#allocation3 + $0x82] sm:$0xff]
      %v3813 = vld [vmem:[#allocation3 + $0x8a] sm:$0xff]
      %v3814 = vld [vmem:[#allocation3 + $0x92] sm:$0xff]
      %v3815 = vld [vmem:[#allocation3 + $0x9a] sm:$0xff]
      %v3816 = vld [vmem:[#allocation3 + $0xa2] sm:$0xff]
      %v3817 = vld [vmem:[#allocation3 + $0xaa] sm:$0xff]
      %v3818 = vld [vmem:[#allocation3 + $0xb2] sm:$0xff]
      %v3819 = vld [vmem:[#allocation3 + $0xba] sm:$0xff]
      %v3820 = vld [vmem:[#allocation3 + $0xc2] sm:$0xff]
      %v3821 = vld [vmem:[#allocation3 + $0xca] sm:$0xff]
      %v3822 = vld [vmem:[#allocation3 + $0xd2] sm:$0xff]
      %v3823 = vld [vmem:[#allocation3 + $0xda] sm:$0xff]
      %v3824 = vld [vmem:[#allocation3 + $0xe2] sm:$0xff]
      %v3825 = vld [vmem:[#allocation3 + $0xea] sm:$0xff]
      %v3826 = vld [vmem:[#allocation3 + $0xf2] sm:$0xff]
      %v3827 = vld [vmem:[#allocation3 + $0xfa] sm:$0xff]
      %v3828 = vld [vmem:[#allocation3 + $0x102] sm:$0xff]
      %v3829 = vld [vmem:[#allocation3 + $0x10a] sm:$0xff]
      %v3830 = vld [vmem:[#allocation3 + $0x112] sm:$0xff]
      %v3831 = vld [vmem:[#allocation3 + $0x11a] sm:$0xff]
      %v3832 = vld [vmem:[#allocation3 + $0x122] sm:$0xff]
      %v3833 = vld [vmem:[#allocation3 + $0x12a] sm:$0xff]
      %v3834 = vpack.c.bf16 %v3798, %v3798
      %v3835 = vpack.c.bf16 %v3799, %v3799
      %v3836 = vpack.c.bf16 %v3800, %v3800
      %v3837 = vpack.c.bf16 %v3801, %v3801
      %v3838 = vpack.c.bf16 %v3802, %v3802
      %v3839 = vpack.c.bf16 %v3803, %v3803
      %v3840 = vpack.c.bf16 %v3804, %v3804
      %v3841 = vpack.c.bf16 %v3805, %v3805
      %v3842 = vpack.c.bf16 %v3806, %v3806
      %v3843 = vpack.c.bf16 %v3807, %v3807
      %v3844 = vpack.c.bf16 %v3808, %v3808
      %v3845 = vpack.c.bf16 %v3809, %v3809
      %v3846 = vpack.c.bf16 %v3810, %v3810
      %v3847 = vpack.c.bf16 %v3811, %v3811
      %v3848 = vpack.c.bf16 %v3812, %v3812
      %v3849 = vpack.c.bf16 %v3813, %v3813
      %v3850 = vpack.c.bf16 %v3814, %v3814
      %v3851 = vpack.c.bf16 %v3815, %v3815
      %v3852 = vpack.c.bf16 %v3816, %v3816
      %v3853 = vpack.c.bf16 %v3817, %v3817
      %v3854 = vpack.c.bf16 %v3818, %v3818
      %v3855 = vpack.c.bf16 %v3819, %v3819
      %v3856 = vpack.c.bf16 %v3820, %v3820
      %v3857 = vpack.c.bf16 %v3821, %v3821
      %v3858 = vpack.c.bf16 %v3822, %v3822
      %v3859 = vpack.c.bf16 %v3823, %v3823
      %v3860 = vpack.c.bf16 %v3824, %v3824
      %v3861 = vpack.c.bf16 %v3825, %v3825
      %v3862 = vpack.c.bf16 %v3826, %v3826
      %v3863 = vpack.c.bf16 %v3827, %v3827
      %v3864 = vpack.c.bf16 %v3828, %v3828
      %v3865 = vpack.c.bf16 %v3829, %v3829
      %v3866 = vpack.c.bf16 %v3830, %v3830
      %v3867 = vpack.c.bf16 %v3831, %v3831
      %v3868 = vpack.c.bf16 %v3832, %v3832
      %v3869 = vpack.c.bf16 %v3833, %v3833
      %3906 = vrot.lane.b32.xlu0 %v3834, 96
      %v3907 = vpop.permute.xlu0 %3906
      %3908 = vrot.lane.b32.xlu0 %v3835, 96
      %v3909 = vpop.permute.xlu0 %3908
      %3910 = vrot.lane.b32.xlu0 %v3836, 96
      %v3911 = vpop.permute.xlu0 %3910
      %3912 = vrot.lane.b32.xlu0 %v3837, 96
      %v3913 = vpop.permute.xlu0 %3912
      %3914 = vrot.lane.b32.xlu0 %v3838, 96
      %v3915 = vpop.permute.xlu0 %3914
      %3916 = vrot.lane.b32.xlu0 %v3839, 96
      %v3917 = vpop.permute.xlu0 %3916
      %3918 = vrot.lane.b32.xlu0 %v3840, 96
      %v3919 = vpop.permute.xlu0 %3918
      %3920 = vrot.lane.b32.xlu0 %v3841, 96
      %v3921 = vpop.permute.xlu0 %3920
      %3922 = vrot.lane.b32.xlu0 %v3842, 96
      %v3923 = vpop.permute.xlu0 %3922
      %3924 = vrot.lane.b32.xlu0 %v3843, 96
      %v3925 = vpop.permute.xlu0 %3924
      %3926 = vrot.lane.b32.xlu0 %v3844, 96
      %v3927 = vpop.permute.xlu0 %3926
      %3928 = vrot.lane.b32.xlu0 %v3845, 96
      %v3929 = vpop.permute.xlu0 %3928
      %3930 = vrot.lane.b32.xlu0 %v3846, 96
      %v3931 = vpop.permute.xlu0 %3930
      %3932 = vrot.lane.b32.xlu0 %v3847, 96
      %v3933 = vpop.permute.xlu0 %3932
      %3934 = vrot.lane.b32.xlu0 %v3848, 96
      %v3935 = vpop.permute.xlu0 %3934
      %3936 = vrot.lane.b32.xlu0 %v3849, 96
      %v3937 = vpop.permute.xlu0 %3936
      %3938 = vrot.lane.b32.xlu0 %v3850, 96
      %v3939 = vpop.permute.xlu0 %3938
      %3940 = vrot.lane.b32.xlu0 %v3851, 96
      %v3941 = vpop.permute.xlu0 %3940
      %3942 = vrot.lane.b32.xlu0 %v3852, 96
      %v3943 = vpop.permute.xlu0 %3942
      %3944 = vrot.lane.b32.xlu0 %v3853, 96
      %v3945 = vpop.permute.xlu0 %3944
      %3946 = vrot.lane.b32.xlu0 %v3854, 96
      %v3947 = vpop.permute.xlu0 %3946
      %3948 = vrot.lane.b32.xlu0 %v3855, 96
      %v3949 = vpop.permute.xlu0 %3948
      %3950 = vrot.lane.b32.xlu0 %v3856, 96
      %v3951 = vpop.permute.xlu0 %3950
      %3952 = vrot.lane.b32.xlu0 %v3857, 96
      %v3953 = vpop.permute.xlu0 %3952
      %3954 = vrot.lane.b32.xlu0 %v3858, 96
      %v3955 = vpop.permute.xlu0 %3954
      %3956 = vrot.lane.b32.xlu0 %v3859, 96
      %v3957 = vpop.permute.xlu0 %3956
      %3958 = vrot.lane.b32.xlu0 %v3860, 96
      %v3959 = vpop.permute.xlu0 %3958
      %3960 = vrot.lane.b32.xlu0 %v3861, 96
      %v3961 = vpop.permute.xlu0 %3960
      %3962 = vrot.lane.b32.xlu0 %v3862, 96
      %v3963 = vpop.permute.xlu0 %3962
      %3964 = vrot.lane.b32.xlu0 %v3863, 96
      %v3965 = vpop.permute.xlu0 %3964
      %3966 = vrot.lane.b32.xlu0 %v3864, 96
      %v3967 = vpop.permute.xlu0 %3966
      %3968 = vrot.lane.b32.xlu0 %v3865, 96
      %v3969 = vpop.permute.xlu0 %3968
      %3970 = vrot.lane.b32.xlu0 %v3866, 96
      %v3971 = vpop.permute.xlu0 %3970
      %3972 = vrot.lane.b32.xlu0 %v3867, 96
      %v3973 = vpop.permute.xlu0 %3972
      %3974 = vrot.lane.b32.xlu0 %v3868, 96
      %v3975 = vpop.permute.xlu0 %3974
      %3976 = vrot.lane.b32.xlu0 %v3869, 96
      %v3977 = vpop.permute.xlu0 %3976
      %vm4014 = vcmask 1044224
      %4015 = vst.msk [vmem:[#allocation4] sm:$0xf] %vm4014, %v3907
      %4016 = vst.msk [vmem:[#allocation4 + $0xc] sm:$0xf] %vm4014, %v3909
      %4017 = vst.msk [vmem:[#allocation4 + $0x18] sm:$0xf] %vm4014, %v3911
      %4018 = vst.msk [vmem:[#allocation4 + $0x24] sm:$0xf] %vm4014, %v3913
      %4019 = vst.msk [vmem:[#allocation4 + $0x30] sm:$0xf] %vm4014, %v3915
      %4020 = vst.msk [vmem:[#allocation4 + $0x3c] sm:$0xf] %vm4014, %v3917
      %4021 = vst.msk [vmem:[#allocation4 + $0x48] sm:$0xf] %vm4014, %v3919
      %4022 = vst.msk [vmem:[#allocation4 + $0x54] sm:$0xf] %vm4014, %v3921
      %4023 = vst.msk [vmem:[#allocation4 + $0x60] sm:$0xf] %vm4014, %v3923
      %4024 = vst.msk [vmem:[#allocation4 + $0x6c] sm:$0xf] %vm4014, %v3925
      %4025 = vst.msk [vmem:[#allocation4 + $0x78] sm:$0xf] %vm4014, %v3927
      %4026 = vst.msk [vmem:[#allocation4 + $0x84] sm:$0xf] %vm4014, %v3929
      %4027 = vst.msk [vmem:[#allocation4 + $0x90] sm:$0xf] %vm4014, %v3931
      %4028 = vst.msk [vmem:[#allocation4 + $0x9c] sm:$0xf] %vm4014, %v3933
      %4029 = vst.msk [vmem:[#allocation4 + $0xa8] sm:$0xf] %vm4014, %v3935
      %4030 = vst.msk [vmem:[#allocation4 + $0xb4] sm:$0xf] %vm4014, %v3937
      %4031 = vst.msk [vmem:[#allocation4 + $0xc0] sm:$0xf] %vm4014, %v3939
      %4032 = vst.msk [vmem:[#allocation4 + $0xcc] sm:$0xf] %vm4014, %v3941
      %4033 = vst.msk [vmem:[#allocation4 + $0xd8] sm:$0xf] %vm4014, %v3943
      %4034 = vst.msk [vmem:[#allocation4 + $0xe4] sm:$0xf] %vm4014, %v3945
      %4035 = vst.msk [vmem:[#allocation4 + $0xf0] sm:$0xf] %vm4014, %v3947
      %4036 = vst.msk [vmem:[#allocation4 + $0xfc] sm:$0xf] %vm4014, %v3949
      %4037 = vst.msk [vmem:[#allocation4 + $0x108] sm:$0xf] %vm4014, %v3951
      %4038 = vst.msk [vmem:[#allocation4 + $0x114] sm:$0xf] %vm4014, %v3953
      %4039 = vst.msk [vmem:[#allocation4 + $0x120] sm:$0xf] %vm4014, %v3955
      %4040 = vst.msk [vmem:[#allocation4 + $0x12c] sm:$0xf] %vm4014, %v3957
      %4041 = vst.msk [vmem:[#allocation4 + $0x138] sm:$0xf] %vm4014, %v3959
      %4042 = vst.msk [vmem:[#allocation4 + $0x144] sm:$0xf] %vm4014, %v3961
      %4043 = vst.msk [vmem:[#allocation4 + $0x150] sm:$0xf] %vm4014, %v3963
      %4044 = vst.msk [vmem:[#allocation4 + $0x15c] sm:$0xf] %vm4014, %v3965
      %4045 = vst.msk [vmem:[#allocation4 + $0x168] sm:$0xf] %vm4014, %v3967
      %4046 = vst.msk [vmem:[#allocation4 + $0x174] sm:$0xf] %vm4014, %v3969
      %4047 = vst.msk [vmem:[#allocation4 + $0x180] sm:$0xf] %vm4014, %v3971
      %4048 = vst.msk [vmem:[#allocation4 + $0x18c] sm:$0xf] %vm4014, %v3973
      %4049 = vst.msk [vmem:[#allocation4 + $0x198] sm:$0xf] %vm4014, %v3975
      %4050 = vst.msk [vmem:[#allocation4 + $0x1a4] sm:$0xf] %vm4014, %v3977
      %v4051 = vld [vmem:[#allocation3 + $0x13] sm:$0xff]
      %v4052 = vld [vmem:[#allocation3 + $0x1b] sm:$0xff]
      %v4053 = vld [vmem:[#allocation3 + $0x23] sm:$0xff]
      %v4054 = vld [vmem:[#allocation3 + $0x2b] sm:$0xff]
      %v4055 = vld [vmem:[#allocation3 + $0x33] sm:$0xff]
      %v4056 = vld [vmem:[#allocation3 + $0x3b] sm:$0xff]
      %v4057 = vld [vmem:[#allocation3 + $0x43] sm:$0xff]
      %v4058 = vld [vmem:[#allocation3 + $0x4b] sm:$0xff]
      %v4059 = vld [vmem:[#allocation3 + $0x53] sm:$0xff]
      %v4060 = vld [vmem:[#allocation3 + $0x5b] sm:$0xff]
      %v4061 = vld [vmem:[#allocation3 + $0x63] sm:$0xff]
      %v4062 = vld [vmem:[#allocation3 + $0x6b] sm:$0xff]
      %v4063 = vld [vmem:[#allocation3 + $0x73] sm:$0xff]
      %v4064 = vld [vmem:[#allocation3 + $0x7b] sm:$0xff]
      %v4065 = vld [vmem:[#allocation3 + $0x83] sm:$0xff]
      %v4066 = vld [vmem:[#allocation3 + $0x8b] sm:$0xff]
      %v4067 = vld [vmem:[#allocation3 + $0x93] sm:$0xff]
      %v4068 = vld [vmem:[#allocation3 + $0x9b] sm:$0xff]
      %v4069 = vld [vmem:[#allocation3 + $0xa3] sm:$0xff]
      %v4070 = vld [vmem:[#allocation3 + $0xab] sm:$0xff]
      %v4071 = vld [vmem:[#allocation3 + $0xb3] sm:$0xff]
      %v4072 = vld [vmem:[#allocation3 + $0xbb] sm:$0xff]
      %v4073 = vld [vmem:[#allocation3 + $0xc3] sm:$0xff]
      %v4074 = vld [vmem:[#allocation3 + $0xcb] sm:$0xff]
      %v4075 = vld [vmem:[#allocation3 + $0xd3] sm:$0xff]
      %v4076 = vld [vmem:[#allocation3 + $0xdb] sm:$0xff]
      %v4077 = vld [vmem:[#allocation3 + $0xe3] sm:$0xff]
      %v4078 = vld [vmem:[#allocation3 + $0xeb] sm:$0xff]
      %v4079 = vld [vmem:[#allocation3 + $0xf3] sm:$0xff]
      %v4080 = vld [vmem:[#allocation3 + $0xfb] sm:$0xff]
      %v4081 = vld [vmem:[#allocation3 + $0x103] sm:$0xff]
      %v4082 = vld [vmem:[#allocation3 + $0x10b] sm:$0xff]
      %v4083 = vld [vmem:[#allocation3 + $0x113] sm:$0xff]
      %v4084 = vld [vmem:[#allocation3 + $0x11b] sm:$0xff]
      %v4085 = vld [vmem:[#allocation3 + $0x123] sm:$0xff]
      %v4086 = vld [vmem:[#allocation3 + $0x12b] sm:$0xff]
      %v4087 = vpack.c.bf16 %v4051, %v4051
      %v4088 = vpack.c.bf16 %v4052, %v4052
      %v4089 = vpack.c.bf16 %v4053, %v4053
      %v4090 = vpack.c.bf16 %v4054, %v4054
      %v4091 = vpack.c.bf16 %v4055, %v4055
      %v4092 = vpack.c.bf16 %v4056, %v4056
      %v4093 = vpack.c.bf16 %v4057, %v4057
      %v4094 = vpack.c.bf16 %v4058, %v4058
      %v4095 = vpack.c.bf16 %v4059, %v4059
      %v4096 = vpack.c.bf16 %v4060, %v4060
      %v4097 = vpack.c.bf16 %v4061, %v4061
      %v4098 = vpack.c.bf16 %v4062, %v4062
      %v4099 = vpack.c.bf16 %v4063, %v4063
      %v4100 = vpack.c.bf16 %v4064, %v4064
      %v4101 = vpack.c.bf16 %v4065, %v4065
      %v4102 = vpack.c.bf16 %v4066, %v4066
      %v4103 = vpack.c.bf16 %v4067, %v4067
      %v4104 = vpack.c.bf16 %v4068, %v4068
      %v4105 = vpack.c.bf16 %v4069, %v4069
      %v4106 = vpack.c.bf16 %v4070, %v4070
      %v4107 = vpack.c.bf16 %v4071, %v4071
      %v4108 = vpack.c.bf16 %v4072, %v4072
      %v4109 = vpack.c.bf16 %v4073, %v4073
      %v4110 = vpack.c.bf16 %v4074, %v4074
      %v4111 = vpack.c.bf16 %v4075, %v4075
      %v4112 = vpack.c.bf16 %v4076, %v4076
      %v4113 = vpack.c.bf16 %v4077, %v4077
      %v4114 = vpack.c.bf16 %v4078, %v4078
      %v4115 = vpack.c.bf16 %v4079, %v4079
      %v4116 = vpack.c.bf16 %v4080, %v4080
      %v4117 = vpack.c.bf16 %v4081, %v4081
      %v4118 = vpack.c.bf16 %v4082, %v4082
      %v4119 = vpack.c.bf16 %v4083, %v4083
      %v4120 = vpack.c.bf16 %v4084, %v4084
      %v4121 = vpack.c.bf16 %v4085, %v4085
      %v4122 = vpack.c.bf16 %v4086, %v4086
      %4123 = vst.msk [vmem:[#allocation4 + $0x4] sm:$0xf] %vm3255, %v4087
      %4124 = vst.msk [vmem:[#allocation4 + $0x10] sm:$0xf] %vm3255, %v4088
      %4125 = vst.msk [vmem:[#allocation4 + $0x1c] sm:$0xf] %vm3255, %v4089
      %4126 = vst.msk [vmem:[#allocation4 + $0x28] sm:$0xf] %vm3255, %v4090
      %4127 = vst.msk [vmem:[#allocation4 + $0x34] sm:$0xf] %vm3255, %v4091
      %4128 = vst.msk [vmem:[#allocation4 + $0x40] sm:$0xf] %vm3255, %v4092
      %4129 = vst.msk [vmem:[#allocation4 + $0x4c] sm:$0xf] %vm3255, %v4093
      %4130 = vst.msk [vmem:[#allocation4 + $0x58] sm:$0xf] %vm3255, %v4094
      %4131 = vst.msk [vmem:[#allocation4 + $0x64] sm:$0xf] %vm3255, %v4095
      %4132 = vst.msk [vmem:[#allocation4 + $0x70] sm:$0xf] %vm3255, %v4096
      %4133 = vst.msk [vmem:[#allocation4 + $0x7c] sm:$0xf] %vm3255, %v4097
      %4134 = vst.msk [vmem:[#allocation4 + $0x88] sm:$0xf] %vm3255, %v4098
      %4135 = vst.msk [vmem:[#allocation4 + $0x94] sm:$0xf] %vm3255, %v4099
      %4136 = vst.msk [vmem:[#allocation4 + $0xa0] sm:$0xf] %vm3255, %v4100
      %4137 = vst.msk [vmem:[#allocation4 + $0xac] sm:$0xf] %vm3255, %v4101
      %4138 = vst.msk [vmem:[#allocation4 + $0xb8] sm:$0xf] %vm3255, %v4102
      %4139 = vst.msk [vmem:[#allocation4 + $0xc4] sm:$0xf] %vm3255, %v4103
      %4140 = vst.msk [vmem:[#allocation4 + $0xd0] sm:$0xf] %vm3255, %v4104
      %4141 = vst.msk [vmem:[#allocation4 + $0xdc] sm:$0xf] %vm3255, %v4105
      %4142 = vst.msk [vmem:[#allocation4 + $0xe8] sm:$0xf] %vm3255, %v4106
      %4143 = vst.msk [vmem:[#allocation4 + $0xf4] sm:$0xf] %vm3255, %v4107
      %4144 = vst.msk [vmem:[#allocation4 + $0x100] sm:$0xf] %vm3255, %v4108
      %4145 = vst.msk [vmem:[#allocation4 + $0x10c] sm:$0xf] %vm3255, %v4109
      %4146 = vst.msk [vmem:[#allocation4 + $0x118] sm:$0xf] %vm3255, %v4110
      %4147 = vst.msk [vmem:[#allocation4 + $0x124] sm:$0xf] %vm3255, %v4111
      %4148 = vst.msk [vmem:[#allocation4 + $0x130] sm:$0xf] %vm3255, %v4112
      %4149 = vst.msk [vmem:[#allocation4 + $0x13c] sm:$0xf] %vm3255, %v4113
      %4150 = vst.msk [vmem:[#allocation4 + $0x148] sm:$0xf] %vm3255, %v4114
      %4151 = vst.msk [vmem:[#allocation4 + $0x154] sm:$0xf] %vm3255, %v4115
      %4152 = vst.msk [vmem:[#allocation4 + $0x160] sm:$0xf] %vm3255, %v4116
      %4153 = vst.msk [vmem:[#allocation4 + $0x16c] sm:$0xf] %vm3255, %v4117
      %4154 = vst.msk [vmem:[#allocation4 + $0x178] sm:$0xf] %vm3255, %v4118
      %4155 = vst.msk [vmem:[#allocation4 + $0x184] sm:$0xf] %vm3255, %v4119
      %4156 = vst.msk [vmem:[#allocation4 + $0x190] sm:$0xf] %vm3255, %v4120
      %4157 = vst.msk [vmem:[#allocation4 + $0x19c] sm:$0xf] %vm3255, %v4121
      %4158 = vst.msk [vmem:[#allocation4 + $0x1a8] sm:$0xf] %vm3255, %v4122
      %v4159 = vld [vmem:[#allocation3 + $0x14] sm:$0xff]
      %v4160 = vld [vmem:[#allocation3 + $0x1c] sm:$0xff]
      %v4161 = vld [vmem:[#allocation3 + $0x24] sm:$0xff]
      %v4162 = vld [vmem:[#allocation3 + $0x2c] sm:$0xff]
      %v4163 = vld [vmem:[#allocation3 + $0x34] sm:$0xff]
      %v4164 = vld [vmem:[#allocation3 + $0x3c] sm:$0xff]
      %v4165 = vld [vmem:[#allocation3 + $0x44] sm:$0xff]
      %v4166 = vld [vmem:[#allocation3 + $0x4c] sm:$0xff]
      %v4167 = vld [vmem:[#allocation3 + $0x54] sm:$0xff]
      %v4168 = vld [vmem:[#allocation3 + $0x5c] sm:$0xff]
      %v4169 = vld [vmem:[#allocation3 + $0x64] sm:$0xff]
      %v4170 = vld [vmem:[#allocation3 + $0x6c] sm:$0xff]
      %v4171 = vld [vmem:[#allocation3 + $0x74] sm:$0xff]
      %v4172 = vld [vmem:[#allocation3 + $0x7c] sm:$0xff]
      %v4173 = vld [vmem:[#allocation3 + $0x84] sm:$0xff]
      %v4174 = vld [vmem:[#allocation3 + $0x8c] sm:$0xff]
      %v4175 = vld [vmem:[#allocation3 + $0x94] sm:$0xff]
      %v4176 = vld [vmem:[#allocation3 + $0x9c] sm:$0xff]
      %v4177 = vld [vmem:[#allocation3 + $0xa4] sm:$0xff]
      %v4178 = vld [vmem:[#allocation3 + $0xac] sm:$0xff]
      %v4179 = vld [vmem:[#allocation3 + $0xb4] sm:$0xff]
      %v4180 = vld [vmem:[#allocation3 + $0xbc] sm:$0xff]
      %v4181 = vld [vmem:[#allocation3 + $0xc4] sm:$0xff]
      %v4182 = vld [vmem:[#allocation3 + $0xcc] sm:$0xff]
      %v4183 = vld [vmem:[#allocation3 + $0xd4] sm:$0xff]
      %v4184 = vld [vmem:[#allocation3 + $0xdc] sm:$0xff]
      %v4185 = vld [vmem:[#allocation3 + $0xe4] sm:$0xff]
      %v4186 = vld [vmem:[#allocation3 + $0xec] sm:$0xff]
      %v4187 = vld [vmem:[#allocation3 + $0xf4] sm:$0xff]
      %v4188 = vld [vmem:[#allocation3 + $0xfc] sm:$0xff]
      %v4189 = vld [vmem:[#allocation3 + $0x104] sm:$0xff]
      %v4190 = vld [vmem:[#allocation3 + $0x10c] sm:$0xff]
      %v4191 = vld [vmem:[#allocation3 + $0x114] sm:$0xff]
      %v4192 = vld [vmem:[#allocation3 + $0x11c] sm:$0xff]
      %v4193 = vld [vmem:[#allocation3 + $0x124] sm:$0xff]
      %v4194 = vld [vmem:[#allocation3 + $0x12c] sm:$0xff]
      %v4195 = vpack.c.bf16 %v4159, %v4159
      %v4196 = vpack.c.bf16 %v4160, %v4160
      %v4197 = vpack.c.bf16 %v4161, %v4161
      %v4198 = vpack.c.bf16 %v4162, %v4162
      %v4199 = vpack.c.bf16 %v4163, %v4163
      %v4200 = vpack.c.bf16 %v4164, %v4164
      %v4201 = vpack.c.bf16 %v4165, %v4165
      %v4202 = vpack.c.bf16 %v4166, %v4166
      %v4203 = vpack.c.bf16 %v4167, %v4167
      %v4204 = vpack.c.bf16 %v4168, %v4168
      %v4205 = vpack.c.bf16 %v4169, %v4169
      %v4206 = vpack.c.bf16 %v4170, %v4170
      %v4207 = vpack.c.bf16 %v4171, %v4171
      %v4208 = vpack.c.bf16 %v4172, %v4172
      %v4209 = vpack.c.bf16 %v4173, %v4173
      %v4210 = vpack.c.bf16 %v4174, %v4174
      %v4211 = vpack.c.bf16 %v4175, %v4175
      %v4212 = vpack.c.bf16 %v4176, %v4176
      %v4213 = vpack.c.bf16 %v4177, %v4177
      %v4214 = vpack.c.bf16 %v4178, %v4178
      %v4215 = vpack.c.bf16 %v4179, %v4179
      %v4216 = vpack.c.bf16 %v4180, %v4180
      %v4217 = vpack.c.bf16 %v4181, %v4181
      %v4218 = vpack.c.bf16 %v4182, %v4182
      %v4219 = vpack.c.bf16 %v4183, %v4183
      %v4220 = vpack.c.bf16 %v4184, %v4184
      %v4221 = vpack.c.bf16 %v4185, %v4185
      %v4222 = vpack.c.bf16 %v4186, %v4186
      %v4223 = vpack.c.bf16 %v4187, %v4187
      %v4224 = vpack.c.bf16 %v4188, %v4188
      %v4225 = vpack.c.bf16 %v4189, %v4189
      %v4226 = vpack.c.bf16 %v4190, %v4190
      %v4227 = vpack.c.bf16 %v4191, %v4191
      %v4228 = vpack.c.bf16 %v4192, %v4192
      %v4229 = vpack.c.bf16 %v4193, %v4193
      %v4230 = vpack.c.bf16 %v4194, %v4194
      %4267 = vrot.lane.b32.xlu0 %v4195, 32
      %v4268 = vpop.permute.xlu0 %4267
      %4269 = vrot.lane.b32.xlu0 %v4196, 32
      %v4270 = vpop.permute.xlu0 %4269
      %4271 = vrot.lane.b32.xlu0 %v4197, 32
      %v4272 = vpop.permute.xlu0 %4271
      %4273 = vrot.lane.b32.xlu0 %v4198, 32
      %v4274 = vpop.permute.xlu0 %4273
      %4275 = vrot.lane.b32.xlu0 %v4199, 32
      %v4276 = vpop.permute.xlu0 %4275
      %4277 = vrot.lane.b32.xlu0 %v4200, 32
      %v4278 = vpop.permute.xlu0 %4277
      %4279 = vrot.lane.b32.xlu0 %v4201, 32
      %v4280 = vpop.permute.xlu0 %4279
      %4281 = vrot.lane.b32.xlu0 %v4202, 32
      %v4282 = vpop.permute.xlu0 %4281
      %4283 = vrot.lane.b32.xlu0 %v4203, 32
      %v4284 = vpop.permute.xlu0 %4283
      %4285 = vrot.lane.b32.xlu0 %v4204, 32
      %v4286 = vpop.permute.xlu0 %4285
      %4287 = vrot.lane.b32.xlu0 %v4205, 32
      %v4288 = vpop.permute.xlu0 %4287
      %4289 = vrot.lane.b32.xlu0 %v4206, 32
      %v4290 = vpop.permute.xlu0 %4289
      %4291 = vrot.lane.b32.xlu0 %v4207, 32
      %v4292 = vpop.permute.xlu0 %4291
      %4293 = vrot.lane.b32.xlu0 %v4208, 32
      %v4294 = vpop.permute.xlu0 %4293
      %4295 = vrot.lane.b32.xlu0 %v4209, 32
      %v4296 = vpop.permute.xlu0 %4295
      %4297 = vrot.lane.b32.xlu0 %v4210, 32
      %v4298 = vpop.permute.xlu0 %4297
      %4299 = vrot.lane.b32.xlu0 %v4211, 32
      %v4300 = vpop.permute.xlu0 %4299
      %4301 = vrot.lane.b32.xlu0 %v4212, 32
      %v4302 = vpop.permute.xlu0 %4301
      %4303 = vrot.lane.b32.xlu0 %v4213, 32
      %v4304 = vpop.permute.xlu0 %4303
      %4305 = vrot.lane.b32.xlu0 %v4214, 32
      %v4306 = vpop.permute.xlu0 %4305
      %4307 = vrot.lane.b32.xlu0 %v4215, 32
      %v4308 = vpop.permute.xlu0 %4307
      %4309 = vrot.lane.b32.xlu0 %v4216, 32
      %v4310 = vpop.permute.xlu0 %4309
      %4311 = vrot.lane.b32.xlu0 %v4217, 32
      %v4312 = vpop.permute.xlu0 %4311
      %4313 = vrot.lane.b32.xlu0 %v4218, 32
      %v4314 = vpop.permute.xlu0 %4313
      %4315 = vrot.lane.b32.xlu0 %v4219, 32
      %v4316 = vpop.permute.xlu0 %4315
      %4317 = vrot.lane.b32.xlu0 %v4220, 32
      %v4318 = vpop.permute.xlu0 %4317
      %4319 = vrot.lane.b32.xlu0 %v4221, 32
      %v4320 = vpop.permute.xlu0 %4319
      %4321 = vrot.lane.b32.xlu0 %v4222, 32
      %v4322 = vpop.permute.xlu0 %4321
      %4323 = vrot.lane.b32.xlu0 %v4223, 32
      %v4324 = vpop.permute.xlu0 %4323
      %4325 = vrot.lane.b32.xlu0 %v4224, 32
      %v4326 = vpop.permute.xlu0 %4325
      %4327 = vrot.lane.b32.xlu0 %v4225, 32
      %v4328 = vpop.permute.xlu0 %4327
      %4329 = vrot.lane.b32.xlu0 %v4226, 32
      %v4330 = vpop.permute.xlu0 %4329
      %4331 = vrot.lane.b32.xlu0 %v4227, 32
      %v4332 = vpop.permute.xlu0 %4331
      %4333 = vrot.lane.b32.xlu0 %v4228, 32
      %v4334 = vpop.permute.xlu0 %4333
      %4335 = vrot.lane.b32.xlu0 %v4229, 32
      %v4336 = vpop.permute.xlu0 %4335
      %4337 = vrot.lane.b32.xlu0 %v4230, 32
      %v4338 = vpop.permute.xlu0 %4337
      %4375 = vst.msk [vmem:[#allocation4 + $0x4] sm:$0xf] %vm3508, %v4268
      %4376 = vst.msk [vmem:[#allocation4 + $0x10] sm:$0xf] %vm3508, %v4270
      %4377 = vst.msk [vmem:[#allocation4 + $0x1c] sm:$0xf] %vm3508, %v4272
      %4378 = vst.msk [vmem:[#allocation4 + $0x28] sm:$0xf] %vm3508, %v4274
      %4379 = vst.msk [vmem:[#allocation4 + $0x34] sm:$0xf] %vm3508, %v4276
      %4380 = vst.msk [vmem:[#allocation4 + $0x40] sm:$0xf] %vm3508, %v4278
      %4381 = vst.msk [vmem:[#allocation4 + $0x4c] sm:$0xf] %vm3508, %v4280
      %4382 = vst.msk [vmem:[#allocation4 + $0x58] sm:$0xf] %vm3508, %v4282
      %4383 = vst.msk [vmem:[#allocation4 + $0x64] sm:$0xf] %vm3508, %v4284
      %4384 = vst.msk [vmem:[#allocation4 + $0x70] sm:$0xf] %vm3508, %v4286
      %4385 = vst.msk [vmem:[#allocation4 + $0x7c] sm:$0xf] %vm3508, %v4288
      %4386 = vst.msk [vmem:[#allocation4 + $0x88] sm:$0xf] %vm3508, %v4290
      %4387 = vst.msk [vmem:[#allocation4 + $0x94] sm:$0xf] %vm3508, %v4292
      %4388 = vst.msk [vmem:[#allocation4 + $0xa0] sm:$0xf] %vm3508, %v4294
      %4389 = vst.msk [vmem:[#allocation4 + $0xac] sm:$0xf] %vm3508, %v4296
      %4390 = vst.msk [vmem:[#allocation4 + $0xb8] sm:$0xf] %vm3508, %v4298
      %4391 = vst.msk [vmem:[#allocation4 + $0xc4] sm:$0xf] %vm3508, %v4300
      %4392 = vst.msk [vmem:[#allocation4 + $0xd0] sm:$0xf] %vm3508, %v4302
      %4393 = vst.msk [vmem:[#allocation4 + $0xdc] sm:$0xf] %vm3508, %v4304
      %4394 = vst.msk [vmem:[#allocation4 + $0xe8] sm:$0xf] %vm3508, %v4306
      %4395 = vst.msk [vmem:[#allocation4 + $0xf4] sm:$0xf] %vm3508, %v4308
      %4396 = vst.msk [vmem:[#allocation4 + $0x100] sm:$0xf] %vm3508, %v4310
      %4397 = vst.msk [vmem:[#allocation4 + $0x10c] sm:$0xf] %vm3508, %v4312
      %4398 = vst.msk [vmem:[#allocation4 + $0x118] sm:$0xf] %vm3508, %v4314
      %4399 = vst.msk [vmem:[#allocation4 + $0x124] sm:$0xf] %vm3508, %v4316
      %4400 = vst.msk [vmem:[#allocation4 + $0x130] sm:$0xf] %vm3508, %v4318
      %4401 = vst.msk [vmem:[#allocation4 + $0x13c] sm:$0xf] %vm3508, %v4320
      %4402 = vst.msk [vmem:[#allocation4 + $0x148] sm:$0xf] %vm3508, %v4322
      %4403 = vst.msk [vmem:[#allocation4 + $0x154] sm:$0xf] %vm3508, %v4324
      %4404 = vst.msk [vmem:[#allocation4 + $0x160] sm:$0xf] %vm3508, %v4326
      %4405 = vst.msk [vmem:[#allocation4 + $0x16c] sm:$0xf] %vm3508, %v4328
      %4406 = vst.msk [vmem:[#allocation4 + $0x178] sm:$0xf] %vm3508, %v4330
      %4407 = vst.msk [vmem:[#allocation4 + $0x184] sm:$0xf] %vm3508, %v4332
      %4408 = vst.msk [vmem:[#allocation4 + $0x190] sm:$0xf] %vm3508, %v4334
      %4409 = vst.msk [vmem:[#allocation4 + $0x19c] sm:$0xf] %vm3508, %v4336
      %4410 = vst.msk [vmem:[#allocation4 + $0x1a8] sm:$0xf] %vm3508, %v4338
      %v4411 = vld [vmem:[#allocation3 + $0x24] sm:$0xff]
      %v4412 = vld [vmem:[#allocation3 + $0x2c] sm:$0xff]
      %v4413 = vld [vmem:[#allocation3 + $0x34] sm:$0xff]
      %v4414 = vld [vmem:[#allocation3 + $0x3c] sm:$0xff]
      %v4415 = vld [vmem:[#allocation3 + $0x44] sm:$0xff]
      %v4416 = vld [vmem:[#allocation3 + $0x4c] sm:$0xff]
      %v4417 = vld [vmem:[#allocation3 + $0x54] sm:$0xff]
      %v4418 = vld [vmem:[#allocation3 + $0x5c] sm:$0xff]
      %v4419 = vld [vmem:[#allocation3 + $0x64] sm:$0xff]
      %v4420 = vld [vmem:[#allocation3 + $0x6c] sm:$0xff]
      %v4421 = vld [vmem:[#allocation3 + $0x74] sm:$0xff]
      %v4422 = vld [vmem:[#allocation3 + $0x7c] sm:$0xff]
      %v4423 = vld [vmem:[#allocation3 + $0x84] sm:$0xff]
      %v4424 = vld [vmem:[#allocation3 + $0x8c] sm:$0xff]
      %v4425 = vld [vmem:[#allocation3 + $0x94] sm:$0xff]
      %v4426 = vld [vmem:[#allocation3 + $0x9c] sm:$0xff]
      %v4427 = vld [vmem:[#allocation3 + $0xa4] sm:$0xff]
      %v4428 = vld [vmem:[#allocation3 + $0xac] sm:$0xff]
      %v4429 = vld [vmem:[#allocation3 + $0xb4] sm:$0xff]
      %v4430 = vld [vmem:[#allocation3 + $0xbc] sm:$0xff]
      %v4431 = vld [vmem:[#allocation3 + $0xc4] sm:$0xff]
      %v4432 = vld [vmem:[#allocation3 + $0xcc] sm:$0xff]
      %v4433 = vld [vmem:[#allocation3 + $0xd4] sm:$0xff]
      %v4434 = vld [vmem:[#allocation3 + $0xdc] sm:$0xff]
      %v4435 = vld [vmem:[#allocation3 + $0xe4] sm:$0xff]
      %v4436 = vld [vmem:[#allocation3 + $0xec] sm:$0xff]
      %v4437 = vld [vmem:[#allocation3 + $0xf4] sm:$0xff]
      %v4438 = vld [vmem:[#allocation3 + $0xfc] sm:$0xff]
      %v4439 = vld [vmem:[#allocation3 + $0x104] sm:$0xff]
      %v4440 = vld [vmem:[#allocation3 + $0x10c] sm:$0xff]
      %v4441 = vld [vmem:[#allocation3 + $0x114] sm:$0xff]
      %v4442 = vld [vmem:[#allocation3 + $0x11c] sm:$0xff]
      %v4443 = vld [vmem:[#allocation3 + $0x124] sm:$0xff]
      %v4444 = vld [vmem:[#allocation3 + $0x12c] sm:$0xff]
      %v4445 = vld [vmem:[#allocation3 + $0x134] sm:$0xff]
      %v4446 = vld [vmem:[#allocation3 + $0x13c] sm:$0xff]
      %v4447 = vpack.c.bf16 %v4411, %v4411
      %v4448 = vpack.c.bf16 %v4412, %v4412
      %v4449 = vpack.c.bf16 %v4413, %v4413
      %v4450 = vpack.c.bf16 %v4414, %v4414
      %v4451 = vpack.c.bf16 %v4415, %v4415
      %v4452 = vpack.c.bf16 %v4416, %v4416
      %v4453 = vpack.c.bf16 %v4417, %v4417
      %v4454 = vpack.c.bf16 %v4418, %v4418
      %v4455 = vpack.c.bf16 %v4419, %v4419
      %v4456 = vpack.c.bf16 %v4420, %v4420
      %v4457 = vpack.c.bf16 %v4421, %v4421
      %v4458 = vpack.c.bf16 %v4422, %v4422
      %v4459 = vpack.c.bf16 %v4423, %v4423
      %v4460 = vpack.c.bf16 %v4424, %v4424
      %v4461 = vpack.c.bf16 %v4425, %v4425
      %v4462 = vpack.c.bf16 %v4426, %v4426
      %v4463 = vpack.c.bf16 %v4427, %v4427
      %v4464 = vpack.c.bf16 %v4428, %v4428
      %v4465 = vpack.c.bf16 %v4429, %v4429
      %v4466 = vpack.c.bf16 %v4430, %v4430
      %v4467 = vpack.c.bf16 %v4431, %v4431
      %v4468 = vpack.c.bf16 %v4432, %v4432
      %v4469 = vpack.c.bf16 %v4433, %v4433
      %v4470 = vpack.c.bf16 %v4434, %v4434
      %v4471 = vpack.c.bf16 %v4435, %v4435
      %v4472 = vpack.c.bf16 %v4436, %v4436
      %v4473 = vpack.c.bf16 %v4437, %v4437
      %v4474 = vpack.c.bf16 %v4438, %v4438
      %v4475 = vpack.c.bf16 %v4439, %v4439
      %v4476 = vpack.c.bf16 %v4440, %v4440
      %v4477 = vpack.c.bf16 %v4441, %v4441
      %v4478 = vpack.c.bf16 %v4442, %v4442
      %v4479 = vpack.c.bf16 %v4443, %v4443
      %v4480 = vpack.c.bf16 %v4444, %v4444
      %v4481 = vpack.c.bf16 %v4445, %v4445
      %v4482 = vpack.c.bf16 %v4446, %v4446
      %4519 = vrot.lane.b32.xlu0 %v4447, 64
      %v4520 = vpop.permute.xlu0 %4519
      %4521 = vrot.lane.b32.xlu0 %v4448, 64
      %v4522 = vpop.permute.xlu0 %4521
      %4523 = vrot.lane.b32.xlu0 %v4449, 64
      %v4524 = vpop.permute.xlu0 %4523
      %4525 = vrot.lane.b32.xlu0 %v4450, 64
      %v4526 = vpop.permute.xlu0 %4525
      %4527 = vrot.lane.b32.xlu0 %v4451, 64
      %v4528 = vpop.permute.xlu0 %4527
      %4529 = vrot.lane.b32.xlu0 %v4452, 64
      %v4530 = vpop.permute.xlu0 %4529
      %4531 = vrot.lane.b32.xlu0 %v4453, 64
      %v4532 = vpop.permute.xlu0 %4531
      %4533 = vrot.lane.b32.xlu0 %v4454, 64
      %v4534 = vpop.permute.xlu0 %4533
      %4535 = vrot.lane.b32.xlu0 %v4455, 64
      %v4536 = vpop.permute.xlu0 %4535
      %4537 = vrot.lane.b32.xlu0 %v4456, 64
      %v4538 = vpop.permute.xlu0 %4537
      %4539 = vrot.lane.b32.xlu0 %v4457, 64
      %v4540 = vpop.permute.xlu0 %4539
      %4541 = vrot.lane.b32.xlu0 %v4458, 64
      %v4542 = vpop.permute.xlu0 %4541
      %4543 = vrot.lane.b32.xlu0 %v4459, 64
      %v4544 = vpop.permute.xlu0 %4543
      %4545 = vrot.lane.b32.xlu0 %v4460, 64
      %v4546 = vpop.permute.xlu0 %4545
      %4547 = vrot.lane.b32.xlu0 %v4461, 64
      %v4548 = vpop.permute.xlu0 %4547
      %4549 = vrot.lane.b32.xlu0 %v4462, 64
      %v4550 = vpop.permute.xlu0 %4549
      %4551 = vrot.lane.b32.xlu0 %v4463, 64
      %v4552 = vpop.permute.xlu0 %4551
      %4553 = vrot.lane.b32.xlu0 %v4464, 64
      %v4554 = vpop.permute.xlu0 %4553
      %4555 = vrot.lane.b32.xlu0 %v4465, 64
      %v4556 = vpop.permute.xlu0 %4555
      %4557 = vrot.lane.b32.xlu0 %v4466, 64
      %v4558 = vpop.permute.xlu0 %4557
      %4559 = vrot.lane.b32.xlu0 %v4467, 64
      %v4560 = vpop.permute.xlu0 %4559
      %4561 = vrot.lane.b32.xlu0 %v4468, 64
      %v4562 = vpop.permute.xlu0 %4561
      %4563 = vrot.lane.b32.xlu0 %v4469, 64
      %v4564 = vpop.permute.xlu0 %4563
      %4565 = vrot.lane.b32.xlu0 %v4470, 64
      %v4566 = vpop.permute.xlu0 %4565
      %4567 = vrot.lane.b32.xlu0 %v4471, 64
      %v4568 = vpop.permute.xlu0 %4567
      %4569 = vrot.lane.b32.xlu0 %v4472, 64
      %v4570 = vpop.permute.xlu0 %4569
      %4571 = vrot.lane.b32.xlu0 %v4473, 64
      %v4572 = vpop.permute.xlu0 %4571
      %4573 = vrot.lane.b32.xlu0 %v4474, 64
      %v4574 = vpop.permute.xlu0 %4573
      %4575 = vrot.lane.b32.xlu0 %v4475, 64
      %v4576 = vpop.permute.xlu0 %4575
      %4577 = vrot.lane.b32.xlu0 %v4476, 64
      %v4578 = vpop.permute.xlu0 %4577
      %4579 = vrot.lane.b32.xlu0 %v4477, 64
      %v4580 = vpop.permute.xlu0 %4579
      %4581 = vrot.lane.b32.xlu0 %v4478, 64
      %v4582 = vpop.permute.xlu0 %4581
      %4583 = vrot.lane.b32.xlu0 %v4479, 64
      %v4584 = vpop.permute.xlu0 %4583
      %4585 = vrot.lane.b32.xlu0 %v4480, 64
      %v4586 = vpop.permute.xlu0 %4585
      %4587 = vrot.lane.b32.xlu0 %v4481, 64
      %v4588 = vpop.permute.xlu0 %4587
      %4589 = vrot.lane.b32.xlu0 %v4482, 64
      %v4590 = vpop.permute.xlu0 %4589
      %4627 = vst.msk [vmem:[#allocation4 + $0x4] sm:$0xf] %vm3761, %v4520
      %4628 = vst.msk [vmem:[#allocation4 + $0x10] sm:$0xf] %vm3761, %v4522
      %4629 = vst.msk [vmem:[#allocation4 + $0x1c] sm:$0xf] %vm3761, %v4524
      %4630 = vst.msk [vmem:[#allocation4 + $0x28] sm:$0xf] %vm3761, %v4526
      %4631 = vst.msk [vmem:[#allocation4 + $0x34] sm:$0xf] %vm3761, %v4528
      %4632 = vst.msk [vmem:[#allocation4 + $0x40] sm:$0xf] %vm3761, %v4530
      %4633 = vst.msk [vmem:[#allocation4 + $0x4c] sm:$0xf] %vm3761, %v4532
      %4634 = vst.msk [vmem:[#allocation4 + $0x58] sm:$0xf] %vm3761, %v4534
      %4635 = vst.msk [vmem:[#allocation4 + $0x64] sm:$0xf] %vm3761, %v4536
      %4636 = vst.msk [vmem:[#allocation4 + $0x70] sm:$0xf] %vm3761, %v4538
      %4637 = vst.msk [vmem:[#allocation4 + $0x7c] sm:$0xf] %vm3761, %v4540
      %4638 = vst.msk [vmem:[#allocation4 + $0x88] sm:$0xf] %vm3761, %v4542
      %4639 = vst.msk [vmem:[#allocation4 + $0x94] sm:$0xf] %vm3761, %v4544
      %4640 = vst.msk [vmem:[#allocation4 + $0xa0] sm:$0xf] %vm3761, %v4546
      %4641 = vst.msk [vmem:[#allocation4 + $0xac] sm:$0xf] %vm3761, %v4548
      %4642 = vst.msk [vmem:[#allocation4 + $0xb8] sm:$0xf] %vm3761, %v4550
      %4643 = vst.msk [vmem:[#allocation4 + $0xc4] sm:$0xf] %vm3761, %v4552
      %4644 = vst.msk [vmem:[#allocation4 + $0xd0] sm:$0xf] %vm3761, %v4554
      %4645 = vst.msk [vmem:[#allocation4 + $0xdc] sm:$0xf] %vm3761, %v4556
      %4646 = vst.msk [vmem:[#allocation4 + $0xe8] sm:$0xf] %vm3761, %v4558
      %4647 = vst.msk [vmem:[#allocation4 + $0xf4] sm:$0xf] %vm3761, %v4560
      %4648 = vst.msk [vmem:[#allocation4 + $0x100] sm:$0xf] %vm3761, %v4562
      %4649 = vst.msk [vmem:[#allocation4 + $0x10c] sm:$0xf] %vm3761, %v4564
      %4650 = vst.msk [vmem:[#allocation4 + $0x118] sm:$0xf] %vm3761, %v4566
      %4651 = vst.msk [vmem:[#allocation4 + $0x124] sm:$0xf] %vm3761, %v4568
      %4652 = vst.msk [vmem:[#allocation4 + $0x130] sm:$0xf] %vm3761, %v4570
      %4653 = vst.msk [vmem:[#allocation4 + $0x13c] sm:$0xf] %vm3761, %v4572
      %4654 = vst.msk [vmem:[#allocation4 + $0x148] sm:$0xf] %vm3761, %v4574
      %4655 = vst.msk [vmem:[#allocation4 + $0x154] sm:$0xf] %vm3761, %v4576
      %4656 = vst.msk [vmem:[#allocation4 + $0x160] sm:$0xf] %vm3761, %v4578
      %4657 = vst.msk [vmem:[#allocation4 + $0x16c] sm:$0xf] %vm3761, %v4580
      %4658 = vst.msk [vmem:[#allocation4 + $0x178] sm:$0xf] %vm3761, %v4582
      %4659 = vst.msk [vmem:[#allocation4 + $0x184] sm:$0xf] %vm3761, %v4584
      %4660 = vst.msk [vmem:[#allocation4 + $0x190] sm:$0xf] %vm3761, %v4586
      %4661 = vst.msk [vmem:[#allocation4 + $0x19c] sm:$0xf] %vm3761, %v4588
      %4662 = vst.msk [vmem:[#allocation4 + $0x1a8] sm:$0xf] %vm3761, %v4590
      %v4663 = vld [vmem:[#allocation3 + $0x25] sm:$0xff]
      %v4664 = vld [vmem:[#allocation3 + $0x2d] sm:$0xff]
      %v4665 = vld [vmem:[#allocation3 + $0x35] sm:$0xff]
      %v4666 = vld [vmem:[#allocation3 + $0x3d] sm:$0xff]
      %v4667 = vld [vmem:[#allocation3 + $0x45] sm:$0xff]
      %v4668 = vld [vmem:[#allocation3 + $0x4d] sm:$0xff]
      %v4669 = vld [vmem:[#allocation3 + $0x55] sm:$0xff]
      %v4670 = vld [vmem:[#allocation3 + $0x5d] sm:$0xff]
      %v4671 = vld [vmem:[#allocation3 + $0x65] sm:$0xff]
      %v4672 = vld [vmem:[#allocation3 + $0x6d] sm:$0xff]
      %v4673 = vld [vmem:[#allocation3 + $0x75] sm:$0xff]
      %v4674 = vld [vmem:[#allocation3 + $0x7d] sm:$0xff]
      %v4675 = vld [vmem:[#allocation3 + $0x85] sm:$0xff]
      %v4676 = vld [vmem:[#allocation3 + $0x8d] sm:$0xff]
      %v4677 = vld [vmem:[#allocation3 + $0x95] sm:$0xff]
      %v4678 = vld [vmem:[#allocation3 + $0x9d] sm:$0xff]
      %v4679 = vld [vmem:[#allocation3 + $0xa5] sm:$0xff]
      %v4680 = vld [vmem:[#allocation3 + $0xad] sm:$0xff]
      %v4681 = vld [vmem:[#allocation3 + $0xb5] sm:$0xff]
      %v4682 = vld [vmem:[#allocation3 + $0xbd] sm:$0xff]
      %v4683 = vld [vmem:[#allocation3 + $0xc5] sm:$0xff]
      %v4684 = vld [vmem:[#allocation3 + $0xcd] sm:$0xff]
      %v4685 = vld [vmem:[#allocation3 + $0xd5] sm:$0xff]
      %v4686 = vld [vmem:[#allocation3 + $0xdd] sm:$0xff]
      %v4687 = vld [vmem:[#allocation3 + $0xe5] sm:$0xff]
      %v4688 = vld [vmem:[#allocation3 + $0xed] sm:$0xff]
      %v4689 = vld [vmem:[#allocation3 + $0xf5] sm:$0xff]
      %v4690 = vld [vmem:[#allocation3 + $0xfd] sm:$0xff]
      %v4691 = vld [vmem:[#allocation3 + $0x105] sm:$0xff]
      %v4692 = vld [vmem:[#allocation3 + $0x10d] sm:$0xff]
      %v4693 = vld [vmem:[#allocation3 + $0x115] sm:$0xff]
      %v4694 = vld [vmem:[#allocation3 + $0x11d] sm:$0xff]
      %v4695 = vld [vmem:[#allocation3 + $0x125] sm:$0xff]
      %v4696 = vld [vmem:[#allocation3 + $0x12d] sm:$0xff]
      %v4697 = vld [vmem:[#allocation3 + $0x135] sm:$0xff]
      %v4698 = vld [vmem:[#allocation3 + $0x13d] sm:$0xff]
      %v4699 = vpack.c.bf16 %v4663, %v4663
      %v4700 = vpack.c.bf16 %v4664, %v4664
      %v4701 = vpack.c.bf16 %v4665, %v4665
      %v4702 = vpack.c.bf16 %v4666, %v4666
      %v4703 = vpack.c.bf16 %v4667, %v4667
      %v4704 = vpack.c.bf16 %v4668, %v4668
      %v4705 = vpack.c.bf16 %v4669, %v4669
      %v4706 = vpack.c.bf16 %v4670, %v4670
      %v4707 = vpack.c.bf16 %v4671, %v4671
      %v4708 = vpack.c.bf16 %v4672, %v4672
      %v4709 = vpack.c.bf16 %v4673, %v4673
      %v4710 = vpack.c.bf16 %v4674, %v4674
      %v4711 = vpack.c.bf16 %v4675, %v4675
      %v4712 = vpack.c.bf16 %v4676, %v4676
      %v4713 = vpack.c.bf16 %v4677, %v4677
      %v4714 = vpack.c.bf16 %v4678, %v4678
      %v4715 = vpack.c.bf16 %v4679, %v4679
      %v4716 = vpack.c.bf16 %v4680, %v4680
      %v4717 = vpack.c.bf16 %v4681, %v4681
      %v4718 = vpack.c.bf16 %v4682, %v4682
      %v4719 = vpack.c.bf16 %v4683, %v4683
      %v4720 = vpack.c.bf16 %v4684, %v4684
      %v4721 = vpack.c.bf16 %v4685, %v4685
      %v4722 = vpack.c.bf16 %v4686, %v4686
      %v4723 = vpack.c.bf16 %v4687, %v4687
      %v4724 = vpack.c.bf16 %v4688, %v4688
      %v4725 = vpack.c.bf16 %v4689, %v4689
      %v4726 = vpack.c.bf16 %v4690, %v4690
      %v4727 = vpack.c.bf16 %v4691, %v4691
      %v4728 = vpack.c.bf16 %v4692, %v4692
      %v4729 = vpack.c.bf16 %v4693, %v4693
      %v4730 = vpack.c.bf16 %v4694, %v4694
      %v4731 = vpack.c.bf16 %v4695, %v4695
      %v4732 = vpack.c.bf16 %v4696, %v4696
      %v4733 = vpack.c.bf16 %v4697, %v4697
      %v4734 = vpack.c.bf16 %v4698, %v4698
      %4771 = vrot.lane.b32.xlu0 %v4699, 96
      %v4772 = vpop.permute.xlu0 %4771
      %4773 = vrot.lane.b32.xlu0 %v4700, 96
      %v4774 = vpop.permute.xlu0 %4773
      %4775 = vrot.lane.b32.xlu0 %v4701, 96
      %v4776 = vpop.permute.xlu0 %4775
      %4777 = vrot.lane.b32.xlu0 %v4702, 96
      %v4778 = vpop.permute.xlu0 %4777
      %4779 = vrot.lane.b32.xlu0 %v4703, 96
      %v4780 = vpop.permute.xlu0 %4779
      %4781 = vrot.lane.b32.xlu0 %v4704, 96
      %v4782 = vpop.permute.xlu0 %4781
      %4783 = vrot.lane.b32.xlu0 %v4705, 96
      %v4784 = vpop.permute.xlu0 %4783
      %4785 = vrot.lane.b32.xlu0 %v4706, 96
      %v4786 = vpop.permute.xlu0 %4785
      %4787 = vrot.lane.b32.xlu0 %v4707, 96
      %v4788 = vpop.permute.xlu0 %4787
      %4789 = vrot.lane.b32.xlu0 %v4708, 96
      %v4790 = vpop.permute.xlu0 %4789
      %4791 = vrot.lane.b32.xlu0 %v4709, 96
      %v4792 = vpop.permute.xlu0 %4791
      %4793 = vrot.lane.b32.xlu0 %v4710, 96
      %v4794 = vpop.permute.xlu0 %4793
      %4795 = vrot.lane.b32.xlu0 %v4711, 96
      %v4796 = vpop.permute.xlu0 %4795
      %4797 = vrot.lane.b32.xlu0 %v4712, 96
      %v4798 = vpop.permute.xlu0 %4797
      %4799 = vrot.lane.b32.xlu0 %v4713, 96
      %v4800 = vpop.permute.xlu0 %4799
      %4801 = vrot.lane.b32.xlu0 %v4714, 96
      %v4802 = vpop.permute.xlu0 %4801
      %4803 = vrot.lane.b32.xlu0 %v4715, 96
      %v4804 = vpop.permute.xlu0 %4803
      %4805 = vrot.lane.b32.xlu0 %v4716, 96
      %v4806 = vpop.permute.xlu0 %4805
      %4807 = vrot.lane.b32.xlu0 %v4717, 96
      %v4808 = vpop.permute.xlu0 %4807
      %4809 = vrot.lane.b32.xlu0 %v4718, 96
      %v4810 = vpop.permute.xlu0 %4809
      %4811 = vrot.lane.b32.xlu0 %v4719, 96
      %v4812 = vpop.permute.xlu0 %4811
      %4813 = vrot.lane.b32.xlu0 %v4720, 96
      %v4814 = vpop.permute.xlu0 %4813
      %4815 = vrot.lane.b32.xlu0 %v4721, 96
      %v4816 = vpop.permute.xlu0 %4815
      %4817 = vrot.lane.b32.xlu0 %v4722, 96
      %v4818 = vpop.permute.xlu0 %4817
      %4819 = vrot.lane.b32.xlu0 %v4723, 96
      %v4820 = vpop.permute.xlu0 %4819
      %4821 = vrot.lane.b32.xlu0 %v4724, 96
      %v4822 = vpop.permute.xlu0 %4821
      %4823 = vrot.lane.b32.xlu0 %v4725, 96
      %v4824 = vpop.permute.xlu0 %4823
      %4825 = vrot.lane.b32.xlu0 %v4726, 96
      %v4826 = vpop.permute.xlu0 %4825
      %4827 = vrot.lane.b32.xlu0 %v4727, 96
      %v4828 = vpop.permute.xlu0 %4827
      %4829 = vrot.lane.b32.xlu0 %v4728, 96
      %v4830 = vpop.permute.xlu0 %4829
      %4831 = vrot.lane.b32.xlu0 %v4729, 96
      %v4832 = vpop.permute.xlu0 %4831
      %4833 = vrot.lane.b32.xlu0 %v4730, 96
      %v4834 = vpop.permute.xlu0 %4833
      %4835 = vrot.lane.b32.xlu0 %v4731, 96
      %v4836 = vpop.permute.xlu0 %4835
      %4837 = vrot.lane.b32.xlu0 %v4732, 96
      %v4838 = vpop.permute.xlu0 %4837
      %4839 = vrot.lane.b32.xlu0 %v4733, 96
      %v4840 = vpop.permute.xlu0 %4839
      %4841 = vrot.lane.b32.xlu0 %v4734, 96
      %v4842 = vpop.permute.xlu0 %4841
      %4879 = vst.msk [vmem:[#allocation4 + $0x4] sm:$0xf] %vm4014, %v4772
      %4880 = vst.msk [vmem:[#allocation4 + $0x10] sm:$0xf] %vm4014, %v4774
      %4881 = vst.msk [vmem:[#allocation4 + $0x1c] sm:$0xf] %vm4014, %v4776
      %4882 = vst.msk [vmem:[#allocation4 + $0x28] sm:$0xf] %vm4014, %v4778
      %4883 = vst.msk [vmem:[#allocation4 + $0x34] sm:$0xf] %vm4014, %v4780
      %4884 = vst.msk [vmem:[#allocation4 + $0x40] sm:$0xf] %vm4014, %v4782
      %4885 = vst.msk [vmem:[#allocation4 + $0x4c] sm:$0xf] %vm4014, %v4784
      %4886 = vst.msk [vmem:[#allocation4 + $0x58] sm:$0xf] %vm4014, %v4786
      %4887 = vst.msk [vmem:[#allocation4 + $0x64] sm:$0xf] %vm4014, %v4788
      %4888 = vst.msk [vmem:[#allocation4 + $0x70] sm:$0xf] %vm4014, %v4790
      %4889 = vst.msk [vmem:[#allocation4 + $0x7c] sm:$0xf] %vm4014, %v4792
      %4890 = vst.msk [vmem:[#allocation4 + $0x88] sm:$0xf] %vm4014, %v4794
      %4891 = vst.msk [vmem:[#allocation4 + $0x94] sm:$0xf] %vm4014, %v4796
      %4892 = vst.msk [vmem:[#allocation4 + $0xa0] sm:$0xf] %vm4014, %v4798
      %4893 = vst.msk [vmem:[#allocation4 + $0xac] sm:$0xf] %vm4014, %v4800
      %4894 = vst.msk [vmem:[#allocation4 + $0xb8] sm:$0xf] %vm4014, %v4802
      %4895 = vst.msk [vmem:[#allocation4 + $0xc4] sm:$0xf] %vm4014, %v4804
      %4896 = vst.msk [vmem:[#allocation4 + $0xd0] sm:$0xf] %vm4014, %v4806
      %4897 = vst.msk [vmem:[#allocation4 + $0xdc] sm:$0xf] %vm4014, %v4808
      %4898 = vst.msk [vmem:[#allocation4 + $0xe8] sm:$0xf] %vm4014, %v4810
      %4899 = vst.msk [vmem:[#allocation4 + $0xf4] sm:$0xf] %vm4014, %v4812
      %4900 = vst.msk [vmem:[#allocation4 + $0x100] sm:$0xf] %vm4014, %v4814
      %4901 = vst.msk [vmem:[#allocation4 + $0x10c] sm:$0xf] %vm4014, %v4816
      %4902 = vst.msk [vmem:[#allocation4 + $0x118] sm:$0xf] %vm4014, %v4818
      %4903 = vst.msk [vmem:[#allocation4 + $0x124] sm:$0xf] %vm4014, %v4820
      %4904 = vst.msk [vmem:[#allocation4 + $0x130] sm:$0xf] %vm4014, %v4822
      %4905 = vst.msk [vmem:[#allocation4 + $0x13c] sm:$0xf] %vm4014, %v4824
      %4906 = vst.msk [vmem:[#allocation4 + $0x148] sm:$0xf] %vm4014, %v4826
      %4907 = vst.msk [vmem:[#allocation4 + $0x154] sm:$0xf] %vm4014, %v4828
      %4908 = vst.msk [vmem:[#allocation4 + $0x160] sm:$0xf] %vm4014, %v4830
      %4909 = vst.msk [vmem:[#allocation4 + $0x16c] sm:$0xf] %vm4014, %v4832
      %4910 = vst.msk [vmem:[#allocation4 + $0x178] sm:$0xf] %vm4014, %v4834
      %4911 = vst.msk [vmem:[#allocation4 + $0x184] sm:$0xf] %vm4014, %v4836
      %4912 = vst.msk [vmem:[#allocation4 + $0x190] sm:$0xf] %vm4014, %v4838
      %4913 = vst.msk [vmem:[#allocation4 + $0x19c] sm:$0xf] %vm4014, %v4840
      %4914 = vst.msk [vmem:[#allocation4 + $0x1a8] sm:$0xf] %vm4014, %v4842
      %v4915 = vld [vmem:[#allocation3 + $0x26] sm:$0xff]
      %v4916 = vld [vmem:[#allocation3 + $0x2e] sm:$0xff]
      %v4917 = vld [vmem:[#allocation3 + $0x36] sm:$0xff]
      %v4918 = vld [vmem:[#allocation3 + $0x3e] sm:$0xff]
      %v4919 = vld [vmem:[#allocation3 + $0x46] sm:$0xff]
      %v4920 = vld [vmem:[#allocation3 + $0x4e] sm:$0xff]
      %v4921 = vld [vmem:[#allocation3 + $0x56] sm:$0xff]
      %v4922 = vld [vmem:[#allocation3 + $0x5e] sm:$0xff]
      %v4923 = vld [vmem:[#allocation3 + $0x66] sm:$0xff]
      %v4924 = vld [vmem:[#allocation3 + $0x6e] sm:$0xff]
      %v4925 = vld [vmem:[#allocation3 + $0x76] sm:$0xff]
      %v4926 = vld [vmem:[#allocation3 + $0x7e] sm:$0xff]
      %v4927 = vld [vmem:[#allocation3 + $0x86] sm:$0xff]
      %v4928 = vld [vmem:[#allocation3 + $0x8e] sm:$0xff]
      %v4929 = vld [vmem:[#allocation3 + $0x96] sm:$0xff]
      %v4930 = vld [vmem:[#allocation3 + $0x9e] sm:$0xff]
      %v4931 = vld [vmem:[#allocation3 + $0xa6] sm:$0xff]
      %v4932 = vld [vmem:[#allocation3 + $0xae] sm:$0xff]
      %v4933 = vld [vmem:[#allocation3 + $0xb6] sm:$0xff]
      %v4934 = vld [vmem:[#allocation3 + $0xbe] sm:$0xff]
      %v4935 = vld [vmem:[#allocation3 + $0xc6] sm:$0xff]
      %v4936 = vld [vmem:[#allocation3 + $0xce] sm:$0xff]
      %v4937 = vld [vmem:[#allocation3 + $0xd6] sm:$0xff]
      %v4938 = vld [vmem:[#allocation3 + $0xde] sm:$0xff]
      %v4939 = vld [vmem:[#allocation3 + $0xe6] sm:$0xff]
      %v4940 = vld [vmem:[#allocation3 + $0xee] sm:$0xff]
      %v4941 = vld [vmem:[#allocation3 + $0xf6] sm:$0xff]
      %v4942 = vld [vmem:[#allocation3 + $0xfe] sm:$0xff]
      %v4943 = vld [vmem:[#allocation3 + $0x106] sm:$0xff]
      %v4944 = vld [vmem:[#allocation3 + $0x10e] sm:$0xff]
      %v4945 = vld [vmem:[#allocation3 + $0x116] sm:$0xff]
      %v4946 = vld [vmem:[#allocation3 + $0x11e] sm:$0xff]
      %v4947 = vld [vmem:[#allocation3 + $0x126] sm:$0xff]
      %v4948 = vld [vmem:[#allocation3 + $0x12e] sm:$0xff]
      %v4949 = vld [vmem:[#allocation3 + $0x136] sm:$0xff]
      %v4950 = vld [vmem:[#allocation3 + $0x13e] sm:$0xff]
      %v4951 = vpack.c.bf16 %v4915, %v4915
      %v4952 = vpack.c.bf16 %v4916, %v4916
      %v4953 = vpack.c.bf16 %v4917, %v4917
      %v4954 = vpack.c.bf16 %v4918, %v4918
      %v4955 = vpack.c.bf16 %v4919, %v4919
      %v4956 = vpack.c.bf16 %v4920, %v4920
      %v4957 = vpack.c.bf16 %v4921, %v4921
      %v4958 = vpack.c.bf16 %v4922, %v4922
      %v4959 = vpack.c.bf16 %v4923, %v4923
      %v4960 = vpack.c.bf16 %v4924, %v4924
      %v4961 = vpack.c.bf16 %v4925, %v4925
      %v4962 = vpack.c.bf16 %v4926, %v4926
      %v4963 = vpack.c.bf16 %v4927, %v4927
      %v4964 = vpack.c.bf16 %v4928, %v4928
      %v4965 = vpack.c.bf16 %v4929, %v4929
      %v4966 = vpack.c.bf16 %v4930, %v4930
      %v4967 = vpack.c.bf16 %v4931, %v4931
      %v4968 = vpack.c.bf16 %v4932, %v4932
      %v4969 = vpack.c.bf16 %v4933, %v4933
      %v4970 = vpack.c.bf16 %v4934, %v4934
      %v4971 = vpack.c.bf16 %v4935, %v4935
      %v4972 = vpack.c.bf16 %v4936, %v4936
      %v4973 = vpack.c.bf16 %v4937, %v4937
      %v4974 = vpack.c.bf16 %v4938, %v4938
      %v4975 = vpack.c.bf16 %v4939, %v4939
      %v4976 = vpack.c.bf16 %v4940, %v4940
      %v4977 = vpack.c.bf16 %v4941, %v4941
      %v4978 = vpack.c.bf16 %v4942, %v4942
      %v4979 = vpack.c.bf16 %v4943, %v4943
      %v4980 = vpack.c.bf16 %v4944, %v4944
      %v4981 = vpack.c.bf16 %v4945, %v4945
      %v4982 = vpack.c.bf16 %v4946, %v4946
      %v4983 = vpack.c.bf16 %v4947, %v4947
      %v4984 = vpack.c.bf16 %v4948, %v4948
      %v4985 = vpack.c.bf16 %v4949, %v4949
      %v4986 = vpack.c.bf16 %v4950, %v4950
      %4987 = vst.msk [vmem:[#allocation4 + $0x8] sm:$0xf] %vm3255, %v4951
      %4988 = vst.msk [vmem:[#allocation4 + $0x14] sm:$0xf] %vm3255, %v4952
      %4989 = vst.msk [vmem:[#allocation4 + $0x20] sm:$0xf] %vm3255, %v4953
      %4990 = vst.msk [vmem:[#allocation4 + $0x2c] sm:$0xf] %vm3255, %v4954
      %4991 = vst.msk [vmem:[#allocation4 + $0x38] sm:$0xf] %vm3255, %v4955
      %4992 = vst.msk [vmem:[#allocation4 + $0x44] sm:$0xf] %vm3255, %v4956
      %4993 = vst.msk [vmem:[#allocation4 + $0x50] sm:$0xf] %vm3255, %v4957
      %4994 = vst.msk [vmem:[#allocation4 + $0x5c] sm:$0xf] %vm3255, %v4958
      %4995 = vst.msk [vmem:[#allocation4 + $0x68] sm:$0xf] %vm3255, %v4959
      %4996 = vst.msk [vmem:[#allocation4 + $0x74] sm:$0xf] %vm3255, %v4960
      %4997 = vst.msk [vmem:[#allocation4 + $0x80] sm:$0xf] %vm3255, %v4961
      %4998 = vst.msk [vmem:[#allocation4 + $0x8c] sm:$0xf] %vm3255, %v4962
      %4999 = vst.msk [vmem:[#allocation4 + $0x98] sm:$0xf] %vm3255, %v4963
      %5000 = vst.msk [vmem:[#allocation4 + $0xa4] sm:$0xf] %vm3255, %v4964
      %5001 = vst.msk [vmem:[#allocation4 + $0xb0] sm:$0xf] %vm3255, %v4965
      %5002 = vst.msk [vmem:[#allocation4 + $0xbc] sm:$0xf] %vm3255, %v4966
      %5003 = vst.msk [vmem:[#allocation4 + $0xc8] sm:$0xf] %vm3255, %v4967
      %5004 = vst.msk [vmem:[#allocation4 + $0xd4] sm:$0xf] %vm3255, %v4968
      %5005 = vst.msk [vmem:[#allocation4 + $0xe0] sm:$0xf] %vm3255, %v4969
      %5006 = vst.msk [vmem:[#allocation4 + $0xec] sm:$0xf] %vm3255, %v4970
      %5007 = vst.msk [vmem:[#allocation4 + $0xf8] sm:$0xf] %vm3255, %v4971
      %5008 = vst.msk [vmem:[#allocation4 + $0x104] sm:$0xf] %vm3255, %v4972
      %5009 = vst.msk [vmem:[#allocation4 + $0x110] sm:$0xf] %vm3255, %v4973
      %5010 = vst.msk [vmem:[#allocation4 + $0x11c] sm:$0xf] %vm3255, %v4974
      %5011 = vst.msk [vmem:[#allocation4 + $0x128] sm:$0xf] %vm3255, %v4975
      %5012 = vst.msk [vmem:[#allocation4 + $0x134] sm:$0xf] %vm3255, %v4976
      %5013 = vst.msk [vmem:[#allocation4 + $0x140] sm:$0xf] %vm3255, %v4977
      %5014 = vst.msk [vmem:[#allocation4 + $0x14c] sm:$0xf] %vm3255, %v4978
      %5015 = vst.msk [vmem:[#allocation4 + $0x158] sm:$0xf] %vm3255, %v4979
      %5016 = vst.msk [vmem:[#allocation4 + $0x164] sm:$0xf] %vm3255, %v4980
      %5017 = vst.msk [vmem:[#allocation4 + $0x170] sm:$0xf] %vm3255, %v4981
      %5018 = vst.msk [vmem:[#allocation4 + $0x17c] sm:$0xf] %vm3255, %v4982
      %5019 = vst.msk [vmem:[#allocation4 + $0x188] sm:$0xf] %vm3255, %v4983
      %5020 = vst.msk [vmem:[#allocation4 + $0x194] sm:$0xf] %vm3255, %v4984
      %5021 = vst.msk [vmem:[#allocation4 + $0x1a0] sm:$0xf] %vm3255, %v4985
      %5022 = vst.msk [vmem:[#allocation4 + $0x1ac] sm:$0xf] %vm3255, %v4986
      %v5023 = vld [vmem:[#allocation4] sm:$0xff]
      %v5024 = vld [vmem:[#allocation4 + $0x8] sm:$0xf]
      %v5025 = vld [vmem:[#allocation4 + $0xc] sm:$0xff]
      %v5026 = vld [vmem:[#allocation4 + $0x14] sm:$0xf]
      %v5027 = vld [vmem:[#allocation4 + $0x18] sm:$0xff]
      %v5028 = vld [vmem:[#allocation4 + $0x20] sm:$0xf]
      %v5029 = vld [vmem:[#allocation4 + $0x24] sm:$0xff]
      %v5030 = vld [vmem:[#allocation4 + $0x2c] sm:$0xf]
      %v5031 = vld [vmem:[#allocation4 + $0x30] sm:$0xff]
      %v5032 = vld [vmem:[#allocation4 + $0x38] sm:$0xf]
      %v5033 = vld [vmem:[#allocation4 + $0x3c] sm:$0xff]
      %v5034 = vld [vmem:[#allocation4 + $0x44] sm:$0xf]
      %v5035 = vld [vmem:[#allocation4 + $0x48] sm:$0xff]
      %v5036 = vld [vmem:[#allocation4 + $0x50] sm:$0xf]
      %v5037 = vld [vmem:[#allocation4 + $0x54] sm:$0xff]
      %v5038 = vld [vmem:[#allocation4 + $0x5c] sm:$0xf]
      %v5039 = vld [vmem:[#allocation4 + $0x60] sm:$0xff]
      %v5040 = vld [vmem:[#allocation4 + $0x68] sm:$0xf]
      %v5041 = vld [vmem:[#allocation4 + $0x6c] sm:$0xff]
      %v5042 = vld [vmem:[#allocation4 + $0x74] sm:$0xf]
      %v5043 = vld [vmem:[#allocation4 + $0x78] sm:$0xff]
      %v5044 = vld [vmem:[#allocation4 + $0x80] sm:$0xf]
      %v5045 = vld [vmem:[#allocation4 + $0x84] sm:$0xff]
      %v5046 = vld [vmem:[#allocation4 + $0x8c] sm:$0xf]
      %v5047 = vld [vmem:[#allocation4 + $0x90] sm:$0xff]
      %v5048 = vld [vmem:[#allocation4 + $0x98] sm:$0xf]
      %v5049 = vld [vmem:[#allocation4 + $0x9c] sm:$0xff]
      %v5050 = vld [vmem:[#allocation4 + $0xa4] sm:$0xf]
      %v5051 = vld [vmem:[#allocation4 + $0xa8] sm:$0xff]
      %v5052 = vld [vmem:[#allocation4 + $0xb0] sm:$0xf]
      %v5053 = vld [vmem:[#allocation4 + $0xb4] sm:$0xff]
      %v5054 = vld [vmem:[#allocation4 + $0xbc] sm:$0xf]
      %v5055 = vld [vmem:[#allocation4 + $0xc0] sm:$0xff]
      %v5056 = vld [vmem:[#allocation4 + $0xc8] sm:$0xf]
      %v5057 = vld [vmem:[#allocation4 + $0xcc] sm:$0xff]
      %v5058 = vld [vmem:[#allocation4 + $0xd4] sm:$0xf]
      %v5059 = vld [vmem:[#allocation4 + $0xd8] sm:$0xff]
      %v5060 = vld [vmem:[#allocation4 + $0xe0] sm:$0xf]
      %v5061 = vld [vmem:[#allocation4 + $0xe4] sm:$0xff]
      %v5062 = vld [vmem:[#allocation4 + $0xec] sm:$0xf]
      %v5063 = vld [vmem:[#allocation4 + $0xf0] sm:$0xff]
      %v5064 = vld [vmem:[#allocation4 + $0xf8] sm:$0xf]
      %v5065 = vld [vmem:[#allocation4 + $0xfc] sm:$0xff]
      %v5066 = vld [vmem:[#allocation4 + $0x104] sm:$0xf]
      %v5067 = vld [vmem:[#allocation4 + $0x108] sm:$0xff]
      %v5068 = vld [vmem:[#allocation4 + $0x110] sm:$0xf]
      %v5069 = vld [vmem:[#allocation4 + $0x114] sm:$0xff]
      %v5070 = vld [vmem:[#allocation4 + $0x11c] sm:$0xf]
      %v5071 = vld [vmem:[#allocation4 + $0x120] sm:$0xff]
      %v5072 = vld [vmem:[#allocation4 + $0x128] sm:$0xf]
      %v5073 = vld [vmem:[#allocation4 + $0x12c] sm:$0xff]
      %v5074 = vld [vmem:[#allocation4 + $0x134] sm:$0xf]
      %v5075 = vld [vmem:[#allocation4 + $0x138] sm:$0xff]
      %v5076 = vld [vmem:[#allocation4 + $0x140] sm:$0xf]
      %v5077 = vld [vmem:[#allocation4 + $0x144] sm:$0xff]
      %v5078 = vld [vmem:[#allocation4 + $0x14c] sm:$0xf]
      %v5079 = vld [vmem:[#allocation4 + $0x150] sm:$0xff]
      %v5080 = vld [vmem:[#allocation4 + $0x158] sm:$0xf]
      %v5081 = vld [vmem:[#allocation4 + $0x15c] sm:$0xff]
      %v5082 = vld [vmem:[#allocation4 + $0x164] sm:$0xf]
      %v5083 = vld [vmem:[#allocation4 + $0x168] sm:$0xff]
      %v5084 = vld [vmem:[#allocation4 + $0x170] sm:$0xf]
      %v5085 = vld [vmem:[#allocation4 + $0x174] sm:$0xff]
      %v5086 = vld [vmem:[#allocation4 + $0x17c] sm:$0xf]
      %v5087 = vld [vmem:[#allocation4 + $0x180] sm:$0xff]
      %v5088 = vld [vmem:[#allocation4 + $0x188] sm:$0xf]
      %v5089 = vld [vmem:[#allocation4 + $0x18c] sm:$0xff]
      %v5090 = vld [vmem:[#allocation4 + $0x194] sm:$0xf]
      %v5091 = vld [vmem:[#allocation4 + $0x198] sm:$0xff]
      %v5092 = vld [vmem:[#allocation4 + $0x1a0] sm:$0xf]
      %v5093 = vld [vmem:[#allocation4 + $0x1a4] sm:$0xff]
      %v5094 = vld [vmem:[#allocation4 + $0x1ac] sm:$0xf]
      %v5095 = vld [vmem:[%s4] sm:$0xf]
      %v5096 = vld [vmem:[%s4 + $0x4] sm:$0xf]
      %v5097 = vld [vmem:[%s4 + $0x8] sm:$0xf]
      %v5098 = vld [vmem:[%s4 + $0xc] sm:$0xf]
      %v5099 = vld [vmem:[%s4 + $0x10] sm:$0xf]
      %v5100 = vld [vmem:[%s4 + $0x14] sm:$0xf]
      %v5101 = vld [vmem:[%s4 + $0x18] sm:$0xf]
      %v5102 = vld [vmem:[%s4 + $0x1c] sm:$0xf]
      %v5103 = vld [vmem:[%s4 + $0x20] sm:$0xf]
      %v5104 = vld [vmem:[%s4 + $0x24] sm:$0xf]
      %v5105 = vld [vmem:[%s4 + $0x28] sm:$0xf]
      %v5106 = vld [vmem:[%s4 + $0x2c] sm:$0xf]
      %v5107 = vld [vmem:[%s4 + $0x30] sm:$0xf]
      %v5108 = vld [vmem:[%s4 + $0x34] sm:$0xf]
      %v5109 = vld [vmem:[%s4 + $0x38] sm:$0xf]
      %v5110 = vld [vmem:[%s4 + $0x3c] sm:$0xf]
      %v5111 = vld [vmem:[%s4 + $0x40] sm:$0xf]
      %v5112 = vld [vmem:[%s4 + $0x44] sm:$0xf]
      %v5113 = vld [vmem:[%s4 + $0x48] sm:$0xf]
      %v5114 = vld [vmem:[%s4 + $0x4c] sm:$0xf]
      %v5115 = vld [vmem:[%s4 + $0x50] sm:$0xf]
      %v5116 = vld [vmem:[%s4 + $0x54] sm:$0xf]
      %v5117 = vld [vmem:[%s4 + $0x58] sm:$0xf]
      %v5118 = vld [vmem:[%s4 + $0x5c] sm:$0xf]
      %v5119 = vld [vmem:[%s4 + $0x60] sm:$0xf]
      %v5120 = vld [vmem:[%s4 + $0x64] sm:$0xf]
      %v5121 = vld [vmem:[%s4 + $0x68] sm:$0xf]
      %v5122 = vld [vmem:[%s4 + $0x6c] sm:$0xf]
      %v5123 = vld [vmem:[%s4 + $0x70] sm:$0xf]
      %v5124 = vld [vmem:[%s4 + $0x74] sm:$0xf]
      %v5125 = vld [vmem:[%s4 + $0x78] sm:$0xf]
      %v5126 = vld [vmem:[%s4 + $0x7c] sm:$0xf]
      %v5127 = vld [vmem:[%s4 + $0x80] sm:$0xf]
      %v5128 = vld [vmem:[%s4 + $0x84] sm:$0xf]
      %v5129 = vld [vmem:[%s4 + $0x88] sm:$0xf]
      %v5130 = vld [vmem:[%s4 + $0x8c] sm:$0xf]
      %v5131 = vld [vmem:[%s5] sm:$0x1]
      %v5133 = vperm.slane %v5131, 0
      %v5207 = vunpack.c.l.b16 %v5023
      %v5208 = vunpack.c.h.b16 %v5023
      %v5209 = vunpack.c.l.b16 %v5024
      %v5210 = vunpack.c.l.b16 %v5025
      %v5211 = vunpack.c.h.b16 %v5025
      %v5212 = vunpack.c.l.b16 %v5026
      %v5213 = vunpack.c.l.b16 %v5027
      %v5214 = vunpack.c.h.b16 %v5027
      %v5215 = vunpack.c.l.b16 %v5028
      %v5216 = vunpack.c.l.b16 %v5029
      %v5217 = vunpack.c.h.b16 %v5029
      %v5218 = vunpack.c.l.b16 %v5030
      %v5219 = vunpack.c.l.b16 %v5031
      %v5220 = vunpack.c.h.b16 %v5031
      %v5221 = vunpack.c.l.b16 %v5032
      %v5222 = vunpack.c.l.b16 %v5033
      %v5223 = vunpack.c.h.b16 %v5033
      %v5224 = vunpack.c.l.b16 %v5034
      %v5225 = vunpack.c.l.b16 %v5035
      %v5226 = vunpack.c.h.b16 %v5035
      %v5227 = vunpack.c.l.b16 %v5036
      %v5228 = vunpack.c.l.b16 %v5037
      %v5229 = vunpack.c.h.b16 %v5037
      %v5230 = vunpack.c.l.b16 %v5038
      %v5231 = vunpack.c.l.b16 %v5039
      %v5232 = vunpack.c.h.b16 %v5039
      %v5233 = vunpack.c.l.b16 %v5040
      %v5234 = vunpack.c.l.b16 %v5041
      %v5235 = vunpack.c.h.b16 %v5041
      %v5236 = vunpack.c.l.b16 %v5042
      %v5237 = vunpack.c.l.b16 %v5043
      %v5238 = vunpack.c.h.b16 %v5043
      %v5239 = vunpack.c.l.b16 %v5044
      %v5240 = vunpack.c.l.b16 %v5045
      %v5241 = vunpack.c.h.b16 %v5045
      %v5242 = vunpack.c.l.b16 %v5046
      %v5243 = vunpack.c.l.b16 %v5047
      %v5244 = vunpack.c.h.b16 %v5047
      %v5245 = vunpack.c.l.b16 %v5048
      %v5246 = vunpack.c.l.b16 %v5049
      %v5247 = vunpack.c.h.b16 %v5049
      %v5248 = vunpack.c.l.b16 %v5050
      %v5249 = vunpack.c.l.b16 %v5051
      %v5250 = vunpack.c.h.b16 %v5051
      %v5251 = vunpack.c.l.b16 %v5052
      %v5252 = vunpack.c.l.b16 %v5053
      %v5253 = vunpack.c.h.b16 %v5053
      %v5254 = vunpack.c.l.b16 %v5054
      %v5255 = vunpack.c.l.b16 %v5055
      %v5256 = vunpack.c.h.b16 %v5055
      %v5257 = vunpack.c.l.b16 %v5056
      %v5258 = vunpack.c.l.b16 %v5057
      %v5259 = vunpack.c.h.b16 %v5057
      %v5260 = vunpack.c.l.b16 %v5058
      %v5261 = vunpack.c.l.b16 %v5059
      %v5262 = vunpack.c.h.b16 %v5059
      %v5263 = vunpack.c.l.b16 %v5060
      %v5264 = vunpack.c.l.b16 %v5061
      %v5265 = vunpack.c.h.b16 %v5061
      %v5266 = vunpack.c.l.b16 %v5062
      %v5267 = vunpack.c.l.b16 %v5063
      %v5268 = vunpack.c.h.b16 %v5063
      %v5269 = vunpack.c.l.b16 %v5064
      %v5270 = vunpack.c.l.b16 %v5065
      %v5271 = vunpack.c.h.b16 %v5065
      %v5272 = vunpack.c.l.b16 %v5066
      %v5273 = vunpack.c.l.b16 %v5067
      %v5274 = vunpack.c.h.b16 %v5067
      %v5275 = vunpack.c.l.b16 %v5068
      %v5276 = vunpack.c.l.b16 %v5069
      %v5277 = vunpack.c.h.b16 %v5069
      %v5278 = vunpack.c.l.b16 %v5070
      %v5279 = vunpack.c.l.b16 %v5071
      %v5280 = vunpack.c.h.b16 %v5071
      %v5281 = vunpack.c.l.b16 %v5072
      %v5282 = vunpack.c.l.b16 %v5073
      %v5283 = vunpack.c.h.b16 %v5073
      %v5284 = vunpack.c.l.b16 %v5074
      %v5285 = vunpack.c.l.b16 %v5075
      %v5286 = vunpack.c.h.b16 %v5075
      %v5287 = vunpack.c.l.b16 %v5076
      %v5288 = vunpack.c.l.b16 %v5077
      %v5289 = vunpack.c.h.b16 %v5077
      %v5290 = vunpack.c.l.b16 %v5078
      %v5291 = vunpack.c.l.b16 %v5079
      %v5292 = vunpack.c.h.b16 %v5079
      %v5293 = vunpack.c.l.b16 %v5080
      %v5294 = vunpack.c.l.b16 %v5081
      %v5295 = vunpack.c.h.b16 %v5081
      %v5296 = vunpack.c.l.b16 %v5082
      %v5297 = vunpack.c.l.b16 %v5083
      %v5298 = vunpack.c.h.b16 %v5083
      %v5299 = vunpack.c.l.b16 %v5084
      %v5300 = vunpack.c.l.b16 %v5085
      %v5301 = vunpack.c.h.b16 %v5085
      %v5302 = vunpack.c.l.b16 %v5086
      %v5303 = vunpack.c.l.b16 %v5087
      %v5304 = vunpack.c.h.b16 %v5087
      %v5305 = vunpack.c.l.b16 %v5088
      %v5306 = vunpack.c.l.b16 %v5089
      %v5307 = vunpack.c.h.b16 %v5089
      %v5308 = vunpack.c.l.b16 %v5090
      %v5309 = vunpack.c.l.b16 %v5091
      %v5310 = vunpack.c.h.b16 %v5091
      %v5311 = vunpack.c.l.b16 %v5092
      %v5312 = vunpack.c.l.b16 %v5093
      %v5313 = vunpack.c.h.b16 %v5093
      %v5314 = vunpack.c.l.b16 %v5094
      %v5315 = vpack.c.b16 %v5210, %v5207
      %v5316 = vpack.c.b16 %v5211, %v5208
      %v5317 = vpack.c.b16 %v5212, %v5209
      %v5318 = vpack.c.b16 %v5216, %v5213
      %v5319 = vpack.c.b16 %v5217, %v5214
      %v5320 = vpack.c.b16 %v5218, %v5215
      %v5321 = vpack.c.b16 %v5222, %v5219
      %v5322 = vpack.c.b16 %v5223, %v5220
      %v5323 = vpack.c.b16 %v5224, %v5221
      %v5324 = vpack.c.b16 %v5228, %v5225
      %v5325 = vpack.c.b16 %v5229, %v5226
      %v5326 = vpack.c.b16 %v5230, %v5227
      %v5327 = vpack.c.b16 %v5234, %v5231
      %v5328 = vpack.c.b16 %v5235, %v5232
      %v5329 = vpack.c.b16 %v5236, %v5233
      %v5330 = vpack.c.b16 %v5240, %v5237
      %v5331 = vpack.c.b16 %v5241, %v5238
      %v5332 = vpack.c.b16 %v5242, %v5239
      %v5333 = vpack.c.b16 %v5246, %v5243
      %v5334 = vpack.c.b16 %v5247, %v5244
      %v5335 = vpack.c.b16 %v5248, %v5245
      %v5336 = vpack.c.b16 %v5252, %v5249
      %v5337 = vpack.c.b16 %v5253, %v5250
      %v5338 = vpack.c.b16 %v5254, %v5251
      %v5339 = vpack.c.b16 %v5258, %v5255
      %v5340 = vpack.c.b16 %v5259, %v5256
      %v5341 = vpack.c.b16 %v5260, %v5257
      %v5342 = vpack.c.b16 %v5264, %v5261
      %v5343 = vpack.c.b16 %v5265, %v5262
      %v5344 = vpack.c.b16 %v5266, %v5263
      %v5345 = vpack.c.b16 %v5270, %v5267
      %v5346 = vpack.c.b16 %v5271, %v5268
      %v5347 = vpack.c.b16 %v5272, %v5269
      %v5348 = vpack.c.b16 %v5276, %v5273
      %v5349 = vpack.c.b16 %v5277, %v5274
      %v5350 = vpack.c.b16 %v5278, %v5275
      %v5351 = vpack.c.b16 %v5282, %v5279
      %v5352 = vpack.c.b16 %v5283, %v5280
      %v5353 = vpack.c.b16 %v5284, %v5281
      %v5354 = vpack.c.b16 %v5288, %v5285
      %v5355 = vpack.c.b16 %v5289, %v5286
      %v5356 = vpack.c.b16 %v5290, %v5287
      %v5357 = vpack.c.b16 %v5294, %v5291
      %v5358 = vpack.c.b16 %v5295, %v5292
      %v5359 = vpack.c.b16 %v5296, %v5293
      %v5360 = vpack.c.b16 %v5300, %v5297
      %v5361 = vpack.c.b16 %v5301, %v5298
      %v5362 = vpack.c.b16 %v5302, %v5299
      %v5363 = vpack.c.b16 %v5306, %v5303
      %v5364 = vpack.c.b16 %v5307, %v5304
      %v5365 = vpack.c.b16 %v5308, %v5305
      %v5366 = vpack.c.b16 %v5312, %v5309
      %v5367 = vpack.c.b16 %v5313, %v5310
      %v5368 = vpack.c.b16 %v5314, %v5311
      %v5441 = vunpack.c.l.b16 %v5095
      %v5442 = vunpack.c.l.b16 %v5096
      %v5443 = vunpack.c.l.b16 %v5097
      %v5444 = vunpack.c.l.b16 %v5098
      %v5445 = vunpack.c.l.b16 %v5099
      %v5446 = vunpack.c.l.b16 %v5100
      %v5447 = vunpack.c.l.b16 %v5101
      %v5448 = vunpack.c.l.b16 %v5102
      %v5449 = vunpack.c.l.b16 %v5103
      %v5450 = vunpack.c.l.b16 %v5104
      %v5451 = vunpack.c.l.b16 %v5105
      %v5452 = vunpack.c.l.b16 %v5106
      %v5453 = vunpack.c.l.b16 %v5107
      %v5454 = vunpack.c.l.b16 %v5108
      %v5455 = vunpack.c.l.b16 %v5109
      %v5456 = vunpack.c.l.b16 %v5110
      %v5457 = vunpack.c.l.b16 %v5111
      %v5458 = vunpack.c.l.b16 %v5112
      %v5459 = vunpack.c.l.b16 %v5113
      %v5460 = vunpack.c.l.b16 %v5114
      %v5461 = vunpack.c.l.b16 %v5115
      %v5462 = vunpack.c.l.b16 %v5116
      %v5463 = vunpack.c.l.b16 %v5117
      %v5464 = vunpack.c.l.b16 %v5118
      %v5465 = vunpack.c.l.b16 %v5119
      %v5466 = vunpack.c.l.b16 %v5120
      %v5467 = vunpack.c.l.b16 %v5121
      %v5468 = vunpack.c.l.b16 %v5122
      %v5469 = vunpack.c.l.b16 %v5123
      %v5470 = vunpack.c.l.b16 %v5124
      %v5471 = vunpack.c.l.b16 %v5125
      %v5472 = vunpack.c.l.b16 %v5126
      %v5473 = vunpack.c.l.b16 %v5127
      %v5474 = vunpack.c.l.b16 %v5128
      %v5475 = vunpack.c.l.b16 %v5129
      %v5476 = vunpack.c.l.b16 %v5130
      %v5477 = vpack.c.b16 %v5442, %v5441
      %v5478 = vpack.c.b16 %v5444, %v5443
      %v5479 = vpack.c.b16 %v5446, %v5445
      %v5480 = vpack.c.b16 %v5448, %v5447
      %v5481 = vpack.c.b16 %v5450, %v5449
      %v5482 = vpack.c.b16 %v5452, %v5451
      %v5483 = vpack.c.b16 %v5454, %v5453
      %v5484 = vpack.c.b16 %v5456, %v5455
      %v5485 = vpack.c.b16 %v5458, %v5457
      %v5486 = vpack.c.b16 %v5460, %v5459
      %v5487 = vpack.c.b16 %v5462, %v5461
      %v5488 = vpack.c.b16 %v5464, %v5463
      %v5489 = vpack.c.b16 %v5466, %v5465
      %v5490 = vpack.c.b16 %v5468, %v5467
      %v5491 = vpack.c.b16 %v5470, %v5469
      %v5492 = vpack.c.b16 %v5472, %v5471
      %v5493 = vpack.c.b16 %v5474, %v5473
      %v5494 = vpack.c.b16 %v5476, %v5475
      %v5514 = vsel %vm3137, %v5317, 0
      %v5517 = vsel %vm3137, %v5320, 0
      %v5520 = vsel %vm3137, %v5323, 0
      %v5523 = vsel %vm3137, %v5326, 0
      %v5526 = vsel %vm3137, %v5329, 0
      %v5529 = vsel %vm3137, %v5332, 0
      %v5532 = vsel %vm3137, %v5335, 0
      %v5535 = vsel %vm3137, %v5338, 0
      %v5538 = vsel %vm3137, %v5341, 0
      %v5541 = vsel %vm3137, %v5344, 0
      %v5544 = vsel %vm3137, %v5347, 0
      %v5547 = vsel %vm3137, %v5350, 0
      %v5550 = vsel %vm3137, %v5353, 0
      %v5553 = vsel %vm3137, %v5356, 0
      %v5556 = vsel %vm3137, %v5359, 0
      %v5559 = vsel %vm3137, %v5362, 0
      %v5562 = vsel %vm3137, %v5365, 0
      %v5565 = vsel %vm3137, %v5368, 0
      %5567 = vmatpush.bf16.msra.mxu0 %v5484
      %5568 = vmatpush.bf16.msra.mxu0 %v5483
      %5569 = vmatpush.bf16.msra.mxu0 %v5482
      %5570 = vmatpush.bf16.msra.mxu0 %v5481
      %5571 = vmatpush.bf16.msra.mxu0 %v5480
      %5572 = vmatpush.bf16.msra.mxu0 %v5479
      %5573 = vmatpush.bf16.msra.mxu0 %v5478
      %5574 = vmatpush.bf16.msra.mxu0 %v5477
      %5575 = vmatmul.bf16.gmra.mxu0 %v5315
      %v5576 = vpop.f32.mrf.mxu0
      %v5577 = vadd.f32 %v5133, %v5576
      %v5578 = vpop.f32.mrf.mxu0
      %v5579 = vadd.f32 %v5133, %v5578
      %5580 = vmatmul.bf16.gmra.mxu0 %v5318
      %v5581 = vpop.f32.mrf.mxu0
      %v5582 = vadd.f32 %v5133, %v5581
      %v5583 = vpop.f32.mrf.mxu0
      %v5584 = vadd.f32 %v5133, %v5583
      %5585 = vmatmul.bf16.gmra.mxu0 %v5321
      %v5586 = vpop.f32.mrf.mxu0
      %v5587 = vadd.f32 %v5133, %v5586
      %v5588 = vpop.f32.mrf.mxu0
      %v5589 = vadd.f32 %v5133, %v5588
      %5590 = vmatmul.bf16.gmra.mxu0 %v5324
      %v5591 = vpop.f32.mrf.mxu0
      %v5592 = vadd.f32 %v5133, %v5591
      %v5593 = vpop.f32.mrf.mxu0
      %v5594 = vadd.f32 %v5133, %v5593
      %5595 = vmatmul.bf16.gmra.mxu0 %v5327
      %v5596 = vpop.f32.mrf.mxu0
      %v5597 = vadd.f32 %v5133, %v5596
      %v5598 = vpop.f32.mrf.mxu0
      %v5599 = vadd.f32 %v5133, %v5598
      %5600 = vmatmul.bf16.gmra.mxu0 %v5330
      %v5601 = vpop.f32.mrf.mxu0
      %v5602 = vadd.f32 %v5133, %v5601
      %v5603 = vpop.f32.mrf.mxu0
      %v5604 = vadd.f32 %v5133, %v5603
      %5605 = vmatmul.bf16.gmra.mxu0 %v5333
      %v5606 = vpop.f32.mrf.mxu0
      %v5607 = vadd.f32 %v5133, %v5606
      %v5608 = vpop.f32.mrf.mxu0
      %v5609 = vadd.f32 %v5133, %v5608
      %5610 = vmatmul.bf16.gmra.mxu0 %v5336
      %v5611 = vpop.f32.mrf.mxu0
      %v5612 = vadd.f32 %v5133, %v5611
      %v5613 = vpop.f32.mrf.mxu0
      %v5614 = vadd.f32 %v5133, %v5613
      %5615 = vmatmul.bf16.gmra.mxu0 %v5339
      %v5616 = vpop.f32.mrf.mxu0
      %v5617 = vadd.f32 %v5133, %v5616
      %v5618 = vpop.f32.mrf.mxu0
      %v5619 = vadd.f32 %v5133, %v5618
      %5620 = vmatmul.bf16.gmra.mxu0 %v5342
      %v5621 = vpop.f32.mrf.mxu0
      %v5622 = vadd.f32 %v5133, %v5621
      %v5623 = vpop.f32.mrf.mxu0
      %v5624 = vadd.f32 %v5133, %v5623
      %5625 = vmatmul.bf16.gmra.mxu0 %v5345
      %v5626 = vpop.f32.mrf.mxu0
      %v5627 = vadd.f32 %v5133, %v5626
      %v5628 = vpop.f32.mrf.mxu0
      %v5629 = vadd.f32 %v5133, %v5628
      %5630 = vmatmul.bf16.gmra.mxu0 %v5348
      %v5631 = vpop.f32.mrf.mxu0
      %v5632 = vadd.f32 %v5133, %v5631
      %v5633 = vpop.f32.mrf.mxu0
      %v5634 = vadd.f32 %v5133, %v5633
      %5635 = vmatmul.bf16.gmra.mxu0 %v5351
      %v5636 = vpop.f32.mrf.mxu0
      %v5637 = vadd.f32 %v5133, %v5636
      %v5638 = vpop.f32.mrf.mxu0
      %v5639 = vadd.f32 %v5133, %v5638
      %5640 = vmatmul.bf16.gmra.mxu0 %v5354
      %v5641 = vpop.f32.mrf.mxu0
      %v5642 = vadd.f32 %v5133, %v5641
      %v5643 = vpop.f32.mrf.mxu0
      %v5644 = vadd.f32 %v5133, %v5643
      %5645 = vmatmul.bf16.gmra.mxu0 %v5357
      %v5646 = vpop.f32.mrf.mxu0
      %v5647 = vadd.f32 %v5133, %v5646
      %v5648 = vpop.f32.mrf.mxu0
      %v5649 = vadd.f32 %v5133, %v5648
      %5650 = vmatmul.bf16.gmra.mxu0 %v5360
      %v5651 = vpop.f32.mrf.mxu0
      %v5652 = vadd.f32 %v5133, %v5651
      %v5653 = vpop.f32.mrf.mxu0
      %v5654 = vadd.f32 %v5133, %v5653
      %5655 = vmatmul.bf16.gmra.mxu0 %v5363
      %v5656 = vpop.f32.mrf.mxu0
      %v5657 = vadd.f32 %v5133, %v5656
      %v5658 = vpop.f32.mrf.mxu0
      %v5659 = vadd.f32 %v5133, %v5658
      %5660 = vmatmul.bf16.gmra.mxu0 %v5366
      %v5661 = vpop.f32.mrf.mxu0
      %v5662 = vadd.f32 %v5133, %v5661
      %v5663 = vpop.f32.mrf.mxu0
      %v5664 = vadd.f32 %v5133, %v5663
      %5665 = vdwg.mxu0
      %5666 = vmatpush.bf16.msra.mxu0 %v5492
      %5667 = vmatpush.bf16.msra.mxu0 %v5491
      %5668 = vmatpush.bf16.msra.mxu0 %v5490
      %5669 = vmatpush.bf16.msra.mxu0 %v5489
      %5670 = vmatpush.bf16.msra.mxu0 %v5488
      %5671 = vmatpush.bf16.msra.mxu0 %v5487
      %5672 = vmatpush.bf16.msra.mxu0 %v5486
      %5673 = vmatpush.bf16.msra.mxu0 %v5485
      %5674 = vmatmul.bf16.gmra.mxu0 %v5316
      %v5675 = vpop.f32.mrf.mxu0
      %v5676 = vadd.f32 %v5577, %v5675
      %v5677 = vpop.f32.mrf.mxu0
      %v5678 = vadd.f32 %v5579, %v5677
      %5679 = vmatmul.bf16.gmra.mxu0 %v5319
      %v5680 = vpop.f32.mrf.mxu0
      %v5681 = vadd.f32 %v5582, %v5680
      %v5682 = vpop.f32.mrf.mxu0
      %v5683 = vadd.f32 %v5584, %v5682
      %5684 = vmatmul.bf16.gmra.mxu0 %v5322
      %v5685 = vpop.f32.mrf.mxu0
      %v5686 = vadd.f32 %v5587, %v5685
      %v5687 = vpop.f32.mrf.mxu0
      %v5688 = vadd.f32 %v5589, %v5687
      %5689 = vmatmul.bf16.gmra.mxu0 %v5325
      %v5690 = vpop.f32.mrf.mxu0
      %v5691 = vadd.f32 %v5592, %v5690
      %v5692 = vpop.f32.mrf.mxu0
      %v5693 = vadd.f32 %v5594, %v5692
      %5694 = vmatmul.bf16.gmra.mxu0 %v5328
      %v5695 = vpop.f32.mrf.mxu0
      %v5696 = vadd.f32 %v5597, %v5695
      %v5697 = vpop.f32.mrf.mxu0
      %v5698 = vadd.f32 %v5599, %v5697
      %5699 = vmatmul.bf16.gmra.mxu0 %v5331
      %v5700 = vpop.f32.mrf.mxu0
      %v5701 = vadd.f32 %v5602, %v5700
      %v5702 = vpop.f32.mrf.mxu0
      %v5703 = vadd.f32 %v5604, %v5702
      %5704 = vmatmul.bf16.gmra.mxu0 %v5334
      %v5705 = vpop.f32.mrf.mxu0
      %v5706 = vadd.f32 %v5607, %v5705
      %v5707 = vpop.f32.mrf.mxu0
      %v5708 = vadd.f32 %v5609, %v5707
      %5709 = vmatmul.bf16.gmra.mxu0 %v5337
      %v5710 = vpop.f32.mrf.mxu0
      %v5711 = vadd.f32 %v5612, %v5710
      %v5712 = vpop.f32.mrf.mxu0
      %v5713 = vadd.f32 %v5614, %v5712
      %5714 = vmatmul.bf16.gmra.mxu0 %v5340
      %v5715 = vpop.f32.mrf.mxu0
      %v5716 = vadd.f32 %v5617, %v5715
      %v5717 = vpop.f32.mrf.mxu0
      %v5718 = vadd.f32 %v5619, %v5717
      %5719 = vmatmul.bf16.gmra.mxu0 %v5343
      %v5720 = vpop.f32.mrf.mxu0
      %v5721 = vadd.f32 %v5622, %v5720
      %v5722 = vpop.f32.mrf.mxu0
      %v5723 = vadd.f32 %v5624, %v5722
      %5724 = vmatmul.bf16.gmra.mxu0 %v5346
      %v5725 = vpop.f32.mrf.mxu0
      %v5726 = vadd.f32 %v5627, %v5725
      %v5727 = vpop.f32.mrf.mxu0
      %v5728 = vadd.f32 %v5629, %v5727
      %5729 = vmatmul.bf16.gmra.mxu0 %v5349
      %v5730 = vpop.f32.mrf.mxu0
      %v5731 = vadd.f32 %v5632, %v5730
      %v5732 = vpop.f32.mrf.mxu0
      %v5733 = vadd.f32 %v5634, %v5732
      %5734 = vmatmul.bf16.gmra.mxu0 %v5352
      %v5735 = vpop.f32.mrf.mxu0
      %v5736 = vadd.f32 %v5637, %v5735
      %v5737 = vpop.f32.mrf.mxu0
      %v5738 = vadd.f32 %v5639, %v5737
      %5739 = vmatmul.bf16.gmra.mxu0 %v5355
      %v5740 = vpop.f32.mrf.mxu0
      %v5741 = vadd.f32 %v5642, %v5740
      %v5742 = vpop.f32.mrf.mxu0
      %v5743 = vadd.f32 %v5644, %v5742
      %5744 = vmatmul.bf16.gmra.mxu0 %v5358
      %v5745 = vpop.f32.mrf.mxu0
      %v5746 = vadd.f32 %v5647, %v5745
      %v5747 = vpop.f32.mrf.mxu0
      %v5748 = vadd.f32 %v5649, %v5747
      %5749 = vmatmul.bf16.gmra.mxu0 %v5361
      %v5750 = vpop.f32.mrf.mxu0
      %v5751 = vadd.f32 %v5652, %v5750
      %v5752 = vpop.f32.mrf.mxu0
      %v5753 = vadd.f32 %v5654, %v5752
      %5754 = vmatmul.bf16.gmra.mxu0 %v5364
      %v5755 = vpop.f32.mrf.mxu0
      %v5756 = vadd.f32 %v5657, %v5755
      %v5757 = vpop.f32.mrf.mxu0
      %v5758 = vadd.f32 %v5659, %v5757
      %5759 = vmatmul.bf16.gmra.mxu0 %v5367
      %v5760 = vpop.f32.mrf.mxu0
      %v5761 = vadd.f32 %v5662, %v5760
      %v5762 = vpop.f32.mrf.mxu0
      %v5763 = vadd.f32 %v5664, %v5762
      %5764 = vdwg.mxu0
      %5765 = vmatpush.bf16.msra.mxu0 0
      %5766 = vmatpush.bf16.msra.mxu0 0
      %5767 = vmatpush.bf16.msra.mxu0 0
      %5768 = vmatpush.bf16.msra.mxu0 0
      %5769 = vmatpush.bf16.msra.mxu0 0
      %5770 = vmatpush.bf16.msra.mxu0 0
      %5771 = vmatpush.bf16.msra.mxu0 %v5494
      %5772 = vmatpush.bf16.msra.mxu0 %v5493
      %5773 = vmatmul.bf16.gmra.mxu0 %v5514
      %v5774 = vpop.f32.mrf.mxu0
      %v5775 = vadd.f32 %v5676, %v5774
      %v5776 = vpop.f32.mrf.mxu0
      %v5777 = vadd.f32 %v5678, %v5776
      %5778 = vmatmul.bf16.gmra.mxu0 %v5517
      %v5779 = vpop.f32.mrf.mxu0
      %v5780 = vadd.f32 %v5681, %v5779
      %v5781 = vpop.f32.mrf.mxu0
      %v5782 = vadd.f32 %v5683, %v5781
      %5783 = vmatmul.bf16.gmra.mxu0 %v5520
      %v5784 = vpop.f32.mrf.mxu0
      %v5785 = vadd.f32 %v5686, %v5784
      %v5786 = vpop.f32.mrf.mxu0
      %v5787 = vadd.f32 %v5688, %v5786
      %5788 = vmatmul.bf16.gmra.mxu0 %v5523
      %v5789 = vpop.f32.mrf.mxu0
      %v5790 = vadd.f32 %v5691, %v5789
      %v5791 = vpop.f32.mrf.mxu0
      %v5792 = vadd.f32 %v5693, %v5791
      %5793 = vmatmul.bf16.gmra.mxu0 %v5526
      %v5794 = vpop.f32.mrf.mxu0
      %v5795 = vadd.f32 %v5696, %v5794
      %v5796 = vpop.f32.mrf.mxu0
      %v5797 = vadd.f32 %v5698, %v5796
      %5798 = vmatmul.bf16.gmra.mxu0 %v5529
      %v5799 = vpop.f32.mrf.mxu0
      %v5800 = vadd.f32 %v5701, %v5799
      %v5801 = vpop.f32.mrf.mxu0
      %v5802 = vadd.f32 %v5703, %v5801
      %5803 = vmatmul.bf16.gmra.mxu0 %v5532
      %v5804 = vpop.f32.mrf.mxu0
      %v5805 = vadd.f32 %v5706, %v5804
      %v5806 = vpop.f32.mrf.mxu0
      %v5807 = vadd.f32 %v5708, %v5806
      %5808 = vmatmul.bf16.gmra.mxu0 %v5535
      %v5809 = vpop.f32.mrf.mxu0
      %v5810 = vadd.f32 %v5711, %v5809
      %v5811 = vpop.f32.mrf.mxu0
      %v5812 = vadd.f32 %v5713, %v5811
      %5813 = vmatmul.bf16.gmra.mxu0 %v5538
      %v5814 = vpop.f32.mrf.mxu0
      %v5815 = vadd.f32 %v5716, %v5814
      %v5816 = vpop.f32.mrf.mxu0
      %v5817 = vadd.f32 %v5718, %v5816
      %5818 = vmatmul.bf16.gmra.mxu0 %v5541
      %v5819 = vpop.f32.mrf.mxu0
      %v5820 = vadd.f32 %v5721, %v5819
      %v5821 = vpop.f32.mrf.mxu0
      %v5822 = vadd.f32 %v5723, %v5821
      %5823 = vmatmul.bf16.gmra.mxu0 %v5544
      %v5824 = vpop.f32.mrf.mxu0
      %v5825 = vadd.f32 %v5726, %v5824
      %v5826 = vpop.f32.mrf.mxu0
      %v5827 = vadd.f32 %v5728, %v5826
      %5828 = vmatmul.bf16.gmra.mxu0 %v5547
      %v5829 = vpop.f32.mrf.mxu0
      %v5830 = vadd.f32 %v5731, %v5829
      %v5831 = vpop.f32.mrf.mxu0
      %v5832 = vadd.f32 %v5733, %v5831
      %5833 = vmatmul.bf16.gmra.mxu0 %v5550
      %v5834 = vpop.f32.mrf.mxu0
      %v5835 = vadd.f32 %v5736, %v5834
      %v5836 = vpop.f32.mrf.mxu0
      %v5837 = vadd.f32 %v5738, %v5836
      %5838 = vmatmul.bf16.gmra.mxu0 %v5553
      %v5839 = vpop.f32.mrf.mxu0
      %v5840 = vadd.f32 %v5741, %v5839
      %v5841 = vpop.f32.mrf.mxu0
      %v5842 = vadd.f32 %v5743, %v5841
      %5843 = vmatmul.bf16.gmra.mxu0 %v5556
      %v5844 = vpop.f32.mrf.mxu0
      %v5845 = vadd.f32 %v5746, %v5844
      %v5846 = vpop.f32.mrf.mxu0
      %v5847 = vadd.f32 %v5748, %v5846
      %5848 = vmatmul.bf16.gmra.mxu0 %v5559
      %v5849 = vpop.f32.mrf.mxu0
      %v5850 = vadd.f32 %v5751, %v5849
      %v5851 = vpop.f32.mrf.mxu0
      %v5852 = vadd.f32 %v5753, %v5851
      %5853 = vmatmul.bf16.gmra.mxu0 %v5562
      %v5854 = vpop.f32.mrf.mxu0
      %v5855 = vadd.f32 %v5756, %v5854
      %v5856 = vpop.f32.mrf.mxu0
      %v5857 = vadd.f32 %v5758, %v5856
      %5858 = vmatmul.bf16.gmra.mxu0 %v5565
      %v5859 = vpop.f32.mrf.mxu0
      %v5860 = vadd.f32 %v5761, %v5859
      %v5861 = vpop.f32.mrf.mxu0
      %v5862 = vadd.f32 %v5763, %v5861
      %5863 = vdwg.mxu0
      %v5864 = vmax.f32 %v5775, 0.0
      %v5865 = vmax.f32 %v5777, 0.0
      %v5866 = vmax.f32 %v5780, 0.0
      %v5867 = vmax.f32 %v5782, 0.0
      %v5868 = vmax.f32 %v5785, 0.0
      %v5869 = vmax.f32 %v5787, 0.0
      %v5870 = vmax.f32 %v5790, 0.0
      %v5871 = vmax.f32 %v5792, 0.0
      %v5872 = vmax.f32 %v5795, 0.0
      %v5873 = vmax.f32 %v5797, 0.0
      %v5874 = vmax.f32 %v5800, 0.0
      %v5875 = vmax.f32 %v5802, 0.0
      %v5876 = vmax.f32 %v5805, 0.0
      %v5877 = vmax.f32 %v5807, 0.0
      %v5878 = vmax.f32 %v5810, 0.0
      %v5879 = vmax.f32 %v5812, 0.0
      %v5880 = vmax.f32 %v5815, 0.0
      %v5881 = vmax.f32 %v5817, 0.0
      %v5882 = vmax.f32 %v5820, 0.0
      %v5883 = vmax.f32 %v5822, 0.0
      %v5884 = vmax.f32 %v5825, 0.0
      %v5885 = vmax.f32 %v5827, 0.0
      %v5886 = vmax.f32 %v5830, 0.0
      %v5887 = vmax.f32 %v5832, 0.0
      %v5888 = vmax.f32 %v5835, 0.0
      %v5889 = vmax.f32 %v5837, 0.0
      %v5890 = vmax.f32 %v5840, 0.0
      %v5891 = vmax.f32 %v5842, 0.0
      %v5892 = vmax.f32 %v5845, 0.0
      %v5893 = vmax.f32 %v5847, 0.0
      %v5894 = vmax.f32 %v5850, 0.0
      %v5895 = vmax.f32 %v5852, 0.0
      %v5896 = vmax.f32 %v5855, 0.0
      %v5897 = vmax.f32 %v5857, 0.0
      %v5898 = vmax.f32 %v5860, 0.0
      %v5899 = vmax.f32 %v5862, 0.0
      %v5900 = vpack.c.bf16 %v5865, %v5864
      %v5901 = vpack.c.bf16 %v5867, %v5866
      %v5902 = vpack.c.bf16 %v5869, %v5868
      %v5903 = vpack.c.bf16 %v5871, %v5870
      %v5904 = vpack.c.bf16 %v5873, %v5872
      %v5905 = vpack.c.bf16 %v5875, %v5874
      %v5906 = vpack.c.bf16 %v5877, %v5876
      %v5907 = vpack.c.bf16 %v5879, %v5878
      %v5908 = vpack.c.bf16 %v5881, %v5880
      %v5909 = vpack.c.bf16 %v5883, %v5882
      %v5910 = vpack.c.bf16 %v5885, %v5884
      %v5911 = vpack.c.bf16 %v5887, %v5886
      %v5912 = vpack.c.bf16 %v5889, %v5888
      %v5913 = vpack.c.bf16 %v5891, %v5890
      %v5914 = vpack.c.bf16 %v5893, %v5892
      %v5915 = vpack.c.bf16 %v5895, %v5894
      %v5916 = vpack.c.bf16 %v5897, %v5896
      %v5917 = vpack.c.bf16 %v5899, %v5898
      %v5918 = vld [vmem:[%s6] sm:$0xf]
      %v5919 = vld [vmem:[%s6 + $0x4] sm:$0xf]
      %v5920 = vld [vmem:[%s6 + $0x8] sm:$0xf]
      %v5921 = vld [vmem:[%s6 + $0xc] sm:$0xf]
      %v5922 = vld [vmem:[%s7] sm:$0x1]
      %v5924 = vperm.slane %v5922, 0
      %v5930 = vunpack.c.l.b16 %v5918
      %v5931 = vunpack.c.l.b16 %v5919
      %v5932 = vunpack.c.l.b16 %v5920
      %v5933 = vunpack.c.l.b16 %v5921
      %v5934 = vpack.c.b16 %v5931, %v5930
      %v5935 = vpack.c.b16 %v5933, %v5932
      %v5939 = vsel %vm3137, %v5900, 0
      %v5942 = vsel %vm3137, %v5901, 0
      %v5945 = vsel %vm3137, %v5902, 0
      %v5948 = vsel %vm3137, %v5903, 0
      %v5951 = vsel %vm3137, %v5904, 0
      %v5954 = vsel %vm3137, %v5905, 0
      %v5957 = vsel %vm3137, %v5906, 0
      %v5960 = vsel %vm3137, %v5907, 0
      %v5963 = vsel %vm3137, %v5908, 0
      %v5966 = vsel %vm3137, %v5909, 0
      %v5969 = vsel %vm3137, %v5910, 0
      %v5972 = vsel %vm3137, %v5911, 0
      %v5975 = vsel %vm3137, %v5912, 0
      %v5978 = vsel %vm3137, %v5913, 0
      %v5981 = vsel %vm3137, %v5914, 0
      %v5984 = vsel %vm3137, %v5915, 0
      %v5987 = vsel %vm3137, %v5916, 0
      %v5990 = vsel %vm3137, %v5917, 0
      %5992 = vmatpush.bf16.msra.mxu0 0
      %5993 = vmatpush.bf16.msra.mxu0 0
      %5994 = vmatpush.bf16.msra.mxu0 0
      %5995 = vmatpush.bf16.msra.mxu0 0
      %5996 = vmatpush.bf16.msra.mxu0 0
      %5997 = vmatpush.bf16.msra.mxu0 0
      %5998 = vmatpush.bf16.msra.mxu0 %v5935
      %5999 = vmatpush.bf16.msra.mxu0 %v5934
      %6000 = vmatmul.bf16.gmra.mxu0 %v5939
      %v6001 = vpop.f32.mrf.mxu0
      %v6002 = vadd.f32 %v5924, %v6001
      %v6003 = vpop.f32.mrf.mxu0
      %v6004 = vadd.f32 %v5924, %v6003
      %6005 = vmatmul.bf16.gmra.mxu0 %v5942
      %v6006 = vpop.f32.mrf.mxu0
      %v6007 = vadd.f32 %v5924, %v6006
      %v6008 = vpop.f32.mrf.mxu0
      %v6009 = vadd.f32 %v5924, %v6008
      %6010 = vmatmul.bf16.gmra.mxu0 %v5945
      %v6011 = vpop.f32.mrf.mxu0
      %v6012 = vadd.f32 %v5924, %v6011
      %v6013 = vpop.f32.mrf.mxu0
      %v6014 = vadd.f32 %v5924, %v6013
      %6015 = vmatmul.bf16.gmra.mxu0 %v5948
      %v6016 = vpop.f32.mrf.mxu0
      %v6017 = vadd.f32 %v5924, %v6016
      %v6018 = vpop.f32.mrf.mxu0
      %v6019 = vadd.f32 %v5924, %v6018
      %6020 = vmatmul.bf16.gmra.mxu0 %v5951
      %v6021 = vpop.f32.mrf.mxu0
      %v6022 = vadd.f32 %v5924, %v6021
      %v6023 = vpop.f32.mrf.mxu0
      %v6024 = vadd.f32 %v5924, %v6023
      %6025 = vmatmul.bf16.gmra.mxu0 %v5954
      %v6026 = vpop.f32.mrf.mxu0
      %v6027 = vadd.f32 %v5924, %v6026
      %v6028 = vpop.f32.mrf.mxu0
      %v6029 = vadd.f32 %v5924, %v6028
      %6030 = vmatmul.bf16.gmra.mxu0 %v5957
      %v6031 = vpop.f32.mrf.mxu0
      %v6032 = vadd.f32 %v5924, %v6031
      %v6033 = vpop.f32.mrf.mxu0
      %v6034 = vadd.f32 %v5924, %v6033
      %6035 = vmatmul.bf16.gmra.mxu0 %v5960
      %v6036 = vpop.f32.mrf.mxu0
      %v6037 = vadd.f32 %v5924, %v6036
      %v6038 = vpop.f32.mrf.mxu0
      %v6039 = vadd.f32 %v5924, %v6038
      %6040 = vmatmul.bf16.gmra.mxu0 %v5963
      %v6041 = vpop.f32.mrf.mxu0
      %v6042 = vadd.f32 %v5924, %v6041
      %v6043 = vpop.f32.mrf.mxu0
      %v6044 = vadd.f32 %v5924, %v6043
      %6045 = vmatmul.bf16.gmra.mxu0 %v5966
      %v6046 = vpop.f32.mrf.mxu0
      %v6047 = vadd.f32 %v5924, %v6046
      %v6048 = vpop.f32.mrf.mxu0
      %v6049 = vadd.f32 %v5924, %v6048
      %6050 = vmatmul.bf16.gmra.mxu0 %v5969
      %v6051 = vpop.f32.mrf.mxu0
      %v6052 = vadd.f32 %v5924, %v6051
      %v6053 = vpop.f32.mrf.mxu0
      %v6054 = vadd.f32 %v5924, %v6053
      %6055 = vmatmul.bf16.gmra.mxu0 %v5972
      %v6056 = vpop.f32.mrf.mxu0
      %v6057 = vadd.f32 %v5924, %v6056
      %v6058 = vpop.f32.mrf.mxu0
      %v6059 = vadd.f32 %v5924, %v6058
      %6060 = vmatmul.bf16.gmra.mxu0 %v5975
      %v6061 = vpop.f32.mrf.mxu0
      %v6062 = vadd.f32 %v5924, %v6061
      %v6063 = vpop.f32.mrf.mxu0
      %v6064 = vadd.f32 %v5924, %v6063
      %6065 = vmatmul.bf16.gmra.mxu0 %v5978
      %v6066 = vpop.f32.mrf.mxu0
      %v6067 = vadd.f32 %v5924, %v6066
      %v6068 = vpop.f32.mrf.mxu0
      %v6069 = vadd.f32 %v5924, %v6068
      %6070 = vmatmul.bf16.gmra.mxu0 %v5981
      %v6071 = vpop.f32.mrf.mxu0
      %v6072 = vadd.f32 %v5924, %v6071
      %v6073 = vpop.f32.mrf.mxu0
      %v6074 = vadd.f32 %v5924, %v6073
      %6075 = vmatmul.bf16.gmra.mxu0 %v5984
      %v6076 = vpop.f32.mrf.mxu0
      %v6077 = vadd.f32 %v5924, %v6076
      %v6078 = vpop.f32.mrf.mxu0
      %v6079 = vadd.f32 %v5924, %v6078
      %6080 = vmatmul.bf16.gmra.mxu0 %v5987
      %v6081 = vpop.f32.mrf.mxu0
      %v6082 = vadd.f32 %v5924, %v6081
      %v6083 = vpop.f32.mrf.mxu0
      %v6084 = vadd.f32 %v5924, %v6083
      %6085 = vmatmul.bf16.gmra.mxu0 %v5990
      %v6086 = vpop.f32.mrf.mxu0
      %v6087 = vadd.f32 %v5924, %v6086
      %v6088 = vpop.f32.mrf.mxu0
      %v6089 = vadd.f32 %v5924, %v6088
      %6090 = vdwg.mxu0
      %v6091 = vld [vmem:[%s8] sm:$0xff]
      %v6092 = vld [vmem:[%s8 + $0x8] sm:$0xff]
      %v6093 = vld [vmem:[%s8 + $0x10] sm:$0xff]
      %v6094 = vld [vmem:[%s8 + $0x18] sm:$0xff]
      %v6095 = vld [vmem:[%s8 + $0x20] sm:$0xff]
      %v6096 = vld [vmem:[%s8 + $0x28] sm:$0xff]
      %v6097 = vld [vmem:[%s8 + $0x30] sm:$0xff]
      %v6098 = vld [vmem:[%s8 + $0x38] sm:$0xff]
      %v6099 = vld [vmem:[%s8 + $0x40] sm:$0xff]
      %v6100 = vld [vmem:[%s8 + $0x48] sm:$0xff]
      %v6101 = vld [vmem:[%s8 + $0x50] sm:$0xff]
      %v6102 = vld [vmem:[%s8 + $0x58] sm:$0xff]
      %v6103 = vld [vmem:[%s8 + $0x60] sm:$0xff]
      %v6104 = vld [vmem:[%s8 + $0x68] sm:$0xff]
      %v6105 = vld [vmem:[%s8 + $0x70] sm:$0xff]
      %v6106 = vld [vmem:[%s8 + $0x78] sm:$0xff]
      %v6107 = vld [vmem:[%s8 + $0x80] sm:$0xff]
      %v6108 = vld [vmem:[%s8 + $0x88] sm:$0xff]
      %v6109 = vld [vmem:[%s8 + $0x90] sm:$0xff]
      %v6110 = vld [vmem:[%s8 + $0x98] sm:$0xff]
      %v6111 = vld [vmem:[%s8 + $0xa0] sm:$0xff]
      %v6112 = vld [vmem:[%s8 + $0xa8] sm:$0xff]
      %v6113 = vld [vmem:[%s8 + $0xb0] sm:$0xff]
      %v6114 = vld [vmem:[%s8 + $0xb8] sm:$0xff]
      %v6115 = vld [vmem:[%s8 + $0xc0] sm:$0xff]
      %v6116 = vld [vmem:[%s8 + $0xc8] sm:$0xff]
      %v6117 = vld [vmem:[%s8 + $0xd0] sm:$0xff]
      %v6118 = vld [vmem:[%s8 + $0xd8] sm:$0xff]
      %v6119 = vld [vmem:[%s8 + $0xe0] sm:$0xff]
      %v6120 = vld [vmem:[%s8 + $0xe8] sm:$0xff]
      %v6121 = vld [vmem:[%s8 + $0xf0] sm:$0xff]
      %v6122 = vld [vmem:[%s8 + $0xf8] sm:$0xff]
      %v6123 = vld [vmem:[%s8 + $0x100] sm:$0xff]
      %v6124 = vld [vmem:[%s8 + $0x108] sm:$0xff]
      %v6125 = vld [vmem:[%s8 + $0x110] sm:$0xff]
      %v6126 = vld [vmem:[%s8 + $0x118] sm:$0xff]
      %6163 = vrot.lane.b32.xlu0 %v6091, 32
      %v6164 = vpop.permute.xlu0 %6163
      %6165 = vrot.lane.b32.xlu0 %v6092, 32
      %v6166 = vpop.permute.xlu0 %6165
      %6167 = vrot.lane.b32.xlu0 %v6093, 32
      %v6168 = vpop.permute.xlu0 %6167
      %6169 = vrot.lane.b32.xlu0 %v6094, 32
      %v6170 = vpop.permute.xlu0 %6169
      %6171 = vrot.lane.b32.xlu0 %v6095, 32
      %v6172 = vpop.permute.xlu0 %6171
      %6173 = vrot.lane.b32.xlu0 %v6096, 32
      %v6174 = vpop.permute.xlu0 %6173
      %6175 = vrot.lane.b32.xlu0 %v6097, 32
      %v6176 = vpop.permute.xlu0 %6175
      %6177 = vrot.lane.b32.xlu0 %v6098, 32
      %v6178 = vpop.permute.xlu0 %6177
      %6179 = vrot.lane.b32.xlu0 %v6099, 32
      %v6180 = vpop.permute.xlu0 %6179
      %6181 = vrot.lane.b32.xlu0 %v6100, 32
      %v6182 = vpop.permute.xlu0 %6181
      %6183 = vrot.lane.b32.xlu0 %v6101, 32
      %v6184 = vpop.permute.xlu0 %6183
      %6185 = vrot.lane.b32.xlu0 %v6102, 32
      %v6186 = vpop.permute.xlu0 %6185
      %6187 = vrot.lane.b32.xlu0 %v6103, 32
      %v6188 = vpop.permute.xlu0 %6187
      %6189 = vrot.lane.b32.xlu0 %v6104, 32
      %v6190 = vpop.permute.xlu0 %6189
      %6191 = vrot.lane.b32.xlu0 %v6105, 32
      %v6192 = vpop.permute.xlu0 %6191
      %6193 = vrot.lane.b32.xlu0 %v6106, 32
      %v6194 = vpop.permute.xlu0 %6193
      %6195 = vrot.lane.b32.xlu0 %v6107, 32
      %v6196 = vpop.permute.xlu0 %6195
      %6197 = vrot.lane.b32.xlu0 %v6108, 32
      %v6198 = vpop.permute.xlu0 %6197
      %6199 = vrot.lane.b32.xlu0 %v6109, 32
      %v6200 = vpop.permute.xlu0 %6199
      %6201 = vrot.lane.b32.xlu0 %v6110, 32
      %v6202 = vpop.permute.xlu0 %6201
      %6203 = vrot.lane.b32.xlu0 %v6111, 32
      %v6204 = vpop.permute.xlu0 %6203
      %6205 = vrot.lane.b32.xlu0 %v6112, 32
      %v6206 = vpop.permute.xlu0 %6205
      %6207 = vrot.lane.b32.xlu0 %v6113, 32
      %v6208 = vpop.permute.xlu0 %6207
      %6209 = vrot.lane.b32.xlu0 %v6114, 32
      %v6210 = vpop.permute.xlu0 %6209
      %6211 = vrot.lane.b32.xlu0 %v6115, 32
      %v6212 = vpop.permute.xlu0 %6211
      %6213 = vrot.lane.b32.xlu0 %v6116, 32
      %v6214 = vpop.permute.xlu0 %6213
      %6215 = vrot.lane.b32.xlu0 %v6117, 32
      %v6216 = vpop.permute.xlu0 %6215
      %6217 = vrot.lane.b32.xlu0 %v6118, 32
      %v6218 = vpop.permute.xlu0 %6217
      %6219 = vrot.lane.b32.xlu0 %v6119, 32
      %v6220 = vpop.permute.xlu0 %6219
      %6221 = vrot.lane.b32.xlu0 %v6120, 32
      %v6222 = vpop.permute.xlu0 %6221
      %6223 = vrot.lane.b32.xlu0 %v6121, 32
      %v6224 = vpop.permute.xlu0 %6223
      %6225 = vrot.lane.b32.xlu0 %v6122, 32
      %v6226 = vpop.permute.xlu0 %6225
      %6227 = vrot.lane.b32.xlu0 %v6123, 32
      %v6228 = vpop.permute.xlu0 %6227
      %6229 = vrot.lane.b32.xlu0 %v6124, 32
      %v6230 = vpop.permute.xlu0 %6229
      %6231 = vrot.lane.b32.xlu0 %v6125, 32
      %v6232 = vpop.permute.xlu0 %6231
      %6233 = vrot.lane.b32.xlu0 %v6126, 32
      %v6234 = vpop.permute.xlu0 %6233
      %v6271 = vsub.f32 %v6091, %v6164
      %v6272 = vsub.f32 %v6092, %v6166
      %v6273 = vsub.f32 %v6093, %v6168
      %v6274 = vsub.f32 %v6094, %v6170
      %v6275 = vsub.f32 %v6095, %v6172
      %v6276 = vsub.f32 %v6096, %v6174
      %v6277 = vsub.f32 %v6097, %v6176
      %v6278 = vsub.f32 %v6098, %v6178
      %v6279 = vsub.f32 %v6099, %v6180
      %v6280 = vsub.f32 %v6100, %v6182
      %v6281 = vsub.f32 %v6101, %v6184
      %v6282 = vsub.f32 %v6102, %v6186
      %v6283 = vsub.f32 %v6103, %v6188
      %v6284 = vsub.f32 %v6104, %v6190
      %v6285 = vsub.f32 %v6105, %v6192
      %v6286 = vsub.f32 %v6106, %v6194
      %v6287 = vsub.f32 %v6107, %v6196
      %v6288 = vsub.f32 %v6108, %v6198
      %v6289 = vsub.f32 %v6109, %v6200
      %v6290 = vsub.f32 %v6110, %v6202
      %v6291 = vsub.f32 %v6111, %v6204
      %v6292 = vsub.f32 %v6112, %v6206
      %v6293 = vsub.f32 %v6113, %v6208
      %v6294 = vsub.f32 %v6114, %v6210
      %v6295 = vsub.f32 %v6115, %v6212
      %v6296 = vsub.f32 %v6116, %v6214
      %v6297 = vsub.f32 %v6117, %v6216
      %v6298 = vsub.f32 %v6118, %v6218
      %v6299 = vsub.f32 %v6119, %v6220
      %v6300 = vsub.f32 %v6120, %v6222
      %v6301 = vsub.f32 %v6121, %v6224
      %v6302 = vsub.f32 %v6122, %v6226
      %v6303 = vsub.f32 %v6123, %v6228
      %v6304 = vsub.f32 %v6124, %v6230
      %v6305 = vsub.f32 %v6125, %v6232
      %v6306 = vsub.f32 %v6126, %v6234
      %v6307 = vmul.f32 %v6271, 0.5
      %v6308 = vmul.f32 %v6272, 0.5
      %v6309 = vmul.f32 %v6273, 0.5
      %v6310 = vmul.f32 %v6274, 0.5
      %v6311 = vmul.f32 %v6275, 0.5
      %v6312 = vmul.f32 %v6276, 0.5
      %v6313 = vmul.f32 %v6277, 0.5
      %v6314 = vmul.f32 %v6278, 0.5
      %v6315 = vmul.f32 %v6279, 0.5
      %v6316 = vmul.f32 %v6280, 0.5
      %v6317 = vmul.f32 %v6281, 0.5
      %v6318 = vmul.f32 %v6282, 0.5
      %v6319 = vmul.f32 %v6283, 0.5
      %v6320 = vmul.f32 %v6284, 0.5
      %v6321 = vmul.f32 %v6285, 0.5
      %v6322 = vmul.f32 %v6286, 0.5
      %v6323 = vmul.f32 %v6287, 0.5
      %v6324 = vmul.f32 %v6288, 0.5
      %v6325 = vmul.f32 %v6289, 0.5
      %v6326 = vmul.f32 %v6290, 0.5
      %v6327 = vmul.f32 %v6291, 0.5
      %v6328 = vmul.f32 %v6292, 0.5
      %v6329 = vmul.f32 %v6293, 0.5
      %v6330 = vmul.f32 %v6294, 0.5
      %v6331 = vmul.f32 %v6295, 0.5
      %v6332 = vmul.f32 %v6296, 0.5
      %v6333 = vmul.f32 %v6297, 0.5
      %v6334 = vmul.f32 %v6298, 0.5
      %v6335 = vmul.f32 %v6299, 0.5
      %v6336 = vmul.f32 %v6300, 0.5
      %v6337 = vmul.f32 %v6301, 0.5
      %v6338 = vmul.f32 %v6302, 0.5
      %v6339 = vmul.f32 %v6303, 0.5
      %v6340 = vmul.f32 %v6304, 0.5
      %v6341 = vmul.f32 %v6305, 0.5
      %v6342 = vmul.f32 %v6306, 0.5
      %6379 = vrot.lane.b32.xlu0 %v6307, 96
      %v6380 = vpop.permute.xlu0 %6379
      %6381 = vrot.lane.b32.xlu0 %v6308, 96
      %v6382 = vpop.permute.xlu0 %6381
      %6383 = vrot.lane.b32.xlu0 %v6309, 96
      %v6384 = vpop.permute.xlu0 %6383
      %6385 = vrot.lane.b32.xlu0 %v6310, 96
      %v6386 = vpop.permute.xlu0 %6385
      %6387 = vrot.lane.b32.xlu0 %v6311, 96
      %v6388 = vpop.permute.xlu0 %6387
      %6389 = vrot.lane.b32.xlu0 %v6312, 96
      %v6390 = vpop.permute.xlu0 %6389
      %6391 = vrot.lane.b32.xlu0 %v6313, 96
      %v6392 = vpop.permute.xlu0 %6391
      %6393 = vrot.lane.b32.xlu0 %v6314, 96
      %v6394 = vpop.permute.xlu0 %6393
      %6395 = vrot.lane.b32.xlu0 %v6315, 96
      %v6396 = vpop.permute.xlu0 %6395
      %6397 = vrot.lane.b32.xlu0 %v6316, 96
      %v6398 = vpop.permute.xlu0 %6397
      %6399 = vrot.lane.b32.xlu0 %v6317, 96
      %v6400 = vpop.permute.xlu0 %6399
      %6401 = vrot.lane.b32.xlu0 %v6318, 96
      %v6402 = vpop.permute.xlu0 %6401
      %6403 = vrot.lane.b32.xlu0 %v6319, 96
      %v6404 = vpop.permute.xlu0 %6403
      %6405 = vrot.lane.b32.xlu0 %v6320, 96
      %v6406 = vpop.permute.xlu0 %6405
      %6407 = vrot.lane.b32.xlu0 %v6321, 96
      %v6408 = vpop.permute.xlu0 %6407
      %6409 = vrot.lane.b32.xlu0 %v6322, 96
      %v6410 = vpop.permute.xlu0 %6409
      %6411 = vrot.lane.b32.xlu0 %v6323, 96
      %v6412 = vpop.permute.xlu0 %6411
      %6413 = vrot.lane.b32.xlu0 %v6324, 96
      %v6414 = vpop.permute.xlu0 %6413
      %6415 = vrot.lane.b32.xlu0 %v6325, 96
      %v6416 = vpop.permute.xlu0 %6415
      %6417 = vrot.lane.b32.xlu0 %v6326, 96
      %v6418 = vpop.permute.xlu0 %6417
      %6419 = vrot.lane.b32.xlu0 %v6327, 96
      %v6420 = vpop.permute.xlu0 %6419
      %6421 = vrot.lane.b32.xlu0 %v6328, 96
      %v6422 = vpop.permute.xlu0 %6421
      %6423 = vrot.lane.b32.xlu0 %v6329, 96
      %v6424 = vpop.permute.xlu0 %6423
      %6425 = vrot.lane.b32.xlu0 %v6330, 96
      %v6426 = vpop.permute.xlu0 %6425
      %6427 = vrot.lane.b32.xlu0 %v6331, 96
      %v6428 = vpop.permute.xlu0 %6427
      %6429 = vrot.lane.b32.xlu0 %v6332, 96
      %v6430 = vpop.permute.xlu0 %6429
      %6431 = vrot.lane.b32.xlu0 %v6333, 96
      %v6432 = vpop.permute.xlu0 %6431
      %6433 = vrot.lane.b32.xlu0 %v6334, 96
      %v6434 = vpop.permute.xlu0 %6433
      %6435 = vrot.lane.b32.xlu0 %v6335, 96
      %v6436 = vpop.permute.xlu0 %6435
      %6437 = vrot.lane.b32.xlu0 %v6336, 96
      %v6438 = vpop.permute.xlu0 %6437
      %6439 = vrot.lane.b32.xlu0 %v6337, 96
      %v6440 = vpop.permute.xlu0 %6439
      %6441 = vrot.lane.b32.xlu0 %v6338, 96
      %v6442 = vpop.permute.xlu0 %6441
      %6443 = vrot.lane.b32.xlu0 %v6339, 96
      %v6444 = vpop.permute.xlu0 %6443
      %6445 = vrot.lane.b32.xlu0 %v6340, 96
      %v6446 = vpop.permute.xlu0 %6445
      %6447 = vrot.lane.b32.xlu0 %v6341, 96
      %v6448 = vpop.permute.xlu0 %6447
      %6449 = vrot.lane.b32.xlu0 %v6342, 96
      %v6450 = vpop.permute.xlu0 %6449
      %v6487 = vadd.f32 %v6091, %v6380
      %v6488 = vadd.f32 %v6092, %v6382
      %v6489 = vadd.f32 %v6093, %v6384
      %v6490 = vadd.f32 %v6094, %v6386
      %v6491 = vadd.f32 %v6095, %v6388
      %v6492 = vadd.f32 %v6096, %v6390
      %v6493 = vadd.f32 %v6097, %v6392
      %v6494 = vadd.f32 %v6098, %v6394
      %v6495 = vadd.f32 %v6099, %v6396
      %v6496 = vadd.f32 %v6100, %v6398
      %v6497 = vadd.f32 %v6101, %v6400
      %v6498 = vadd.f32 %v6102, %v6402
      %v6499 = vadd.f32 %v6103, %v6404
      %v6500 = vadd.f32 %v6104, %v6406
      %v6501 = vadd.f32 %v6105, %v6408
      %v6502 = vadd.f32 %v6106, %v6410
      %v6503 = vadd.f32 %v6107, %v6412
      %v6504 = vadd.f32 %v6108, %v6414
      %v6505 = vadd.f32 %v6109, %v6416
      %v6506 = vadd.f32 %v6110, %v6418
      %v6507 = vadd.f32 %v6111, %v6420
      %v6508 = vadd.f32 %v6112, %v6422
      %v6509 = vadd.f32 %v6113, %v6424
      %v6510 = vadd.f32 %v6114, %v6426
      %v6511 = vadd.f32 %v6115, %v6428
      %v6512 = vadd.f32 %v6116, %v6430
      %v6513 = vadd.f32 %v6117, %v6432
      %v6514 = vadd.f32 %v6118, %v6434
      %v6515 = vadd.f32 %v6119, %v6436
      %v6516 = vadd.f32 %v6120, %v6438
      %v6517 = vadd.f32 %v6121, %v6440
      %v6518 = vadd.f32 %v6122, %v6442
      %v6519 = vadd.f32 %v6123, %v6444
      %v6520 = vadd.f32 %v6124, %v6446
      %v6521 = vadd.f32 %v6125, %v6448
      %v6522 = vadd.f32 %v6126, %v6450
      %v6523 = vmin.f32 %v6002, 4.1351666
      %v6524 = vmin.f32 %v6004, 4.1351666
      %v6525 = vmin.f32 %v6007, 4.1351666
      %v6526 = vmin.f32 %v6009, 4.1351666
      %v6527 = vmin.f32 %v6012, 4.1351666
      %v6528 = vmin.f32 %v6014, 4.1351666
      %v6529 = vmin.f32 %v6017, 4.1351666
      %v6530 = vmin.f32 %v6019, 4.1351666
      %v6531 = vmin.f32 %v6022, 4.1351666
      %v6532 = vmin.f32 %v6024, 4.1351666
      %v6533 = vmin.f32 %v6027, 4.1351666
      %v6534 = vmin.f32 %v6029, 4.1351666
      %v6535 = vmin.f32 %v6032, 4.1351666
      %v6536 = vmin.f32 %v6034, 4.1351666
      %v6537 = vmin.f32 %v6037, 4.1351666
      %v6538 = vmin.f32 %v6039, 4.1351666
      %v6539 = vmin.f32 %v6042, 4.1351666
      %v6540 = vmin.f32 %v6044, 4.1351666
      %v6541 = vmin.f32 %v6047, 4.1351666
      %v6542 = vmin.f32 %v6049, 4.1351666
      %v6543 = vmin.f32 %v6052, 4.1351666
      %v6544 = vmin.f32 %v6054, 4.1351666
      %v6545 = vmin.f32 %v6057, 4.1351666
      %v6546 = vmin.f32 %v6059, 4.1351666
      %v6547 = vmin.f32 %v6062, 4.1351666
      %v6548 = vmin.f32 %v6064, 4.1351666
      %v6549 = vmin.f32 %v6067, 4.1351666
      %v6550 = vmin.f32 %v6069, 4.1351666
      %v6551 = vmin.f32 %v6072, 4.1351666
      %v6552 = vmin.f32 %v6074, 4.1351666
      %v6553 = vmin.f32 %v6077, 4.1351666
      %v6554 = vmin.f32 %v6079, 4.1351666
      %v6555 = vmin.f32 %v6082, 4.1351666
      %v6556 = vmin.f32 %v6084, 4.1351666
      %v6557 = vmin.f32 %v6087, 4.1351666
      %v6558 = vmin.f32 %v6089, 4.1351666
      %6595 = vrot.lane.b32.xlu0 %v6271, 112
      %v6596 = vpop.permute.xlu0 %6595
      %6597 = vrot.lane.b32.xlu0 %v6272, 112
      %v6598 = vpop.permute.xlu0 %6597
      %6599 = vrot.lane.b32.xlu0 %v6273, 112
      %v6600 = vpop.permute.xlu0 %6599
      %6601 = vrot.lane.b32.xlu0 %v6274, 112
      %v6602 = vpop.permute.xlu0 %6601
      %6603 = vrot.lane.b32.xlu0 %v6275, 112
      %v6604 = vpop.permute.xlu0 %6603
      %6605 = vrot.lane.b32.xlu0 %v6276, 112
      %v6606 = vpop.permute.xlu0 %6605
      %6607 = vrot.lane.b32.xlu0 %v6277, 112
      %v6608 = vpop.permute.xlu0 %6607
      %6609 = vrot.lane.b32.xlu0 %v6278, 112
      %v6610 = vpop.permute.xlu0 %6609
      %6611 = vrot.lane.b32.xlu0 %v6279, 112
      %v6612 = vpop.permute.xlu0 %6611
      %6613 = vrot.lane.b32.xlu0 %v6280, 112
      %v6614 = vpop.permute.xlu0 %6613
      %6615 = vrot.lane.b32.xlu0 %v6281, 112
      %v6616 = vpop.permute.xlu0 %6615
      %6617 = vrot.lane.b32.xlu0 %v6282, 112
      %v6618 = vpop.permute.xlu0 %6617
      %6619 = vrot.lane.b32.xlu0 %v6283, 112
      %v6620 = vpop.permute.xlu0 %6619
      %6621 = vrot.lane.b32.xlu0 %v6284, 112
      %v6622 = vpop.permute.xlu0 %6621
      %6623 = vrot.lane.b32.xlu0 %v6285, 112
      %v6624 = vpop.permute.xlu0 %6623
      %6625 = vrot.lane.b32.xlu0 %v6286, 112
      %v6626 = vpop.permute.xlu0 %6625
      %6627 = vrot.lane.b32.xlu0 %v6287, 112
      %v6628 = vpop.permute.xlu0 %6627
      %6629 = vrot.lane.b32.xlu0 %v6288, 112
      %v6630 = vpop.permute.xlu0 %6629
      %6631 = vrot.lane.b32.xlu0 %v6289, 112
      %v6632 = vpop.permute.xlu0 %6631
      %6633 = vrot.lane.b32.xlu0 %v6290, 112
      %v6634 = vpop.permute.xlu0 %6633
      %6635 = vrot.lane.b32.xlu0 %v6291, 112
      %v6636 = vpop.permute.xlu0 %6635
      %6637 = vrot.lane.b32.xlu0 %v6292, 112
      %v6638 = vpop.permute.xlu0 %6637
      %6639 = vrot.lane.b32.xlu0 %v6293, 112
      %v6640 = vpop.permute.xlu0 %6639
      %6641 = vrot.lane.b32.xlu0 %v6294, 112
      %v6642 = vpop.permute.xlu0 %6641
      %6643 = vrot.lane.b32.xlu0 %v6295, 112
      %v6644 = vpop.permute.xlu0 %6643
      %6645 = vrot.lane.b32.xlu0 %v6296, 112
      %v6646 = vpop.permute.xlu0 %6645
      %6647 = vrot.lane.b32.xlu0 %v6297, 112
      %v6648 = vpop.permute.xlu0 %6647
      %6649 = vrot.lane.b32.xlu0 %v6298, 112
      %v6650 = vpop.permute.xlu0 %6649
      %6651 = vrot.lane.b32.xlu0 %v6299, 112
      %v6652 = vpop.permute.xlu0 %6651
      %6653 = vrot.lane.b32.xlu0 %v6300, 112
      %v6654 = vpop.permute.xlu0 %6653
      %6655 = vrot.lane.b32.xlu0 %v6301, 112
      %v6656 = vpop.permute.xlu0 %6655
      %6657 = vrot.lane.b32.xlu0 %v6302, 112
      %v6658 = vpop.permute.xlu0 %6657
      %6659 = vrot.lane.b32.xlu0 %v6303, 112
      %v6660 = vpop.permute.xlu0 %6659
      %6661 = vrot.lane.b32.xlu0 %v6304, 112
      %v6662 = vpop.permute.xlu0 %6661
      %6663 = vrot.lane.b32.xlu0 %v6305, 112
      %v6664 = vpop.permute.xlu0 %6663
      %6665 = vrot.lane.b32.xlu0 %v6306, 112
      %v6666 = vpop.permute.xlu0 %6665
      %v6703 = vmul.f32 %v6002, %v6596
      %v6704 = vmul.f32 %v6004, %v6598
      %v6705 = vmul.f32 %v6007, %v6600
      %v6706 = vmul.f32 %v6009, %v6602
      %v6707 = vmul.f32 %v6012, %v6604
      %v6708 = vmul.f32 %v6014, %v6606
      %v6709 = vmul.f32 %v6017, %v6608
      %v6710 = vmul.f32 %v6019, %v6610
      %v6711 = vmul.f32 %v6022, %v6612
      %v6712 = vmul.f32 %v6024, %v6614
      %v6713 = vmul.f32 %v6027, %v6616
      %v6714 = vmul.f32 %v6029, %v6618
      %v6715 = vmul.f32 %v6032, %v6620
      %v6716 = vmul.f32 %v6034, %v6622
      %v6717 = vmul.f32 %v6037, %v6624
      %v6718 = vmul.f32 %v6039, %v6626
      %v6719 = vmul.f32 %v6042, %v6628
      %v6720 = vmul.f32 %v6044, %v6630
      %v6721 = vmul.f32 %v6047, %v6632
      %v6722 = vmul.f32 %v6049, %v6634
      %v6723 = vmul.f32 %v6052, %v6636
      %v6724 = vmul.f32 %v6054, %v6638
      %v6725 = vmul.f32 %v6057, %v6640
      %v6726 = vmul.f32 %v6059, %v6642
      %v6727 = vmul.f32 %v6062, %v6644
      %v6728 = vmul.f32 %v6064, %v6646
      %v6729 = vmul.f32 %v6067, %v6648
      %v6730 = vmul.f32 %v6069, %v6650
      %v6731 = vmul.f32 %v6072, %v6652
      %v6732 = vmul.f32 %v6074, %v6654
      %v6733 = vmul.f32 %v6077, %v6656
      %v6734 = vmul.f32 %v6079, %v6658
      %v6735 = vmul.f32 %v6082, %v6660
      %v6736 = vmul.f32 %v6084, %v6662
      %v6737 = vmul.f32 %v6087, %v6664
      %v6738 = vmul.f32 %v6089, %v6666
      %6775 = vrot.lane.b32.xlu0 %v6487, 16
      %v6776 = vpop.permute.xlu0 %6775
      %6777 = vrot.lane.b32.xlu0 %v6488, 16
      %v6778 = vpop.permute.xlu0 %6777
      %6779 = vrot.lane.b32.xlu0 %v6489, 16
      %v6780 = vpop.permute.xlu0 %6779
      %6781 = vrot.lane.b32.xlu0 %v6490, 16
      %v6782 = vpop.permute.xlu0 %6781
      %6783 = vrot.lane.b32.xlu0 %v6491, 16
      %v6784 = vpop.permute.xlu0 %6783
      %6785 = vrot.lane.b32.xlu0 %v6492, 16
      %v6786 = vpop.permute.xlu0 %6785
      %6787 = vrot.lane.b32.xlu0 %v6493, 16
      %v6788 = vpop.permute.xlu0 %6787
      %6789 = vrot.lane.b32.xlu0 %v6494, 16
      %v6790 = vpop.permute.xlu0 %6789
      %6791 = vrot.lane.b32.xlu0 %v6495, 16
      %v6792 = vpop.permute.xlu0 %6791
      %6793 = vrot.lane.b32.xlu0 %v6496, 16
      %v6794 = vpop.permute.xlu0 %6793
      %6795 = vrot.lane.b32.xlu0 %v6497, 16
      %v6796 = vpop.permute.xlu0 %6795
      %6797 = vrot.lane.b32.xlu0 %v6498, 16
      %v6798 = vpop.permute.xlu0 %6797
      %6799 = vrot.lane.b32.xlu0 %v6499, 16
      %v6800 = vpop.permute.xlu0 %6799
      %6801 = vrot.lane.b32.xlu0 %v6500, 16
      %v6802 = vpop.permute.xlu0 %6801
      %6803 = vrot.lane.b32.xlu0 %v6501, 16
      %v6804 = vpop.permute.xlu0 %6803
      %6805 = vrot.lane.b32.xlu0 %v6502, 16
      %v6806 = vpop.permute.xlu0 %6805
      %6807 = vrot.lane.b32.xlu0 %v6503, 16
      %v6808 = vpop.permute.xlu0 %6807
      %6809 = vrot.lane.b32.xlu0 %v6504, 16
      %v6810 = vpop.permute.xlu0 %6809
      %6811 = vrot.lane.b32.xlu0 %v6505, 16
      %v6812 = vpop.permute.xlu0 %6811
      %6813 = vrot.lane.b32.xlu0 %v6506, 16
      %v6814 = vpop.permute.xlu0 %6813
      %6815 = vrot.lane.b32.xlu0 %v6507, 16
      %v6816 = vpop.permute.xlu0 %6815
      %6817 = vrot.lane.b32.xlu0 %v6508, 16
      %v6818 = vpop.permute.xlu0 %6817
      %6819 = vrot.lane.b32.xlu0 %v6509, 16
      %v6820 = vpop.permute.xlu0 %6819
      %6821 = vrot.lane.b32.xlu0 %v6510, 16
      %v6822 = vpop.permute.xlu0 %6821
      %6823 = vrot.lane.b32.xlu0 %v6511, 16
      %v6824 = vpop.permute.xlu0 %6823
      %6825 = vrot.lane.b32.xlu0 %v6512, 16
      %v6826 = vpop.permute.xlu0 %6825
      %6827 = vrot.lane.b32.xlu0 %v6513, 16
      %v6828 = vpop.permute.xlu0 %6827
      %6829 = vrot.lane.b32.xlu0 %v6514, 16
      %v6830 = vpop.permute.xlu0 %6829
      %6831 = vrot.lane.b32.xlu0 %v6515, 16
      %v6832 = vpop.permute.xlu0 %6831
      %6833 = vrot.lane.b32.xlu0 %v6516, 16
      %v6834 = vpop.permute.xlu0 %6833
      %6835 = vrot.lane.b32.xlu0 %v6517, 16
      %v6836 = vpop.permute.xlu0 %6835
      %6837 = vrot.lane.b32.xlu0 %v6518, 16
      %v6838 = vpop.permute.xlu0 %6837
      %6839 = vrot.lane.b32.xlu0 %v6519, 16
      %v6840 = vpop.permute.xlu0 %6839
      %6841 = vrot.lane.b32.xlu0 %v6520, 16
      %v6842 = vpop.permute.xlu0 %6841
      %6843 = vrot.lane.b32.xlu0 %v6521, 16
      %v6844 = vpop.permute.xlu0 %6843
      %6845 = vrot.lane.b32.xlu0 %v6522, 16
      %v6846 = vpop.permute.xlu0 %6845
      %v6883 = vadd.f32 %v6703, %v6776
      %v6884 = vadd.f32 %v6704, %v6778
      %v6885 = vadd.f32 %v6705, %v6780
      %v6886 = vadd.f32 %v6706, %v6782
      %v6887 = vadd.f32 %v6707, %v6784
      %v6888 = vadd.f32 %v6708, %v6786
      %v6889 = vadd.f32 %v6709, %v6788
      %v6890 = vadd.f32 %v6710, %v6790
      %v6891 = vadd.f32 %v6711, %v6792
      %v6892 = vadd.f32 %v6712, %v6794
      %v6893 = vadd.f32 %v6713, %v6796
      %v6894 = vadd.f32 %v6714, %v6798
      %v6895 = vadd.f32 %v6715, %v6800
      %v6896 = vadd.f32 %v6716, %v6802
      %v6897 = vadd.f32 %v6717, %v6804
      %v6898 = vadd.f32 %v6718, %v6806
      %v6899 = vadd.f32 %v6719, %v6808
      %v6900 = vadd.f32 %v6720, %v6810
      %v6901 = vadd.f32 %v6721, %v6812
      %v6902 = vadd.f32 %v6722, %v6814
      %v6903 = vadd.f32 %v6723, %v6816
      %v6904 = vadd.f32 %v6724, %v6818
      %v6905 = vadd.f32 %v6725, %v6820
      %v6906 = vadd.f32 %v6726, %v6822
      %v6907 = vadd.f32 %v6727, %v6824
      %v6908 = vadd.f32 %v6728, %v6826
      %v6909 = vadd.f32 %v6729, %v6828
      %v6910 = vadd.f32 %v6730, %v6830
      %v6911 = vadd.f32 %v6731, %v6832
      %v6912 = vadd.f32 %v6732, %v6834
      %v6913 = vadd.f32 %v6733, %v6836
      %v6914 = vadd.f32 %v6734, %v6838
      %v6915 = vadd.f32 %v6735, %v6840
      %v6916 = vadd.f32 %v6736, %v6842
      %v6917 = vadd.f32 %v6737, %v6844
      %v6918 = vadd.f32 %v6738, %v6846
      %v6919 = vmul.f32 %v6523, 1.442695
      %v6920 = vpow.pop %v6919
      %v6921 = vmul.f32 %v6524, 1.442695
      %v6922 = vpow.pop %v6921
      %v6923 = vmul.f32 %v6525, 1.442695
      %v6924 = vpow.pop %v6923
      %v6925 = vmul.f32 %v6526, 1.442695
      %v6926 = vpow.pop %v6925
      %v6927 = vmul.f32 %v6527, 1.442695
      %v6928 = vpow.pop %v6927
      %v6929 = vmul.f32 %v6528, 1.442695
      %v6930 = vpow.pop %v6929
      %v6931 = vmul.f32 %v6529, 1.442695
      %v6932 = vpow.pop %v6931
      %v6933 = vmul.f32 %v6530, 1.442695
      %v6934 = vpow.pop %v6933
      %v6935 = vmul.f32 %v6531, 1.442695
      %v6936 = vpow.pop %v6935
      %v6937 = vmul.f32 %v6532, 1.442695
      %v6938 = vpow.pop %v6937
      %v6939 = vmul.f32 %v6533, 1.442695
      %v6940 = vpow.pop %v6939
      %v6941 = vmul.f32 %v6534, 1.442695
      %v6942 = vpow.pop %v6941
      %v6943 = vmul.f32 %v6535, 1.442695
      %v6944 = vpow.pop %v6943
      %v6945 = vmul.f32 %v6536, 1.442695
      %v6946 = vpow.pop %v6945
      %v6947 = vmul.f32 %v6537, 1.442695
      %v6948 = vpow.pop %v6947
      %v6949 = vmul.f32 %v6538, 1.442695
      %v6950 = vpow.pop %v6949
      %v6951 = vmul.f32 %v6539, 1.442695
      %v6952 = vpow.pop %v6951
      %v6953 = vmul.f32 %v6540, 1.442695
      %v6954 = vpow.pop %v6953
      %v6955 = vmul.f32 %v6541, 1.442695
      %v6956 = vpow.pop %v6955
      %v6957 = vmul.f32 %v6542, 1.442695
      %v6958 = vpow.pop %v6957
      %v6959 = vmul.f32 %v6543, 1.442695
      %v6960 = vpow.pop %v6959
      %v6961 = vmul.f32 %v6544, 1.442695
      %v6962 = vpow.pop %v6961
      %v6963 = vmul.f32 %v6545, 1.442695
      %v6964 = vpow.pop %v6963
      %v6965 = vmul.f32 %v6546, 1.442695
      %v6966 = vpow.pop %v6965
      %v6967 = vmul.f32 %v6547, 1.442695
      %v6968 = vpow.pop %v6967
      %v6969 = vmul.f32 %v6548, 1.442695
      %v6970 = vpow.pop %v6969
      %v6971 = vmul.f32 %v6549, 1.442695
      %v6972 = vpow.pop %v6971
      %v6973 = vmul.f32 %v6550, 1.442695
      %v6974 = vpow.pop %v6973
      %v6975 = vmul.f32 %v6551, 1.442695
      %v6976 = vpow.pop %v6975
      %v6977 = vmul.f32 %v6552, 1.442695
      %v6978 = vpow.pop %v6977
      %v6979 = vmul.f32 %v6553, 1.442695
      %v6980 = vpow.pop %v6979
      %v6981 = vmul.f32 %v6554, 1.442695
      %v6982 = vpow.pop %v6981
      %v6983 = vmul.f32 %v6555, 1.442695
      %v6984 = vpow.pop %v6983
      %v6985 = vmul.f32 %v6556, 1.442695
      %v6986 = vpow.pop %v6985
      %v6987 = vmul.f32 %v6557, 1.442695
      %v6988 = vpow.pop %v6987
      %v6989 = vmul.f32 %v6558, 1.442695
      %v6990 = vpow.pop %v6989
      %v6991 = vmul.f32 %v6920, 0.5
      %v6992 = vmul.f32 %v6922, 0.5
      %v6993 = vmul.f32 %v6924, 0.5
      %v6994 = vmul.f32 %v6926, 0.5
      %v6995 = vmul.f32 %v6928, 0.5
      %v6996 = vmul.f32 %v6930, 0.5
      %v6997 = vmul.f32 %v6932, 0.5
      %v6998 = vmul.f32 %v6934, 0.5
      %v6999 = vmul.f32 %v6936, 0.5
      %v7000 = vmul.f32 %v6938, 0.5
      %v7001 = vmul.f32 %v6940, 0.5
      %v7002 = vmul.f32 %v6942, 0.5
      %v7003 = vmul.f32 %v6944, 0.5
      %v7004 = vmul.f32 %v6946, 0.5
      %v7005 = vmul.f32 %v6948, 0.5
      %v7006 = vmul.f32 %v6950, 0.5
      %v7007 = vmul.f32 %v6952, 0.5
      %v7008 = vmul.f32 %v6954, 0.5
      %v7009 = vmul.f32 %v6956, 0.5
      %v7010 = vmul.f32 %v6958, 0.5
      %v7011 = vmul.f32 %v6960, 0.5
      %v7012 = vmul.f32 %v6962, 0.5
      %v7013 = vmul.f32 %v6964, 0.5
      %v7014 = vmul.f32 %v6966, 0.5
      %v7015 = vmul.f32 %v6968, 0.5
      %v7016 = vmul.f32 %v6970, 0.5
      %v7017 = vmul.f32 %v6972, 0.5
      %v7018 = vmul.f32 %v6974, 0.5
      %v7019 = vmul.f32 %v6976, 0.5
      %v7020 = vmul.f32 %v6978, 0.5
      %v7021 = vmul.f32 %v6980, 0.5
      %v7022 = vmul.f32 %v6982, 0.5
      %v7023 = vmul.f32 %v6984, 0.5
      %v7024 = vmul.f32 %v6986, 0.5
      %v7025 = vmul.f32 %v6988, 0.5
      %v7026 = vmul.f32 %v6990, 0.5
      %7027 = vrot.lane.b32.xlu0 %v6271, 16
      %v7028 = vpop.permute.xlu0 %7027
      %7029 = vrot.lane.b32.xlu0 %v6272, 16
      %v7030 = vpop.permute.xlu0 %7029
      %7031 = vrot.lane.b32.xlu0 %v6273, 16
      %v7032 = vpop.permute.xlu0 %7031
      %7033 = vrot.lane.b32.xlu0 %v6274, 16
      %v7034 = vpop.permute.xlu0 %7033
      %7035 = vrot.lane.b32.xlu0 %v6275, 16
      %v7036 = vpop.permute.xlu0 %7035
      %7037 = vrot.lane.b32.xlu0 %v6276, 16
      %v7038 = vpop.permute.xlu0 %7037
      %7039 = vrot.lane.b32.xlu0 %v6277, 16
      %v7040 = vpop.permute.xlu0 %7039
      %7041 = vrot.lane.b32.xlu0 %v6278, 16
      %v7042 = vpop.permute.xlu0 %7041
      %7043 = vrot.lane.b32.xlu0 %v6279, 16
      %v7044 = vpop.permute.xlu0 %7043
      %7045 = vrot.lane.b32.xlu0 %v6280, 16
      %v7046 = vpop.permute.xlu0 %7045
      %7047 = vrot.lane.b32.xlu0 %v6281, 16
      %v7048 = vpop.permute.xlu0 %7047
      %7049 = vrot.lane.b32.xlu0 %v6282, 16
      %v7050 = vpop.permute.xlu0 %7049
      %7051 = vrot.lane.b32.xlu0 %v6283, 16
      %v7052 = vpop.permute.xlu0 %7051
      %7053 = vrot.lane.b32.xlu0 %v6284, 16
      %v7054 = vpop.permute.xlu0 %7053
      %7055 = vrot.lane.b32.xlu0 %v6285, 16
      %v7056 = vpop.permute.xlu0 %7055
      %7057 = vrot.lane.b32.xlu0 %v6286, 16
      %v7058 = vpop.permute.xlu0 %7057
      %7059 = vrot.lane.b32.xlu0 %v6287, 16
      %v7060 = vpop.permute.xlu0 %7059
      %7061 = vrot.lane.b32.xlu0 %v6288, 16
      %v7062 = vpop.permute.xlu0 %7061
      %7063 = vrot.lane.b32.xlu0 %v6289, 16
      %v7064 = vpop.permute.xlu0 %7063
      %7065 = vrot.lane.b32.xlu0 %v6290, 16
      %v7066 = vpop.permute.xlu0 %7065
      %7067 = vrot.lane.b32.xlu0 %v6291, 16
      %v7068 = vpop.permute.xlu0 %7067
      %7069 = vrot.lane.b32.xlu0 %v6292, 16
      %v7070 = vpop.permute.xlu0 %7069
      %7071 = vrot.lane.b32.xlu0 %v6293, 16
      %v7072 = vpop.permute.xlu0 %7071
      %7073 = vrot.lane.b32.xlu0 %v6294, 16
      %v7074 = vpop.permute.xlu0 %7073
      %7075 = vrot.lane.b32.xlu0 %v6295, 16
      %v7076 = vpop.permute.xlu0 %7075
      %7077 = vrot.lane.b32.xlu0 %v6296, 16
      %v7078 = vpop.permute.xlu0 %7077
      %7079 = vrot.lane.b32.xlu0 %v6297, 16
      %v7080 = vpop.permute.xlu0 %7079
      %7081 = vrot.lane.b32.xlu0 %v6298, 16
      %v7082 = vpop.permute.xlu0 %7081
      %7083 = vrot.lane.b32.xlu0 %v6299, 16
      %v7084 = vpop.permute.xlu0 %7083
      %7085 = vrot.lane.b32.xlu0 %v6300, 16
      %v7086 = vpop.permute.xlu0 %7085
      %7087 = vrot.lane.b32.xlu0 %v6301, 16
      %v7088 = vpop.permute.xlu0 %7087
      %7089 = vrot.lane.b32.xlu0 %v6302, 16
      %v7090 = vpop.permute.xlu0 %7089
      %7091 = vrot.lane.b32.xlu0 %v6303, 16
      %v7092 = vpop.permute.xlu0 %7091
      %7093 = vrot.lane.b32.xlu0 %v6304, 16
      %v7094 = vpop.permute.xlu0 %7093
      %7095 = vrot.lane.b32.xlu0 %v6305, 16
      %v7096 = vpop.permute.xlu0 %7095
      %7097 = vrot.lane.b32.xlu0 %v6306, 16
      %v7098 = vpop.permute.xlu0 %7097
      %v7135 = vmul.f32 %v6991, %v7028
      %v7136 = vmul.f32 %v6992, %v7030
      %v7137 = vmul.f32 %v6993, %v7032
      %v7138 = vmul.f32 %v6994, %v7034
      %v7139 = vmul.f32 %v6995, %v7036
      %v7140 = vmul.f32 %v6996, %v7038
      %v7141 = vmul.f32 %v6997, %v7040
      %v7142 = vmul.f32 %v6998, %v7042
      %v7143 = vmul.f32 %v6999, %v7044
      %v7144 = vmul.f32 %v7000, %v7046
      %v7145 = vmul.f32 %v7001, %v7048
      %v7146 = vmul.f32 %v7002, %v7050
      %v7147 = vmul.f32 %v7003, %v7052
      %v7148 = vmul.f32 %v7004, %v7054
      %v7149 = vmul.f32 %v7005, %v7056
      %v7150 = vmul.f32 %v7006, %v7058
      %v7151 = vmul.f32 %v7007, %v7060
      %v7152 = vmul.f32 %v7008, %v7062
      %v7153 = vmul.f32 %v7009, %v7064
      %v7154 = vmul.f32 %v7010, %v7066
      %v7155 = vmul.f32 %v7011, %v7068
      %v7156 = vmul.f32 %v7012, %v7070
      %v7157 = vmul.f32 %v7013, %v7072
      %v7158 = vmul.f32 %v7014, %v7074
      %v7159 = vmul.f32 %v7015, %v7076
      %v7160 = vmul.f32 %v7016, %v7078
      %v7161 = vmul.f32 %v7017, %v7080
      %v7162 = vmul.f32 %v7018, %v7082
      %v7163 = vmul.f32 %v7019, %v7084
      %v7164 = vmul.f32 %v7020, %v7086
      %v7165 = vmul.f32 %v7021, %v7088
      %v7166 = vmul.f32 %v7022, %v7090
      %v7167 = vmul.f32 %v7023, %v7092
      %v7168 = vmul.f32 %v7024, %v7094
      %v7169 = vmul.f32 %v7025, %v7096
      %v7170 = vmul.f32 %v7026, %v7098
      %7207 = vrot.lane.b32.xlu0 %v7135, 96
      %v7208 = vpop.permute.xlu0 %7207
      %7209 = vrot.lane.b32.xlu0 %v7136, 96
      %v7210 = vpop.permute.xlu0 %7209
      %7211 = vrot.lane.b32.xlu0 %v7137, 96
      %v7212 = vpop.permute.xlu0 %7211
      %7213 = vrot.lane.b32.xlu0 %v7138, 96
      %v7214 = vpop.permute.xlu0 %7213
      %7215 = vrot.lane.b32.xlu0 %v7139, 96
      %v7216 = vpop.permute.xlu0 %7215
      %7217 = vrot.lane.b32.xlu0 %v7140, 96
      %v7218 = vpop.permute.xlu0 %7217
      %7219 = vrot.lane.b32.xlu0 %v7141, 96
      %v7220 = vpop.permute.xlu0 %7219
      %7221 = vrot.lane.b32.xlu0 %v7142, 96
      %v7222 = vpop.permute.xlu0 %7221
      %7223 = vrot.lane.b32.xlu0 %v7143, 96
      %v7224 = vpop.permute.xlu0 %7223
      %7225 = vrot.lane.b32.xlu0 %v7144, 96
      %v7226 = vpop.permute.xlu0 %7225
      %7227 = vrot.lane.b32.xlu0 %v7145, 96
      %v7228 = vpop.permute.xlu0 %7227
      %7229 = vrot.lane.b32.xlu0 %v7146, 96
      %v7230 = vpop.permute.xlu0 %7229
      %7231 = vrot.lane.b32.xlu0 %v7147, 96
      %v7232 = vpop.permute.xlu0 %7231
      %7233 = vrot.lane.b32.xlu0 %v7148, 96
      %v7234 = vpop.permute.xlu0 %7233
      %7235 = vrot.lane.b32.xlu0 %v7149, 96
      %v7236 = vpop.permute.xlu0 %7235
      %7237 = vrot.lane.b32.xlu0 %v7150, 96
      %v7238 = vpop.permute.xlu0 %7237
      %7239 = vrot.lane.b32.xlu0 %v7151, 96
      %v7240 = vpop.permute.xlu0 %7239
      %7241 = vrot.lane.b32.xlu0 %v7152, 96
      %v7242 = vpop.permute.xlu0 %7241
      %7243 = vrot.lane.b32.xlu0 %v7153, 96
      %v7244 = vpop.permute.xlu0 %7243
      %7245 = vrot.lane.b32.xlu0 %v7154, 96
      %v7246 = vpop.permute.xlu0 %7245
      %7247 = vrot.lane.b32.xlu0 %v7155, 96
      %v7248 = vpop.permute.xlu0 %7247
      %7249 = vrot.lane.b32.xlu0 %v7156, 96
      %v7250 = vpop.permute.xlu0 %7249
      %7251 = vrot.lane.b32.xlu0 %v7157, 96
      %v7252 = vpop.permute.xlu0 %7251
      %7253 = vrot.lane.b32.xlu0 %v7158, 96
      %v7254 = vpop.permute.xlu0 %7253
      %7255 = vrot.lane.b32.xlu0 %v7159, 96
      %v7256 = vpop.permute.xlu0 %7255
      %7257 = vrot.lane.b32.xlu0 %v7160, 96
      %v7258 = vpop.permute.xlu0 %7257
      %7259 = vrot.lane.b32.xlu0 %v7161, 96
      %v7260 = vpop.permute.xlu0 %7259
      %7261 = vrot.lane.b32.xlu0 %v7162, 96
      %v7262 = vpop.permute.xlu0 %7261
      %7263 = vrot.lane.b32.xlu0 %v7163, 96
      %v7264 = vpop.permute.xlu0 %7263
      %7265 = vrot.lane.b32.xlu0 %v7164, 96
      %v7266 = vpop.permute.xlu0 %7265
      %7267 = vrot.lane.b32.xlu0 %v7165, 96
      %v7268 = vpop.permute.xlu0 %7267
      %7269 = vrot.lane.b32.xlu0 %v7166, 96
      %v7270 = vpop.permute.xlu0 %7269
      %7271 = vrot.lane.b32.xlu0 %v7167, 96
      %v7272 = vpop.permute.xlu0 %7271
      %7273 = vrot.lane.b32.xlu0 %v7168, 96
      %v7274 = vpop.permute.xlu0 %7273
      %7275 = vrot.lane.b32.xlu0 %v7169, 96
      %v7276 = vpop.permute.xlu0 %7275
      %7277 = vrot.lane.b32.xlu0 %v7170, 96
      %v7278 = vpop.permute.xlu0 %7277
      %v7315 = vsub.f32 %v6883, %v7208
      %v7316 = vsub.f32 %v6884, %v7210
      %v7317 = vsub.f32 %v6885, %v7212
      %v7318 = vsub.f32 %v6886, %v7214
      %v7319 = vsub.f32 %v6887, %v7216
      %v7320 = vsub.f32 %v6888, %v7218
      %v7321 = vsub.f32 %v6889, %v7220
      %v7322 = vsub.f32 %v6890, %v7222
      %v7323 = vsub.f32 %v6891, %v7224
      %v7324 = vsub.f32 %v6892, %v7226
      %v7325 = vsub.f32 %v6893, %v7228
      %v7326 = vsub.f32 %v6894, %v7230
      %v7327 = vsub.f32 %v6895, %v7232
      %v7328 = vsub.f32 %v6896, %v7234
      %v7329 = vsub.f32 %v6897, %v7236
      %v7330 = vsub.f32 %v6898, %v7238
      %v7331 = vsub.f32 %v6899, %v7240
      %v7332 = vsub.f32 %v6900, %v7242
      %v7333 = vsub.f32 %v6901, %v7244
      %v7334 = vsub.f32 %v6902, %v7246
      %v7335 = vsub.f32 %v6903, %v7248
      %v7336 = vsub.f32 %v6904, %v7250
      %v7337 = vsub.f32 %v6905, %v7252
      %v7338 = vsub.f32 %v6906, %v7254
      %v7339 = vsub.f32 %v6907, %v7256
      %v7340 = vsub.f32 %v6908, %v7258
      %v7341 = vsub.f32 %v6909, %v7260
      %v7342 = vsub.f32 %v6910, %v7262
      %v7343 = vsub.f32 %v6911, %v7264
      %v7344 = vsub.f32 %v6912, %v7266
      %v7345 = vsub.f32 %v6913, %v7268
      %v7346 = vsub.f32 %v6914, %v7270
      %v7347 = vsub.f32 %v6915, %v7272
      %v7348 = vsub.f32 %v6916, %v7274
      %v7349 = vsub.f32 %v6917, %v7276
      %v7350 = vsub.f32 %v6918, %v7278
      %v7351 = vmax.f32 %v7315, 0.0
      %v7352 = vmax.f32 %v7316, 0.0
      %v7353 = vmax.f32 %v7317, 0.0
      %v7354 = vmax.f32 %v7318, 0.0
      %v7355 = vmax.f32 %v7319, 0.0
      %v7356 = vmax.f32 %v7320, 0.0
      %v7357 = vmax.f32 %v7321, 0.0
      %v7358 = vmax.f32 %v7322, 0.0
      %v7359 = vmax.f32 %v7323, 0.0
      %v7360 = vmax.f32 %v7324, 0.0
      %v7361 = vmax.f32 %v7325, 0.0
      %v7362 = vmax.f32 %v7326, 0.0
      %v7363 = vmax.f32 %v7327, 0.0
      %v7364 = vmax.f32 %v7328, 0.0
      %v7365 = vmax.f32 %v7329, 0.0
      %v7366 = vmax.f32 %v7330, 0.0
      %v7367 = vmax.f32 %v7331, 0.0
      %v7368 = vmax.f32 %v7332, 0.0
      %v7369 = vmax.f32 %v7333, 0.0
      %v7370 = vmax.f32 %v7334, 0.0
      %v7371 = vmax.f32 %v7335, 0.0
      %v7372 = vmax.f32 %v7336, 0.0
      %v7373 = vmax.f32 %v7337, 0.0
      %v7374 = vmax.f32 %v7338, 0.0
      %v7375 = vmax.f32 %v7339, 0.0
      %v7376 = vmax.f32 %v7340, 0.0
      %v7377 = vmax.f32 %v7341, 0.0
      %v7378 = vmax.f32 %v7342, 0.0
      %v7379 = vmax.f32 %v7343, 0.0
      %v7380 = vmax.f32 %v7344, 0.0
      %v7381 = vmax.f32 %v7345, 0.0
      %v7382 = vmax.f32 %v7346, 0.0
      %v7383 = vmax.f32 %v7347, 0.0
      %v7384 = vmax.f32 %v7348, 0.0
      %v7385 = vmax.f32 %v7349, 0.0
      %v7386 = vmax.f32 %v7350, 0.0
      %v7387 = vmin.f32 %v7351, 16.0
      %v7388 = vmin.f32 %v7352, 16.0
      %v7389 = vmin.f32 %v7353, 16.0
      %v7390 = vmin.f32 %v7354, 16.0
      %v7391 = vmin.f32 %v7355, 16.0
      %v7392 = vmin.f32 %v7356, 16.0
      %v7393 = vmin.f32 %v7357, 16.0
      %v7394 = vmin.f32 %v7358, 16.0
      %v7395 = vmin.f32 %v7359, 16.0
      %v7396 = vmin.f32 %v7360, 16.0
      %v7397 = vmin.f32 %v7361, 16.0
      %v7398 = vmin.f32 %v7362, 16.0
      %v7399 = vmin.f32 %v7363, 16.0
      %v7400 = vmin.f32 %v7364, 16.0
      %v7401 = vmin.f32 %v7365, 16.0
      %v7402 = vmin.f32 %v7366, 16.0
      %v7403 = vmin.f32 %v7367, 16.0
      %v7404 = vmin.f32 %v7368, 16.0
      %v7405 = vmin.f32 %v7369, 16.0
      %v7406 = vmin.f32 %v7370, 16.0
      %v7407 = vmin.f32 %v7371, 16.0
      %v7408 = vmin.f32 %v7372, 16.0
      %v7409 = vmin.f32 %v7373, 16.0
      %v7410 = vmin.f32 %v7374, 16.0
      %v7411 = vmin.f32 %v7375, 16.0
      %v7412 = vmin.f32 %v7376, 16.0
      %v7413 = vmin.f32 %v7377, 16.0
      %v7414 = vmin.f32 %v7378, 16.0
      %v7415 = vmin.f32 %v7379, 16.0
      %v7416 = vmin.f32 %v7380, 16.0
      %v7417 = vmin.f32 %v7381, 16.0
      %v7418 = vmin.f32 %v7382, 16.0
      %v7419 = vmin.f32 %v7383, 16.0
      %v7420 = vmin.f32 %v7384, 16.0
      %v7421 = vmin.f32 %v7385, 16.0
      %v7422 = vmin.f32 %v7386, 16.0
      %v7423 = vadd.f32 %v6883, %v7208
      %v7424 = vadd.f32 %v6884, %v7210
      %v7425 = vadd.f32 %v6885, %v7212
      %v7426 = vadd.f32 %v6886, %v7214
      %v7427 = vadd.f32 %v6887, %v7216
      %v7428 = vadd.f32 %v6888, %v7218
      %v7429 = vadd.f32 %v6889, %v7220
      %v7430 = vadd.f32 %v6890, %v7222
      %v7431 = vadd.f32 %v6891, %v7224
      %v7432 = vadd.f32 %v6892, %v7226
      %v7433 = vadd.f32 %v6893, %v7228
      %v7434 = vadd.f32 %v6894, %v7230
      %v7435 = vadd.f32 %v6895, %v7232
      %v7436 = vadd.f32 %v6896, %v7234
      %v7437 = vadd.f32 %v6897, %v7236
      %v7438 = vadd.f32 %v6898, %v7238
      %v7439 = vadd.f32 %v6899, %v7240
      %v7440 = vadd.f32 %v6900, %v7242
      %v7441 = vadd.f32 %v6901, %v7244
      %v7442 = vadd.f32 %v6902, %v7246
      %v7443 = vadd.f32 %v6903, %v7248
      %v7444 = vadd.f32 %v6904, %v7250
      %v7445 = vadd.f32 %v6905, %v7252
      %v7446 = vadd.f32 %v6906, %v7254
      %v7447 = vadd.f32 %v6907, %v7256
      %v7448 = vadd.f32 %v6908, %v7258
      %v7449 = vadd.f32 %v6909, %v7260
      %v7450 = vadd.f32 %v6910, %v7262
      %v7451 = vadd.f32 %v6911, %v7264
      %v7452 = vadd.f32 %v6912, %v7266
      %v7453 = vadd.f32 %v6913, %v7268
      %v7454 = vadd.f32 %v6914, %v7270
      %v7455 = vadd.f32 %v6915, %v7272
      %v7456 = vadd.f32 %v6916, %v7274
      %v7457 = vadd.f32 %v6917, %v7276
      %v7458 = vadd.f32 %v6918, %v7278
      %v7459 = vmax.f32 %v7423, 0.0
      %v7460 = vmax.f32 %v7424, 0.0
      %v7461 = vmax.f32 %v7425, 0.0
      %v7462 = vmax.f32 %v7426, 0.0
      %v7463 = vmax.f32 %v7427, 0.0
      %v7464 = vmax.f32 %v7428, 0.0
      %v7465 = vmax.f32 %v7429, 0.0
      %v7466 = vmax.f32 %v7430, 0.0
      %v7467 = vmax.f32 %v7431, 0.0
      %v7468 = vmax.f32 %v7432, 0.0
      %v7469 = vmax.f32 %v7433, 0.0
      %v7470 = vmax.f32 %v7434, 0.0
      %v7471 = vmax.f32 %v7435, 0.0
      %v7472 = vmax.f32 %v7436, 0.0
      %v7473 = vmax.f32 %v7437, 0.0
      %v7474 = vmax.f32 %v7438, 0.0
      %v7475 = vmax.f32 %v7439, 0.0
      %v7476 = vmax.f32 %v7440, 0.0
      %v7477 = vmax.f32 %v7441, 0.0
      %v7478 = vmax.f32 %v7442, 0.0
      %v7479 = vmax.f32 %v7443, 0.0
      %v7480 = vmax.f32 %v7444, 0.0
      %v7481 = vmax.f32 %v7445, 0.0
      %v7482 = vmax.f32 %v7446, 0.0
      %v7483 = vmax.f32 %v7447, 0.0
      %v7484 = vmax.f32 %v7448, 0.0
      %v7485 = vmax.f32 %v7449, 0.0
      %v7486 = vmax.f32 %v7450, 0.0
      %v7487 = vmax.f32 %v7451, 0.0
      %v7488 = vmax.f32 %v7452, 0.0
      %v7489 = vmax.f32 %v7453, 0.0
      %v7490 = vmax.f32 %v7454, 0.0
      %v7491 = vmax.f32 %v7455, 0.0
      %v7492 = vmax.f32 %v7456, 0.0
      %v7493 = vmax.f32 %v7457, 0.0
      %v7494 = vmax.f32 %v7458, 0.0
      %v7495 = vmin.f32 %v7459, 16.0
      %v7496 = vmin.f32 %v7460, 16.0
      %v7497 = vmin.f32 %v7461, 16.0
      %v7498 = vmin.f32 %v7462, 16.0
      %v7499 = vmin.f32 %v7463, 16.0
      %v7500 = vmin.f32 %v7464, 16.0
      %v7501 = vmin.f32 %v7465, 16.0
      %v7502 = vmin.f32 %v7466, 16.0
      %v7503 = vmin.f32 %v7467, 16.0
      %v7504 = vmin.f32 %v7468, 16.0
      %v7505 = vmin.f32 %v7469, 16.0
      %v7506 = vmin.f32 %v7470, 16.0
      %v7507 = vmin.f32 %v7471, 16.0
      %v7508 = vmin.f32 %v7472, 16.0
      %v7509 = vmin.f32 %v7473, 16.0
      %v7510 = vmin.f32 %v7474, 16.0
      %v7511 = vmin.f32 %v7475, 16.0
      %v7512 = vmin.f32 %v7476, 16.0
      %v7513 = vmin.f32 %v7477, 16.0
      %v7514 = vmin.f32 %v7478, 16.0
      %v7515 = vmin.f32 %v7479, 16.0
      %v7516 = vmin.f32 %v7480, 16.0
      %v7517 = vmin.f32 %v7481, 16.0
      %v7518 = vmin.f32 %v7482, 16.0
      %v7519 = vmin.f32 %v7483, 16.0
      %v7520 = vmin.f32 %v7484, 16.0
      %v7521 = vmin.f32 %v7485, 16.0
      %v7522 = vmin.f32 %v7486, 16.0
      %v7523 = vmin.f32 %v7487, 16.0
      %v7524 = vmin.f32 %v7488, 16.0
      %v7525 = vmin.f32 %v7489, 16.0
      %v7526 = vmin.f32 %v7490, 16.0
      %v7527 = vmin.f32 %v7491, 16.0
      %v7528 = vmin.f32 %v7492, 16.0
      %v7529 = vmin.f32 %v7493, 16.0
      %v7530 = vmin.f32 %v7494, 16.0
      %7567 = vrot.lane.b32.xlu0 %v7495, 32
      %v7568 = vpop.permute.xlu0 %7567
      %7569 = vrot.lane.b32.xlu0 %v7496, 32
      %v7570 = vpop.permute.xlu0 %7569
      %7571 = vrot.lane.b32.xlu0 %v7497, 32
      %v7572 = vpop.permute.xlu0 %7571
      %7573 = vrot.lane.b32.xlu0 %v7498, 32
      %v7574 = vpop.permute.xlu0 %7573
      %7575 = vrot.lane.b32.xlu0 %v7499, 32
      %v7576 = vpop.permute.xlu0 %7575
      %7577 = vrot.lane.b32.xlu0 %v7500, 32
      %v7578 = vpop.permute.xlu0 %7577
      %7579 = vrot.lane.b32.xlu0 %v7501, 32
      %v7580 = vpop.permute.xlu0 %7579
      %7581 = vrot.lane.b32.xlu0 %v7502, 32
      %v7582 = vpop.permute.xlu0 %7581
      %7583 = vrot.lane.b32.xlu0 %v7503, 32
      %v7584 = vpop.permute.xlu0 %7583
      %7585 = vrot.lane.b32.xlu0 %v7504, 32
      %v7586 = vpop.permute.xlu0 %7585
      %7587 = vrot.lane.b32.xlu0 %v7505, 32
      %v7588 = vpop.permute.xlu0 %7587
      %7589 = vrot.lane.b32.xlu0 %v7506, 32
      %v7590 = vpop.permute.xlu0 %7589
      %7591 = vrot.lane.b32.xlu0 %v7507, 32
      %v7592 = vpop.permute.xlu0 %7591
      %7593 = vrot.lane.b32.xlu0 %v7508, 32
      %v7594 = vpop.permute.xlu0 %7593
      %7595 = vrot.lane.b32.xlu0 %v7509, 32
      %v7596 = vpop.permute.xlu0 %7595
      %7597 = vrot.lane.b32.xlu0 %v7510, 32
      %v7598 = vpop.permute.xlu0 %7597
      %7599 = vrot.lane.b32.xlu0 %v7511, 32
      %v7600 = vpop.permute.xlu0 %7599
      %7601 = vrot.lane.b32.xlu0 %v7512, 32
      %v7602 = vpop.permute.xlu0 %7601
      %7603 = vrot.lane.b32.xlu0 %v7513, 32
      %v7604 = vpop.permute.xlu0 %7603
      %7605 = vrot.lane.b32.xlu0 %v7514, 32
      %v7606 = vpop.permute.xlu0 %7605
      %7607 = vrot.lane.b32.xlu0 %v7515, 32
      %v7608 = vpop.permute.xlu0 %7607
      %7609 = vrot.lane.b32.xlu0 %v7516, 32
      %v7610 = vpop.permute.xlu0 %7609
      %7611 = vrot.lane.b32.xlu0 %v7517, 32
      %v7612 = vpop.permute.xlu0 %7611
      %7613 = vrot.lane.b32.xlu0 %v7518, 32
      %v7614 = vpop.permute.xlu0 %7613
      %7615 = vrot.lane.b32.xlu0 %v7519, 32
      %v7616 = vpop.permute.xlu0 %7615
      %7617 = vrot.lane.b32.xlu0 %v7520, 32
      %v7618 = vpop.permute.xlu0 %7617
      %7619 = vrot.lane.b32.xlu0 %v7521, 32
      %v7620 = vpop.permute.xlu0 %7619
      %7621 = vrot.lane.b32.xlu0 %v7522, 32
      %v7622 = vpop.permute.xlu0 %7621
      %7623 = vrot.lane.b32.xlu0 %v7523, 32
      %v7624 = vpop.permute.xlu0 %7623
      %7625 = vrot.lane.b32.xlu0 %v7524, 32
      %v7626 = vpop.permute.xlu0 %7625
      %7627 = vrot.lane.b32.xlu0 %v7525, 32
      %v7628 = vpop.permute.xlu0 %7627
      %7629 = vrot.lane.b32.xlu0 %v7526, 32
      %v7630 = vpop.permute.xlu0 %7629
      %7631 = vrot.lane.b32.xlu0 %v7527, 32
      %v7632 = vpop.permute.xlu0 %7631
      %7633 = vrot.lane.b32.xlu0 %v7528, 32
      %v7634 = vpop.permute.xlu0 %7633
      %7635 = vrot.lane.b32.xlu0 %v7529, 32
      %v7636 = vpop.permute.xlu0 %7635
      %7637 = vrot.lane.b32.xlu0 %v7530, 32
      %v7638 = vpop.permute.xlu0 %7637
      %v7675 = vsel %vm2596, %v6002, %v7387
      %v7676 = vsel %vm2596, %v6004, %v7388
      %v7677 = vsel %vm2596, %v6007, %v7389
      %v7678 = vsel %vm2596, %v6009, %v7390
      %v7679 = vsel %vm2596, %v6012, %v7391
      %v7680 = vsel %vm2596, %v6014, %v7392
      %v7681 = vsel %vm2596, %v6017, %v7393
      %v7682 = vsel %vm2596, %v6019, %v7394
      %v7683 = vsel %vm2596, %v6022, %v7395
      %v7684 = vsel %vm2596, %v6024, %v7396
      %v7685 = vsel %vm2596, %v6027, %v7397
      %v7686 = vsel %vm2596, %v6029, %v7398
      %v7687 = vsel %vm2596, %v6032, %v7399
      %v7688 = vsel %vm2596, %v6034, %v7400
      %v7689 = vsel %vm2596, %v6037, %v7401
      %v7690 = vsel %vm2596, %v6039, %v7402
      %v7691 = vsel %vm2596, %v6042, %v7403
      %v7692 = vsel %vm2596, %v6044, %v7404
      %v7693 = vsel %vm2596, %v6047, %v7405
      %v7694 = vsel %vm2596, %v6049, %v7406
      %v7695 = vsel %vm2596, %v6052, %v7407
      %v7696 = vsel %vm2596, %v6054, %v7408
      %v7697 = vsel %vm2596, %v6057, %v7409
      %v7698 = vsel %vm2596, %v6059, %v7410
      %v7699 = vsel %vm2596, %v6062, %v7411
      %v7700 = vsel %vm2596, %v6064, %v7412
      %v7701 = vsel %vm2596, %v6067, %v7413
      %v7702 = vsel %vm2596, %v6069, %v7414
      %v7703 = vsel %vm2596, %v6072, %v7415
      %v7704 = vsel %vm2596, %v6074, %v7416
      %v7705 = vsel %vm2596, %v6077, %v7417
      %v7706 = vsel %vm2596, %v6079, %v7418
      %v7707 = vsel %vm2596, %v6082, %v7419
      %v7708 = vsel %vm2596, %v6084, %v7420
      %v7709 = vsel %vm2596, %v6087, %v7421
      %v7710 = vsel %vm2596, %v6089, %v7422
      %v7711 = vsel %vm3137, %v7675, %v7387
      %v7712 = vsel %vm3137, %v7676, %v7388
      %v7713 = vsel %vm3137, %v7677, %v7389
      %v7714 = vsel %vm3137, %v7678, %v7390
      %v7715 = vsel %vm3137, %v7679, %v7391
      %v7716 = vsel %vm3137, %v7680, %v7392
      %v7717 = vsel %vm3137, %v7681, %v7393
      %v7718 = vsel %vm3137, %v7682, %v7394
      %v7719 = vsel %vm3137, %v7683, %v7395
      %v7720 = vsel %vm3137, %v7684, %v7396
      %v7721 = vsel %vm3137, %v7685, %v7397
      %v7722 = vsel %vm3137, %v7686, %v7398
      %v7723 = vsel %vm3137, %v7687, %v7399
      %v7724 = vsel %vm3137, %v7688, %v7400
      %v7725 = vsel %vm3137, %v7689, %v7401
      %v7726 = vsel %vm3137, %v7690, %v7402
      %v7727 = vsel %vm3137, %v7691, %v7403
      %v7728 = vsel %vm3137, %v7692, %v7404
      %v7729 = vsel %vm3137, %v7693, %v7405
      %v7730 = vsel %vm3137, %v7694, %v7406
      %v7731 = vsel %vm3137, %v7695, %v7407
      %v7732 = vsel %vm3137, %v7696, %v7408
      %v7733 = vsel %vm3137, %v7697, %v7409
      %v7734 = vsel %vm3137, %v7698, %v7410
      %v7735 = vsel %vm3137, %v7699, %v7411
      %v7736 = vsel %vm3137, %v7700, %v7412
      %v7737 = vsel %vm3137, %v7701, %v7413
      %v7738 = vsel %vm3137, %v7702, %v7414
      %v7739 = vsel %vm3137, %v7703, %v7415
      %v7740 = vsel %vm3137, %v7704, %v7416
      %v7741 = vsel %vm3137, %v7705, %v7417
      %v7742 = vsel %vm3137, %v7706, %v7418
      %v7743 = vsel %vm3137, %v7707, %v7419
      %v7744 = vsel %vm3137, %v7708, %v7420
      %v7745 = vsel %vm3137, %v7709, %v7421
      %v7746 = vsel %vm3137, %v7710, %v7422
      %vm7747 = vcmask 392192
      %v7748 = vsel %vm7747, %v7711, %v7568
      %v7749 = vsel %vm7747, %v7712, %v7570
      %v7750 = vsel %vm7747, %v7713, %v7572
      %v7751 = vsel %vm7747, %v7714, %v7574
      %v7752 = vsel %vm7747, %v7715, %v7576
      %v7753 = vsel %vm7747, %v7716, %v7578
      %v7754 = vsel %vm7747, %v7717, %v7580
      %v7755 = vsel %vm7747, %v7718, %v7582
      %v7756 = vsel %vm7747, %v7719, %v7584
      %v7757 = vsel %vm7747, %v7720, %v7586
      %v7758 = vsel %vm7747, %v7721, %v7588
      %v7759 = vsel %vm7747, %v7722, %v7590
      %v7760 = vsel %vm7747, %v7723, %v7592
      %v7761 = vsel %vm7747, %v7724, %v7594
      %v7762 = vsel %vm7747, %v7725, %v7596
      %v7763 = vsel %vm7747, %v7726, %v7598
      %v7764 = vsel %vm7747, %v7727, %v7600
      %v7765 = vsel %vm7747, %v7728, %v7602
      %v7766 = vsel %vm7747, %v7729, %v7604
      %v7767 = vsel %vm7747, %v7730, %v7606
      %v7768 = vsel %vm7747, %v7731, %v7608
      %v7769 = vsel %vm7747, %v7732, %v7610
      %v7770 = vsel %vm7747, %v7733, %v7612
      %v7771 = vsel %vm7747, %v7734, %v7614
      %v7772 = vsel %vm7747, %v7735, %v7616
      %v7773 = vsel %vm7747, %v7736, %v7618
      %v7774 = vsel %vm7747, %v7737, %v7620
      %v7775 = vsel %vm7747, %v7738, %v7622
      %v7776 = vsel %vm7747, %v7739, %v7624
      %v7777 = vsel %vm7747, %v7740, %v7626
      %v7778 = vsel %vm7747, %v7741, %v7628
      %v7779 = vsel %vm7747, %v7742, %v7630
      %v7780 = vsel %vm7747, %v7743, %v7632
      %v7781 = vsel %vm7747, %v7744, %v7634
      %v7782 = vsel %vm7747, %v7745, %v7636
      %v7783 = vsel %vm7747, %v7746, %v7638
      %vm7784 = vcmask 523264
      %v7785 = vsel %vm7784, %v7748, %v7568
      %v7786 = vsel %vm7784, %v7749, %v7570
      %v7787 = vsel %vm7784, %v7750, %v7572
      %v7788 = vsel %vm7784, %v7751, %v7574
      %v7789 = vsel %vm7784, %v7752, %v7576
      %v7790 = vsel %vm7784, %v7753, %v7578
      %v7791 = vsel %vm7784, %v7754, %v7580
      %v7792 = vsel %vm7784, %v7755, %v7582
      %v7793 = vsel %vm7784, %v7756, %v7584
      %v7794 = vsel %vm7784, %v7757, %v7586
      %v7795 = vsel %vm7784, %v7758, %v7588
      %v7796 = vsel %vm7784, %v7759, %v7590
      %v7797 = vsel %vm7784, %v7760, %v7592
      %v7798 = vsel %vm7784, %v7761, %v7594
      %v7799 = vsel %vm7784, %v7762, %v7596
      %v7800 = vsel %vm7784, %v7763, %v7598
      %v7801 = vsel %vm7784, %v7764, %v7600
      %v7802 = vsel %vm7784, %v7765, %v7602
      %v7803 = vsel %vm7784, %v7766, %v7604
      %v7804 = vsel %vm7784, %v7767, %v7606
      %v7805 = vsel %vm7784, %v7768, %v7608
      %v7806 = vsel %vm7784, %v7769, %v7610
      %v7807 = vsel %vm7784, %v7770, %v7612
      %v7808 = vsel %vm7784, %v7771, %v7614
      %v7809 = vsel %vm7784, %v7772, %v7616
      %v7810 = vsel %vm7784, %v7773, %v7618
      %v7811 = vsel %vm7784, %v7774, %v7620
      %v7812 = vsel %vm7784, %v7775, %v7622
      %v7813 = vsel %vm7784, %v7776, %v7624
      %v7814 = vsel %vm7784, %v7777, %v7626
      %v7815 = vsel %vm7784, %v7778, %v7628
      %v7816 = vsel %vm7784, %v7779, %v7630
      %v7817 = vsel %vm7784, %v7780, %v7632
      %v7818 = vsel %vm7784, %v7781, %v7634
      %v7819 = vsel %vm7784, %v7782, %v7636
      %v7820 = vsel %vm7784, %v7783, %v7638
      %vm7821 = vcmask 654336
      %v7822 = vsel %vm7821, %v7785, %v6002
      %v7823 = vsel %vm7821, %v7786, %v6004
      %v7824 = vsel %vm7821, %v7787, %v6007
      %v7825 = vsel %vm7821, %v7788, %v6009
      %v7826 = vsel %vm7821, %v7789, %v6012
      %v7827 = vsel %vm7821, %v7790, %v6014
      %v7828 = vsel %vm7821, %v7791, %v6017
      %v7829 = vsel %vm7821, %v7792, %v6019
      %v7830 = vsel %vm7821, %v7793, %v6022
      %v7831 = vsel %vm7821, %v7794, %v6024
      %v7832 = vsel %vm7821, %v7795, %v6027
      %v7833 = vsel %vm7821, %v7796, %v6029
      %v7834 = vsel %vm7821, %v7797, %v6032
      %v7835 = vsel %vm7821, %v7798, %v6034
      %v7836 = vsel %vm7821, %v7799, %v6037
      %v7837 = vsel %vm7821, %v7800, %v6039
      %v7838 = vsel %vm7821, %v7801, %v6042
      %v7839 = vsel %vm7821, %v7802, %v6044
      %v7840 = vsel %vm7821, %v7803, %v6047
      %v7841 = vsel %vm7821, %v7804, %v6049
      %v7842 = vsel %vm7821, %v7805, %v6052
      %v7843 = vsel %vm7821, %v7806, %v6054
      %v7844 = vsel %vm7821, %v7807, %v6057
      %v7845 = vsel %vm7821, %v7808, %v6059
      %v7846 = vsel %vm7821, %v7809, %v6062
      %v7847 = vsel %vm7821, %v7810, %v6064
      %v7848 = vsel %vm7821, %v7811, %v6067
      %v7849 = vsel %vm7821, %v7812, %v6069
      %v7850 = vsel %vm7821, %v7813, %v6072
      %v7851 = vsel %vm7821, %v7814, %v6074
      %v7852 = vsel %vm7821, %v7815, %v6077
      %v7853 = vsel %vm7821, %v7816, %v6079
      %v7854 = vsel %vm7821, %v7817, %v6082
      %v7855 = vsel %vm7821, %v7818, %v6084
      %v7856 = vsel %vm7821, %v7819, %v6087
      %v7857 = vsel %vm7821, %v7820, %v6089
      %7858 = vst [vmem:[%s332] sm:$0xff] %v7822
      %7859 = vst [vmem:[%s332 + $0x8] sm:$0xff] %v7823
      %7860 = vst [vmem:[%s332 + $0x10] sm:$0xff] %v7824
      %7861 = vst [vmem:[%s332 + $0x18] sm:$0xff] %v7825
      %7862 = vst [vmem:[%s332 + $0x20] sm:$0xff] %v7826
      %7863 = vst [vmem:[%s332 + $0x28] sm:$0xff] %v7827
      %7864 = vst [vmem:[%s332 + $0x30] sm:$0xff] %v7828
      %7865 = vst [vmem:[%s332 + $0x38] sm:$0xff] %v7829
      %7866 = vst [vmem:[%s332 + $0x40] sm:$0xff] %v7830
      %7867 = vst [vmem:[%s332 + $0x48] sm:$0xff] %v7831
      %7868 = vst [vmem:[%s332 + $0x50] sm:$0xff] %v7832
      %7869 = vst [vmem:[%s332 + $0x58] sm:$0xff] %v7833
      %7870 = vst [vmem:[%s332 + $0x60] sm:$0xff] %v7834
      %7871 = vst [vmem:[%s332 + $0x68] sm:$0xff] %v7835
      %7872 = vst [vmem:[%s332 + $0x70] sm:$0xff] %v7836
      %7873 = vst [vmem:[%s332 + $0x78] sm:$0xff] %v7837
      %7874 = vst [vmem:[%s332 + $0x80] sm:$0xff] %v7838
      %7875 = vst [vmem:[%s332 + $0x88] sm:$0xff] %v7839
      %7876 = vst [vmem:[%s332 + $0x90] sm:$0xff] %v7840
      %7877 = vst [vmem:[%s332 + $0x98] sm:$0xff] %v7841
      %7878 = vst [vmem:[%s332 + $0xa0] sm:$0xff] %v7842
      %7879 = vst [vmem:[%s332 + $0xa8] sm:$0xff] %v7843
      %7880 = vst [vmem:[%s332 + $0xb0] sm:$0xff] %v7844
      %7881 = vst [vmem:[%s332 + $0xb8] sm:$0xff] %v7845
      %7882 = vst [vmem:[%s332 + $0xc0] sm:$0xff] %v7846
      %7883 = vst [vmem:[%s332 + $0xc8] sm:$0xff] %v7847
      %7884 = vst [vmem:[%s332 + $0xd0] sm:$0xff] %v7848
      %7885 = vst [vmem:[%s332 + $0xd8] sm:$0xff] %v7849
      %7886 = vst [vmem:[%s332 + $0xe0] sm:$0xff] %v7850
      %7887 = vst [vmem:[%s332 + $0xe8] sm:$0xff] %v7851
      %7888 = vst [vmem:[%s332 + $0xf0] sm:$0xff] %v7852
      %7889 = vst [vmem:[%s332 + $0xf8] sm:$0xff] %v7853
      %7890 = vst [vmem:[%s332 + $0x100] sm:$0xff] %v7854
      %7891 = vst [vmem:[%s332 + $0x108] sm:$0xff] %v7855
      %7892 = vst [vmem:[%s332 + $0x110] sm:$0xff] %v7856
      %7893 = vst [vmem:[%s332 + $0x118] sm:$0xff] %v7857
      %p7894 = scmp.lt.s32.totalorder %s20, 1
      %s7895 = scalar_select %p7894, %s20, 1
      %s7896 = smul.addr %s7895, 36
      %s7897 = smul.addr %s7896, 8
      %s7898 = scalar_lea.vmem %s9, %s7897
      // Predicated region
      $region57: #{proposal_network_forward.1} parent=55 // pred_check
        %p7899 = pneg %p232
      $region58: #{proposal_network_forward.1} parent=55 // pred_check_branch
        %7901 = sbr.rel (%p7899) target = $region60
      $region59: #{proposal_network_forward.1} parent=55 // pred_region
        _
      $region60: #{proposal_network_forward.1} parent=55 // pred_fallthru
        _
    $region56: #{proposal_network_forward.1} parent=5 // pred_fallthru
      _
    %p7902 = scmp.le.s32.totalorder 2, %s15
    // Predicated region
    $region61: #{proposal_network_forward.1} parent=5 // pred_check
      %p7903 = pneg %p7902
    $region62: #{proposal_network_forward.1} parent=5 // pred_check_branch
      %7905 = sbr.rel (%p7903) target = $region64
    $region63: #{proposal_network_forward.1} parent=5 // pred_region
      %s7906 = ssub.s32 %s15, 2
      // Predicated region
      $region65: #{proposal_network_forward.1} parent=63 // pred_check
        %p7907 = pneg %p238
      $region66: #{proposal_network_forward.1} parent=63 // pred_check_branch
        %7909 = sbr.rel (%p7907) target = $region68
      $region67: #{proposal_network_forward.1} parent=63 // pred_region
        %p7910 = scmp.lt.s32.totalorder %s21, 1
        %s7911 = scalar_select %p7910, %s21, 1
        %s7912 = smul.addr %s7911, 36
        %s7913 = smul.addr %s7912, 8
        %s7914 = scalar_lea.vmem %s9, %s7913
      $region68: #{proposal_network_forward.1} parent=63 // pred_fallthru
        _
    $region64: #{proposal_network_forward.1} parent=5 // pred_fallthru
      _
  $region6: #{proposal_network_forward.1} parent=0 // loop_footer
    %s19 = sadd.s32 1, %s15
  $region7: #{proposal_network_forward.1} parent=0 // loop_footer_branch
    %14 = sbr.rel target = $region3
  $region8: #{proposal_network_forward.1} parent=0 // loop_exit
    _

</llo_original>
